<compile_context>
chip_gen: v5e
topology: v5e:2x2
jax: 0.10.0
libtpu: 0.0.40
codegen_flags: <defaults>
</compile_context>

<pallas_src>
import functools

import jax
import jax.numpy as jnp
from jax.experimental import pallas as pl
from jax.experimental.pallas import tpu as pltpu

FEAT_C, FEAT_H, FEAT_W = 512, 4, 4
FLAT = FEAT_C * FEAT_H * FEAT_W        # 8192
FEAT_DIM = 512
K_LAT = FEAT_DIM // 2                  # 256  (self.k)
NUM_CLASSES = 1000                     # self.n_classes == num_classes
NUM_CLASSES_PAD = 1024                 # multiple of 128 lanes
BN_EPS = 1e-5
NEG_INF = -1e30                        # padded-class logit bias (f32 only!)


# ---------------------------------------------------------------------------
# Fused kernel: feature GEMM (reduction over FLAT on the grid) + VIB head.
#   grid = (FLAT // TK,)   -- reduction axis, "arbitrary"
#   feat_ref is the resident f32 accumulator / first output; the head runs
#   once, in the epilogue of the last reduction step.
# ---------------------------------------------------------------------------
def _ir50_fused_kernel(x_ref, w1_ref, beff_ref, wst_ref, bst_ref, eps_ref,
                       wfc_ref, bfc_ref,
                       feat_ref, out_ref, mu_ref, std_ref, iden_ref):
    k = pl.program_id(0)

    @pl.when(k == 0)
    def _():
        # Initialize the resident output with the fused bias (broadcast on B).
        feat_ref[...] = jnp.broadcast_to(beff_ref[...], feat_ref.shape)

    # Hot path: stream a (TK, FEAT_DIM) bf16 slab of W_eff and accumulate
    # directly into the resident f32 output block.
    feat_ref[...] += jnp.dot(x_ref[...].astype(jnp.bfloat16), w1_ref[...],
                             preferred_element_type=jnp.float32)

    @pl.when(k == pl.num_programs(0) - 1)
    def _():
        feat = feat_ref[...]                                     # (B, 512) f32

        # st_layer: Linear(512, 2k)   (tiny, kept in f32 for fidelity)
        statis = jnp.dot(feat, wst_ref[...],
                         preferred_element_type=jnp.float32) + bst_ref[...]
        mu = statis[:, :K_LAT]
        pre = statis[:, K_LAT:] - 5.0
        # softplus, beta=1, torch threshold=20 (linear above the threshold).
        std = jnp.where(pre > 20.0, pre,
                        jnp.log(1.0 + jnp.exp(jnp.minimum(pre, 20.0))))
        mu_ref[...] = mu
        std_ref[...] = std

        # reparameterisation (eps is a deterministic input here).
        res = mu + std * eps_ref[...]

        # fc_layer: Linear(k, n_classes) + Softmax.  bfc stays f32: the
        # -1e30 padded-class bias would overflow to -inf in bf16.
        logits = jnp.dot(res, wfc_ref[...],
                         preferred_element_type=jnp.float32) + bfc_ref[...]
        m = jnp.max(logits, axis=-1, keepdims=True)
        e = jnp.exp(logits - m)                # padded lanes -> exp(-huge) == 0
        denom = jnp.sum(e, axis=-1, keepdims=True)
        out_ref[...] = e * pl.reciprocal(denom, approx=True)

        # iden = argmax over the 1024 padded lanes (padded logits never win).
        idx = jax.lax.broadcasted_iota(jnp.int32, logits.shape, 1)
        iden_ref[...] = jnp.min(jnp.where(logits == m, idx, NUM_CLASSES_PAD),
                                axis=-1, keepdims=True)


def _default_tk():
    """8192 (single reduction step) on v6e/v7x; 4096 elsewhere (v5e's 16 MiB
    default scoped VMEM cannot hold a double-buffered 8 MiB W_eff slab)."""
    try:
        kind = jax.devices()[0].device_kind.lower()
        if "v6" in kind or "v7" in kind or "7x" in kind:
            return 8192
    except Exception:
        pass
    return 4096


@functools.partial(jax.jit, static_argnames=("tk",))
def ir50_head(x_feat_map, w1_eff, b_eff, wst_t, bst, eps, wfc_t, bfc,
              *, tk=4096):
    B = x_feat_map.shape[0]
    x_flat = x_feat_map.reshape(B, FLAT)   # torch-style .view(B, -1) on NCHW

    feature, out_pad, mu, std, iden = pl.pallas_call(
        _ir50_fused_kernel,
        out_shape=(
            jax.ShapeDtypeStruct((B, FEAT_DIM), jnp.float32),        # feature
            jax.ShapeDtypeStruct((B, NUM_CLASSES_PAD), jnp.float32),  # softmax
            jax.ShapeDtypeStruct((B, K_LAT), jnp.float32),            # mu
            jax.ShapeDtypeStruct((B, K_LAT), jnp.float32),            # std
            jax.ShapeDtypeStruct((B, 1), jnp.int32),                  # iden
        ),
        grid_spec=pltpu.PrefetchScalarGridSpec(
            num_scalar_prefetch=0,
            grid=(FLAT // tk,),
            in_specs=[
                pl.BlockSpec((B, tk), lambda k: (0, k)),            # x chunk (f32)
                pl.BlockSpec((tk, FEAT_DIM), lambda k: (k, 0)),     # W_eff chunk (bf16)
                pl.BlockSpec((1, FEAT_DIM), lambda k: (0, 0)),      # fused bias
                pl.BlockSpec((FEAT_DIM, 2 * K_LAT), lambda k: (0, 0)),       # Wst^T (f32)
                pl.BlockSpec((1, 2 * K_LAT), lambda k: (0, 0)),              # bst
                pl.BlockSpec((B, K_LAT), lambda k: (0, 0)),                  # eps
                pl.BlockSpec((K_LAT, NUM_CLASSES_PAD), lambda k: (0, 0)),    # Wfc^T (f32, padded)
                pl.BlockSpec((1, NUM_CLASSES_PAD), lambda k: (0, 0)),        # bfc (padded)
            ],
            out_specs=[
                pl.BlockSpec((B, FEAT_DIM), lambda k: (0, 0)),
                pl.BlockSpec((B, NUM_CLASSES_PAD), lambda k: (0, 0)),
                pl.BlockSpec((B, K_LAT), lambda k: (0, 0)),
                pl.BlockSpec((B, K_LAT), lambda k: (0, 0)),
                pl.BlockSpec((B, 1), lambda k: (0, 0)),
            ],
        ),
        compiler_params=pltpu.CompilerParams(
            dimension_semantics=("arbitrary",)),
    )(x_flat, w1_eff, b_eff, wst_t, bst, eps, wfc_t, bfc)

    out = out_pad[:, :NUM_CLASSES]
    return feature, out, iden, mu, std


def make_params(key):
    ks = jax.random.split(key, 14)
    # BatchNorm2d(512): gamma, beta, running_mean, running_var
    g2 = 1.0 + 0.1 * jax.random.normal(ks[0], (FEAT_C,), jnp.float32)
    beta2 = 0.1 * jax.random.normal(ks[1], (FEAT_C,), jnp.float32)
    rm2 = 0.1 * jax.random.normal(ks[2], (FEAT_C,), jnp.float32)
    rv2 = jax.random.uniform(ks[3], (FEAT_C,), jnp.float32, 0.5, 1.5)
    # Linear(8192, 512)
    w1 = jax.random.normal(ks[4], (FEAT_DIM, FLAT), jnp.float32) / jnp.sqrt(FLAT)
    b1 = 0.01 * jax.random.normal(ks[5], (FEAT_DIM,), jnp.float32)
    # BatchNorm1d(512)
    g1 = 1.0 + 0.1 * jax.random.normal(ks[6], (FEAT_DIM,), jnp.float32)
    beta1 = 0.1 * jax.random.normal(ks[7], (FEAT_DIM,), jnp.float32)
    rm1 = 0.1 * jax.random.normal(ks[8], (FEAT_DIM,), jnp.float32)
    rv1 = jax.random.uniform(ks[9], (FEAT_DIM,), jnp.float32, 0.5, 1.5)
    # st_layer: Linear(512, 2k)
    wst = jax.random.normal(ks[10], (2 * K_LAT, FEAT_DIM), jnp.float32) / jnp.sqrt(FEAT_DIM)
    bst = 0.01 * jax.random.normal(ks[11], (2 * K_LAT,), jnp.float32)
    # fc_layer[0]: Linear(k, num_classes)
    wfc = jax.random.normal(ks[12], (NUM_CLASSES, K_LAT), jnp.float32) / jnp.sqrt(K_LAT)
    bfc = 0.01 * jax.random.normal(ks[13], (NUM_CLASSES,), jnp.float32)

    # ---- Fold eval-mode BatchNorms offline (exact) ----
    s2_c = g2 / jnp.sqrt(rv2 + BN_EPS)                # BN2d per-channel scale
    t2_c = beta2 - rm2 * s2_c                         # BN2d per-channel shift
    s2d = jnp.repeat(s2_c, FEAT_H * FEAT_W)           # (8192,) NCHW flatten order
    t2d = jnp.repeat(t2_c, FEAT_H * FEAT_W)           # (8192,)
    s1 = g1 / jnp.sqrt(rv1 + BN_EPS)                  # BN1d scale
    t1 = beta1 - rm1 * s1                             # BN1d shift

    # feature = ((x*s2d + t2d) @ W1.T + b1) * s1 + t1 = x @ W_eff + b_eff
    w_eff = (w1.T * s2d[:, None]) * s1[None, :]                    # (8192, 512)
    b_eff = ((t2d @ w1.T + b1) * s1 + t1).reshape(1, FEAT_DIM)     # (1, 512)

    # Pad fc to 1024 lane-dense classes; padded logits get bias -1e30 (f32!).
    wfc_t = jnp.zeros((K_LAT, NUM_CLASSES_PAD), jnp.float32)
    wfc_t = wfc_t.at[:, :NUM_CLASSES].set(wfc.T)
    bfc_p = jnp.full((1, NUM_CLASSES_PAD), NEG_INF, jnp.float32)
    bfc_p = bfc_p.at[0, :NUM_CLASSES].set(bfc)

    return dict(
        w1_eff=w_eff.astype(jnp.bfloat16),      # bf16 streaming: ~2x less HBM
        b_eff=b_eff,                            # small biases stay f32
        wst_t=wst.T,                            # tiny head weights stay f32
        bst=bst.reshape(1, 2 * K_LAT),
        wfc_t=wfc_t,
        bfc=bfc_p,
    )


if __name__ == "__main__":
    key = jax.random.PRNGKey(0)
    k_feat, k_param, k_eps = jax.random.split(key, 3)

    # NOTE: B=2 keeps the example small; real serving should batch (B >= 8)
    # to amortize the weight stream.
    B = 2
    # evolve.IR_50_64 backbone output feature map, NCHW: (B, 512, 4, 4).
    feat_map = jax.random.normal(k_feat, (B, FEAT_C, FEAT_H, FEAT_W), jnp.float32)
    p = make_params(k_param)
    # Reparameterisation noise (the torch reference draws a fresh CUDA normal;
    # here it is a deterministic jax.random normal passed as an input).
    eps = jax.random.normal(k_eps, (B, K_LAT), jnp.float32)

    tk = _default_tk()
    feature, out, iden, mu, std = ir50_head(
        feat_map, p["w1_eff"], p["b_eff"], p["wst_t"], p["bst"], eps,
        p["wfc_t"], p["bfc"], tk=tk)
    for t in (feature, out, iden, mu, std):
        jax.block_until_ready(t)

    assert feature.shape == (B, FEAT_DIM)
    assert out.shape == (B, NUM_CLASSES)
    assert iden.shape == (B, 1)
    assert mu.shape == (B, K_LAT) and std.shape == (B, K_LAT)
    print("KERNEL_OK")
</pallas_src>

<mosaic_0001>
module attributes {stable_mosaic.version = 11 : i64} {
  func.func @_ir50_fused_kernel(%arg0: i32, %arg1: memref<2x4096xf32, #tpu.memory_space<vmem>>, %arg2: memref<4096x512xbf16, #tpu.memory_space<vmem>>, %arg3: memref<1x512xf32, #tpu.memory_space<vmem>>, %arg4: memref<512x512xf32, #tpu.memory_space<vmem>>, %arg5: memref<1x512xf32, #tpu.memory_space<vmem>>, %arg6: memref<2x256xf32, #tpu.memory_space<vmem>>, %arg7: memref<256x1024xf32, #tpu.memory_space<vmem>>, %arg8: memref<1x1024xf32, #tpu.memory_space<vmem>>, %arg9: memref<2x512xf32, #tpu.memory_space<vmem>>, %arg10: memref<2x1024xf32, #tpu.memory_space<vmem>>, %arg11: memref<2x256xf32, #tpu.memory_space<vmem>>, %arg12: memref<2x256xf32, #tpu.memory_space<vmem>>, %arg13: memref<2x1xi32, #tpu.memory_space<vmem>>) attributes {dimension_semantics = [#tpu.dimension_semantics<arbitrary>], iteration_bounds = array<i64: 2>, scalar_prefetch = 0 : i64, scratch_operands = 0 : i64, tpu.core_type = #tpu.core_type<tc>, window_params = [{transform_indices = @transform_0, window_bounds = array<i64: 2, 4096>}, {transform_indices = @transform_1, window_bounds = array<i64: 4096, 512>}, {pipeline_mode = #tpu.pipeline_mode<synchronous>, transform_indices = @transform_2, window_bounds = array<i64: 1, 512>}, {pipeline_mode = #tpu.pipeline_mode<synchronous>, transform_indices = @transform_3, window_bounds = array<i64: 512, 512>}, {pipeline_mode = #tpu.pipeline_mode<synchronous>, transform_indices = @transform_4, window_bounds = array<i64: 1, 512>}, {pipeline_mode = #tpu.pipeline_mode<synchronous>, transform_indices = @transform_5, window_bounds = array<i64: 2, 256>}, {pipeline_mode = #tpu.pipeline_mode<synchronous>, transform_indices = @transform_6, window_bounds = array<i64: 256, 1024>}, {pipeline_mode = #tpu.pipeline_mode<synchronous>, transform_indices = @transform_7, window_bounds = array<i64: 1, 1024>}, {pipeline_mode = #tpu.pipeline_mode<synchronous>, transform_indices = @transform_8, window_bounds = array<i64: 2, 512>}, {pipeline_mode = #tpu.pipeline_mode<synchronous>, transform_indices = @transform_9, window_bounds = array<i64: 2, 1024>}, {pipeline_mode = #tpu.pipeline_mode<synchronous>, transform_indices = @transform_10, window_bounds = array<i64: 2, 256>}, {pipeline_mode = #tpu.pipeline_mode<synchronous>, transform_indices = @transform_11, window_bounds = array<i64: 2, 256>}, {pipeline_mode = #tpu.pipeline_mode<synchronous>, transform_indices = @transform_12, window_bounds = array<i64: 2, 1>}]} {
    %c0_i32 = arith.constant 0 : i32
    %0 = arith.cmpi eq, %arg0, %c0_i32 : i32
    %1 = arith.extui %0 : i1 to i32
    %c0_i32_0 = arith.constant 0 : i32
    %2 = arith.cmpi ne, %1, %c0_i32_0 : i32
    scf.if %2 {
      %c0_9 = arith.constant 0 : index
      %c0_10 = arith.constant 0 : index
      %13 = vector.load %arg3[%c0_9, %c0_10] : memref<1x512xf32, #tpu.memory_space<vmem>>, vector<1x512xf32>
      %14 = vector.shape_cast %13 : vector<1x512xf32> to vector<1x512xf32>
      %15 = vector.broadcast %14 : vector<1x512xf32> to vector<2x512xf32>
      %c0_11 = arith.constant 0 : index
      %c0_12 = arith.constant 0 : index
      %16 = vector.load %arg9[%c0_11, %c0_12] : memref<2x512xf32, #tpu.memory_space<vmem>>, vector<2x512xf32>
      tpu.vector_store %arg9[%c0_11, %c0_12], %15 {strides = array<i32>} : memref<2x512xf32, #tpu.memory_space<vmem>>, vector<2x512xf32>,
    } else {
    }
    %c0 = arith.constant 0 : index
    %c0_1 = arith.constant 0 : index
    %3 = vector.load %arg9[%c0, %c0_1] : memref<2x512xf32, #tpu.memory_space<vmem>>, vector<2x512xf32>
    %c0_2 = arith.constant 0 : index
    %c0_3 = arith.constant 0 : index
    %4 = vector.load %arg1[%c0_2, %c0_3] : memref<2x4096xf32, #tpu.memory_space<vmem>>, vector<2x4096xf32>
    %5 = arith.truncf %4 : vector<2x4096xf32> to vector<2x4096xbf16>
    %c0_4 = arith.constant 0 : index
    %c0_5 = arith.constant 0 : index
    %6 = vector.load %arg2[%c0_4, %c0_5] : memref<4096x512xbf16, #tpu.memory_space<vmem>>, vector<4096x512xbf16>
    %cst = arith.constant dense<0.000000e+00> : vector<2x512xf32>
    %7 = tpu.matmul %5, %6, %cst {dimension_numbers = #tpu.dot_dimension_numbers<[1], [0], [0], [1], [0, 0, 1, 1], [], []>} : vector<2x4096xbf16>, vector<4096x512xbf16>, vector<2x512xf32> -> vector<2x512xf32>
    %8 = arith.addf %3, %7 : vector<2x512xf32>
    %c0_6 = arith.constant 0 : index
    %c0_7 = arith.constant 0 : index
    %9 = vector.load %arg9[%c0_6, %c0_7] : memref<2x512xf32, #tpu.memory_space<vmem>>, vector<2x512xf32>
    tpu.vector_store %arg9[%c0_6, %c0_7], %8 {strides = array<i32>} : memref<2x512xf32, #tpu.memory_space<vmem>>, vector<2x512xf32>,
    %c1_i32 = arith.constant 1 : i32
    %10 = arith.cmpi eq, %arg0, %c1_i32 : i32
    %11 = arith.extui %10 : i1 to i32
    %c0_i32_8 = arith.constant 0 : i32
    %12 = arith.cmpi ne, %11, %c0_i32_8 : i32
    scf.if %12 {
      %c0_9 = arith.constant 0 : index
      %c0_10 = arith.constant 0 : index
      %13 = vector.load %arg9[%c0_9, %c0_10] : memref<2x512xf32, #tpu.memory_space<vmem>>, vector<2x512xf32>
      %c0_11 = arith.constant 0 : index
      %c0_12 = arith.constant 0 : index
      %14 = vector.load %arg4[%c0_11, %c0_12] : memref<512x512xf32, #tpu.memory_space<vmem>>, vector<512x512xf32>
      %cst_13 = arith.constant dense<0.000000e+00> : vector<2x512xf32>
      %15 = tpu.matmul %13, %14, %cst_13 {dimension_numbers = #tpu.dot_dimension_numbers<[1], [0], [0], [1], [0, 0, 1, 1], [], []>} : vector<2x512xf32>, vector<512x512xf32>, vector<2x512xf32> -> vector<2x512xf32>
      %c0_14 = arith.constant 0 : index
      %c0_15 = arith.constant 0 : index
      %16 = vector.load %arg5[%c0_14, %c0_15] : memref<1x512xf32, #tpu.memory_space<vmem>>, vector<1x512xf32>
      %17 = vector.broadcast %16 : vector<1x512xf32> to vector<2x512xf32>
      %18 = arith.addf %15, %17 : vector<2x512xf32>
      %19 = vector.extract_strided_slice %18 {offsets = [0, 0], sizes = [2, 256], strides = [1, 1]} : vector<2x512xf32> to vector<2x256xf32>
      %20 = vector.extract_strided_slice %18 {offsets = [0, 256], sizes = [2, 256], strides = [1, 1]} : vector<2x512xf32> to vector<2x256xf32>
      %cst_16 = arith.constant 5.000000e+00 : f32
      %21 = vector.broadcast %cst_16 : f32 to vector<2x256xf32>
      %22 = arith.subf %20, %21 : vector<2x256xf32>
      %cst_17 = arith.constant 2.000000e+01 : f32
      %23 = vector.broadcast %cst_17 : f32 to vector<2x256xf32>
      %24 = arith.cmpf ogt, %22, %23 : vector<2x256xf32>
      %cst_18 = arith.constant 2.000000e+01 : f32
      %25 = vector.broadcast %cst_18 : f32 to vector<2x256xf32>
      %26 = arith.minimumf %22, %25 : vector<2x256xf32>
      %27 = math.exp %26 : vector<2x256xf32>
      %cst_19 = arith.constant 1.000000e+00 : f32
      %28 = vector.broadcast %cst_19 : f32 to vector<2x256xf32>
      %29 = arith.addf %28, %27 : vector<2x256xf32>
      %30 = math.log %29 : vector<2x256xf32>
      %31 = arith.select %24, %22, %30 : vector<2x256xi1>, vector<2x256xf32>
      %c0_20 = arith.constant 0 : index
      %c0_21 = arith.constant 0 : index
      %32 = vector.load %arg11[%c0_20, %c0_21] : memref<2x256xf32, #tpu.memory_space<vmem>>, vector<2x256xf32>
      tpu.vector_store %arg11[%c0_20, %c0_21], %19 {strides = array<i32>} : memref<2x256xf32, #tpu.memory_space<vmem>>, vector<2x256xf32>,
      %c0_22 = arith.constant 0 : index
      %c0_23 = arith.constant 0 : index
      %33 = vector.load %arg12[%c0_22, %c0_23] : memref<2x256xf32, #tpu.memory_space<vmem>>, vector<2x256xf32>
      tpu.vector_store %arg12[%c0_22, %c0_23], %31 {strides = array<i32>} : memref<2x256xf32, #tpu.memory_space<vmem>>, vector<2x256xf32>,
      %c0_24 = arith.constant 0 : index
      %c0_25 = arith.constant 0 : index
      %34 = vector.load %arg6[%c0_24, %c0_25] : memref<2x256xf32, #tpu.memory_space<vmem>>, vector<2x256xf32>
      %35 = arith.mulf %31, %34 : vector<2x256xf32>
      %36 = arith.addf %19, %35 : vector<2x256xf32>
      %c0_26 = arith.constant 0 : index
      %c0_27 = arith.constant 0 : index
      %37 = vector.load %arg7[%c0_26, %c0_27] : memref<256x1024xf32, #tpu.memory_space<vmem>>, vector<256x1024xf32>
      %cst_28 = arith.constant dense<0.000000e+00> : vector<2x1024xf32>
      %38 = tpu.matmul %36, %37, %cst_28 {dimension_numbers = #tpu.dot_dimension_numbers<[1], [0], [0], [1], [0, 0, 1, 1], [], []>} : vector<2x256xf32>, vector<256x1024xf32>, vector<2x1024xf32> -> vector<2x1024xf32>
      %c0_29 = arith.constant 0 : index
      %c0_30 = arith.constant 0 : index
      %39 = vector.load %arg8[%c0_29, %c0_30] : memref<1x1024xf32, #tpu.memory_space<vmem>>, vector<1x1024xf32>
      %40 = vector.broadcast %39 : vector<1x1024xf32> to vector<2x1024xf32>
      %41 = arith.addf %38, %40 : vector<2x1024xf32>
      %cst_31 = arith.constant dense<0xFF800000> : vector<2xf32>
      %42 = vector.multi_reduction <maximumf>, %41, %cst_31 [1] : vector<2x1024xf32> to vector<2xf32>
      %43 = vector.shape_cast %42 : vector<2xf32> to vector<2x1xf32>
      %44 = vector.broadcast %43 : vector<2x1xf32> to vector<2x1024xf32>
      %45 = arith.subf %41, %44 : vector<2x1024xf32>
      %46 = math.exp %45 : vector<2x1024xf32>
      %cst_32 = arith.constant dense<0.000000e+00> : vector<2xf32>
      %47 = vector.multi_reduction <add>, %46, %cst_32 [1] : vector<2x1024xf32> to vector<2xf32>
      %48 = vector.shape_cast %47 : vector<2xf32> to vector<2x1xf32>
      %49 = tpu.reciprocal %48 {approx = true} : vector<2x1xf32> -> vector<2x1xf32>
      %50 = vector.broadcast %49 : vector<2x1xf32> to vector<2x1024xf32>
      %51 = arith.mulf %46, %50 : vector<2x1024xf32>
      %c0_33 = arith.constant 0 : index
      %c0_34 = arith.constant 0 : index
      %52 = vector.load %arg10[%c0_33, %c0_34] : memref<2x1024xf32, #tpu.memory_space<vmem>>, vector<2x1024xf32>
      tpu.vector_store %arg10[%c0_33, %c0_34], %51 {strides = array<i32>} : memref<2x1024xf32, #tpu.memory_space<vmem>>, vector<2x1024xf32>,
      %53 = tpu.iota {dimensions = array<i32: 1>} : vector<2x1024xi32>
      %54 = vector.broadcast %43 : vector<2x1xf32> to vector<2x1024xf32>
      %55 = arith.cmpf oeq, %41, %54 : vector<2x1024xf32>
      %c1024_i32 = arith.constant 1024 : i32
      %56 = vector.broadcast %c1024_i32 : i32 to vector<2x1024xi32>
      %57 = arith.select %55, %53, %56 : vector<2x1024xi1>, vector<2x1024xi32>
      %cst_35 = arith.constant dense<2147483647> : vector<2xi32>
      %58 = vector.multi_reduction <minsi>, %57, %cst_35 [1] : vector<2x1024xi32> to vector<2xi32>
      %59 = vector.shape_cast %58 : vector<2xi32> to vector<2x1xi32>
      %c0_36 = arith.constant 0 : index
      %c0_37 = arith.constant 0 : index
      %60 = vector.load %arg13[%c0_36, %c0_37] : memref<2x1xi32, #tpu.memory_space<vmem>>, vector<2x1xi32>
      tpu.vector_store %arg13[%c0_36, %c0_37], %59 {strides = array<i32>} : memref<2x1xi32, #tpu.memory_space<vmem>>, vector<2x1xi32>,
    } else {
    }
    return
  }
  func.func @transform_0(%arg0: i32) -> (i32, i32) {
    %c0_i32 = arith.constant 0 : i32
    %c0_i32_0 = arith.constant 0 : i32
    return %c0_i32, %arg0 : i32, i32
  }
  func.func @transform_1(%arg0: i32) -> (i32, i32) {
    %c0_i32 = arith.constant 0 : i32
    %c0_i32_0 = arith.constant 0 : i32
    return %arg0, %c0_i32 : i32, i32
  }
  func.func @transform_2(%arg0: i32) -> (i32, i32) {
    %c0_i32 = arith.constant 0 : i32
    %c0_i32_0 = arith.constant 0 : i32
    %c0_i32_1 = arith.constant 0 : i32
    return %c0_i32, %c0_i32_0 : i32, i32
  }
  func.func @transform_3(%arg0: i32) -> (i32, i32) {
    %c0_i32 = arith.constant 0 : i32
    %c0_i32_0 = arith.constant 0 : i32
    %c0_i32_1 = arith.constant 0 : i32
    return %c0_i32, %c0_i32_0 : i32, i32
  }
  func.func @transform_4(%arg0: i32) -> (i32, i32) {
    %c0_i32 = arith.constant 0 : i32
    %c0_i32_0 = arith.constant 0 : i32
    %c0_i32_1 = arith.constant 0 : i32
    return %c0_i32, %c0_i32_0 : i32, i32
  }
  func.func @transform_5(%arg0: i32) -> (i32, i32) {
    %c0_i32 = arith.constant 0 : i32
    %c0_i32_0 = arith.constant 0 : i32
    %c0_i32_1 = arith.constant 0 : i32
    return %c0_i32, %c0_i32_0 : i32, i32
  }
  func.func @transform_6(%arg0: i32) -> (i32, i32) {
    %c0_i32 = arith.constant 0 : i32
    %c0_i32_0 = arith.constant 0 : i32
    %c0_i32_1 = arith.constant 0 : i32
    return %c0_i32, %c0_i32_0 : i32, i32
  }
  func.func @transform_7(%arg0: i32) -> (i32, i32) {
    %c0_i32 = arith.constant 0 : i32
    %c0_i32_0 = arith.constant 0 : i32
    %c0_i32_1 = arith.constant 0 : i32
    return %c0_i32, %c0_i32_0 : i32, i32
  }
  func.func @transform_8(%arg0: i32) -> (i32, i32) {
    %c0_i32 = arith.constant 0 : i32
    %c0_i32_0 = arith.constant 0 : i32
    %c0_i32_1 = arith.constant 0 : i32
    return %c0_i32, %c0_i32_0 : i32, i32
  }
  func.func @transform_9(%arg0: i32) -> (i32, i32) {
    %c0_i32 = arith.constant 0 : i32
    %c0_i32_0 = arith.constant 0 : i32
    %c0_i32_1 = arith.constant 0 : i32
    return %c0_i32, %c0_i32_0 : i32, i32
  }
  func.func @transform_10(%arg0: i32) -> (i32, i32) {
    %c0_i32 = arith.constant 0 : i32
    %c0_i32_0 = arith.constant 0 : i32
    %c0_i32_1 = arith.constant 0 : i32
    return %c0_i32, %c0_i32_0 : i32, i32
  }
  func.func @transform_11(%arg0: i32) -> (i32, i32) {
    %c0_i32 = arith.constant 0 : i32
    %c0_i32_0 = arith.constant 0 : i32
    %c0_i32_1 = arith.constant 0 : i32
    return %c0_i32, %c0_i32_0 : i32, i32
  }
  func.func @transform_12(%arg0: i32) -> (i32, i32) {
    %c0_i32 = arith.constant 0 : i32
    %c0_i32_0 = arith.constant 0 : i32
    %c0_i32_1 = arith.constant 0 : i32
    return %c0_i32, %c0_i32_0 : i32, i32
  }
}

</mosaic_0001>

<llo_original>
// kernel: ir50_head.1
$region0: #{ir50_head.1}
  #allocation0 [shape = 'u32[]', space=smem, size = 0x4, offset = 0x4, fixed_abs, tag = 'smem constant byte address 0x4 - core index']
  #allocation1 [shape = 'u32[72,128]{1,0:T(1,128)}', space=vmem, size = 0x9000, scoped, tag = 'internal scratch']
  %s0 = inlined_call_operand.vmem [shape: f32[2,8192], index: 0, kind: input, shape index: {}]
  %s1 = inlined_call_operand.hbm [shape: bf16[8192,512], index: 1, kind: input, shape index: {}]
  %s2 = inlined_call_operand.hbm [shape: f32[1,512], index: 2, kind: input, shape index: {}]
  %s3 = inlined_call_operand.hbm [shape: f32[512,512], index: 3, kind: input, shape index: {}]
  %s4 = inlined_call_operand.hbm [shape: f32[1,512], index: 4, kind: input, shape index: {}]
  %s5 = inlined_call_operand.hbm [shape: f32[2,256], index: 5, kind: input, shape index: {}]
  %s6 = inlined_call_operand.hbm [shape: f32[256,1024], index: 6, kind: input, shape index: {}]
  %s7 = inlined_call_operand.hbm [shape: f32[1,1024], index: 7, kind: input, shape index: {}]
  %s8 = inlined_call_operand.hbm [shape: f32[2,512], index: 8, kind: output, shape index: {0}]
  %s9 = inlined_call_operand.hbm [shape: f32[2,1024], index: 9, kind: output, shape index: {1}]
  %s10 = inlined_call_operand.hbm [shape: f32[2,256], index: 10, kind: output, shape index: {2}]
  %s11 = inlined_call_operand.hbm [shape: f32[2,256], index: 11, kind: output, shape index: {3}]
  %s12 = inlined_call_operand.vmem [shape: s32[2,1], index: 12, kind: output, shape index: {4}]
  %13 = xla_tuple %s8, %s9, %s10, %s11, %s12
  %s14 = sld [smem:[#allocation0]]
  $region133: #{ir50_head.1} parent=0
    _
  %s16 = ssub.s32 1, %s14
  %s17 = scalar_select 0, %s16, %s14
  $region1: #{ir50_head.1} parent=0
    #allocation2 [shape = 'u8[8388608]{0}', space=vmem, size = 0x800000, scoped, tag = 'input window, operand 1']
    #allocation3 [shape = 's32[2]{0}', space=sflag, size = 0x8, scoped, tag = 'scoped memory for ir50_head.1']
    #allocation4 [shape = 's32[2]{0}', space=sflag, size = 0x8, scoped, tag = 'scoped memory for ir50_head.1']
    #allocation5 [shape = 'u8[2048]{0}', space=vmem, size = 0x800, scoped, tag = 'input window, operand 2, single buffered']
    #allocation6 [shape = 's32[1]{0}', space=sflag, size = 0x4, scoped, tag = 'scoped memory for ir50_head.1']
    #allocation7 [shape = 'u8[1048576]{0}', space=vmem, size = 0x100000, scoped, tag = 'input window, operand 3, single buffered']
    #allocation8 [shape = 'u8[2048]{0}', space=vmem, size = 0x800, scoped, tag = 'input window, operand 4, single buffered']
    #allocation9 [shape = 's32[1]{0}', space=sflag, size = 0x4, scoped, tag = 'scoped memory for ir50_head.1']
    #allocation10 [shape = 'u8[2048]{0}', space=vmem, size = 0x800, scoped, tag = 'input window, operand 5, single buffered']
    #allocation11 [shape = 'u8[1048576]{0}', space=vmem, size = 0x100000, scoped, tag = 'input window, operand 6, single buffered']
    #allocation12 [shape = 's32[1]{0}', space=sflag, size = 0x4, scoped, tag = 'scoped memory for ir50_head.1']
    #allocation13 [shape = 'u8[4096]{0}', space=vmem, size = 0x1000, scoped, tag = 'input window, operand 7, single buffered']
    #allocation14 [shape = 'u8[4096]{0}', space=vmem, size = 0x1000, scoped, tag = 'output window, operand 0, single buffered']
    #allocation15 [shape = 'u8[8192]{0}', space=vmem, size = 0x2000, scoped, tag = 'output window, operand 1, single buffered']
    #allocation16 [shape = 's32[1]{0}', space=sflag, size = 0x4, scoped, tag = 'scoped memory for ir50_head.1']
    #allocation17 [shape = 'u8[2048]{0}', space=vmem, size = 0x800, scoped, tag = 'output window, operand 2, single buffered']
    #allocation18 [shape = 'u8[2048]{0}', space=vmem, size = 0x800, scoped, tag = 'output window, operand 3, single buffered']
    #allocation19 [shape = 's32[1]{0}', space=sflag, size = 0x4, scoped, tag = 'scoped memory for ir50_head.1']
    %18 = vsyncpa [#allocation3], 0
    %s19 = scalar_lea.sflag [#allocation3], 1
    %20 = vsyncpa %s19, 0
    %21 = vsyncpa [#allocation6], 0
    %22 = vsyncpa [#allocation9], 0
    %23 = vsyncpa [#allocation12], 0
    %24 = vsyncpa [#allocation4], 0
    %25 = vsyncpa [#allocation16], 0
    %26 = vsyncpa [#allocation19], 0
    loop: start=0, step=1, limit=4
    $region2: #{ir50_head.1} parent=1 // loop_pre_header
      _
    $region3: #{ir50_head.1} parent=1 // loop_header
      %s28 = sphi 0, %s32
      %p29 = scmp.ge.s32.totalorder %s28, 4
      %s38 = sphi 0, %s40
      %s41 = sphi 0, %s38
      %s42 = sphi 0, %s41
      %s58 = sphi 0, %s42
      %s64 = sphi 0, %s66
      %s67 = sphi 0, %s64
      %s68 = sphi 0, %s67
      %s84 = sphi 0, %s68
      %s88 = sphi 0, %s88
      %s90 = sphi 0, %s88
      %s91 = sphi 0, %s90
      %s105 = sphi 0, %s91
      %s109 = sphi 0, %s109
      %s111 = sphi 0, %s109
      %s112 = sphi 0, %s111
      %s126 = sphi 0, %s112
      %s130 = sphi 0, %s130
      %s132 = sphi 0, %s130
      %s133 = sphi 0, %s132
      %s147 = sphi 0, %s133
      %s151 = sphi 0, %s151
      %s153 = sphi 0, %s151
      %s154 = sphi 0, %s153
      %s168 = sphi 0, %s154
      %s172 = sphi 0, %s172
      %s174 = sphi 0, %s172
      %s175 = sphi 0, %s174
      %s189 = sphi 0, %s175
      %s193 = sphi 0, %s193
      %s195 = sphi 0, %s193
      %s196 = sphi 0, %s195
      %s210 = sphi 0, %s196
      %s214 = sphi 0, %s214
      %s216 = sphi 0, %s214
      %s217 = sphi 0, %s216
      %s231 = sphi 0, %s217
      %s235 = sphi 0, %s235
      %s237 = sphi 0, %s235
      %s238 = sphi 0, %s237
      %s252 = sphi 0, %s238
      %s256 = sphi 0, %s256
      %s258 = sphi 0, %s256
      %s259 = sphi 0, %s258
      %s273 = sphi 0, %s259
      %s277 = sphi 0, %s277
      %s279 = sphi 0, %s277
      %s280 = sphi 0, %s279
      %s294 = sphi 0, %s280
      %s298 = sphi 0, %s298
      %s300 = sphi 0, %s298
      %s301 = sphi 0, %s300
      %s315 = sphi 0, %s301
    $region4: #{ir50_head.1} parent=1 // loop_header_branch
      %31 = sbr.rel (%p29) target = $region8
    $region5: #{ir50_head.1} parent=1 // loop_body
      %s33 = ssub.s32 %s28, 1
      %s34 = ssub.s32 %s28, 2
      %s35 = sadd.s32 %s28, 1
      %s36 = ssub.s32 %s28, %s35
      %p37 = scmp.eq.s32.totalorder %s36, 0
      %s39 = sadd.s32 %s38, 1
      %s40 = scalar_select %p37, %s38, %s39
      %p43 = pneg %p37
      %p44 = scmp.eq.s32.totalorder %s28, 1
      %p45 = por %p43, %p44
      %p46 = scmp.ne.s32.totalorder %s38, %s41
      %p47 = scmp.eq.s32.totalorder %s28, 0
      %p48 = por %p46, %p47
      %p49 = scmp.ne.s32.totalorder %s38, %s41
      %p50 = scmp.eq.s32.totalorder %s33, 1
      %p51 = por %p49, %p50
      %p52 = scmp.ne.s32.totalorder %s41, %s42
      %p53 = scmp.eq.s32.totalorder %s33, 0
      %p54 = por %p52, %p53
      %p55 = scmp.ne.s32.totalorder %s41, %s42
      %p56 = scmp.eq.s32.totalorder %s34, 1
      %p57 = por %p55, %p56
      %p59 = scmp.ne.s32.totalorder %s42, %s58
      %p60 = scmp.eq.s32.totalorder %s34, 0
      %p61 = por %p59, %p60
      %s62 = ssub.s32 %s28, %s35
      %p63 = scmp.eq.s32.totalorder %s62, 0
      %s65 = sadd.s32 %s64, 1
      %s66 = scalar_select %p63, %s64, %s65
      %p69 = pneg %p63
      %p70 = scmp.eq.s32.totalorder %s28, 1
      %p71 = por %p69, %p70
      %p72 = scmp.ne.s32.totalorder %s64, %s67
      %p73 = scmp.eq.s32.totalorder %s28, 0
      %p74 = por %p72, %p73
      %p75 = scmp.ne.s32.totalorder %s64, %s67
      %p76 = scmp.eq.s32.totalorder %s33, 1
      %p77 = por %p75, %p76
      %p78 = scmp.ne.s32.totalorder %s67, %s68
      %p79 = scmp.eq.s32.totalorder %s33, 0
      %p80 = por %p78, %p79
      %p81 = scmp.ne.s32.totalorder %s67, %s68
      %p82 = scmp.eq.s32.totalorder %s34, 1
      %p83 = por %p81, %p82
      %p85 = scmp.ne.s32.totalorder %s68, %s84
      %p86 = scmp.eq.s32.totalorder %s34, 0
      %p87 = por %p85, %p86
      %s89 = sadd.s32 %s88, 1
      %p92 = scmp.eq.s32.totalorder %s28, 1
      %p93 = scmp.ne.s32.totalorder %s88, %s90
      %p94 = scmp.eq.s32.totalorder %s28, 0
      %p95 = por %p93, %p94
      %p96 = scmp.ne.s32.totalorder %s88, %s90
      %p97 = scmp.eq.s32.totalorder %s33, 1
      %p98 = por %p96, %p97
      %p99 = scmp.ne.s32.totalorder %s90, %s91
      %p100 = scmp.eq.s32.totalorder %s33, 0
      %p101 = por %p99, %p100
      %p102 = scmp.ne.s32.totalorder %s90, %s91
      %p103 = scmp.eq.s32.totalorder %s34, 1
      %p104 = por %p102, %p103
      %p106 = scmp.ne.s32.totalorder %s91, %s105
      %p107 = scmp.eq.s32.totalorder %s34, 0
      %p108 = por %p106, %p107
      %s110 = sadd.s32 %s109, 1
      %p113 = scmp.eq.s32.totalorder %s28, 1
      %p114 = scmp.ne.s32.totalorder %s109, %s111
      %p115 = scmp.eq.s32.totalorder %s28, 0
      %p116 = por %p114, %p115
      %p117 = scmp.ne.s32.totalorder %s109, %s111
      %p118 = scmp.eq.s32.totalorder %s33, 1
      %p119 = por %p117, %p118
      %p120 = scmp.ne.s32.totalorder %s111, %s112
      %p121 = scmp.eq.s32.totalorder %s33, 0
      %p122 = por %p120, %p121
      %p123 = scmp.ne.s32.totalorder %s111, %s112
      %p124 = scmp.eq.s32.totalorder %s34, 1
      %p125 = por %p123, %p124
      %p127 = scmp.ne.s32.totalorder %s112, %s126
      %p128 = scmp.eq.s32.totalorder %s34, 0
      %p129 = por %p127, %p128
      %s131 = sadd.s32 %s130, 1
      %p134 = scmp.eq.s32.totalorder %s28, 1
      %p135 = scmp.ne.s32.totalorder %s130, %s132
      %p136 = scmp.eq.s32.totalorder %s28, 0
      %p137 = por %p135, %p136
      %p138 = scmp.ne.s32.totalorder %s130, %s132
      %p139 = scmp.eq.s32.totalorder %s33, 1
      %p140 = por %p138, %p139
      %p141 = scmp.ne.s32.totalorder %s132, %s133
      %p142 = scmp.eq.s32.totalorder %s33, 0
      %p143 = por %p141, %p142
      %p144 = scmp.ne.s32.totalorder %s132, %s133
      %p145 = scmp.eq.s32.totalorder %s34, 1
      %p146 = por %p144, %p145
      %p148 = scmp.ne.s32.totalorder %s133, %s147
      %p149 = scmp.eq.s32.totalorder %s34, 0
      %p150 = por %p148, %p149
      %s152 = sadd.s32 %s151, 1
      %p155 = scmp.eq.s32.totalorder %s28, 1
      %p156 = scmp.ne.s32.totalorder %s151, %s153
      %p157 = scmp.eq.s32.totalorder %s28, 0
      %p158 = por %p156, %p157
      %p159 = scmp.ne.s32.totalorder %s151, %s153
      %p160 = scmp.eq.s32.totalorder %s33, 1
      %p161 = por %p159, %p160
      %p162 = scmp.ne.s32.totalorder %s153, %s154
      %p163 = scmp.eq.s32.totalorder %s33, 0
      %p164 = por %p162, %p163
      %p165 = scmp.ne.s32.totalorder %s153, %s154
      %p166 = scmp.eq.s32.totalorder %s34, 1
      %p167 = por %p165, %p166
      %p169 = scmp.ne.s32.totalorder %s154, %s168
      %p170 = scmp.eq.s32.totalorder %s34, 0
      %p171 = por %p169, %p170
      %s173 = sadd.s32 %s172, 1
      %p176 = scmp.eq.s32.totalorder %s28, 1
      %p177 = scmp.ne.s32.totalorder %s172, %s174
      %p178 = scmp.eq.s32.totalorder %s28, 0
      %p179 = por %p177, %p178
      %p180 = scmp.ne.s32.totalorder %s172, %s174
      %p181 = scmp.eq.s32.totalorder %s33, 1
      %p182 = por %p180, %p181
      %p183 = scmp.ne.s32.totalorder %s174, %s175
      %p184 = scmp.eq.s32.totalorder %s33, 0
      %p185 = por %p183, %p184
      %p186 = scmp.ne.s32.totalorder %s174, %s175
      %p187 = scmp.eq.s32.totalorder %s34, 1
      %p188 = por %p186, %p187
      %p190 = scmp.ne.s32.totalorder %s175, %s189
      %p191 = scmp.eq.s32.totalorder %s34, 0
      %p192 = por %p190, %p191
      %s194 = sadd.s32 %s193, 1
      %p197 = scmp.eq.s32.totalorder %s28, 1
      %p198 = scmp.ne.s32.totalorder %s193, %s195
      %p199 = scmp.eq.s32.totalorder %s28, 0
      %p200 = por %p198, %p199
      %p201 = scmp.ne.s32.totalorder %s193, %s195
      %p202 = scmp.eq.s32.totalorder %s33, 1
      %p203 = por %p201, %p202
      %p204 = scmp.ne.s32.totalorder %s195, %s196
      %p205 = scmp.eq.s32.totalorder %s33, 0
      %p206 = por %p204, %p205
      %p207 = scmp.ne.s32.totalorder %s195, %s196
      %p208 = scmp.eq.s32.totalorder %s34, 1
      %p209 = por %p207, %p208
      %p211 = scmp.ne.s32.totalorder %s196, %s210
      %p212 = scmp.eq.s32.totalorder %s34, 0
      %p213 = por %p211, %p212
      %s215 = sadd.s32 %s214, 1
      %p218 = scmp.eq.s32.totalorder %s28, 1
      %p219 = scmp.ne.s32.totalorder %s214, %s216
      %p220 = scmp.eq.s32.totalorder %s28, 0
      %p221 = por %p219, %p220
      %p222 = scmp.ne.s32.totalorder %s214, %s216
      %p223 = scmp.eq.s32.totalorder %s33, 1
      %p224 = por %p222, %p223
      %p225 = scmp.ne.s32.totalorder %s216, %s217
      %p226 = scmp.eq.s32.totalorder %s33, 0
      %p227 = por %p225, %p226
      %p228 = scmp.ne.s32.totalorder %s216, %s217
      %p229 = scmp.eq.s32.totalorder %s34, 1
      %p230 = por %p228, %p229
      %p232 = scmp.ne.s32.totalorder %s217, %s231
      %p233 = scmp.eq.s32.totalorder %s34, 0
      %p234 = por %p232, %p233
      %s236 = sadd.s32 %s235, 1
      %p239 = scmp.eq.s32.totalorder %s28, 1
      %p240 = scmp.ne.s32.totalorder %s235, %s237
      %p241 = scmp.eq.s32.totalorder %s28, 0
      %p242 = por %p240, %p241
      %p243 = scmp.ne.s32.totalorder %s235, %s237
      %p244 = scmp.eq.s32.totalorder %s33, 1
      %p245 = por %p243, %p244
      %p246 = scmp.ne.s32.totalorder %s237, %s238
      %p247 = scmp.eq.s32.totalorder %s33, 0
      %p248 = por %p246, %p247
      %p249 = scmp.ne.s32.totalorder %s237, %s238
      %p250 = scmp.eq.s32.totalorder %s34, 1
      %p251 = por %p249, %p250
      %p253 = scmp.ne.s32.totalorder %s238, %s252
      %p254 = scmp.eq.s32.totalorder %s34, 0
      %p255 = por %p253, %p254
      %s257 = sadd.s32 %s256, 1
      %p260 = scmp.eq.s32.totalorder %s28, 1
      %p261 = scmp.ne.s32.totalorder %s256, %s258
      %p262 = scmp.eq.s32.totalorder %s28, 0
      %p263 = por %p261, %p262
      %p264 = scmp.ne.s32.totalorder %s256, %s258
      %p265 = scmp.eq.s32.totalorder %s33, 1
      %p266 = por %p264, %p265
      %p267 = scmp.ne.s32.totalorder %s258, %s259
      %p268 = scmp.eq.s32.totalorder %s33, 0
      %p269 = por %p267, %p268
      %p270 = scmp.ne.s32.totalorder %s258, %s259
      %p271 = scmp.eq.s32.totalorder %s34, 1
      %p272 = por %p270, %p271
      %p274 = scmp.ne.s32.totalorder %s259, %s273
      %p275 = scmp.eq.s32.totalorder %s34, 0
      %p276 = por %p274, %p275
      %s278 = sadd.s32 %s277, 1
      %p281 = scmp.eq.s32.totalorder %s28, 1
      %p282 = scmp.ne.s32.totalorder %s277, %s279
      %p283 = scmp.eq.s32.totalorder %s28, 0
      %p284 = por %p282, %p283
      %p285 = scmp.ne.s32.totalorder %s277, %s279
      %p286 = scmp.eq.s32.totalorder %s33, 1
      %p287 = por %p285, %p286
      %p288 = scmp.ne.s32.totalorder %s279, %s280
      %p289 = scmp.eq.s32.totalorder %s33, 0
      %p290 = por %p288, %p289
      %p291 = scmp.ne.s32.totalorder %s279, %s280
      %p292 = scmp.eq.s32.totalorder %s34, 1
      %p293 = por %p291, %p292
      %p295 = scmp.ne.s32.totalorder %s280, %s294
      %p296 = scmp.eq.s32.totalorder %s34, 0
      %p297 = por %p295, %p296
      %s299 = sadd.s32 %s298, 1
      %p302 = scmp.eq.s32.totalorder %s28, 1
      %p303 = scmp.ne.s32.totalorder %s298, %s300
      %p304 = scmp.eq.s32.totalorder %s28, 0
      %p305 = por %p303, %p304
      %p306 = scmp.ne.s32.totalorder %s298, %s300
      %p307 = scmp.eq.s32.totalorder %s33, 1
      %p308 = por %p306, %p307
      %p309 = scmp.ne.s32.totalorder %s300, %s301
      %p310 = scmp.eq.s32.totalorder %s33, 0
      %p311 = por %p309, %p310
      %p312 = scmp.ne.s32.totalorder %s300, %s301
      %p313 = scmp.eq.s32.totalorder %s34, 1
      %p314 = por %p312, %p313
      %p316 = scmp.ne.s32.totalorder %s301, %s315
      %p317 = scmp.eq.s32.totalorder %s34, 0
      %p318 = por %p316, %p317
      %p319 = scmp.le.s32.totalorder 1, %s28
      %p320 = scmp.lt.s32.totalorder %s28, 3
      %p321 = pnand %p319, %p320
      %p322 = pneg %p321
      // Predicated region
      $region9: #{ir50_head.1} parent=5 // pred_check
        _
      $region10: #{ir50_head.1} parent=5 // pred_check_branch
        %324 = sbr.rel (%p321) target = $region12
      $region11: #{ir50_head.1} parent=5 // pred_region
        %s325 = ssub.s32 %s28, 1
        // Predicated region
        $region13: #{ir50_head.1} parent=11 // pred_check
          %p326 = pneg %p101
        $region14: #{ir50_head.1} parent=11 // pred_check_branch
          %328 = sbr.rel (%p326) target = $region16
        $region15: #{ir50_head.1} parent=11 // pred_region
          %330 = vsyncadd [#allocation6], 0
          %s332 = sshll.u32 %s2, 4
          %s333 = int_to_ptr.hbm [resolvable:$true] %s332
          %s334 = sshll.u32 [#allocation5], 4
          %s335 = int_to_ptr.vmem [resolvable:$true] %s334
          %337 = dma.hbm_to_vmem [thread:$0]  %s333, 64, %s335, [#allocation6]
        $region16: #{ir50_head.1} parent=11 // pred_fallthru
          _
        // Predicated region
        $region17: #{ir50_head.1} parent=11 // pred_check
          %p338 = pneg %p122
        $region18: #{ir50_head.1} parent=11 // pred_check_branch
          %340 = sbr.rel (%p338) target = $region20
        $region19: #{ir50_head.1} parent=11 // pred_region
          %342 = vsyncadd [#allocation6], 0
          %s343 = sshll.u32 %s3, 4
          %s344 = int_to_ptr.hbm [resolvable:$true] %s343
          %s345 = sshll.u32 [#allocation7], 4
          %s346 = int_to_ptr.vmem [resolvable:$true] %s345
          %351 = dma.hbm_to_vmem [thread:$0]  %s344, 32768, %s346, [#allocation6], 512, 512, 32
        $region20: #{ir50_head.1} parent=11 // pred_fallthru
          _
        // Predicated region
        $region21: #{ir50_head.1} parent=11 // pred_check
          %p352 = pneg %p143
        $region22: #{ir50_head.1} parent=11 // pred_check_branch
          %354 = sbr.rel (%p352) target = $region24
        $region23: #{ir50_head.1} parent=11 // pred_region
          %356 = vsyncadd [#allocation9], 0
          %s358 = sshll.u32 %s4, 4
          %s359 = int_to_ptr.hbm [resolvable:$true] %s358
          %s360 = sshll.u32 [#allocation8], 4
          %s361 = int_to_ptr.vmem [resolvable:$true] %s360
          %363 = dma.hbm_to_vmem [thread:$0]  %s359, 64, %s361, [#allocation9]
        $region24: #{ir50_head.1} parent=11 // pred_fallthru
          _
        // Predicated region
        $region25: #{ir50_head.1} parent=11 // pred_check
          %p364 = pneg %p164
        $region26: #{ir50_head.1} parent=11 // pred_check_branch
          %366 = sbr.rel (%p364) target = $region28
        $region27: #{ir50_head.1} parent=11 // pred_region
          %368 = vsyncadd [#allocation9], 0
          %s370 = sshll.u32 %s5, 4
          %s371 = int_to_ptr.hbm [resolvable:$true] %s370
          %s372 = sshll.u32 [#allocation10], 4
          %s373 = int_to_ptr.vmem [resolvable:$true] %s372
          %375 = dma.hbm_to_vmem [thread:$0]  %s371, 64, %s373, [#allocation9]
        $region28: #{ir50_head.1} parent=11 // pred_fallthru
          _
        // Predicated region
        $region29: #{ir50_head.1} parent=11 // pred_check
          %p376 = pneg %p185
        $region30: #{ir50_head.1} parent=11 // pred_check_branch
          %378 = sbr.rel (%p376) target = $region32
        $region31: #{ir50_head.1} parent=11 // pred_region
          %380 = vsyncadd [#allocation12], 0
          %s381 = sshll.u32 %s6, 4
          %s382 = int_to_ptr.hbm [resolvable:$true] %s381
          %s383 = sshll.u32 [#allocation11], 4
          %s384 = int_to_ptr.vmem [resolvable:$true] %s383
          %389 = dma.hbm_to_vmem [thread:$0]  %s382, 32768, %s384, [#allocation12], 1024, 1024, 64
        $region32: #{ir50_head.1} parent=11 // pred_fallthru
          _
        // Predicated region
        $region33: #{ir50_head.1} parent=11 // pred_check
          %p390 = pneg %p206
        $region34: #{ir50_head.1} parent=11 // pred_check_branch
          %392 = sbr.rel (%p390) target = $region36
        $region35: #{ir50_head.1} parent=11 // pred_region
          %394 = vsyncadd [#allocation12], 0
          %s396 = sshll.u32 %s7, 4
          %s397 = int_to_ptr.hbm [resolvable:$true] %s396
          %s398 = sshll.u32 [#allocation13], 4
          %s399 = int_to_ptr.vmem [resolvable:$true] %s398
          %401 = dma.hbm_to_vmem [thread:$0]  %s397, 128, %s399, [#allocation12]
        $region36: #{ir50_head.1} parent=11 // pred_fallthru
          _
      $region12: #{ir50_head.1} parent=5 // pred_fallthru
        _
      %p402 = scmp.lt.s32.totalorder %s28, 2
      // Predicated region
      $region37: #{ir50_head.1} parent=5 // pred_check
        %p403 = pneg %p402
      $region38: #{ir50_head.1} parent=5 // pred_check_branch
        %405 = sbr.rel (%p403) target = $region40
      $region39: #{ir50_head.1} parent=5 // pred_region
        // Predicated region
        $region41: #{ir50_head.1} parent=39 // pred_check
          %p406 = pneg %p48
        $region42: #{ir50_head.1} parent=39 // pred_check_branch
          %408 = sbr.rel (%p406) target = $region44
        $region43: #{ir50_head.1} parent=39 // pred_region
          %s409 = smul.u32 32, %s28
          %p410 = scmp.lt.s32.totalorder %s409, 63
          %s411 = scalar_select %p410, %s409, 63
          %s412 = smul.addr %s411, 2
          %s413 = scalar_lea.vmem %s0, %s412
          %s414 = smul.u32 32, %s28
        $region44: #{ir50_head.1} parent=39 // pred_fallthru
          _
        // Predicated region
        $region45: #{ir50_head.1} parent=39 // pred_check
          %p415 = pneg %p74
        $region46: #{ir50_head.1} parent=39 // pred_check_branch
          %417 = sbr.rel (%p415) target = $region48
        $region47: #{ir50_head.1} parent=39 // pred_region
          %s418 = sand.u32 %s64, 1
          %s419 = scalar_lea.sflag [#allocation3], %s418
          %s420 = sand.u32 %s64, 1
          %s421 = smul.addr %s420, 8192
          %s422 = scalar_lea.vmem [#allocation2], %s421
          %s423 = smul.u32 512, %s28
          %425 = vsyncadd %s419, 0
          %s426 = smul.addr %s423, 4
          %s427 = smul.addr %s426, 4
          %s428 = scalar_lea.hbm %s1, %s427
          %s429 = sshll.u32 %s428, 4
          %s430 = int_to_ptr.hbm [resolvable:$true] %s429
          %s431 = sshll.u32 %s422, 4
          %s432 = int_to_ptr.vmem [resolvable:$true] %s431
          %437 = dma.hbm_to_vmem [thread:$0]  %s430, 131072, %s432, %s419, 256, 256, 16
        $region48: #{ir50_head.1} parent=39 // pred_fallthru
          _
      $region40: #{ir50_head.1} parent=5 // pred_fallthru
        _
      %p438 = scmp.le.s32.totalorder 1, %s28
      %p439 = scmp.lt.s32.totalorder %s28, 3
      %p440 = pnand %p438, %p439
      %p441 = pneg %p440
      // Predicated region
      $region49: #{ir50_head.1} parent=5 // pred_check
        _
      $region50: #{ir50_head.1} parent=5 // pred_check_branch
        %443 = sbr.rel (%p440) target = $region52
      $region51: #{ir50_head.1} parent=5 // pred_region
        %s444 = ssub.s32 %s28, 1
        %s445 = sand.u32 %s67, 1
        %s446 = scalar_lea.sflag [#allocation3], %s445
        %s447 = sand.u32 %s67, 1
        %s448 = smul.addr %s447, 8192
        %s449 = scalar_lea.vmem [#allocation2], %s448
        // Predicated region
        $region53: #{ir50_head.1} parent=51 // pred_check
          %p450 = pneg %p80
        $region54: #{ir50_head.1} parent=51 // pred_check_branch
          %452 = sbr.rel (%p450) target = $region56
        $region55: #{ir50_head.1} parent=51 // pred_region
          %454 = dma.done %s446, 131072
        $region56: #{ir50_head.1} parent=51 // pred_fallthru
          _
        // Predicated region
        $region57: #{ir50_head.1} parent=51 // pred_check
          %p455 = pneg %p101
        $region58: #{ir50_head.1} parent=51 // pred_check_branch
          %457 = sbr.rel (%p455) target = $region60
        $region59: #{ir50_head.1} parent=51 // pred_region
          %459 = dma.done [#allocation6], 64
        $region60: #{ir50_head.1} parent=51 // pred_fallthru
          _
        // Predicated region
        $region61: #{ir50_head.1} parent=51 // pred_check
          %p460 = pneg %p122
        $region62: #{ir50_head.1} parent=51 // pred_check_branch
          %462 = sbr.rel (%p460) target = $region64
        $region63: #{ir50_head.1} parent=51 // pred_region
          %464 = dma.done [#allocation6], 32768
        $region64: #{ir50_head.1} parent=51 // pred_fallthru
          _
        // Predicated region
        $region65: #{ir50_head.1} parent=51 // pred_check
          %p465 = pneg %p143
        $region66: #{ir50_head.1} parent=51 // pred_check_branch
          %467 = sbr.rel (%p465) target = $region68
        $region67: #{ir50_head.1} parent=51 // pred_region
          %469 = dma.done [#allocation9], 64
        $region68: #{ir50_head.1} parent=51 // pred_fallthru
          _
        // Predicated region
        $region69: #{ir50_head.1} parent=51 // pred_check
          %p470 = pneg %p164
        $region70: #{ir50_head.1} parent=51 // pred_check_branch
          %472 = sbr.rel (%p470) target = $region72
        $region71: #{ir50_head.1} parent=51 // pred_region
          %474 = dma.done [#allocation9], 64
        $region72: #{ir50_head.1} parent=51 // pred_fallthru
          _
        // Predicated region
        $region73: #{ir50_head.1} parent=51 // pred_check
          %p475 = pneg %p185
        $region74: #{ir50_head.1} parent=51 // pred_check_branch
          %477 = sbr.rel (%p475) target = $region76
        $region75: #{ir50_head.1} parent=51 // pred_region
          %479 = dma.done [#allocation12], 32768
        $region76: #{ir50_head.1} parent=51 // pred_fallthru
          _
        // Predicated region
        $region77: #{ir50_head.1} parent=51 // pred_check
          %p480 = pneg %p206
        $region78: #{ir50_head.1} parent=51 // pred_check_branch
          %482 = sbr.rel (%p480) target = $region80
        $region79: #{ir50_head.1} parent=51 // pred_region
          %484 = dma.done [#allocation12], 128
        $region80: #{ir50_head.1} parent=51 // pred_fallthru
          _
        %s485 = smul.u32 32, %s33
        %p486 = scmp.lt.s32.totalorder %s485, 63
        %s487 = scalar_select %p486, %s485, 63
        %s488 = smul.addr %s487, 2
        %s489 = scalar_lea.vmem %s0, %s488
        %p490 = pneg %p54
        %p491 = pneg %p51
        %s492 = sand.u32 %s67, 1
        %s493 = scalar_lea.sflag [#allocation3], %s492
        %s494 = sand.u32 %s67, 1
        %s495 = smul.addr %s494, 8192
        %s496 = scalar_lea.vmem [#allocation2], %s495
        %p497 = pneg %p80
        %p498 = pneg %p77
        %p499 = pneg %p101
        %p500 = pneg %p98
        %p501 = pneg %p122
        %p502 = pneg %p119
        %p503 = pneg %p143
        %p504 = pneg %p140
        %p505 = pneg %p164
        %p506 = pneg %p161
        %p507 = pneg %p185
        %p508 = pneg %p182
        %p509 = pneg %p206
        %p510 = pneg %p203
        %p511 = pneg %p227
        %p512 = pneg %p224
        %p513 = pneg %p248
        %p514 = pneg %p245
        %p515 = pneg %p269
        %p516 = pneg %p266
        %p517 = pneg %p290
        %p518 = pneg %p287
        %p519 = pneg %p311
        %p520 = pneg %p308
        %s521 = smul.u32 32, %s33
        %p522 = scmp.lt.s32.totalorder %s521, 63
        %s523 = scalar_select %p522, %s521, 63
        %s524 = smul.addr %s523, 2
        %s525 = scalar_lea.vmem %s0, %s524
        %s526 = smul.u32 32, %s33
        %s527 = smul.u32 512, %s33
        %p528 = scmp.eq.s32.totalorder %s33, 0
        // Predicated region
        $region81: #{ir50_head.1} parent=51 // pred_check
          %p529 = pneg %p528
        $region82: #{ir50_head.1} parent=51 // pred_check_branch
          %531 = sbr.rel (%p529) target = $region84
        $region83: #{ir50_head.1} parent=51 // pred_region
          %v532 = vld [vmem:[#allocation5] sm:$0xf]
          %v534 = vperm.slane %v532, 0
          %v535 = vperm.slane %v532, 1
          %v536 = vperm.slane %v532, 2
          %v537 = vperm.slane %v532, 3
          %v538 = vrot.slane %v535, 6
          %v539 = vrot.slane %v536, 4
          %v540 = vrot.slane %v537, 2
          %vm541 = vcmask 1041408
          %v542 = vsel %vm541, %v534, %v538
          %vm543 = vcmask 1045508
          %v544 = vsel %vm543, %v539, %v540
          %vm545 = vcmask 1043456
          %v546 = vsel %vm545, %v542, %v544
          %548 = vst [vmem:[#allocation14] sm:$0xff] %v546
        $region84: #{ir50_head.1} parent=51 // pred_fallthru
          _
        %v549 = vld [vmem:[#allocation14] sm:$0xff]
        %v550 = vld [vmem:[%s525] sm:$0xff]
        %v551 = vld [vmem:[%s525 + $0x8] sm:$0xff]
        %v552 = vld [vmem:[%s525 + $0x10] sm:$0xff]
        %v553 = vld [vmem:[%s525 + $0x18] sm:$0xff]
        %v554 = vld [vmem:[%s525 + $0x20] sm:$0xff]
        %v555 = vld [vmem:[%s525 + $0x28] sm:$0xff]
        %v556 = vld [vmem:[%s525 + $0x30] sm:$0xff]
        %v557 = vld [vmem:[%s525 + $0x38] sm:$0xff]
        %566 = vst [vmem:[#allocation1] ss:$4 sm:$0xff] %v550
        %s567 = scalar_lea.vmem [#allocation1], 32
        %568 = vst [vmem:[%s567] ss:$4 sm:$0xff] %v551
        %v569 = vld.sshfl [vmem:[#allocation1] sm:$0xff pattern:$0x73625140]
        %v570 = vld.sshfl [vmem:[#allocation1 + $0x8] sm:$0xff pattern:$0x73625140]
        %v571 = vld.sshfl [vmem:[#allocation1 + $0x10] sm:$0xff pattern:$0x73625140]
        %v572 = vld.sshfl [vmem:[#allocation1 + $0x18] sm:$0xff pattern:$0x73625140]
        %v573 = vld.sshfl [vmem:[#allocation1 + $0x20] sm:$0xff pattern:$0x73625140]
        %v574 = vld.sshfl [vmem:[#allocation1 + $0x28] sm:$0xff pattern:$0x73625140]
        %v575 = vld.sshfl [vmem:[#allocation1 + $0x30] sm:$0xff pattern:$0x73625140]
        %v576 = vld.sshfl [vmem:[#allocation1 + $0x38] sm:$0xff pattern:$0x73625140]
        %577 = vst [vmem:[#allocation1] ss:$4 sm:$0xff] %v552
        %578 = vst [vmem:[%s567] ss:$4 sm:$0xff] %v553
        %v579 = vld.sshfl [vmem:[#allocation1] sm:$0xff pattern:$0x73625140]
        %v580 = vld.sshfl [vmem:[#allocation1 + $0x8] sm:$0xff pattern:$0x73625140]
        %v581 = vld.sshfl [vmem:[#allocation1 + $0x10] sm:$0xff pattern:$0x73625140]
        %v582 = vld.sshfl [vmem:[#allocation1 + $0x18] sm:$0xff pattern:$0x73625140]
        %v583 = vld.sshfl [vmem:[#allocation1 + $0x20] sm:$0xff pattern:$0x73625140]
        %v584 = vld.sshfl [vmem:[#allocation1 + $0x28] sm:$0xff pattern:$0x73625140]
        %v585 = vld.sshfl [vmem:[#allocation1 + $0x30] sm:$0xff pattern:$0x73625140]
        %v586 = vld.sshfl [vmem:[#allocation1 + $0x38] sm:$0xff pattern:$0x73625140]
        %587 = vst [vmem:[#allocation1] ss:$4 sm:$0xff] %v554
        %588 = vst [vmem:[%s567] ss:$4 sm:$0xff] %v555
        %v589 = vld.sshfl [vmem:[#allocation1] sm:$0xff pattern:$0x73625140]
        %v590 = vld.sshfl [vmem:[#allocation1 + $0x8] sm:$0xff pattern:$0x73625140]
        %v591 = vld.sshfl [vmem:[#allocation1 + $0x10] sm:$0xff pattern:$0x73625140]
        %v592 = vld.sshfl [vmem:[#allocation1 + $0x18] sm:$0xff pattern:$0x73625140]
        %v593 = vld.sshfl [vmem:[#allocation1 + $0x20] sm:$0xff pattern:$0x73625140]
        %v594 = vld.sshfl [vmem:[#allocation1 + $0x28] sm:$0xff pattern:$0x73625140]
        %v595 = vld.sshfl [vmem:[#allocation1 + $0x30] sm:$0xff pattern:$0x73625140]
        %v596 = vld.sshfl [vmem:[#allocation1 + $0x38] sm:$0xff pattern:$0x73625140]
        %597 = vst [vmem:[#allocation1] ss:$4 sm:$0xff] %v556
        %598 = vst [vmem:[%s567] ss:$4 sm:$0xff] %v557
        %v599 = vld.sshfl [vmem:[#allocation1] sm:$0xff pattern:$0x73625140]
        %v600 = vld.sshfl [vmem:[#allocation1 + $0x8] sm:$0xff pattern:$0x73625140]
        %v601 = vld.sshfl [vmem:[#allocation1 + $0x10] sm:$0xff pattern:$0x73625140]
        %v602 = vld.sshfl [vmem:[#allocation1 + $0x18] sm:$0xff pattern:$0x73625140]
        %v603 = vld.sshfl [vmem:[#allocation1 + $0x20] sm:$0xff pattern:$0x73625140]
        %v604 = vld.sshfl [vmem:[#allocation1 + $0x28] sm:$0xff pattern:$0x73625140]
        %v605 = vld.sshfl [vmem:[#allocation1 + $0x30] sm:$0xff pattern:$0x73625140]
        %v606 = vld.sshfl [vmem:[#allocation1 + $0x38] sm:$0xff pattern:$0x73625140]
        %v639 = vpack.c.bf16 %v569, %v569
        %v640 = vpack.c.bf16 %v570, %v570
        %v641 = vpack.c.bf16 %v571, %v571
        %v642 = vpack.c.bf16 %v572, %v572
        %v643 = vpack.c.bf16 %v573, %v573
        %v644 = vpack.c.bf16 %v574, %v574
        %v645 = vpack.c.bf16 %v575, %v575
        %v646 = vpack.c.bf16 %v576, %v576
        %v647 = vpack.c.bf16 %v579, %v579
        %v648 = vpack.c.bf16 %v580, %v580
        %v649 = vpack.c.bf16 %v581, %v581
        %v650 = vpack.c.bf16 %v582, %v582
        %v651 = vpack.c.bf16 %v583, %v583
        %v652 = vpack.c.bf16 %v584, %v584
        %v653 = vpack.c.bf16 %v585, %v585
        %v654 = vpack.c.bf16 %v586, %v586
        %v655 = vpack.c.bf16 %v589, %v589
        %v656 = vpack.c.bf16 %v590, %v590
        %v657 = vpack.c.bf16 %v591, %v591
        %v658 = vpack.c.bf16 %v592, %v592
        %v659 = vpack.c.bf16 %v593, %v593
        %v660 = vpack.c.bf16 %v594, %v594
        %v661 = vpack.c.bf16 %v595, %v595
        %v662 = vpack.c.bf16 %v596, %v596
        %v663 = vpack.c.bf16 %v599, %v599
        %v664 = vpack.c.bf16 %v600, %v600
        %v665 = vpack.c.bf16 %v601, %v601
        %v666 = vpack.c.bf16 %v602, %v602
        %v667 = vpack.c.bf16 %v603, %v603
        %v668 = vpack.c.bf16 %v604, %v604
        %v669 = vpack.c.bf16 %v605, %v605
        %v670 = vpack.c.bf16 %v606, %v606
        %v671 = vld [vmem:[%s449] sm:$0xff]
        %v672 = vld [vmem:[%s449 + $0x8] sm:$0xff]
        %v673 = vld [vmem:[%s449 + $0x10] sm:$0xff]
        %v674 = vld [vmem:[%s449 + $0x18] sm:$0xff]
        %v675 = vld [vmem:[%s449 + $0x20] sm:$0xff]
        %v676 = vld [vmem:[%s449 + $0x28] sm:$0xff]
        %v677 = vld [vmem:[%s449 + $0x30] sm:$0xff]
        %v678 = vld [vmem:[%s449 + $0x38] sm:$0xff]
        %v679 = vld [vmem:[%s449 + $0x40] sm:$0xff]
        %v680 = vld [vmem:[%s449 + $0x48] sm:$0xff]
        %v681 = vld [vmem:[%s449 + $0x50] sm:$0xff]
        %v682 = vld [vmem:[%s449 + $0x58] sm:$0xff]
        %v683 = vld [vmem:[%s449 + $0x60] sm:$0xff]
        %v684 = vld [vmem:[%s449 + $0x68] sm:$0xff]
        %v685 = vld [vmem:[%s449 + $0x70] sm:$0xff]
        %v686 = vld [vmem:[%s449 + $0x78] sm:$0xff]
        %v687 = vld [vmem:[%s449 + $0x80] sm:$0xff]
        %v688 = vld [vmem:[%s449 + $0x88] sm:$0xff]
        %v689 = vld [vmem:[%s449 + $0x90] sm:$0xff]
        %v690 = vld [vmem:[%s449 + $0x98] sm:$0xff]
        %v691 = vld [vmem:[%s449 + $0xa0] sm:$0xff]
        %v692 = vld [vmem:[%s449 + $0xa8] sm:$0xff]
        %v693 = vld [vmem:[%s449 + $0xb0] sm:$0xff]
        %v694 = vld [vmem:[%s449 + $0xb8] sm:$0xff]
        %v695 = vld [vmem:[%s449 + $0xc0] sm:$0xff]
        %v696 = vld [vmem:[%s449 + $0xc8] sm:$0xff]
        %v697 = vld [vmem:[%s449 + $0xd0] sm:$0xff]
        %v698 = vld [vmem:[%s449 + $0xd8] sm:$0xff]
        %v699 = vld [vmem:[%s449 + $0xe0] sm:$0xff]
        %v700 = vld [vmem:[%s449 + $0xe8] sm:$0xff]
        %v701 = vld [vmem:[%s449 + $0xf0] sm:$0xff]
        %v702 = vld [vmem:[%s449 + $0xf8] sm:$0xff]
        %v703 = vld [vmem:[%s449 + $0x100] sm:$0xff]
        %v704 = vld [vmem:[%s449 + $0x108] sm:$0xff]
        %v705 = vld [vmem:[%s449 + $0x110] sm:$0xff]
        %v706 = vld [vmem:[%s449 + $0x118] sm:$0xff]
        %v707 = vld [vmem:[%s449 + $0x120] sm:$0xff]
        %v708 = vld [vmem:[%s449 + $0x128] sm:$0xff]
        %v709 = vld [vmem:[%s449 + $0x130] sm:$0xff]
        %v710 = vld [vmem:[%s449 + $0x138] sm:$0xff]
        %v711 = vld [vmem:[%s449 + $0x140] sm:$0xff]
        %v712 = vld [vmem:[%s449 + $0x148] sm:$0xff]
        %v713 = vld [vmem:[%s449 + $0x150] sm:$0xff]
        %v714 = vld [vmem:[%s449 + $0x158] sm:$0xff]
        %v715 = vld [vmem:[%s449 + $0x160] sm:$0xff]
        %v716 = vld [vmem:[%s449 + $0x168] sm:$0xff]
        %v717 = vld [vmem:[%s449 + $0x170] sm:$0xff]
        %v718 = vld [vmem:[%s449 + $0x178] sm:$0xff]
        %v719 = vld [vmem:[%s449 + $0x180] sm:$0xff]
        %v720 = vld [vmem:[%s449 + $0x188] sm:$0xff]
        %v721 = vld [vmem:[%s449 + $0x190] sm:$0xff]
        %v722 = vld [vmem:[%s449 + $0x198] sm:$0xff]
        %v723 = vld [vmem:[%s449 + $0x1a0] sm:$0xff]
        %v724 = vld [vmem:[%s449 + $0x1a8] sm:$0xff]
        %v725 = vld [vmem:[%s449 + $0x1b0] sm:$0xff]
        %v726 = vld [vmem:[%s449 + $0x1b8] sm:$0xff]
        %v727 = vld [vmem:[%s449 + $0x1c0] sm:$0xff]
        %v728 = vld [vmem:[%s449 + $0x1c8] sm:$0xff]
        %v729 = vld [vmem:[%s449 + $0x1d0] sm:$0xff]
        %v730 = vld [vmem:[%s449 + $0x1d8] sm:$0xff]
        %v731 = vld [vmem:[%s449 + $0x1e0] sm:$0xff]
        %v732 = vld [vmem:[%s449 + $0x1e8] sm:$0xff]
        %v733 = vld [vmem:[%s449 + $0x1f0] sm:$0xff]
        %v734 = vld [vmem:[%s449 + $0x1f8] sm:$0xff]
        %v735 = vld [vmem:[%s449 + $0x200] sm:$0xff]
        %v736 = vld [vmem:[%s449 + $0x208] sm:$0xff]
        %v737 = vld [vmem:[%s449 + $0x210] sm:$0xff]
        %v738 = vld [vmem:[%s449 + $0x218] sm:$0xff]
        %v739 = vld [vmem:[%s449 + $0x220] sm:$0xff]
        %v740 = vld [vmem:[%s449 + $0x228] sm:$0xff]
        %v741 = vld [vmem:[%s449 + $0x230] sm:$0xff]
        %v742 = vld [vmem:[%s449 + $0x238] sm:$0xff]
        %v743 = vld [vmem:[%s449 + $0x240] sm:$0xff]
        %v744 = vld [vmem:[%s449 + $0x248] sm:$0xff]
        %v745 = vld [vmem:[%s449 + $0x250] sm:$0xff]
        %v746 = vld [vmem:[%s449 + $0x258] sm:$0xff]
        %v747 = vld [vmem:[%s449 + $0x260] sm:$0xff]
        %v748 = vld [vmem:[%s449 + $0x268] sm:$0xff]
        %v749 = vld [vmem:[%s449 + $0x270] sm:$0xff]
        %v750 = vld [vmem:[%s449 + $0x278] sm:$0xff]
        %v751 = vld [vmem:[%s449 + $0x280] sm:$0xff]
        %v752 = vld [vmem:[%s449 + $0x288] sm:$0xff]
        %v753 = vld [vmem:[%s449 + $0x290] sm:$0xff]
        %v754 = vld [vmem:[%s449 + $0x298] sm:$0xff]
        %v755 = vld [vmem:[%s449 + $0x2a0] sm:$0xff]
        %v756 = vld [vmem:[%s449 + $0x2a8] sm:$0xff]
        %v757 = vld [vmem:[%s449 + $0x2b0] sm:$0xff]
        %v758 = vld [vmem:[%s449 + $0x2b8] sm:$0xff]
        %v759 = vld [vmem:[%s449 + $0x2c0] sm:$0xff]
        %v760 = vld [vmem:[%s449 + $0x2c8] sm:$0xff]
        %v761 = vld [vmem:[%s449 + $0x2d0] sm:$0xff]
        %v762 = vld [vmem:[%s449 + $0x2d8] sm:$0xff]
        %v763 = vld [vmem:[%s449 + $0x2e0] sm:$0xff]
        %v764 = vld [vmem:[%s449 + $0x2e8] sm:$0xff]
        %v765 = vld [vmem:[%s449 + $0x2f0] sm:$0xff]
        %v766 = vld [vmem:[%s449 + $0x2f8] sm:$0xff]
        %v767 = vld [vmem:[%s449 + $0x300] sm:$0xff]
        %v768 = vld [vmem:[%s449 + $0x308] sm:$0xff]
        %v769 = vld [vmem:[%s449 + $0x310] sm:$0xff]
        %v770 = vld [vmem:[%s449 + $0x318] sm:$0xff]
        %v771 = vld [vmem:[%s449 + $0x320] sm:$0xff]
        %v772 = vld [vmem:[%s449 + $0x328] sm:$0xff]
        %v773 = vld [vmem:[%s449 + $0x330] sm:$0xff]
        %v774 = vld [vmem:[%s449 + $0x338] sm:$0xff]
        %v775 = vld [vmem:[%s449 + $0x340] sm:$0xff]
        %v776 = vld [vmem:[%s449 + $0x348] sm:$0xff]
        %v777 = vld [vmem:[%s449 + $0x350] sm:$0xff]
        %v778 = vld [vmem:[%s449 + $0x358] sm:$0xff]
        %v779 = vld [vmem:[%s449 + $0x360] sm:$0xff]
        %v780 = vld [vmem:[%s449 + $0x368] sm:$0xff]
        %v781 = vld [vmem:[%s449 + $0x370] sm:$0xff]
        %v782 = vld [vmem:[%s449 + $0x378] sm:$0xff]
        %v783 = vld [vmem:[%s449 + $0x380] sm:$0xff]
        %v784 = vld [vmem:[%s449 + $0x388] sm:$0xff]
        %v785 = vld [vmem:[%s449 + $0x390] sm:$0xff]
        %v786 = vld [vmem:[%s449 + $0x398] sm:$0xff]
        %v787 = vld [vmem:[%s449 + $0x3a0] sm:$0xff]
        %v788 = vld [vmem:[%s449 + $0x3a8] sm:$0xff]
        %v789 = vld [vmem:[%s449 + $0x3b0] sm:$0xff]
        %v790 = vld [vmem:[%s449 + $0x3b8] sm:$0xff]
        %v791 = vld [vmem:[%s449 + $0x3c0] sm:$0xff]
        %v792 = vld [vmem:[%s449 + $0x3c8] sm:$0xff]
        %v793 = vld [vmem:[%s449 + $0x3d0] sm:$0xff]
        %v794 = vld [vmem:[%s449 + $0x3d8] sm:$0xff]
        %v795 = vld [vmem:[%s449 + $0x3e0] sm:$0xff]
        %v796 = vld [vmem:[%s449 + $0x3e8] sm:$0xff]
        %v797 = vld [vmem:[%s449 + $0x3f0] sm:$0xff]
        %v798 = vld [vmem:[%s449 + $0x3f8] sm:$0xff]
        %v799 = vld [vmem:[%s449 + $0x400] sm:$0xff]
        %v800 = vld [vmem:[%s449 + $0x408] sm:$0xff]
        %v801 = vld [vmem:[%s449 + $0x410] sm:$0xff]
        %v802 = vld [vmem:[%s449 + $0x418] sm:$0xff]
        %v803 = vld [vmem:[%s449 + $0x420] sm:$0xff]
        %v804 = vld [vmem:[%s449 + $0x428] sm:$0xff]
        %v805 = vld [vmem:[%s449 + $0x430] sm:$0xff]
        %v806 = vld [vmem:[%s449 + $0x438] sm:$0xff]
        %v807 = vld [vmem:[%s449 + $0x440] sm:$0xff]
        %v808 = vld [vmem:[%s449 + $0x448] sm:$0xff]
        %v809 = vld [vmem:[%s449 + $0x450] sm:$0xff]
        %v810 = vld [vmem:[%s449 + $0x458] sm:$0xff]
        %v811 = vld [vmem:[%s449 + $0x460] sm:$0xff]
        %v812 = vld [vmem:[%s449 + $0x468] sm:$0xff]
        %v813 = vld [vmem:[%s449 + $0x470] sm:$0xff]
        %v814 = vld [vmem:[%s449 + $0x478] sm:$0xff]
        %v815 = vld [vmem:[%s449 + $0x480] sm:$0xff]
        %v816 = vld [vmem:[%s449 + $0x488] sm:$0xff]
        %v817 = vld [vmem:[%s449 + $0x490] sm:$0xff]
        %v818 = vld [vmem:[%s449 + $0x498] sm:$0xff]
        %v819 = vld [vmem:[%s449 + $0x4a0] sm:$0xff]
        %v820 = vld [vmem:[%s449 + $0x4a8] sm:$0xff]
        %v821 = vld [vmem:[%s449 + $0x4b0] sm:$0xff]
        %v822 = vld [vmem:[%s449 + $0x4b8] sm:$0xff]
        %v823 = vld [vmem:[%s449 + $0x4c0] sm:$0xff]
        %v824 = vld [vmem:[%s449 + $0x4c8] sm:$0xff]
        %v825 = vld [vmem:[%s449 + $0x4d0] sm:$0xff]
        %v826 = vld [vmem:[%s449 + $0x4d8] sm:$0xff]
        %v827 = vld [vmem:[%s449 + $0x4e0] sm:$0xff]
        %v828 = vld [vmem:[%s449 + $0x4e8] sm:$0xff]
        %v829 = vld [vmem:[%s449 + $0x4f0] sm:$0xff]
        %v830 = vld [vmem:[%s449 + $0x4f8] sm:$0xff]
        %v831 = vld [vmem:[%s449 + $0x500] sm:$0xff]
        %v832 = vld [vmem:[%s449 + $0x508] sm:$0xff]
        %v833 = vld [vmem:[%s449 + $0x510] sm:$0xff]
        %v834 = vld [vmem:[%s449 + $0x518] sm:$0xff]
        %v835 = vld [vmem:[%s449 + $0x520] sm:$0xff]
        %v836 = vld [vmem:[%s449 + $0x528] sm:$0xff]
        %v837 = vld [vmem:[%s449 + $0x530] sm:$0xff]
        %v838 = vld [vmem:[%s449 + $0x538] sm:$0xff]
        %v839 = vld [vmem:[%s449 + $0x540] sm:$0xff]
        %v840 = vld [vmem:[%s449 + $0x548] sm:$0xff]
        %v841 = vld [vmem:[%s449 + $0x550] sm:$0xff]
        %v842 = vld [vmem:[%s449 + $0x558] sm:$0xff]
        %v843 = vld [vmem:[%s449 + $0x560] sm:$0xff]
        %v844 = vld [vmem:[%s449 + $0x568] sm:$0xff]
        %v845 = vld [vmem:[%s449 + $0x570] sm:$0xff]
        %v846 = vld [vmem:[%s449 + $0x578] sm:$0xff]
        %v847 = vld [vmem:[%s449 + $0x580] sm:$0xff]
        %v848 = vld [vmem:[%s449 + $0x588] sm:$0xff]
        %v849 = vld [vmem:[%s449 + $0x590] sm:$0xff]
        %v850 = vld [vmem:[%s449 + $0x598] sm:$0xff]
        %v851 = vld [vmem:[%s449 + $0x5a0] sm:$0xff]
        %v852 = vld [vmem:[%s449 + $0x5a8] sm:$0xff]
        %v853 = vld [vmem:[%s449 + $0x5b0] sm:$0xff]
        %v854 = vld [vmem:[%s449 + $0x5b8] sm:$0xff]
        %v855 = vld [vmem:[%s449 + $0x5c0] sm:$0xff]
        %v856 = vld [vmem:[%s449 + $0x5c8] sm:$0xff]
        %v857 = vld [vmem:[%s449 + $0x5d0] sm:$0xff]
        %v858 = vld [vmem:[%s449 + $0x5d8] sm:$0xff]
        %v859 = vld [vmem:[%s449 + $0x5e0] sm:$0xff]
        %v860 = vld [vmem:[%s449 + $0x5e8] sm:$0xff]
        %v861 = vld [vmem:[%s449 + $0x5f0] sm:$0xff]
        %v862 = vld [vmem:[%s449 + $0x5f8] sm:$0xff]
        %v863 = vld [vmem:[%s449 + $0x600] sm:$0xff]
        %v864 = vld [vmem:[%s449 + $0x608] sm:$0xff]
        %v865 = vld [vmem:[%s449 + $0x610] sm:$0xff]
        %v866 = vld [vmem:[%s449 + $0x618] sm:$0xff]
        %v867 = vld [vmem:[%s449 + $0x620] sm:$0xff]
        %v868 = vld [vmem:[%s449 + $0x628] sm:$0xff]
        %v869 = vld [vmem:[%s449 + $0x630] sm:$0xff]
        %v870 = vld [vmem:[%s449 + $0x638] sm:$0xff]
        %v871 = vld [vmem:[%s449 + $0x640] sm:$0xff]
        %v872 = vld [vmem:[%s449 + $0x648] sm:$0xff]
        %v873 = vld [vmem:[%s449 + $0x650] sm:$0xff]
        %v874 = vld [vmem:[%s449 + $0x658] sm:$0xff]
        %v875 = vld [vmem:[%s449 + $0x660] sm:$0xff]
        %v876 = vld [vmem:[%s449 + $0x668] sm:$0xff]
        %v877 = vld [vmem:[%s449 + $0x670] sm:$0xff]
        %v878 = vld [vmem:[%s449 + $0x678] sm:$0xff]
        %v879 = vld [vmem:[%s449 + $0x680] sm:$0xff]
        %v880 = vld [vmem:[%s449 + $0x688] sm:$0xff]
        %v881 = vld [vmem:[%s449 + $0x690] sm:$0xff]
        %v882 = vld [vmem:[%s449 + $0x698] sm:$0xff]
        %v883 = vld [vmem:[%s449 + $0x6a0] sm:$0xff]
        %v884 = vld [vmem:[%s449 + $0x6a8] sm:$0xff]
        %v885 = vld [vmem:[%s449 + $0x6b0] sm:$0xff]
        %v886 = vld [vmem:[%s449 + $0x6b8] sm:$0xff]
        %v887 = vld [vmem:[%s449 + $0x6c0] sm:$0xff]
        %v888 = vld [vmem:[%s449 + $0x6c8] sm:$0xff]
        %v889 = vld [vmem:[%s449 + $0x6d0] sm:$0xff]
        %v890 = vld [vmem:[%s449 + $0x6d8] sm:$0xff]
        %v891 = vld [vmem:[%s449 + $0x6e0] sm:$0xff]
        %v892 = vld [vmem:[%s449 + $0x6e8] sm:$0xff]
        %v893 = vld [vmem:[%s449 + $0x6f0] sm:$0xff]
        %v894 = vld [vmem:[%s449 + $0x6f8] sm:$0xff]
        %v895 = vld [vmem:[%s449 + $0x700] sm:$0xff]
        %v896 = vld [vmem:[%s449 + $0x708] sm:$0xff]
        %v897 = vld [vmem:[%s449 + $0x710] sm:$0xff]
        %v898 = vld [vmem:[%s449 + $0x718] sm:$0xff]
        %v899 = vld [vmem:[%s449 + $0x720] sm:$0xff]
        %v900 = vld [vmem:[%s449 + $0x728] sm:$0xff]
        %v901 = vld [vmem:[%s449 + $0x730] sm:$0xff]
        %v902 = vld [vmem:[%s449 + $0x738] sm:$0xff]
        %v903 = vld [vmem:[%s449 + $0x740] sm:$0xff]
        %v904 = vld [vmem:[%s449 + $0x748] sm:$0xff]
        %v905 = vld [vmem:[%s449 + $0x750] sm:$0xff]
        %v906 = vld [vmem:[%s449 + $0x758] sm:$0xff]
        %v907 = vld [vmem:[%s449 + $0x760] sm:$0xff]
        %v908 = vld [vmem:[%s449 + $0x768] sm:$0xff]
        %v909 = vld [vmem:[%s449 + $0x770] sm:$0xff]
        %v910 = vld [vmem:[%s449 + $0x778] sm:$0xff]
        %v911 = vld [vmem:[%s449 + $0x780] sm:$0xff]
        %v912 = vld [vmem:[%s449 + $0x788] sm:$0xff]
        %v913 = vld [vmem:[%s449 + $0x790] sm:$0xff]
        %v914 = vld [vmem:[%s449 + $0x798] sm:$0xff]
        %v915 = vld [vmem:[%s449 + $0x7a0] sm:$0xff]
        %v916 = vld [vmem:[%s449 + $0x7a8] sm:$0xff]
        %v917 = vld [vmem:[%s449 + $0x7b0] sm:$0xff]
        %v918 = vld [vmem:[%s449 + $0x7b8] sm:$0xff]
        %v919 = vld [vmem:[%s449 + $0x7c0] sm:$0xff]
        %v920 = vld [vmem:[%s449 + $0x7c8] sm:$0xff]
        %v921 = vld [vmem:[%s449 + $0x7d0] sm:$0xff]
        %v922 = vld [vmem:[%s449 + $0x7d8] sm:$0xff]
        %v923 = vld [vmem:[%s449 + $0x7e0] sm:$0xff]
        %v924 = vld [vmem:[%s449 + $0x7e8] sm:$0xff]
        %v925 = vld [vmem:[%s449 + $0x7f0] sm:$0xff]
        %v926 = vld [vmem:[%s449 + $0x7f8] sm:$0xff]
        %v927 = vld [vmem:[%s449 + $0x800] sm:$0xff]
        %v928 = vld [vmem:[%s449 + $0x808] sm:$0xff]
        %v929 = vld [vmem:[%s449 + $0x810] sm:$0xff]
        %v930 = vld [vmem:[%s449 + $0x818] sm:$0xff]
        %v931 = vld [vmem:[%s449 + $0x820] sm:$0xff]
        %v932 = vld [vmem:[%s449 + $0x828] sm:$0xff]
        %v933 = vld [vmem:[%s449 + $0x830] sm:$0xff]
        %v934 = vld [vmem:[%s449 + $0x838] sm:$0xff]
        %v935 = vld [vmem:[%s449 + $0x840] sm:$0xff]
        %v936 = vld [vmem:[%s449 + $0x848] sm:$0xff]
        %v937 = vld [vmem:[%s449 + $0x850] sm:$0xff]
        %v938 = vld [vmem:[%s449 + $0x858] sm:$0xff]
        %v939 = vld [vmem:[%s449 + $0x860] sm:$0xff]
        %v940 = vld [vmem:[%s449 + $0x868] sm:$0xff]
        %v941 = vld [vmem:[%s449 + $0x870] sm:$0xff]
        %v942 = vld [vmem:[%s449 + $0x878] sm:$0xff]
        %v943 = vld [vmem:[%s449 + $0x880] sm:$0xff]
        %v944 = vld [vmem:[%s449 + $0x888] sm:$0xff]
        %v945 = vld [vmem:[%s449 + $0x890] sm:$0xff]
        %v946 = vld [vmem:[%s449 + $0x898] sm:$0xff]
        %v947 = vld [vmem:[%s449 + $0x8a0] sm:$0xff]
        %v948 = vld [vmem:[%s449 + $0x8a8] sm:$0xff]
        %v949 = vld [vmem:[%s449 + $0x8b0] sm:$0xff]
        %v950 = vld [vmem:[%s449 + $0x8b8] sm:$0xff]
        %v951 = vld [vmem:[%s449 + $0x8c0] sm:$0xff]
        %v952 = vld [vmem:[%s449 + $0x8c8] sm:$0xff]
        %v953 = vld [vmem:[%s449 + $0x8d0] sm:$0xff]
        %v954 = vld [vmem:[%s449 + $0x8d8] sm:$0xff]
        %v955 = vld [vmem:[%s449 + $0x8e0] sm:$0xff]
        %v956 = vld [vmem:[%s449 + $0x8e8] sm:$0xff]
        %v957 = vld [vmem:[%s449 + $0x8f0] sm:$0xff]
        %v958 = vld [vmem:[%s449 + $0x8f8] sm:$0xff]
        %v959 = vld [vmem:[%s449 + $0x900] sm:$0xff]
        %v960 = vld [vmem:[%s449 + $0x908] sm:$0xff]
        %v961 = vld [vmem:[%s449 + $0x910] sm:$0xff]
        %v962 = vld [vmem:[%s449 + $0x918] sm:$0xff]
        %v963 = vld [vmem:[%s449 + $0x920] sm:$0xff]
        %v964 = vld [vmem:[%s449 + $0x928] sm:$0xff]
        %v965 = vld [vmem:[%s449 + $0x930] sm:$0xff]
        %v966 = vld [vmem:[%s449 + $0x938] sm:$0xff]
        %v967 = vld [vmem:[%s449 + $0x940] sm:$0xff]
        %v968 = vld [vmem:[%s449 + $0x948] sm:$0xff]
        %v969 = vld [vmem:[%s449 + $0x950] sm:$0xff]
        %v970 = vld [vmem:[%s449 + $0x958] sm:$0xff]
        %v971 = vld [vmem:[%s449 + $0x960] sm:$0xff]
        %v972 = vld [vmem:[%s449 + $0x968] sm:$0xff]
        %v973 = vld [vmem:[%s449 + $0x970] sm:$0xff]
        %v974 = vld [vmem:[%s449 + $0x978] sm:$0xff]
        %v975 = vld [vmem:[%s449 + $0x980] sm:$0xff]
        %v976 = vld [vmem:[%s449 + $0x988] sm:$0xff]
        %v977 = vld [vmem:[%s449 + $0x990] sm:$0xff]
        %v978 = vld [vmem:[%s449 + $0x998] sm:$0xff]
        %v979 = vld [vmem:[%s449 + $0x9a0] sm:$0xff]
        %v980 = vld [vmem:[%s449 + $0x9a8] sm:$0xff]
        %v981 = vld [vmem:[%s449 + $0x9b0] sm:$0xff]
        %v982 = vld [vmem:[%s449 + $0x9b8] sm:$0xff]
        %v983 = vld [vmem:[%s449 + $0x9c0] sm:$0xff]
        %v984 = vld [vmem:[%s449 + $0x9c8] sm:$0xff]
        %v985 = vld [vmem:[%s449 + $0x9d0] sm:$0xff]
        %v986 = vld [vmem:[%s449 + $0x9d8] sm:$0xff]
        %v987 = vld [vmem:[%s449 + $0x9e0] sm:$0xff]
        %v988 = vld [vmem:[%s449 + $0x9e8] sm:$0xff]
        %v989 = vld [vmem:[%s449 + $0x9f0] sm:$0xff]
        %v990 = vld [vmem:[%s449 + $0x9f8] sm:$0xff]
        %v991 = vld [vmem:[%s449 + $0xa00] sm:$0xff]
        %v992 = vld [vmem:[%s449 + $0xa08] sm:$0xff]
        %v993 = vld [vmem:[%s449 + $0xa10] sm:$0xff]
        %v994 = vld [vmem:[%s449 + $0xa18] sm:$0xff]
        %v995 = vld [vmem:[%s449 + $0xa20] sm:$0xff]
        %v996 = vld [vmem:[%s449 + $0xa28] sm:$0xff]
        %v997 = vld [vmem:[%s449 + $0xa30] sm:$0xff]
        %v998 = vld [vmem:[%s449 + $0xa38] sm:$0xff]
        %v999 = vld [vmem:[%s449 + $0xa40] sm:$0xff]
        %v1000 = vld [vmem:[%s449 + $0xa48] sm:$0xff]
        %v1001 = vld [vmem:[%s449 + $0xa50] sm:$0xff]
        %v1002 = vld [vmem:[%s449 + $0xa58] sm:$0xff]
        %v1003 = vld [vmem:[%s449 + $0xa60] sm:$0xff]
        %v1004 = vld [vmem:[%s449 + $0xa68] sm:$0xff]
        %v1005 = vld [vmem:[%s449 + $0xa70] sm:$0xff]
        %v1006 = vld [vmem:[%s449 + $0xa78] sm:$0xff]
        %v1007 = vld [vmem:[%s449 + $0xa80] sm:$0xff]
        %v1008 = vld [vmem:[%s449 + $0xa88] sm:$0xff]
        %v1009 = vld [vmem:[%s449 + $0xa90] sm:$0xff]
        %v1010 = vld [vmem:[%s449 + $0xa98] sm:$0xff]
        %v1011 = vld [vmem:[%s449 + $0xaa0] sm:$0xff]
        %v1012 = vld [vmem:[%s449 + $0xaa8] sm:$0xff]
        %v1013 = vld [vmem:[%s449 + $0xab0] sm:$0xff]
        %v1014 = vld [vmem:[%s449 + $0xab8] sm:$0xff]
        %v1015 = vld [vmem:[%s449 + $0xac0] sm:$0xff]
        %v1016 = vld [vmem:[%s449 + $0xac8] sm:$0xff]
        %v1017 = vld [vmem:[%s449 + $0xad0] sm:$0xff]
        %v1018 = vld [vmem:[%s449 + $0xad8] sm:$0xff]
        %v1019 = vld [vmem:[%s449 + $0xae0] sm:$0xff]
        %v1020 = vld [vmem:[%s449 + $0xae8] sm:$0xff]
        %v1021 = vld [vmem:[%s449 + $0xaf0] sm:$0xff]
        %v1022 = vld [vmem:[%s449 + $0xaf8] sm:$0xff]
        %v1023 = vld [vmem:[%s449 + $0xb00] sm:$0xff]
        %v1024 = vld [vmem:[%s449 + $0xb08] sm:$0xff]
        %v1025 = vld [vmem:[%s449 + $0xb10] sm:$0xff]
        %v1026 = vld [vmem:[%s449 + $0xb18] sm:$0xff]
        %v1027 = vld [vmem:[%s449 + $0xb20] sm:$0xff]
        %v1028 = vld [vmem:[%s449 + $0xb28] sm:$0xff]
        %v1029 = vld [vmem:[%s449 + $0xb30] sm:$0xff]
        %v1030 = vld [vmem:[%s449 + $0xb38] sm:$0xff]
        %v1031 = vld [vmem:[%s449 + $0xb40] sm:$0xff]
        %v1032 = vld [vmem:[%s449 + $0xb48] sm:$0xff]
        %v1033 = vld [vmem:[%s449 + $0xb50] sm:$0xff]
        %v1034 = vld [vmem:[%s449 + $0xb58] sm:$0xff]
        %v1035 = vld [vmem:[%s449 + $0xb60] sm:$0xff]
        %v1036 = vld [vmem:[%s449 + $0xb68] sm:$0xff]
        %v1037 = vld [vmem:[%s449 + $0xb70] sm:$0xff]
        %v1038 = vld [vmem:[%s449 + $0xb78] sm:$0xff]
        %v1039 = vld [vmem:[%s449 + $0xb80] sm:$0xff]
        %v1040 = vld [vmem:[%s449 + $0xb88] sm:$0xff]
        %v1041 = vld [vmem:[%s449 + $0xb90] sm:$0xff]
        %v1042 = vld [vmem:[%s449 + $0xb98] sm:$0xff]
        %v1043 = vld [vmem:[%s449 + $0xba0] sm:$0xff]
        %v1044 = vld [vmem:[%s449 + $0xba8] sm:$0xff]
        %v1045 = vld [vmem:[%s449 + $0xbb0] sm:$0xff]
        %v1046 = vld [vmem:[%s449 + $0xbb8] sm:$0xff]
        %v1047 = vld [vmem:[%s449 + $0xbc0] sm:$0xff]
        %v1048 = vld [vmem:[%s449 + $0xbc8] sm:$0xff]
        %v1049 = vld [vmem:[%s449 + $0xbd0] sm:$0xff]
        %v1050 = vld [vmem:[%s449 + $0xbd8] sm:$0xff]
        %v1051 = vld [vmem:[%s449 + $0xbe0] sm:$0xff]
        %v1052 = vld [vmem:[%s449 + $0xbe8] sm:$0xff]
        %v1053 = vld [vmem:[%s449 + $0xbf0] sm:$0xff]
        %v1054 = vld [vmem:[%s449 + $0xbf8] sm:$0xff]
        %v1055 = vld [vmem:[%s449 + $0xc00] sm:$0xff]
        %v1056 = vld [vmem:[%s449 + $0xc08] sm:$0xff]
        %v1057 = vld [vmem:[%s449 + $0xc10] sm:$0xff]
        %v1058 = vld [vmem:[%s449 + $0xc18] sm:$0xff]
        %v1059 = vld [vmem:[%s449 + $0xc20] sm:$0xff]
        %v1060 = vld [vmem:[%s449 + $0xc28] sm:$0xff]
        %v1061 = vld [vmem:[%s449 + $0xc30] sm:$0xff]
        %v1062 = vld [vmem:[%s449 + $0xc38] sm:$0xff]
        %v1063 = vld [vmem:[%s449 + $0xc40] sm:$0xff]
        %v1064 = vld [vmem:[%s449 + $0xc48] sm:$0xff]
        %v1065 = vld [vmem:[%s449 + $0xc50] sm:$0xff]
        %v1066 = vld [vmem:[%s449 + $0xc58] sm:$0xff]
        %v1067 = vld [vmem:[%s449 + $0xc60] sm:$0xff]
        %v1068 = vld [vmem:[%s449 + $0xc68] sm:$0xff]
        %v1069 = vld [vmem:[%s449 + $0xc70] sm:$0xff]
        %v1070 = vld [vmem:[%s449 + $0xc78] sm:$0xff]
        %v1071 = vld [vmem:[%s449 + $0xc80] sm:$0xff]
        %v1072 = vld [vmem:[%s449 + $0xc88] sm:$0xff]
        %v1073 = vld [vmem:[%s449 + $0xc90] sm:$0xff]
        %v1074 = vld [vmem:[%s449 + $0xc98] sm:$0xff]
        %v1075 = vld [vmem:[%s449 + $0xca0] sm:$0xff]
        %v1076 = vld [vmem:[%s449 + $0xca8] sm:$0xff]
        %v1077 = vld [vmem:[%s449 + $0xcb0] sm:$0xff]
        %v1078 = vld [vmem:[%s449 + $0xcb8] sm:$0xff]
        %v1079 = vld [vmem:[%s449 + $0xcc0] sm:$0xff]
        %v1080 = vld [vmem:[%s449 + $0xcc8] sm:$0xff]
        %v1081 = vld [vmem:[%s449 + $0xcd0] sm:$0xff]
        %v1082 = vld [vmem:[%s449 + $0xcd8] sm:$0xff]
        %v1083 = vld [vmem:[%s449 + $0xce0] sm:$0xff]
        %v1084 = vld [vmem:[%s449 + $0xce8] sm:$0xff]
        %v1085 = vld [vmem:[%s449 + $0xcf0] sm:$0xff]
        %v1086 = vld [vmem:[%s449 + $0xcf8] sm:$0xff]
        %v1087 = vld [vmem:[%s449 + $0xd00] sm:$0xff]
        %v1088 = vld [vmem:[%s449 + $0xd08] sm:$0xff]
        %v1089 = vld [vmem:[%s449 + $0xd10] sm:$0xff]
        %v1090 = vld [vmem:[%s449 + $0xd18] sm:$0xff]
        %v1091 = vld [vmem:[%s449 + $0xd20] sm:$0xff]
        %v1092 = vld [vmem:[%s449 + $0xd28] sm:$0xff]
        %v1093 = vld [vmem:[%s449 + $0xd30] sm:$0xff]
        %v1094 = vld [vmem:[%s449 + $0xd38] sm:$0xff]
        %v1095 = vld [vmem:[%s449 + $0xd40] sm:$0xff]
        %v1096 = vld [vmem:[%s449 + $0xd48] sm:$0xff]
        %v1097 = vld [vmem:[%s449 + $0xd50] sm:$0xff]
        %v1098 = vld [vmem:[%s449 + $0xd58] sm:$0xff]
        %v1099 = vld [vmem:[%s449 + $0xd60] sm:$0xff]
        %v1100 = vld [vmem:[%s449 + $0xd68] sm:$0xff]
        %v1101 = vld [vmem:[%s449 + $0xd70] sm:$0xff]
        %v1102 = vld [vmem:[%s449 + $0xd78] sm:$0xff]
        %v1103 = vld [vmem:[%s449 + $0xd80] sm:$0xff]
        %v1104 = vld [vmem:[%s449 + $0xd88] sm:$0xff]
        %v1105 = vld [vmem:[%s449 + $0xd90] sm:$0xff]
        %v1106 = vld [vmem:[%s449 + $0xd98] sm:$0xff]
        %v1107 = vld [vmem:[%s449 + $0xda0] sm:$0xff]
        %v1108 = vld [vmem:[%s449 + $0xda8] sm:$0xff]
        %v1109 = vld [vmem:[%s449 + $0xdb0] sm:$0xff]
        %v1110 = vld [vmem:[%s449 + $0xdb8] sm:$0xff]
        %v1111 = vld [vmem:[%s449 + $0xdc0] sm:$0xff]
        %v1112 = vld [vmem:[%s449 + $0xdc8] sm:$0xff]
        %v1113 = vld [vmem:[%s449 + $0xdd0] sm:$0xff]
        %v1114 = vld [vmem:[%s449 + $0xdd8] sm:$0xff]
        %v1115 = vld [vmem:[%s449 + $0xde0] sm:$0xff]
        %v1116 = vld [vmem:[%s449 + $0xde8] sm:$0xff]
        %v1117 = vld [vmem:[%s449 + $0xdf0] sm:$0xff]
        %v1118 = vld [vmem:[%s449 + $0xdf8] sm:$0xff]
        %v1119 = vld [vmem:[%s449 + $0xe00] sm:$0xff]
        %v1120 = vld [vmem:[%s449 + $0xe08] sm:$0xff]
        %v1121 = vld [vmem:[%s449 + $0xe10] sm:$0xff]
        %v1122 = vld [vmem:[%s449 + $0xe18] sm:$0xff]
        %v1123 = vld [vmem:[%s449 + $0xe20] sm:$0xff]
        %v1124 = vld [vmem:[%s449 + $0xe28] sm:$0xff]
        %v1125 = vld [vmem:[%s449 + $0xe30] sm:$0xff]
        %v1126 = vld [vmem:[%s449 + $0xe38] sm:$0xff]
        %v1127 = vld [vmem:[%s449 + $0xe40] sm:$0xff]
        %v1128 = vld [vmem:[%s449 + $0xe48] sm:$0xff]
        %v1129 = vld [vmem:[%s449 + $0xe50] sm:$0xff]
        %v1130 = vld [vmem:[%s449 + $0xe58] sm:$0xff]
        %v1131 = vld [vmem:[%s449 + $0xe60] sm:$0xff]
        %v1132 = vld [vmem:[%s449 + $0xe68] sm:$0xff]
        %v1133 = vld [vmem:[%s449 + $0xe70] sm:$0xff]
        %v1134 = vld [vmem:[%s449 + $0xe78] sm:$0xff]
        %v1135 = vld [vmem:[%s449 + $0xe80] sm:$0xff]
        %v1136 = vld [vmem:[%s449 + $0xe88] sm:$0xff]
        %v1137 = vld [vmem:[%s449 + $0xe90] sm:$0xff]
        %v1138 = vld [vmem:[%s449 + $0xe98] sm:$0xff]
        %v1139 = vld [vmem:[%s449 + $0xea0] sm:$0xff]
        %v1140 = vld [vmem:[%s449 + $0xea8] sm:$0xff]
        %v1141 = vld [vmem:[%s449 + $0xeb0] sm:$0xff]
        %v1142 = vld [vmem:[%s449 + $0xeb8] sm:$0xff]
        %v1143 = vld [vmem:[%s449 + $0xec0] sm:$0xff]
        %v1144 = vld [vmem:[%s449 + $0xec8] sm:$0xff]
        %v1145 = vld [vmem:[%s449 + $0xed0] sm:$0xff]
        %v1146 = vld [vmem:[%s449 + $0xed8] sm:$0xff]
        %v1147 = vld [vmem:[%s449 + $0xee0] sm:$0xff]
        %v1148 = vld [vmem:[%s449 + $0xee8] sm:$0xff]
        %v1149 = vld [vmem:[%s449 + $0xef0] sm:$0xff]
        %v1150 = vld [vmem:[%s449 + $0xef8] sm:$0xff]
        %v1151 = vld [vmem:[%s449 + $0xf00] sm:$0xff]
        %v1152 = vld [vmem:[%s449 + $0xf08] sm:$0xff]
        %v1153 = vld [vmem:[%s449 + $0xf10] sm:$0xff]
        %v1154 = vld [vmem:[%s449 + $0xf18] sm:$0xff]
        %v1155 = vld [vmem:[%s449 + $0xf20] sm:$0xff]
        %v1156 = vld [vmem:[%s449 + $0xf28] sm:$0xff]
        %v1157 = vld [vmem:[%s449 + $0xf30] sm:$0xff]
        %v1158 = vld [vmem:[%s449 + $0xf38] sm:$0xff]
        %v1159 = vld [vmem:[%s449 + $0xf40] sm:$0xff]
        %v1160 = vld [vmem:[%s449 + $0xf48] sm:$0xff]
        %v1161 = vld [vmem:[%s449 + $0xf50] sm:$0xff]
        %v1162 = vld [vmem:[%s449 + $0xf58] sm:$0xff]
        %v1163 = vld [vmem:[%s449 + $0xf60] sm:$0xff]
        %v1164 = vld [vmem:[%s449 + $0xf68] sm:$0xff]
        %v1165 = vld [vmem:[%s449 + $0xf70] sm:$0xff]
        %v1166 = vld [vmem:[%s449 + $0xf78] sm:$0xff]
        %v1167 = vld [vmem:[%s449 + $0xf80] sm:$0xff]
        %v1168 = vld [vmem:[%s449 + $0xf88] sm:$0xff]
        %v1169 = vld [vmem:[%s449 + $0xf90] sm:$0xff]
        %v1170 = vld [vmem:[%s449 + $0xf98] sm:$0xff]
        %v1171 = vld [vmem:[%s449 + $0xfa0] sm:$0xff]
        %v1172 = vld [vmem:[%s449 + $0xfa8] sm:$0xff]
        %v1173 = vld [vmem:[%s449 + $0xfb0] sm:$0xff]
        %v1174 = vld [vmem:[%s449 + $0xfb8] sm:$0xff]
        %v1175 = vld [vmem:[%s449 + $0xfc0] sm:$0xff]
        %v1176 = vld [vmem:[%s449 + $0xfc8] sm:$0xff]
        %v1177 = vld [vmem:[%s449 + $0xfd0] sm:$0xff]
        %v1178 = vld [vmem:[%s449 + $0xfd8] sm:$0xff]
        %v1179 = vld [vmem:[%s449 + $0xfe0] sm:$0xff]
        %v1180 = vld [vmem:[%s449 + $0xfe8] sm:$0xff]
        %v1181 = vld [vmem:[%s449 + $0xff0] sm:$0xff]
        %v1182 = vld [vmem:[%s449 + $0xff8] sm:$0xff]
        %v1183 = vld [vmem:[%s449 + $0x1000] sm:$0xff]
        %v1184 = vld [vmem:[%s449 + $0x1008] sm:$0xff]
        %v1185 = vld [vmem:[%s449 + $0x1010] sm:$0xff]
        %v1186 = vld [vmem:[%s449 + $0x1018] sm:$0xff]
        %v1187 = vld [vmem:[%s449 + $0x1020] sm:$0xff]
        %v1188 = vld [vmem:[%s449 + $0x1028] sm:$0xff]
        %v1189 = vld [vmem:[%s449 + $0x1030] sm:$0xff]
        %v1190 = vld [vmem:[%s449 + $0x1038] sm:$0xff]
        %v1191 = vld [vmem:[%s449 + $0x1040] sm:$0xff]
        %v1192 = vld [vmem:[%s449 + $0x1048] sm:$0xff]
        %v1193 = vld [vmem:[%s449 + $0x1050] sm:$0xff]
        %v1194 = vld [vmem:[%s449 + $0x1058] sm:$0xff]
        %v1195 = vld [vmem:[%s449 + $0x1060] sm:$0xff]
        %v1196 = vld [vmem:[%s449 + $0x1068] sm:$0xff]
        %v1197 = vld [vmem:[%s449 + $0x1070] sm:$0xff]
        %v1198 = vld [vmem:[%s449 + $0x1078] sm:$0xff]
        %v1199 = vld [vmem:[%s449 + $0x1080] sm:$0xff]
        %v1200 = vld [vmem:[%s449 + $0x1088] sm:$0xff]
        %v1201 = vld [vmem:[%s449 + $0x1090] sm:$0xff]
        %v1202 = vld [vmem:[%s449 + $0x1098] sm:$0xff]
        %v1203 = vld [vmem:[%s449 + $0x10a0] sm:$0xff]
        %v1204 = vld [vmem:[%s449 + $0x10a8] sm:$0xff]
        %v1205 = vld [vmem:[%s449 + $0x10b0] sm:$0xff]
        %v1206 = vld [vmem:[%s449 + $0x10b8] sm:$0xff]
        %v1207 = vld [vmem:[%s449 + $0x10c0] sm:$0xff]
        %v1208 = vld [vmem:[%s449 + $0x10c8] sm:$0xff]
        %v1209 = vld [vmem:[%s449 + $0x10d0] sm:$0xff]
        %v1210 = vld [vmem:[%s449 + $0x10d8] sm:$0xff]
        %v1211 = vld [vmem:[%s449 + $0x10e0] sm:$0xff]
        %v1212 = vld [vmem:[%s449 + $0x10e8] sm:$0xff]
        %v1213 = vld [vmem:[%s449 + $0x10f0] sm:$0xff]
        %v1214 = vld [vmem:[%s449 + $0x10f8] sm:$0xff]
        %v1215 = vld [vmem:[%s449 + $0x1100] sm:$0xff]
        %v1216 = vld [vmem:[%s449 + $0x1108] sm:$0xff]
        %v1217 = vld [vmem:[%s449 + $0x1110] sm:$0xff]
        %v1218 = vld [vmem:[%s449 + $0x1118] sm:$0xff]
        %v1219 = vld [vmem:[%s449 + $0x1120] sm:$0xff]
        %v1220 = vld [vmem:[%s449 + $0x1128] sm:$0xff]
        %v1221 = vld [vmem:[%s449 + $0x1130] sm:$0xff]
        %v1222 = vld [vmem:[%s449 + $0x1138] sm:$0xff]
        %v1223 = vld [vmem:[%s449 + $0x1140] sm:$0xff]
        %v1224 = vld [vmem:[%s449 + $0x1148] sm:$0xff]
        %v1225 = vld [vmem:[%s449 + $0x1150] sm:$0xff]
        %v1226 = vld [vmem:[%s449 + $0x1158] sm:$0xff]
        %v1227 = vld [vmem:[%s449 + $0x1160] sm:$0xff]
        %v1228 = vld [vmem:[%s449 + $0x1168] sm:$0xff]
        %v1229 = vld [vmem:[%s449 + $0x1170] sm:$0xff]
        %v1230 = vld [vmem:[%s449 + $0x1178] sm:$0xff]
        %v1231 = vld [vmem:[%s449 + $0x1180] sm:$0xff]
        %v1232 = vld [vmem:[%s449 + $0x1188] sm:$0xff]
        %v1233 = vld [vmem:[%s449 + $0x1190] sm:$0xff]
        %v1234 = vld [vmem:[%s449 + $0x1198] sm:$0xff]
        %v1235 = vld [vmem:[%s449 + $0x11a0] sm:$0xff]
        %v1236 = vld [vmem:[%s449 + $0x11a8] sm:$0xff]
        %v1237 = vld [vmem:[%s449 + $0x11b0] sm:$0xff]
        %v1238 = vld [vmem:[%s449 + $0x11b8] sm:$0xff]
        %v1239 = vld [vmem:[%s449 + $0x11c0] sm:$0xff]
        %v1240 = vld [vmem:[%s449 + $0x11c8] sm:$0xff]
        %v1241 = vld [vmem:[%s449 + $0x11d0] sm:$0xff]
        %v1242 = vld [vmem:[%s449 + $0x11d8] sm:$0xff]
        %v1243 = vld [vmem:[%s449 + $0x11e0] sm:$0xff]
        %v1244 = vld [vmem:[%s449 + $0x11e8] sm:$0xff]
        %v1245 = vld [vmem:[%s449 + $0x11f0] sm:$0xff]
        %v1246 = vld [vmem:[%s449 + $0x11f8] sm:$0xff]
        %v1247 = vld [vmem:[%s449 + $0x1200] sm:$0xff]
        %v1248 = vld [vmem:[%s449 + $0x1208] sm:$0xff]
        %v1249 = vld [vmem:[%s449 + $0x1210] sm:$0xff]
        %v1250 = vld [vmem:[%s449 + $0x1218] sm:$0xff]
        %v1251 = vld [vmem:[%s449 + $0x1220] sm:$0xff]
        %v1252 = vld [vmem:[%s449 + $0x1228] sm:$0xff]
        %v1253 = vld [vmem:[%s449 + $0x1230] sm:$0xff]
        %v1254 = vld [vmem:[%s449 + $0x1238] sm:$0xff]
        %v1255 = vld [vmem:[%s449 + $0x1240] sm:$0xff]
        %v1256 = vld [vmem:[%s449 + $0x1248] sm:$0xff]
        %v1257 = vld [vmem:[%s449 + $0x1250] sm:$0xff]
        %v1258 = vld [vmem:[%s449 + $0x1258] sm:$0xff]
        %v1259 = vld [vmem:[%s449 + $0x1260] sm:$0xff]
        %v1260 = vld [vmem:[%s449 + $0x1268] sm:$0xff]
        %v1261 = vld [vmem:[%s449 + $0x1270] sm:$0xff]
        %v1262 = vld [vmem:[%s449 + $0x1278] sm:$0xff]
        %v1263 = vld [vmem:[%s449 + $0x1280] sm:$0xff]
        %v1264 = vld [vmem:[%s449 + $0x1288] sm:$0xff]
        %v1265 = vld [vmem:[%s449 + $0x1290] sm:$0xff]
        %v1266 = vld [vmem:[%s449 + $0x1298] sm:$0xff]
        %v1267 = vld [vmem:[%s449 + $0x12a0] sm:$0xff]
        %v1268 = vld [vmem:[%s449 + $0x12a8] sm:$0xff]
        %v1269 = vld [vmem:[%s449 + $0x12b0] sm:$0xff]
        %v1270 = vld [vmem:[%s449 + $0x12b8] sm:$0xff]
        %v1271 = vld [vmem:[%s449 + $0x12c0] sm:$0xff]
        %v1272 = vld [vmem:[%s449 + $0x12c8] sm:$0xff]
        %v1273 = vld [vmem:[%s449 + $0x12d0] sm:$0xff]
        %v1274 = vld [vmem:[%s449 + $0x12d8] sm:$0xff]
        %v1275 = vld [vmem:[%s449 + $0x12e0] sm:$0xff]
        %v1276 = vld [vmem:[%s449 + $0x12e8] sm:$0xff]
        %v1277 = vld [vmem:[%s449 + $0x12f0] sm:$0xff]
        %v1278 = vld [vmem:[%s449 + $0x12f8] sm:$0xff]
        %v1279 = vld [vmem:[%s449 + $0x1300] sm:$0xff]
        %v1280 = vld [vmem:[%s449 + $0x1308] sm:$0xff]
        %v1281 = vld [vmem:[%s449 + $0x1310] sm:$0xff]
        %v1282 = vld [vmem:[%s449 + $0x1318] sm:$0xff]
        %v1283 = vld [vmem:[%s449 + $0x1320] sm:$0xff]
        %v1284 = vld [vmem:[%s449 + $0x1328] sm:$0xff]
        %v1285 = vld [vmem:[%s449 + $0x1330] sm:$0xff]
        %v1286 = vld [vmem:[%s449 + $0x1338] sm:$0xff]
        %v1287 = vld [vmem:[%s449 + $0x1340] sm:$0xff]
        %v1288 = vld [vmem:[%s449 + $0x1348] sm:$0xff]
        %v1289 = vld [vmem:[%s449 + $0x1350] sm:$0xff]
        %v1290 = vld [vmem:[%s449 + $0x1358] sm:$0xff]
        %v1291 = vld [vmem:[%s449 + $0x1360] sm:$0xff]
        %v1292 = vld [vmem:[%s449 + $0x1368] sm:$0xff]
        %v1293 = vld [vmem:[%s449 + $0x1370] sm:$0xff]
        %v1294 = vld [vmem:[%s449 + $0x1378] sm:$0xff]
        %v1295 = vld [vmem:[%s449 + $0x1380] sm:$0xff]
        %v1296 = vld [vmem:[%s449 + $0x1388] sm:$0xff]
        %v1297 = vld [vmem:[%s449 + $0x1390] sm:$0xff]
        %v1298 = vld [vmem:[%s449 + $0x1398] sm:$0xff]
        %v1299 = vld [vmem:[%s449 + $0x13a0] sm:$0xff]
        %v1300 = vld [vmem:[%s449 + $0x13a8] sm:$0xff]
        %v1301 = vld [vmem:[%s449 + $0x13b0] sm:$0xff]
        %v1302 = vld [vmem:[%s449 + $0x13b8] sm:$0xff]
        %v1303 = vld [vmem:[%s449 + $0x13c0] sm:$0xff]
        %v1304 = vld [vmem:[%s449 + $0x13c8] sm:$0xff]
        %v1305 = vld [vmem:[%s449 + $0x13d0] sm:$0xff]
        %v1306 = vld [vmem:[%s449 + $0x13d8] sm:$0xff]
        %v1307 = vld [vmem:[%s449 + $0x13e0] sm:$0xff]
        %v1308 = vld [vmem:[%s449 + $0x13e8] sm:$0xff]
        %v1309 = vld [vmem:[%s449 + $0x13f0] sm:$0xff]
        %v1310 = vld [vmem:[%s449 + $0x13f8] sm:$0xff]
        %v1311 = vld [vmem:[%s449 + $0x1400] sm:$0xff]
        %v1312 = vld [vmem:[%s449 + $0x1408] sm:$0xff]
        %v1313 = vld [vmem:[%s449 + $0x1410] sm:$0xff]
        %v1314 = vld [vmem:[%s449 + $0x1418] sm:$0xff]
        %v1315 = vld [vmem:[%s449 + $0x1420] sm:$0xff]
        %v1316 = vld [vmem:[%s449 + $0x1428] sm:$0xff]
        %v1317 = vld [vmem:[%s449 + $0x1430] sm:$0xff]
        %v1318 = vld [vmem:[%s449 + $0x1438] sm:$0xff]
        %v1319 = vld [vmem:[%s449 + $0x1440] sm:$0xff]
        %v1320 = vld [vmem:[%s449 + $0x1448] sm:$0xff]
        %v1321 = vld [vmem:[%s449 + $0x1450] sm:$0xff]
        %v1322 = vld [vmem:[%s449 + $0x1458] sm:$0xff]
        %v1323 = vld [vmem:[%s449 + $0x1460] sm:$0xff]
        %v1324 = vld [vmem:[%s449 + $0x1468] sm:$0xff]
        %v1325 = vld [vmem:[%s449 + $0x1470] sm:$0xff]
        %v1326 = vld [vmem:[%s449 + $0x1478] sm:$0xff]
        %v1327 = vld [vmem:[%s449 + $0x1480] sm:$0xff]
        %v1328 = vld [vmem:[%s449 + $0x1488] sm:$0xff]
        %v1329 = vld [vmem:[%s449 + $0x1490] sm:$0xff]
        %v1330 = vld [vmem:[%s449 + $0x1498] sm:$0xff]
        %v1331 = vld [vmem:[%s449 + $0x14a0] sm:$0xff]
        %v1332 = vld [vmem:[%s449 + $0x14a8] sm:$0xff]
        %v1333 = vld [vmem:[%s449 + $0x14b0] sm:$0xff]
        %v1334 = vld [vmem:[%s449 + $0x14b8] sm:$0xff]
        %v1335 = vld [vmem:[%s449 + $0x14c0] sm:$0xff]
        %v1336 = vld [vmem:[%s449 + $0x14c8] sm:$0xff]
        %v1337 = vld [vmem:[%s449 + $0x14d0] sm:$0xff]
        %v1338 = vld [vmem:[%s449 + $0x14d8] sm:$0xff]
        %v1339 = vld [vmem:[%s449 + $0x14e0] sm:$0xff]
        %v1340 = vld [vmem:[%s449 + $0x14e8] sm:$0xff]
        %v1341 = vld [vmem:[%s449 + $0x14f0] sm:$0xff]
        %v1342 = vld [vmem:[%s449 + $0x14f8] sm:$0xff]
        %v1343 = vld [vmem:[%s449 + $0x1500] sm:$0xff]
        %v1344 = vld [vmem:[%s449 + $0x1508] sm:$0xff]
        %v1345 = vld [vmem:[%s449 + $0x1510] sm:$0xff]
        %v1346 = vld [vmem:[%s449 + $0x1518] sm:$0xff]
        %v1347 = vld [vmem:[%s449 + $0x1520] sm:$0xff]
        %v1348 = vld [vmem:[%s449 + $0x1528] sm:$0xff]
        %v1349 = vld [vmem:[%s449 + $0x1530] sm:$0xff]
        %v1350 = vld [vmem:[%s449 + $0x1538] sm:$0xff]
        %v1351 = vld [vmem:[%s449 + $0x1540] sm:$0xff]
        %v1352 = vld [vmem:[%s449 + $0x1548] sm:$0xff]
        %v1353 = vld [vmem:[%s449 + $0x1550] sm:$0xff]
        %v1354 = vld [vmem:[%s449 + $0x1558] sm:$0xff]
        %v1355 = vld [vmem:[%s449 + $0x1560] sm:$0xff]
        %v1356 = vld [vmem:[%s449 + $0x1568] sm:$0xff]
        %v1357 = vld [vmem:[%s449 + $0x1570] sm:$0xff]
        %v1358 = vld [vmem:[%s449 + $0x1578] sm:$0xff]
        %v1359 = vld [vmem:[%s449 + $0x1580] sm:$0xff]
        %v1360 = vld [vmem:[%s449 + $0x1588] sm:$0xff]
        %v1361 = vld [vmem:[%s449 + $0x1590] sm:$0xff]
        %v1362 = vld [vmem:[%s449 + $0x1598] sm:$0xff]
        %v1363 = vld [vmem:[%s449 + $0x15a0] sm:$0xff]
        %v1364 = vld [vmem:[%s449 + $0x15a8] sm:$0xff]
        %v1365 = vld [vmem:[%s449 + $0x15b0] sm:$0xff]
        %v1366 = vld [vmem:[%s449 + $0x15b8] sm:$0xff]
        %v1367 = vld [vmem:[%s449 + $0x15c0] sm:$0xff]
        %v1368 = vld [vmem:[%s449 + $0x15c8] sm:$0xff]
        %v1369 = vld [vmem:[%s449 + $0x15d0] sm:$0xff]
        %v1370 = vld [vmem:[%s449 + $0x15d8] sm:$0xff]
        %v1371 = vld [vmem:[%s449 + $0x15e0] sm:$0xff]
        %v1372 = vld [vmem:[%s449 + $0x15e8] sm:$0xff]
        %v1373 = vld [vmem:[%s449 + $0x15f0] sm:$0xff]
        %v1374 = vld [vmem:[%s449 + $0x15f8] sm:$0xff]
        %v1375 = vld [vmem:[%s449 + $0x1600] sm:$0xff]
        %v1376 = vld [vmem:[%s449 + $0x1608] sm:$0xff]
        %v1377 = vld [vmem:[%s449 + $0x1610] sm:$0xff]
        %v1378 = vld [vmem:[%s449 + $0x1618] sm:$0xff]
        %v1379 = vld [vmem:[%s449 + $0x1620] sm:$0xff]
        %v1380 = vld [vmem:[%s449 + $0x1628] sm:$0xff]
        %v1381 = vld [vmem:[%s449 + $0x1630] sm:$0xff]
        %v1382 = vld [vmem:[%s449 + $0x1638] sm:$0xff]
        %v1383 = vld [vmem:[%s449 + $0x1640] sm:$0xff]
        %v1384 = vld [vmem:[%s449 + $0x1648] sm:$0xff]
        %v1385 = vld [vmem:[%s449 + $0x1650] sm:$0xff]
        %v1386 = vld [vmem:[%s449 + $0x1658] sm:$0xff]
        %v1387 = vld [vmem:[%s449 + $0x1660] sm:$0xff]
        %v1388 = vld [vmem:[%s449 + $0x1668] sm:$0xff]
        %v1389 = vld [vmem:[%s449 + $0x1670] sm:$0xff]
        %v1390 = vld [vmem:[%s449 + $0x1678] sm:$0xff]
        %v1391 = vld [vmem:[%s449 + $0x1680] sm:$0xff]
        %v1392 = vld [vmem:[%s449 + $0x1688] sm:$0xff]
        %v1393 = vld [vmem:[%s449 + $0x1690] sm:$0xff]
        %v1394 = vld [vmem:[%s449 + $0x1698] sm:$0xff]
        %v1395 = vld [vmem:[%s449 + $0x16a0] sm:$0xff]
        %v1396 = vld [vmem:[%s449 + $0x16a8] sm:$0xff]
        %v1397 = vld [vmem:[%s449 + $0x16b0] sm:$0xff]
        %v1398 = vld [vmem:[%s449 + $0x16b8] sm:$0xff]
        %v1399 = vld [vmem:[%s449 + $0x16c0] sm:$0xff]
        %v1400 = vld [vmem:[%s449 + $0x16c8] sm:$0xff]
        %v1401 = vld [vmem:[%s449 + $0x16d0] sm:$0xff]
        %v1402 = vld [vmem:[%s449 + $0x16d8] sm:$0xff]
        %v1403 = vld [vmem:[%s449 + $0x16e0] sm:$0xff]
        %v1404 = vld [vmem:[%s449 + $0x16e8] sm:$0xff]
        %v1405 = vld [vmem:[%s449 + $0x16f0] sm:$0xff]
        %v1406 = vld [vmem:[%s449 + $0x16f8] sm:$0xff]
        %v1407 = vld [vmem:[%s449 + $0x1700] sm:$0xff]
        %v1408 = vld [vmem:[%s449 + $0x1708] sm:$0xff]
        %v1409 = vld [vmem:[%s449 + $0x1710] sm:$0xff]
        %v1410 = vld [vmem:[%s449 + $0x1718] sm:$0xff]
        %v1411 = vld [vmem:[%s449 + $0x1720] sm:$0xff]
        %v1412 = vld [vmem:[%s449 + $0x1728] sm:$0xff]
        %v1413 = vld [vmem:[%s449 + $0x1730] sm:$0xff]
        %v1414 = vld [vmem:[%s449 + $0x1738] sm:$0xff]
        %v1415 = vld [vmem:[%s449 + $0x1740] sm:$0xff]
        %v1416 = vld [vmem:[%s449 + $0x1748] sm:$0xff]
        %v1417 = vld [vmem:[%s449 + $0x1750] sm:$0xff]
        %v1418 = vld [vmem:[%s449 + $0x1758] sm:$0xff]
        %v1419 = vld [vmem:[%s449 + $0x1760] sm:$0xff]
        %v1420 = vld [vmem:[%s449 + $0x1768] sm:$0xff]
        %v1421 = vld [vmem:[%s449 + $0x1770] sm:$0xff]
        %v1422 = vld [vmem:[%s449 + $0x1778] sm:$0xff]
        %v1423 = vld [vmem:[%s449 + $0x1780] sm:$0xff]
        %v1424 = vld [vmem:[%s449 + $0x1788] sm:$0xff]
        %v1425 = vld [vmem:[%s449 + $0x1790] sm:$0xff]
        %v1426 = vld [vmem:[%s449 + $0x1798] sm:$0xff]
        %v1427 = vld [vmem:[%s449 + $0x17a0] sm:$0xff]
        %v1428 = vld [vmem:[%s449 + $0x17a8] sm:$0xff]
        %v1429 = vld [vmem:[%s449 + $0x17b0] sm:$0xff]
        %v1430 = vld [vmem:[%s449 + $0x17b8] sm:$0xff]
        %v1431 = vld [vmem:[%s449 + $0x17c0] sm:$0xff]
        %v1432 = vld [vmem:[%s449 + $0x17c8] sm:$0xff]
        %v1433 = vld [vmem:[%s449 + $0x17d0] sm:$0xff]
        %v1434 = vld [vmem:[%s449 + $0x17d8] sm:$0xff]
        %v1435 = vld [vmem:[%s449 + $0x17e0] sm:$0xff]
        %v1436 = vld [vmem:[%s449 + $0x17e8] sm:$0xff]
        %v1437 = vld [vmem:[%s449 + $0x17f0] sm:$0xff]
        %v1438 = vld [vmem:[%s449 + $0x17f8] sm:$0xff]
        %v1439 = vld [vmem:[%s449 + $0x1800] sm:$0xff]
        %v1440 = vld [vmem:[%s449 + $0x1808] sm:$0xff]
        %v1441 = vld [vmem:[%s449 + $0x1810] sm:$0xff]
        %v1442 = vld [vmem:[%s449 + $0x1818] sm:$0xff]
        %v1443 = vld [vmem:[%s449 + $0x1820] sm:$0xff]
        %v1444 = vld [vmem:[%s449 + $0x1828] sm:$0xff]
        %v1445 = vld [vmem:[%s449 + $0x1830] sm:$0xff]
        %v1446 = vld [vmem:[%s449 + $0x1838] sm:$0xff]
        %v1447 = vld [vmem:[%s449 + $0x1840] sm:$0xff]
        %v1448 = vld [vmem:[%s449 + $0x1848] sm:$0xff]
        %v1449 = vld [vmem:[%s449 + $0x1850] sm:$0xff]
        %v1450 = vld [vmem:[%s449 + $0x1858] sm:$0xff]
        %v1451 = vld [vmem:[%s449 + $0x1860] sm:$0xff]
        %v1452 = vld [vmem:[%s449 + $0x1868] sm:$0xff]
        %v1453 = vld [vmem:[%s449 + $0x1870] sm:$0xff]
        %v1454 = vld [vmem:[%s449 + $0x1878] sm:$0xff]
        %v1455 = vld [vmem:[%s449 + $0x1880] sm:$0xff]
        %v1456 = vld [vmem:[%s449 + $0x1888] sm:$0xff]
        %v1457 = vld [vmem:[%s449 + $0x1890] sm:$0xff]
        %v1458 = vld [vmem:[%s449 + $0x1898] sm:$0xff]
        %v1459 = vld [vmem:[%s449 + $0x18a0] sm:$0xff]
        %v1460 = vld [vmem:[%s449 + $0x18a8] sm:$0xff]
        %v1461 = vld [vmem:[%s449 + $0x18b0] sm:$0xff]
        %v1462 = vld [vmem:[%s449 + $0x18b8] sm:$0xff]
        %v1463 = vld [vmem:[%s449 + $0x18c0] sm:$0xff]
        %v1464 = vld [vmem:[%s449 + $0x18c8] sm:$0xff]
        %v1465 = vld [vmem:[%s449 + $0x18d0] sm:$0xff]
        %v1466 = vld [vmem:[%s449 + $0x18d8] sm:$0xff]
        %v1467 = vld [vmem:[%s449 + $0x18e0] sm:$0xff]
        %v1468 = vld [vmem:[%s449 + $0x18e8] sm:$0xff]
        %v1469 = vld [vmem:[%s449 + $0x18f0] sm:$0xff]
        %v1470 = vld [vmem:[%s449 + $0x18f8] sm:$0xff]
        %v1471 = vld [vmem:[%s449 + $0x1900] sm:$0xff]
        %v1472 = vld [vmem:[%s449 + $0x1908] sm:$0xff]
        %v1473 = vld [vmem:[%s449 + $0x1910] sm:$0xff]
        %v1474 = vld [vmem:[%s449 + $0x1918] sm:$0xff]
        %v1475 = vld [vmem:[%s449 + $0x1920] sm:$0xff]
        %v1476 = vld [vmem:[%s449 + $0x1928] sm:$0xff]
        %v1477 = vld [vmem:[%s449 + $0x1930] sm:$0xff]
        %v1478 = vld [vmem:[%s449 + $0x1938] sm:$0xff]
        %v1479 = vld [vmem:[%s449 + $0x1940] sm:$0xff]
        %v1480 = vld [vmem:[%s449 + $0x1948] sm:$0xff]
        %v1481 = vld [vmem:[%s449 + $0x1950] sm:$0xff]
        %v1482 = vld [vmem:[%s449 + $0x1958] sm:$0xff]
        %v1483 = vld [vmem:[%s449 + $0x1960] sm:$0xff]
        %v1484 = vld [vmem:[%s449 + $0x1968] sm:$0xff]
        %v1485 = vld [vmem:[%s449 + $0x1970] sm:$0xff]
        %v1486 = vld [vmem:[%s449 + $0x1978] sm:$0xff]
        %v1487 = vld [vmem:[%s449 + $0x1980] sm:$0xff]
        %v1488 = vld [vmem:[%s449 + $0x1988] sm:$0xff]
        %v1489 = vld [vmem:[%s449 + $0x1990] sm:$0xff]
        %v1490 = vld [vmem:[%s449 + $0x1998] sm:$0xff]
        %v1491 = vld [vmem:[%s449 + $0x19a0] sm:$0xff]
        %v1492 = vld [vmem:[%s449 + $0x19a8] sm:$0xff]
        %v1493 = vld [vmem:[%s449 + $0x19b0] sm:$0xff]
        %v1494 = vld [vmem:[%s449 + $0x19b8] sm:$0xff]
        %v1495 = vld [vmem:[%s449 + $0x19c0] sm:$0xff]
        %v1496 = vld [vmem:[%s449 + $0x19c8] sm:$0xff]
        %v1497 = vld [vmem:[%s449 + $0x19d0] sm:$0xff]
        %v1498 = vld [vmem:[%s449 + $0x19d8] sm:$0xff]
        %v1499 = vld [vmem:[%s449 + $0x19e0] sm:$0xff]
        %v1500 = vld [vmem:[%s449 + $0x19e8] sm:$0xff]
        %v1501 = vld [vmem:[%s449 + $0x19f0] sm:$0xff]
        %v1502 = vld [vmem:[%s449 + $0x19f8] sm:$0xff]
        %v1503 = vld [vmem:[%s449 + $0x1a00] sm:$0xff]
        %v1504 = vld [vmem:[%s449 + $0x1a08] sm:$0xff]
        %v1505 = vld [vmem:[%s449 + $0x1a10] sm:$0xff]
        %v1506 = vld [vmem:[%s449 + $0x1a18] sm:$0xff]
        %v1507 = vld [vmem:[%s449 + $0x1a20] sm:$0xff]
        %v1508 = vld [vmem:[%s449 + $0x1a28] sm:$0xff]
        %v1509 = vld [vmem:[%s449 + $0x1a30] sm:$0xff]
        %v1510 = vld [vmem:[%s449 + $0x1a38] sm:$0xff]
        %v1511 = vld [vmem:[%s449 + $0x1a40] sm:$0xff]
        %v1512 = vld [vmem:[%s449 + $0x1a48] sm:$0xff]
        %v1513 = vld [vmem:[%s449 + $0x1a50] sm:$0xff]
        %v1514 = vld [vmem:[%s449 + $0x1a58] sm:$0xff]
        %v1515 = vld [vmem:[%s449 + $0x1a60] sm:$0xff]
        %v1516 = vld [vmem:[%s449 + $0x1a68] sm:$0xff]
        %v1517 = vld [vmem:[%s449 + $0x1a70] sm:$0xff]
        %v1518 = vld [vmem:[%s449 + $0x1a78] sm:$0xff]
        %v1519 = vld [vmem:[%s449 + $0x1a80] sm:$0xff]
        %v1520 = vld [vmem:[%s449 + $0x1a88] sm:$0xff]
        %v1521 = vld [vmem:[%s449 + $0x1a90] sm:$0xff]
        %v1522 = vld [vmem:[%s449 + $0x1a98] sm:$0xff]
        %v1523 = vld [vmem:[%s449 + $0x1aa0] sm:$0xff]
        %v1524 = vld [vmem:[%s449 + $0x1aa8] sm:$0xff]
        %v1525 = vld [vmem:[%s449 + $0x1ab0] sm:$0xff]
        %v1526 = vld [vmem:[%s449 + $0x1ab8] sm:$0xff]
        %v1527 = vld [vmem:[%s449 + $0x1ac0] sm:$0xff]
        %v1528 = vld [vmem:[%s449 + $0x1ac8] sm:$0xff]
        %v1529 = vld [vmem:[%s449 + $0x1ad0] sm:$0xff]
        %v1530 = vld [vmem:[%s449 + $0x1ad8] sm:$0xff]
        %v1531 = vld [vmem:[%s449 + $0x1ae0] sm:$0xff]
        %v1532 = vld [vmem:[%s449 + $0x1ae8] sm:$0xff]
        %v1533 = vld [vmem:[%s449 + $0x1af0] sm:$0xff]
        %v1534 = vld [vmem:[%s449 + $0x1af8] sm:$0xff]
        %v1535 = vld [vmem:[%s449 + $0x1b00] sm:$0xff]
        %v1536 = vld [vmem:[%s449 + $0x1b08] sm:$0xff]
        %v1537 = vld [vmem:[%s449 + $0x1b10] sm:$0xff]
        %v1538 = vld [vmem:[%s449 + $0x1b18] sm:$0xff]
        %v1539 = vld [vmem:[%s449 + $0x1b20] sm:$0xff]
        %v1540 = vld [vmem:[%s449 + $0x1b28] sm:$0xff]
        %v1541 = vld [vmem:[%s449 + $0x1b30] sm:$0xff]
        %v1542 = vld [vmem:[%s449 + $0x1b38] sm:$0xff]
        %v1543 = vld [vmem:[%s449 + $0x1b40] sm:$0xff]
        %v1544 = vld [vmem:[%s449 + $0x1b48] sm:$0xff]
        %v1545 = vld [vmem:[%s449 + $0x1b50] sm:$0xff]
        %v1546 = vld [vmem:[%s449 + $0x1b58] sm:$0xff]
        %v1547 = vld [vmem:[%s449 + $0x1b60] sm:$0xff]
        %v1548 = vld [vmem:[%s449 + $0x1b68] sm:$0xff]
        %v1549 = vld [vmem:[%s449 + $0x1b70] sm:$0xff]
        %v1550 = vld [vmem:[%s449 + $0x1b78] sm:$0xff]
        %v1551 = vld [vmem:[%s449 + $0x1b80] sm:$0xff]
        %v1552 = vld [vmem:[%s449 + $0x1b88] sm:$0xff]
        %v1553 = vld [vmem:[%s449 + $0x1b90] sm:$0xff]
        %v1554 = vld [vmem:[%s449 + $0x1b98] sm:$0xff]
        %v1555 = vld [vmem:[%s449 + $0x1ba0] sm:$0xff]
        %v1556 = vld [vmem:[%s449 + $0x1ba8] sm:$0xff]
        %v1557 = vld [vmem:[%s449 + $0x1bb0] sm:$0xff]
        %v1558 = vld [vmem:[%s449 + $0x1bb8] sm:$0xff]
        %v1559 = vld [vmem:[%s449 + $0x1bc0] sm:$0xff]
        %v1560 = vld [vmem:[%s449 + $0x1bc8] sm:$0xff]
        %v1561 = vld [vmem:[%s449 + $0x1bd0] sm:$0xff]
        %v1562 = vld [vmem:[%s449 + $0x1bd8] sm:$0xff]
        %v1563 = vld [vmem:[%s449 + $0x1be0] sm:$0xff]
        %v1564 = vld [vmem:[%s449 + $0x1be8] sm:$0xff]
        %v1565 = vld [vmem:[%s449 + $0x1bf0] sm:$0xff]
        %v1566 = vld [vmem:[%s449 + $0x1bf8] sm:$0xff]
        %v1567 = vld [vmem:[%s449 + $0x1c00] sm:$0xff]
        %v1568 = vld [vmem:[%s449 + $0x1c08] sm:$0xff]
        %v1569 = vld [vmem:[%s449 + $0x1c10] sm:$0xff]
        %v1570 = vld [vmem:[%s449 + $0x1c18] sm:$0xff]
        %v1571 = vld [vmem:[%s449 + $0x1c20] sm:$0xff]
        %v1572 = vld [vmem:[%s449 + $0x1c28] sm:$0xff]
        %v1573 = vld [vmem:[%s449 + $0x1c30] sm:$0xff]
        %v1574 = vld [vmem:[%s449 + $0x1c38] sm:$0xff]
        %v1575 = vld [vmem:[%s449 + $0x1c40] sm:$0xff]
        %v1576 = vld [vmem:[%s449 + $0x1c48] sm:$0xff]
        %v1577 = vld [vmem:[%s449 + $0x1c50] sm:$0xff]
        %v1578 = vld [vmem:[%s449 + $0x1c58] sm:$0xff]
        %v1579 = vld [vmem:[%s449 + $0x1c60] sm:$0xff]
        %v1580 = vld [vmem:[%s449 + $0x1c68] sm:$0xff]
        %v1581 = vld [vmem:[%s449 + $0x1c70] sm:$0xff]
        %v1582 = vld [vmem:[%s449 + $0x1c78] sm:$0xff]
        %v1583 = vld [vmem:[%s449 + $0x1c80] sm:$0xff]
        %v1584 = vld [vmem:[%s449 + $0x1c88] sm:$0xff]
        %v1585 = vld [vmem:[%s449 + $0x1c90] sm:$0xff]
        %v1586 = vld [vmem:[%s449 + $0x1c98] sm:$0xff]
        %v1587 = vld [vmem:[%s449 + $0x1ca0] sm:$0xff]
        %v1588 = vld [vmem:[%s449 + $0x1ca8] sm:$0xff]
        %v1589 = vld [vmem:[%s449 + $0x1cb0] sm:$0xff]
        %v1590 = vld [vmem:[%s449 + $0x1cb8] sm:$0xff]
        %v1591 = vld [vmem:[%s449 + $0x1cc0] sm:$0xff]
        %v1592 = vld [vmem:[%s449 + $0x1cc8] sm:$0xff]
        %v1593 = vld [vmem:[%s449 + $0x1cd0] sm:$0xff]
        %v1594 = vld [vmem:[%s449 + $0x1cd8] sm:$0xff]
        %v1595 = vld [vmem:[%s449 + $0x1ce0] sm:$0xff]
        %v1596 = vld [vmem:[%s449 + $0x1ce8] sm:$0xff]
        %v1597 = vld [vmem:[%s449 + $0x1cf0] sm:$0xff]
        %v1598 = vld [vmem:[%s449 + $0x1cf8] sm:$0xff]
        %v1599 = vld [vmem:[%s449 + $0x1d00] sm:$0xff]
        %v1600 = vld [vmem:[%s449 + $0x1d08] sm:$0xff]
        %v1601 = vld [vmem:[%s449 + $0x1d10] sm:$0xff]
        %v1602 = vld [vmem:[%s449 + $0x1d18] sm:$0xff]
        %v1603 = vld [vmem:[%s449 + $0x1d20] sm:$0xff]
        %v1604 = vld [vmem:[%s449 + $0x1d28] sm:$0xff]
        %v1605 = vld [vmem:[%s449 + $0x1d30] sm:$0xff]
        %v1606 = vld [vmem:[%s449 + $0x1d38] sm:$0xff]
        %v1607 = vld [vmem:[%s449 + $0x1d40] sm:$0xff]
        %v1608 = vld [vmem:[%s449 + $0x1d48] sm:$0xff]
        %v1609 = vld [vmem:[%s449 + $0x1d50] sm:$0xff]
        %v1610 = vld [vmem:[%s449 + $0x1d58] sm:$0xff]
        %v1611 = vld [vmem:[%s449 + $0x1d60] sm:$0xff]
        %v1612 = vld [vmem:[%s449 + $0x1d68] sm:$0xff]
        %v1613 = vld [vmem:[%s449 + $0x1d70] sm:$0xff]
        %v1614 = vld [vmem:[%s449 + $0x1d78] sm:$0xff]
        %v1615 = vld [vmem:[%s449 + $0x1d80] sm:$0xff]
        %v1616 = vld [vmem:[%s449 + $0x1d88] sm:$0xff]
        %v1617 = vld [vmem:[%s449 + $0x1d90] sm:$0xff]
        %v1618 = vld [vmem:[%s449 + $0x1d98] sm:$0xff]
        %v1619 = vld [vmem:[%s449 + $0x1da0] sm:$0xff]
        %v1620 = vld [vmem:[%s449 + $0x1da8] sm:$0xff]
        %v1621 = vld [vmem:[%s449 + $0x1db0] sm:$0xff]
        %v1622 = vld [vmem:[%s449 + $0x1db8] sm:$0xff]
        %v1623 = vld [vmem:[%s449 + $0x1dc0] sm:$0xff]
        %v1624 = vld [vmem:[%s449 + $0x1dc8] sm:$0xff]
        %v1625 = vld [vmem:[%s449 + $0x1dd0] sm:$0xff]
        %v1626 = vld [vmem:[%s449 + $0x1dd8] sm:$0xff]
        %v1627 = vld [vmem:[%s449 + $0x1de0] sm:$0xff]
        %v1628 = vld [vmem:[%s449 + $0x1de8] sm:$0xff]
        %v1629 = vld [vmem:[%s449 + $0x1df0] sm:$0xff]
        %v1630 = vld [vmem:[%s449 + $0x1df8] sm:$0xff]
        %v1631 = vld [vmem:[%s449 + $0x1e00] sm:$0xff]
        %v1632 = vld [vmem:[%s449 + $0x1e08] sm:$0xff]
        %v1633 = vld [vmem:[%s449 + $0x1e10] sm:$0xff]
        %v1634 = vld [vmem:[%s449 + $0x1e18] sm:$0xff]
        %v1635 = vld [vmem:[%s449 + $0x1e20] sm:$0xff]
        %v1636 = vld [vmem:[%s449 + $0x1e28] sm:$0xff]
        %v1637 = vld [vmem:[%s449 + $0x1e30] sm:$0xff]
        %v1638 = vld [vmem:[%s449 + $0x1e38] sm:$0xff]
        %v1639 = vld [vmem:[%s449 + $0x1e40] sm:$0xff]
        %v1640 = vld [vmem:[%s449 + $0x1e48] sm:$0xff]
        %v1641 = vld [vmem:[%s449 + $0x1e50] sm:$0xff]
        %v1642 = vld [vmem:[%s449 + $0x1e58] sm:$0xff]
        %v1643 = vld [vmem:[%s449 + $0x1e60] sm:$0xff]
        %v1644 = vld [vmem:[%s449 + $0x1e68] sm:$0xff]
        %v1645 = vld [vmem:[%s449 + $0x1e70] sm:$0xff]
        %v1646 = vld [vmem:[%s449 + $0x1e78] sm:$0xff]
        %v1647 = vld [vmem:[%s449 + $0x1e80] sm:$0xff]
        %v1648 = vld [vmem:[%s449 + $0x1e88] sm:$0xff]
        %v1649 = vld [vmem:[%s449 + $0x1e90] sm:$0xff]
        %v1650 = vld [vmem:[%s449 + $0x1e98] sm:$0xff]
        %v1651 = vld [vmem:[%s449 + $0x1ea0] sm:$0xff]
        %v1652 = vld [vmem:[%s449 + $0x1ea8] sm:$0xff]
        %v1653 = vld [vmem:[%s449 + $0x1eb0] sm:$0xff]
        %v1654 = vld [vmem:[%s449 + $0x1eb8] sm:$0xff]
        %v1655 = vld [vmem:[%s449 + $0x1ec0] sm:$0xff]
        %v1656 = vld [vmem:[%s449 + $0x1ec8] sm:$0xff]
        %v1657 = vld [vmem:[%s449 + $0x1ed0] sm:$0xff]
        %v1658 = vld [vmem:[%s449 + $0x1ed8] sm:$0xff]
        %v1659 = vld [vmem:[%s449 + $0x1ee0] sm:$0xff]
        %v1660 = vld [vmem:[%s449 + $0x1ee8] sm:$0xff]
        %v1661 = vld [vmem:[%s449 + $0x1ef0] sm:$0xff]
        %v1662 = vld [vmem:[%s449 + $0x1ef8] sm:$0xff]
        %v1663 = vld [vmem:[%s449 + $0x1f00] sm:$0xff]
        %v1664 = vld [vmem:[%s449 + $0x1f08] sm:$0xff]
        %v1665 = vld [vmem:[%s449 + $0x1f10] sm:$0xff]
        %v1666 = vld [vmem:[%s449 + $0x1f18] sm:$0xff]
        %v1667 = vld [vmem:[%s449 + $0x1f20] sm:$0xff]
        %v1668 = vld [vmem:[%s449 + $0x1f28] sm:$0xff]
        %v1669 = vld [vmem:[%s449 + $0x1f30] sm:$0xff]
        %v1670 = vld [vmem:[%s449 + $0x1f38] sm:$0xff]
        %v1671 = vld [vmem:[%s449 + $0x1f40] sm:$0xff]
        %v1672 = vld [vmem:[%s449 + $0x1f48] sm:$0xff]
        %v1673 = vld [vmem:[%s449 + $0x1f50] sm:$0xff]
        %v1674 = vld [vmem:[%s449 + $0x1f58] sm:$0xff]
        %v1675 = vld [vmem:[%s449 + $0x1f60] sm:$0xff]
        %v1676 = vld [vmem:[%s449 + $0x1f68] sm:$0xff]
        %v1677 = vld [vmem:[%s449 + $0x1f70] sm:$0xff]
        %v1678 = vld [vmem:[%s449 + $0x1f78] sm:$0xff]
        %v1679 = vld [vmem:[%s449 + $0x1f80] sm:$0xff]
        %v1680 = vld [vmem:[%s449 + $0x1f88] sm:$0xff]
        %v1681 = vld [vmem:[%s449 + $0x1f90] sm:$0xff]
        %v1682 = vld [vmem:[%s449 + $0x1f98] sm:$0xff]
        %v1683 = vld [vmem:[%s449 + $0x1fa0] sm:$0xff]
        %v1684 = vld [vmem:[%s449 + $0x1fa8] sm:$0xff]
        %v1685 = vld [vmem:[%s449 + $0x1fb0] sm:$0xff]
        %v1686 = vld [vmem:[%s449 + $0x1fb8] sm:$0xff]
        %v1687 = vld [vmem:[%s449 + $0x1fc0] sm:$0xff]
        %v1688 = vld [vmem:[%s449 + $0x1fc8] sm:$0xff]
        %v1689 = vld [vmem:[%s449 + $0x1fd0] sm:$0xff]
        %v1690 = vld [vmem:[%s449 + $0x1fd8] sm:$0xff]
        %v1691 = vld [vmem:[%s449 + $0x1fe0] sm:$0xff]
        %v1692 = vld [vmem:[%s449 + $0x1fe8] sm:$0xff]
        %v1693 = vld [vmem:[%s449 + $0x1ff0] sm:$0xff]
        %v1694 = vld [vmem:[%s449 + $0x1ff8] sm:$0xff]
        %v2719 = vunpack.c.l.b16 %v671
        %v2720 = vunpack.c.h.b16 %v671
        %v2721 = vunpack.c.l.b16 %v672
        %v2722 = vunpack.c.h.b16 %v672
        %v2723 = vunpack.c.l.b16 %v673
        %v2724 = vunpack.c.h.b16 %v673
        %v2725 = vunpack.c.l.b16 %v674
        %v2726 = vunpack.c.h.b16 %v674
        %v2727 = vunpack.c.l.b16 %v675
        %v2728 = vunpack.c.h.b16 %v675
        %v2729 = vunpack.c.l.b16 %v676
        %v2730 = vunpack.c.h.b16 %v676
        %v2731 = vunpack.c.l.b16 %v677
        %v2732 = vunpack.c.h.b16 %v677
        %v2733 = vunpack.c.l.b16 %v678
        %v2734 = vunpack.c.h.b16 %v678
        %v2735 = vunpack.c.l.b16 %v679
        %v2736 = vunpack.c.h.b16 %v679
        %v2737 = vunpack.c.l.b16 %v680
        %v2738 = vunpack.c.h.b16 %v680
        %v2739 = vunpack.c.l.b16 %v681
        %v2740 = vunpack.c.h.b16 %v681
        %v2741 = vunpack.c.l.b16 %v682
        %v2742 = vunpack.c.h.b16 %v682
        %v2743 = vunpack.c.l.b16 %v683
        %v2744 = vunpack.c.h.b16 %v683
        %v2745 = vunpack.c.l.b16 %v684
        %v2746 = vunpack.c.h.b16 %v684
        %v2747 = vunpack.c.l.b16 %v685
        %v2748 = vunpack.c.h.b16 %v685
        %v2749 = vunpack.c.l.b16 %v686
        %v2750 = vunpack.c.h.b16 %v686
        %v2751 = vunpack.c.l.b16 %v687
        %v2752 = vunpack.c.h.b16 %v687
        %v2753 = vunpack.c.l.b16 %v688
        %v2754 = vunpack.c.h.b16 %v688
        %v2755 = vunpack.c.l.b16 %v689
        %v2756 = vunpack.c.h.b16 %v689
        %v2757 = vunpack.c.l.b16 %v690
        %v2758 = vunpack.c.h.b16 %v690
        %v2759 = vunpack.c.l.b16 %v691
        %v2760 = vunpack.c.h.b16 %v691
        %v2761 = vunpack.c.l.b16 %v692
        %v2762 = vunpack.c.h.b16 %v692
        %v2763 = vunpack.c.l.b16 %v693
        %v2764 = vunpack.c.h.b16 %v693
        %v2765 = vunpack.c.l.b16 %v694
        %v2766 = vunpack.c.h.b16 %v694
        %v2767 = vunpack.c.l.b16 %v695
        %v2768 = vunpack.c.h.b16 %v695
        %v2769 = vunpack.c.l.b16 %v696
        %v2770 = vunpack.c.h.b16 %v696
        %v2771 = vunpack.c.l.b16 %v697
        %v2772 = vunpack.c.h.b16 %v697
        %v2773 = vunpack.c.l.b16 %v698
        %v2774 = vunpack.c.h.b16 %v698
        %v2775 = vunpack.c.l.b16 %v699
        %v2776 = vunpack.c.h.b16 %v699
        %v2777 = vunpack.c.l.b16 %v700
        %v2778 = vunpack.c.h.b16 %v700
        %v2779 = vunpack.c.l.b16 %v701
        %v2780 = vunpack.c.h.b16 %v701
        %v2781 = vunpack.c.l.b16 %v702
        %v2782 = vunpack.c.h.b16 %v702
        %v2783 = vunpack.c.l.b16 %v703
        %v2784 = vunpack.c.h.b16 %v703
        %v2785 = vunpack.c.l.b16 %v704
        %v2786 = vunpack.c.h.b16 %v704
        %v2787 = vunpack.c.l.b16 %v705
        %v2788 = vunpack.c.h.b16 %v705
        %v2789 = vunpack.c.l.b16 %v706
        %v2790 = vunpack.c.h.b16 %v706
        %v2791 = vunpack.c.l.b16 %v707
        %v2792 = vunpack.c.h.b16 %v707
        %v2793 = vunpack.c.l.b16 %v708
        %v2794 = vunpack.c.h.b16 %v708
        %v2795 = vunpack.c.l.b16 %v709
        %v2796 = vunpack.c.h.b16 %v709
        %v2797 = vunpack.c.l.b16 %v710
        %v2798 = vunpack.c.h.b16 %v710
        %v2799 = vunpack.c.l.b16 %v711
        %v2800 = vunpack.c.h.b16 %v711
        %v2801 = vunpack.c.l.b16 %v712
        %v2802 = vunpack.c.h.b16 %v712
        %v2803 = vunpack.c.l.b16 %v713
        %v2804 = vunpack.c.h.b16 %v713
        %v2805 = vunpack.c.l.b16 %v714
        %v2806 = vunpack.c.h.b16 %v714
        %v2807 = vunpack.c.l.b16 %v715
        %v2808 = vunpack.c.h.b16 %v715
        %v2809 = vunpack.c.l.b16 %v716
        %v2810 = vunpack.c.h.b16 %v716
        %v2811 = vunpack.c.l.b16 %v717
        %v2812 = vunpack.c.h.b16 %v717
        %v2813 = vunpack.c.l.b16 %v718
        %v2814 = vunpack.c.h.b16 %v718
        %v2815 = vunpack.c.l.b16 %v719
        %v2816 = vunpack.c.h.b16 %v719
        %v2817 = vunpack.c.l.b16 %v720
        %v2818 = vunpack.c.h.b16 %v720
        %v2819 = vunpack.c.l.b16 %v721
        %v2820 = vunpack.c.h.b16 %v721
        %v2821 = vunpack.c.l.b16 %v722
        %v2822 = vunpack.c.h.b16 %v722
        %v2823 = vunpack.c.l.b16 %v723
        %v2824 = vunpack.c.h.b16 %v723
        %v2825 = vunpack.c.l.b16 %v724
        %v2826 = vunpack.c.h.b16 %v724
        %v2827 = vunpack.c.l.b16 %v725
        %v2828 = vunpack.c.h.b16 %v725
        %v2829 = vunpack.c.l.b16 %v726
        %v2830 = vunpack.c.h.b16 %v726
        %v2831 = vunpack.c.l.b16 %v727
        %v2832 = vunpack.c.h.b16 %v727
        %v2833 = vunpack.c.l.b16 %v728
        %v2834 = vunpack.c.h.b16 %v728
        %v2835 = vunpack.c.l.b16 %v729
        %v2836 = vunpack.c.h.b16 %v729
        %v2837 = vunpack.c.l.b16 %v730
        %v2838 = vunpack.c.h.b16 %v730
        %v2839 = vunpack.c.l.b16 %v731
        %v2840 = vunpack.c.h.b16 %v731
        %v2841 = vunpack.c.l.b16 %v732
        %v2842 = vunpack.c.h.b16 %v732
        %v2843 = vunpack.c.l.b16 %v733
        %v2844 = vunpack.c.h.b16 %v733
        %v2845 = vunpack.c.l.b16 %v734
        %v2846 = vunpack.c.h.b16 %v734
        %v2847 = vunpack.c.l.b16 %v735
        %v2848 = vunpack.c.h.b16 %v735
        %v2849 = vunpack.c.l.b16 %v736
        %v2850 = vunpack.c.h.b16 %v736
        %v2851 = vunpack.c.l.b16 %v737
        %v2852 = vunpack.c.h.b16 %v737
        %v2853 = vunpack.c.l.b16 %v738
        %v2854 = vunpack.c.h.b16 %v738
        %v2855 = vunpack.c.l.b16 %v739
        %v2856 = vunpack.c.h.b16 %v739
        %v2857 = vunpack.c.l.b16 %v740
        %v2858 = vunpack.c.h.b16 %v740
        %v2859 = vunpack.c.l.b16 %v741
        %v2860 = vunpack.c.h.b16 %v741
        %v2861 = vunpack.c.l.b16 %v742
        %v2862 = vunpack.c.h.b16 %v742
        %v2863 = vunpack.c.l.b16 %v743
        %v2864 = vunpack.c.h.b16 %v743
        %v2865 = vunpack.c.l.b16 %v744
        %v2866 = vunpack.c.h.b16 %v744
        %v2867 = vunpack.c.l.b16 %v745
        %v2868 = vunpack.c.h.b16 %v745
        %v2869 = vunpack.c.l.b16 %v746
        %v2870 = vunpack.c.h.b16 %v746
        %v2871 = vunpack.c.l.b16 %v747
        %v2872 = vunpack.c.h.b16 %v747
        %v2873 = vunpack.c.l.b16 %v748
        %v2874 = vunpack.c.h.b16 %v748
        %v2875 = vunpack.c.l.b16 %v749
        %v2876 = vunpack.c.h.b16 %v749
        %v2877 = vunpack.c.l.b16 %v750
        %v2878 = vunpack.c.h.b16 %v750
        %v2879 = vunpack.c.l.b16 %v751
        %v2880 = vunpack.c.h.b16 %v751
        %v2881 = vunpack.c.l.b16 %v752
        %v2882 = vunpack.c.h.b16 %v752
        %v2883 = vunpack.c.l.b16 %v753
        %v2884 = vunpack.c.h.b16 %v753
        %v2885 = vunpack.c.l.b16 %v754
        %v2886 = vunpack.c.h.b16 %v754
        %v2887 = vunpack.c.l.b16 %v755
        %v2888 = vunpack.c.h.b16 %v755
        %v2889 = vunpack.c.l.b16 %v756
        %v2890 = vunpack.c.h.b16 %v756
        %v2891 = vunpack.c.l.b16 %v757
        %v2892 = vunpack.c.h.b16 %v757
        %v2893 = vunpack.c.l.b16 %v758
        %v2894 = vunpack.c.h.b16 %v758
        %v2895 = vunpack.c.l.b16 %v759
        %v2896 = vunpack.c.h.b16 %v759
        %v2897 = vunpack.c.l.b16 %v760
        %v2898 = vunpack.c.h.b16 %v760
        %v2899 = vunpack.c.l.b16 %v761
        %v2900 = vunpack.c.h.b16 %v761
        %v2901 = vunpack.c.l.b16 %v762
        %v2902 = vunpack.c.h.b16 %v762
        %v2903 = vunpack.c.l.b16 %v763
        %v2904 = vunpack.c.h.b16 %v763
        %v2905 = vunpack.c.l.b16 %v764
        %v2906 = vunpack.c.h.b16 %v764
        %v2907 = vunpack.c.l.b16 %v765
        %v2908 = vunpack.c.h.b16 %v765
        %v2909 = vunpack.c.l.b16 %v766
        %v2910 = vunpack.c.h.b16 %v766
        %v2911 = vunpack.c.l.b16 %v767
        %v2912 = vunpack.c.h.b16 %v767
        %v2913 = vunpack.c.l.b16 %v768
        %v2914 = vunpack.c.h.b16 %v768
        %v2915 = vunpack.c.l.b16 %v769
        %v2916 = vunpack.c.h.b16 %v769
        %v2917 = vunpack.c.l.b16 %v770
        %v2918 = vunpack.c.h.b16 %v770
        %v2919 = vunpack.c.l.b16 %v771
        %v2920 = vunpack.c.h.b16 %v771
        %v2921 = vunpack.c.l.b16 %v772
        %v2922 = vunpack.c.h.b16 %v772
        %v2923 = vunpack.c.l.b16 %v773
        %v2924 = vunpack.c.h.b16 %v773
        %v2925 = vunpack.c.l.b16 %v774
        %v2926 = vunpack.c.h.b16 %v774
        %v2927 = vunpack.c.l.b16 %v775
        %v2928 = vunpack.c.h.b16 %v775
        %v2929 = vunpack.c.l.b16 %v776
        %v2930 = vunpack.c.h.b16 %v776
        %v2931 = vunpack.c.l.b16 %v777
        %v2932 = vunpack.c.h.b16 %v777
        %v2933 = vunpack.c.l.b16 %v778
        %v2934 = vunpack.c.h.b16 %v778
        %v2935 = vunpack.c.l.b16 %v779
        %v2936 = vunpack.c.h.b16 %v779
        %v2937 = vunpack.c.l.b16 %v780
        %v2938 = vunpack.c.h.b16 %v780
        %v2939 = vunpack.c.l.b16 %v781
        %v2940 = vunpack.c.h.b16 %v781
        %v2941 = vunpack.c.l.b16 %v782
        %v2942 = vunpack.c.h.b16 %v782
        %v2943 = vunpack.c.l.b16 %v783
        %v2944 = vunpack.c.h.b16 %v783
        %v2945 = vunpack.c.l.b16 %v784
        %v2946 = vunpack.c.h.b16 %v784
        %v2947 = vunpack.c.l.b16 %v785
        %v2948 = vunpack.c.h.b16 %v785
        %v2949 = vunpack.c.l.b16 %v786
        %v2950 = vunpack.c.h.b16 %v786
        %v2951 = vunpack.c.l.b16 %v787
        %v2952 = vunpack.c.h.b16 %v787
        %v2953 = vunpack.c.l.b16 %v788
        %v2954 = vunpack.c.h.b16 %v788
        %v2955 = vunpack.c.l.b16 %v789
        %v2956 = vunpack.c.h.b16 %v789
        %v2957 = vunpack.c.l.b16 %v790
        %v2958 = vunpack.c.h.b16 %v790
        %v2959 = vunpack.c.l.b16 %v791
        %v2960 = vunpack.c.h.b16 %v791
        %v2961 = vunpack.c.l.b16 %v792
        %v2962 = vunpack.c.h.b16 %v792
        %v2963 = vunpack.c.l.b16 %v793
        %v2964 = vunpack.c.h.b16 %v793
        %v2965 = vunpack.c.l.b16 %v794
        %v2966 = vunpack.c.h.b16 %v794
        %v2967 = vunpack.c.l.b16 %v795
        %v2968 = vunpack.c.h.b16 %v795
        %v2969 = vunpack.c.l.b16 %v796
        %v2970 = vunpack.c.h.b16 %v796
        %v2971 = vunpack.c.l.b16 %v797
        %v2972 = vunpack.c.h.b16 %v797
        %v2973 = vunpack.c.l.b16 %v798
        %v2974 = vunpack.c.h.b16 %v798
        %v2975 = vunpack.c.l.b16 %v799
        %v2976 = vunpack.c.h.b16 %v799
        %v2977 = vunpack.c.l.b16 %v800
        %v2978 = vunpack.c.h.b16 %v800
        %v2979 = vunpack.c.l.b16 %v801
        %v2980 = vunpack.c.h.b16 %v801
        %v2981 = vunpack.c.l.b16 %v802
        %v2982 = vunpack.c.h.b16 %v802
        %v2983 = vunpack.c.l.b16 %v803
        %v2984 = vunpack.c.h.b16 %v803
        %v2985 = vunpack.c.l.b16 %v804
        %v2986 = vunpack.c.h.b16 %v804
        %v2987 = vunpack.c.l.b16 %v805
        %v2988 = vunpack.c.h.b16 %v805
        %v2989 = vunpack.c.l.b16 %v806
        %v2990 = vunpack.c.h.b16 %v806
        %v2991 = vunpack.c.l.b16 %v807
        %v2992 = vunpack.c.h.b16 %v807
        %v2993 = vunpack.c.l.b16 %v808
        %v2994 = vunpack.c.h.b16 %v808
        %v2995 = vunpack.c.l.b16 %v809
        %v2996 = vunpack.c.h.b16 %v809
        %v2997 = vunpack.c.l.b16 %v810
        %v2998 = vunpack.c.h.b16 %v810
        %v2999 = vunpack.c.l.b16 %v811
        %v3000 = vunpack.c.h.b16 %v811
        %v3001 = vunpack.c.l.b16 %v812
        %v3002 = vunpack.c.h.b16 %v812
        %v3003 = vunpack.c.l.b16 %v813
        %v3004 = vunpack.c.h.b16 %v813
        %v3005 = vunpack.c.l.b16 %v814
        %v3006 = vunpack.c.h.b16 %v814
        %v3007 = vunpack.c.l.b16 %v815
        %v3008 = vunpack.c.h.b16 %v815
        %v3009 = vunpack.c.l.b16 %v816
        %v3010 = vunpack.c.h.b16 %v816
        %v3011 = vunpack.c.l.b16 %v817
        %v3012 = vunpack.c.h.b16 %v817
        %v3013 = vunpack.c.l.b16 %v818
        %v3014 = vunpack.c.h.b16 %v818
        %v3015 = vunpack.c.l.b16 %v819
        %v3016 = vunpack.c.h.b16 %v819
        %v3017 = vunpack.c.l.b16 %v820
        %v3018 = vunpack.c.h.b16 %v820
        %v3019 = vunpack.c.l.b16 %v821
        %v3020 = vunpack.c.h.b16 %v821
        %v3021 = vunpack.c.l.b16 %v822
        %v3022 = vunpack.c.h.b16 %v822
        %v3023 = vunpack.c.l.b16 %v823
        %v3024 = vunpack.c.h.b16 %v823
        %v3025 = vunpack.c.l.b16 %v824
        %v3026 = vunpack.c.h.b16 %v824
        %v3027 = vunpack.c.l.b16 %v825
        %v3028 = vunpack.c.h.b16 %v825
        %v3029 = vunpack.c.l.b16 %v826
        %v3030 = vunpack.c.h.b16 %v826
        %v3031 = vunpack.c.l.b16 %v827
        %v3032 = vunpack.c.h.b16 %v827
        %v3033 = vunpack.c.l.b16 %v828
        %v3034 = vunpack.c.h.b16 %v828
        %v3035 = vunpack.c.l.b16 %v829
        %v3036 = vunpack.c.h.b16 %v829
        %v3037 = vunpack.c.l.b16 %v830
        %v3038 = vunpack.c.h.b16 %v830
        %v3039 = vunpack.c.l.b16 %v831
        %v3040 = vunpack.c.h.b16 %v831
        %v3041 = vunpack.c.l.b16 %v832
        %v3042 = vunpack.c.h.b16 %v832
        %v3043 = vunpack.c.l.b16 %v833
        %v3044 = vunpack.c.h.b16 %v833
        %v3045 = vunpack.c.l.b16 %v834
        %v3046 = vunpack.c.h.b16 %v834
        %v3047 = vunpack.c.l.b16 %v835
        %v3048 = vunpack.c.h.b16 %v835
        %v3049 = vunpack.c.l.b16 %v836
        %v3050 = vunpack.c.h.b16 %v836
        %v3051 = vunpack.c.l.b16 %v837
        %v3052 = vunpack.c.h.b16 %v837
        %v3053 = vunpack.c.l.b16 %v838
        %v3054 = vunpack.c.h.b16 %v838
        %v3055 = vunpack.c.l.b16 %v839
        %v3056 = vunpack.c.h.b16 %v839
        %v3057 = vunpack.c.l.b16 %v840
        %v3058 = vunpack.c.h.b16 %v840
        %v3059 = vunpack.c.l.b16 %v841
        %v3060 = vunpack.c.h.b16 %v841
        %v3061 = vunpack.c.l.b16 %v842
        %v3062 = vunpack.c.h.b16 %v842
        %v3063 = vunpack.c.l.b16 %v843
        %v3064 = vunpack.c.h.b16 %v843
        %v3065 = vunpack.c.l.b16 %v844
        %v3066 = vunpack.c.h.b16 %v844
        %v3067 = vunpack.c.l.b16 %v845
        %v3068 = vunpack.c.h.b16 %v845
        %v3069 = vunpack.c.l.b16 %v846
        %v3070 = vunpack.c.h.b16 %v846
        %v3071 = vunpack.c.l.b16 %v847
        %v3072 = vunpack.c.h.b16 %v847
        %v3073 = vunpack.c.l.b16 %v848
        %v3074 = vunpack.c.h.b16 %v848
        %v3075 = vunpack.c.l.b16 %v849
        %v3076 = vunpack.c.h.b16 %v849
        %v3077 = vunpack.c.l.b16 %v850
        %v3078 = vunpack.c.h.b16 %v850
        %v3079 = vunpack.c.l.b16 %v851
        %v3080 = vunpack.c.h.b16 %v851
        %v3081 = vunpack.c.l.b16 %v852
        %v3082 = vunpack.c.h.b16 %v852
        %v3083 = vunpack.c.l.b16 %v853
        %v3084 = vunpack.c.h.b16 %v853
        %v3085 = vunpack.c.l.b16 %v854
        %v3086 = vunpack.c.h.b16 %v854
        %v3087 = vunpack.c.l.b16 %v855
        %v3088 = vunpack.c.h.b16 %v855
        %v3089 = vunpack.c.l.b16 %v856
        %v3090 = vunpack.c.h.b16 %v856
        %v3091 = vunpack.c.l.b16 %v857
        %v3092 = vunpack.c.h.b16 %v857
        %v3093 = vunpack.c.l.b16 %v858
        %v3094 = vunpack.c.h.b16 %v858
        %v3095 = vunpack.c.l.b16 %v859
        %v3096 = vunpack.c.h.b16 %v859
        %v3097 = vunpack.c.l.b16 %v860
        %v3098 = vunpack.c.h.b16 %v860
        %v3099 = vunpack.c.l.b16 %v861
        %v3100 = vunpack.c.h.b16 %v861
        %v3101 = vunpack.c.l.b16 %v862
        %v3102 = vunpack.c.h.b16 %v862
        %v3103 = vunpack.c.l.b16 %v863
        %v3104 = vunpack.c.h.b16 %v863
        %v3105 = vunpack.c.l.b16 %v864
        %v3106 = vunpack.c.h.b16 %v864
        %v3107 = vunpack.c.l.b16 %v865
        %v3108 = vunpack.c.h.b16 %v865
        %v3109 = vunpack.c.l.b16 %v866
        %v3110 = vunpack.c.h.b16 %v866
        %v3111 = vunpack.c.l.b16 %v867
        %v3112 = vunpack.c.h.b16 %v867
        %v3113 = vunpack.c.l.b16 %v868
        %v3114 = vunpack.c.h.b16 %v868
        %v3115 = vunpack.c.l.b16 %v869
        %v3116 = vunpack.c.h.b16 %v869
        %v3117 = vunpack.c.l.b16 %v870
        %v3118 = vunpack.c.h.b16 %v870
        %v3119 = vunpack.c.l.b16 %v871
        %v3120 = vunpack.c.h.b16 %v871
        %v3121 = vunpack.c.l.b16 %v872
        %v3122 = vunpack.c.h.b16 %v872
        %v3123 = vunpack.c.l.b16 %v873
        %v3124 = vunpack.c.h.b16 %v873
        %v3125 = vunpack.c.l.b16 %v874
        %v3126 = vunpack.c.h.b16 %v874
        %v3127 = vunpack.c.l.b16 %v875
        %v3128 = vunpack.c.h.b16 %v875
        %v3129 = vunpack.c.l.b16 %v876
        %v3130 = vunpack.c.h.b16 %v876
        %v3131 = vunpack.c.l.b16 %v877
        %v3132 = vunpack.c.h.b16 %v877
        %v3133 = vunpack.c.l.b16 %v878
        %v3134 = vunpack.c.h.b16 %v878
        %v3135 = vunpack.c.l.b16 %v879
        %v3136 = vunpack.c.h.b16 %v879
        %v3137 = vunpack.c.l.b16 %v880
        %v3138 = vunpack.c.h.b16 %v880
        %v3139 = vunpack.c.l.b16 %v881
        %v3140 = vunpack.c.h.b16 %v881
        %v3141 = vunpack.c.l.b16 %v882
        %v3142 = vunpack.c.h.b16 %v882
        %v3143 = vunpack.c.l.b16 %v883
        %v3144 = vunpack.c.h.b16 %v883
        %v3145 = vunpack.c.l.b16 %v884
        %v3146 = vunpack.c.h.b16 %v884
        %v3147 = vunpack.c.l.b16 %v885
        %v3148 = vunpack.c.h.b16 %v885
        %v3149 = vunpack.c.l.b16 %v886
        %v3150 = vunpack.c.h.b16 %v886
        %v3151 = vunpack.c.l.b16 %v887
        %v3152 = vunpack.c.h.b16 %v887
        %v3153 = vunpack.c.l.b16 %v888
        %v3154 = vunpack.c.h.b16 %v888
        %v3155 = vunpack.c.l.b16 %v889
        %v3156 = vunpack.c.h.b16 %v889
        %v3157 = vunpack.c.l.b16 %v890
        %v3158 = vunpack.c.h.b16 %v890
        %v3159 = vunpack.c.l.b16 %v891
        %v3160 = vunpack.c.h.b16 %v891
        %v3161 = vunpack.c.l.b16 %v892
        %v3162 = vunpack.c.h.b16 %v892
        %v3163 = vunpack.c.l.b16 %v893
        %v3164 = vunpack.c.h.b16 %v893
        %v3165 = vunpack.c.l.b16 %v894
        %v3166 = vunpack.c.h.b16 %v894
        %v3167 = vunpack.c.l.b16 %v895
        %v3168 = vunpack.c.h.b16 %v895
        %v3169 = vunpack.c.l.b16 %v896
        %v3170 = vunpack.c.h.b16 %v896
        %v3171 = vunpack.c.l.b16 %v897
        %v3172 = vunpack.c.h.b16 %v897
        %v3173 = vunpack.c.l.b16 %v898
        %v3174 = vunpack.c.h.b16 %v898
        %v3175 = vunpack.c.l.b16 %v899
        %v3176 = vunpack.c.h.b16 %v899
        %v3177 = vunpack.c.l.b16 %v900
        %v3178 = vunpack.c.h.b16 %v900
        %v3179 = vunpack.c.l.b16 %v901
        %v3180 = vunpack.c.h.b16 %v901
        %v3181 = vunpack.c.l.b16 %v902
        %v3182 = vunpack.c.h.b16 %v902
        %v3183 = vunpack.c.l.b16 %v903
        %v3184 = vunpack.c.h.b16 %v903
        %v3185 = vunpack.c.l.b16 %v904
        %v3186 = vunpack.c.h.b16 %v904
        %v3187 = vunpack.c.l.b16 %v905
        %v3188 = vunpack.c.h.b16 %v905
        %v3189 = vunpack.c.l.b16 %v906
        %v3190 = vunpack.c.h.b16 %v906
        %v3191 = vunpack.c.l.b16 %v907
        %v3192 = vunpack.c.h.b16 %v907
        %v3193 = vunpack.c.l.b16 %v908
        %v3194 = vunpack.c.h.b16 %v908
        %v3195 = vunpack.c.l.b16 %v909
        %v3196 = vunpack.c.h.b16 %v909
        %v3197 = vunpack.c.l.b16 %v910
        %v3198 = vunpack.c.h.b16 %v910
        %v3199 = vunpack.c.l.b16 %v911
        %v3200 = vunpack.c.h.b16 %v911
        %v3201 = vunpack.c.l.b16 %v912
        %v3202 = vunpack.c.h.b16 %v912
        %v3203 = vunpack.c.l.b16 %v913
        %v3204 = vunpack.c.h.b16 %v913
        %v3205 = vunpack.c.l.b16 %v914
        %v3206 = vunpack.c.h.b16 %v914
        %v3207 = vunpack.c.l.b16 %v915
        %v3208 = vunpack.c.h.b16 %v915
        %v3209 = vunpack.c.l.b16 %v916
        %v3210 = vunpack.c.h.b16 %v916
        %v3211 = vunpack.c.l.b16 %v917
        %v3212 = vunpack.c.h.b16 %v917
        %v3213 = vunpack.c.l.b16 %v918
        %v3214 = vunpack.c.h.b16 %v918
        %v3215 = vunpack.c.l.b16 %v919
        %v3216 = vunpack.c.h.b16 %v919
        %v3217 = vunpack.c.l.b16 %v920
        %v3218 = vunpack.c.h.b16 %v920
        %v3219 = vunpack.c.l.b16 %v921
        %v3220 = vunpack.c.h.b16 %v921
        %v3221 = vunpack.c.l.b16 %v922
        %v3222 = vunpack.c.h.b16 %v922
        %v3223 = vunpack.c.l.b16 %v923
        %v3224 = vunpack.c.h.b16 %v923
        %v3225 = vunpack.c.l.b16 %v924
        %v3226 = vunpack.c.h.b16 %v924
        %v3227 = vunpack.c.l.b16 %v925
        %v3228 = vunpack.c.h.b16 %v925
        %v3229 = vunpack.c.l.b16 %v926
        %v3230 = vunpack.c.h.b16 %v926
        %v3231 = vunpack.c.l.b16 %v927
        %v3232 = vunpack.c.h.b16 %v927
        %v3233 = vunpack.c.l.b16 %v928
        %v3234 = vunpack.c.h.b16 %v928
        %v3235 = vunpack.c.l.b16 %v929
        %v3236 = vunpack.c.h.b16 %v929
        %v3237 = vunpack.c.l.b16 %v930
        %v3238 = vunpack.c.h.b16 %v930
        %v3239 = vunpack.c.l.b16 %v931
        %v3240 = vunpack.c.h.b16 %v931
        %v3241 = vunpack.c.l.b16 %v932
        %v3242 = vunpack.c.h.b16 %v932
        %v3243 = vunpack.c.l.b16 %v933
        %v3244 = vunpack.c.h.b16 %v933
        %v3245 = vunpack.c.l.b16 %v934
        %v3246 = vunpack.c.h.b16 %v934
        %v3247 = vunpack.c.l.b16 %v935
        %v3248 = vunpack.c.h.b16 %v935
        %v3249 = vunpack.c.l.b16 %v936
        %v3250 = vunpack.c.h.b16 %v936
        %v3251 = vunpack.c.l.b16 %v937
        %v3252 = vunpack.c.h.b16 %v937
        %v3253 = vunpack.c.l.b16 %v938
        %v3254 = vunpack.c.h.b16 %v938
        %v3255 = vunpack.c.l.b16 %v939
        %v3256 = vunpack.c.h.b16 %v939
        %v3257 = vunpack.c.l.b16 %v940
        %v3258 = vunpack.c.h.b16 %v940
        %v3259 = vunpack.c.l.b16 %v941
        %v3260 = vunpack.c.h.b16 %v941
        %v3261 = vunpack.c.l.b16 %v942
        %v3262 = vunpack.c.h.b16 %v942
        %v3263 = vunpack.c.l.b16 %v943
        %v3264 = vunpack.c.h.b16 %v943
        %v3265 = vunpack.c.l.b16 %v944
        %v3266 = vunpack.c.h.b16 %v944
        %v3267 = vunpack.c.l.b16 %v945
        %v3268 = vunpack.c.h.b16 %v945
        %v3269 = vunpack.c.l.b16 %v946
        %v3270 = vunpack.c.h.b16 %v946
        %v3271 = vunpack.c.l.b16 %v947
        %v3272 = vunpack.c.h.b16 %v947
        %v3273 = vunpack.c.l.b16 %v948
        %v3274 = vunpack.c.h.b16 %v948
        %v3275 = vunpack.c.l.b16 %v949
        %v3276 = vunpack.c.h.b16 %v949
        %v3277 = vunpack.c.l.b16 %v950
        %v3278 = vunpack.c.h.b16 %v950
        %v3279 = vunpack.c.l.b16 %v951
        %v3280 = vunpack.c.h.b16 %v951
        %v3281 = vunpack.c.l.b16 %v952
        %v3282 = vunpack.c.h.b16 %v952
        %v3283 = vunpack.c.l.b16 %v953
        %v3284 = vunpack.c.h.b16 %v953
        %v3285 = vunpack.c.l.b16 %v954
        %v3286 = vunpack.c.h.b16 %v954
        %v3287 = vunpack.c.l.b16 %v955
        %v3288 = vunpack.c.h.b16 %v955
        %v3289 = vunpack.c.l.b16 %v956
        %v3290 = vunpack.c.h.b16 %v956
        %v3291 = vunpack.c.l.b16 %v957
        %v3292 = vunpack.c.h.b16 %v957
        %v3293 = vunpack.c.l.b16 %v958
        %v3294 = vunpack.c.h.b16 %v958
        %v3295 = vunpack.c.l.b16 %v959
        %v3296 = vunpack.c.h.b16 %v959
        %v3297 = vunpack.c.l.b16 %v960
        %v3298 = vunpack.c.h.b16 %v960
        %v3299 = vunpack.c.l.b16 %v961
        %v3300 = vunpack.c.h.b16 %v961
        %v3301 = vunpack.c.l.b16 %v962
        %v3302 = vunpack.c.h.b16 %v962
        %v3303 = vunpack.c.l.b16 %v963
        %v3304 = vunpack.c.h.b16 %v963
        %v3305 = vunpack.c.l.b16 %v964
        %v3306 = vunpack.c.h.b16 %v964
        %v3307 = vunpack.c.l.b16 %v965
        %v3308 = vunpack.c.h.b16 %v965
        %v3309 = vunpack.c.l.b16 %v966
        %v3310 = vunpack.c.h.b16 %v966
        %v3311 = vunpack.c.l.b16 %v967
        %v3312 = vunpack.c.h.b16 %v967
        %v3313 = vunpack.c.l.b16 %v968
        %v3314 = vunpack.c.h.b16 %v968
        %v3315 = vunpack.c.l.b16 %v969
        %v3316 = vunpack.c.h.b16 %v969
        %v3317 = vunpack.c.l.b16 %v970
        %v3318 = vunpack.c.h.b16 %v970
        %v3319 = vunpack.c.l.b16 %v971
        %v3320 = vunpack.c.h.b16 %v971
        %v3321 = vunpack.c.l.b16 %v972
        %v3322 = vunpack.c.h.b16 %v972
        %v3323 = vunpack.c.l.b16 %v973
        %v3324 = vunpack.c.h.b16 %v973
        %v3325 = vunpack.c.l.b16 %v974
        %v3326 = vunpack.c.h.b16 %v974
        %v3327 = vunpack.c.l.b16 %v975
        %v3328 = vunpack.c.h.b16 %v975
        %v3329 = vunpack.c.l.b16 %v976
        %v3330 = vunpack.c.h.b16 %v976
        %v3331 = vunpack.c.l.b16 %v977
        %v3332 = vunpack.c.h.b16 %v977
        %v3333 = vunpack.c.l.b16 %v978
        %v3334 = vunpack.c.h.b16 %v978
        %v3335 = vunpack.c.l.b16 %v979
        %v3336 = vunpack.c.h.b16 %v979
        %v3337 = vunpack.c.l.b16 %v980
        %v3338 = vunpack.c.h.b16 %v980
        %v3339 = vunpack.c.l.b16 %v981
        %v3340 = vunpack.c.h.b16 %v981
        %v3341 = vunpack.c.l.b16 %v982
        %v3342 = vunpack.c.h.b16 %v982
        %v3343 = vunpack.c.l.b16 %v983
        %v3344 = vunpack.c.h.b16 %v983
        %v3345 = vunpack.c.l.b16 %v984
        %v3346 = vunpack.c.h.b16 %v984
        %v3347 = vunpack.c.l.b16 %v985
        %v3348 = vunpack.c.h.b16 %v985
        %v3349 = vunpack.c.l.b16 %v986
        %v3350 = vunpack.c.h.b16 %v986
        %v3351 = vunpack.c.l.b16 %v987
        %v3352 = vunpack.c.h.b16 %v987
        %v3353 = vunpack.c.l.b16 %v988
        %v3354 = vunpack.c.h.b16 %v988
        %v3355 = vunpack.c.l.b16 %v989
        %v3356 = vunpack.c.h.b16 %v989
        %v3357 = vunpack.c.l.b16 %v990
        %v3358 = vunpack.c.h.b16 %v990
        %v3359 = vunpack.c.l.b16 %v991
        %v3360 = vunpack.c.h.b16 %v991
        %v3361 = vunpack.c.l.b16 %v992
        %v3362 = vunpack.c.h.b16 %v992
        %v3363 = vunpack.c.l.b16 %v993
        %v3364 = vunpack.c.h.b16 %v993
        %v3365 = vunpack.c.l.b16 %v994
        %v3366 = vunpack.c.h.b16 %v994
        %v3367 = vunpack.c.l.b16 %v995
        %v3368 = vunpack.c.h.b16 %v995
        %v3369 = vunpack.c.l.b16 %v996
        %v3370 = vunpack.c.h.b16 %v996
        %v3371 = vunpack.c.l.b16 %v997
        %v3372 = vunpack.c.h.b16 %v997
        %v3373 = vunpack.c.l.b16 %v998
        %v3374 = vunpack.c.h.b16 %v998
        %v3375 = vunpack.c.l.b16 %v999
        %v3376 = vunpack.c.h.b16 %v999
        %v3377 = vunpack.c.l.b16 %v1000
        %v3378 = vunpack.c.h.b16 %v1000
        %v3379 = vunpack.c.l.b16 %v1001
        %v3380 = vunpack.c.h.b16 %v1001
        %v3381 = vunpack.c.l.b16 %v1002
        %v3382 = vunpack.c.h.b16 %v1002
        %v3383 = vunpack.c.l.b16 %v1003
        %v3384 = vunpack.c.h.b16 %v1003
        %v3385 = vunpack.c.l.b16 %v1004
        %v3386 = vunpack.c.h.b16 %v1004
        %v3387 = vunpack.c.l.b16 %v1005
        %v3388 = vunpack.c.h.b16 %v1005
        %v3389 = vunpack.c.l.b16 %v1006
        %v3390 = vunpack.c.h.b16 %v1006
        %v3391 = vunpack.c.l.b16 %v1007
        %v3392 = vunpack.c.h.b16 %v1007
        %v3393 = vunpack.c.l.b16 %v1008
        %v3394 = vunpack.c.h.b16 %v1008
        %v3395 = vunpack.c.l.b16 %v1009
        %v3396 = vunpack.c.h.b16 %v1009
        %v3397 = vunpack.c.l.b16 %v1010
        %v3398 = vunpack.c.h.b16 %v1010
        %v3399 = vunpack.c.l.b16 %v1011
        %v3400 = vunpack.c.h.b16 %v1011
        %v3401 = vunpack.c.l.b16 %v1012
        %v3402 = vunpack.c.h.b16 %v1012
        %v3403 = vunpack.c.l.b16 %v1013
        %v3404 = vunpack.c.h.b16 %v1013
        %v3405 = vunpack.c.l.b16 %v1014
        %v3406 = vunpack.c.h.b16 %v1014
        %v3407 = vunpack.c.l.b16 %v1015
        %v3408 = vunpack.c.h.b16 %v1015
        %v3409 = vunpack.c.l.b16 %v1016
        %v3410 = vunpack.c.h.b16 %v1016
        %v3411 = vunpack.c.l.b16 %v1017
        %v3412 = vunpack.c.h.b16 %v1017
        %v3413 = vunpack.c.l.b16 %v1018
        %v3414 = vunpack.c.h.b16 %v1018
        %v3415 = vunpack.c.l.b16 %v1019
        %v3416 = vunpack.c.h.b16 %v1019
        %v3417 = vunpack.c.l.b16 %v1020
        %v3418 = vunpack.c.h.b16 %v1020
        %v3419 = vunpack.c.l.b16 %v1021
        %v3420 = vunpack.c.h.b16 %v1021
        %v3421 = vunpack.c.l.b16 %v1022
        %v3422 = vunpack.c.h.b16 %v1022
        %v3423 = vunpack.c.l.b16 %v1023
        %v3424 = vunpack.c.h.b16 %v1023
        %v3425 = vunpack.c.l.b16 %v1024
        %v3426 = vunpack.c.h.b16 %v1024
        %v3427 = vunpack.c.l.b16 %v1025
        %v3428 = vunpack.c.h.b16 %v1025
        %v3429 = vunpack.c.l.b16 %v1026
        %v3430 = vunpack.c.h.b16 %v1026
        %v3431 = vunpack.c.l.b16 %v1027
        %v3432 = vunpack.c.h.b16 %v1027
        %v3433 = vunpack.c.l.b16 %v1028
        %v3434 = vunpack.c.h.b16 %v1028
        %v3435 = vunpack.c.l.b16 %v1029
        %v3436 = vunpack.c.h.b16 %v1029
        %v3437 = vunpack.c.l.b16 %v1030
        %v3438 = vunpack.c.h.b16 %v1030
        %v3439 = vunpack.c.l.b16 %v1031
        %v3440 = vunpack.c.h.b16 %v1031
        %v3441 = vunpack.c.l.b16 %v1032
        %v3442 = vunpack.c.h.b16 %v1032
        %v3443 = vunpack.c.l.b16 %v1033
        %v3444 = vunpack.c.h.b16 %v1033
        %v3445 = vunpack.c.l.b16 %v1034
        %v3446 = vunpack.c.h.b16 %v1034
        %v3447 = vunpack.c.l.b16 %v1035
        %v3448 = vunpack.c.h.b16 %v1035
        %v3449 = vunpack.c.l.b16 %v1036
        %v3450 = vunpack.c.h.b16 %v1036
        %v3451 = vunpack.c.l.b16 %v1037
        %v3452 = vunpack.c.h.b16 %v1037
        %v3453 = vunpack.c.l.b16 %v1038
        %v3454 = vunpack.c.h.b16 %v1038
        %v3455 = vunpack.c.l.b16 %v1039
        %v3456 = vunpack.c.h.b16 %v1039
        %v3457 = vunpack.c.l.b16 %v1040
        %v3458 = vunpack.c.h.b16 %v1040
        %v3459 = vunpack.c.l.b16 %v1041
        %v3460 = vunpack.c.h.b16 %v1041
        %v3461 = vunpack.c.l.b16 %v1042
        %v3462 = vunpack.c.h.b16 %v1042
        %v3463 = vunpack.c.l.b16 %v1043
        %v3464 = vunpack.c.h.b16 %v1043
        %v3465 = vunpack.c.l.b16 %v1044
        %v3466 = vunpack.c.h.b16 %v1044
        %v3467 = vunpack.c.l.b16 %v1045
        %v3468 = vunpack.c.h.b16 %v1045
        %v3469 = vunpack.c.l.b16 %v1046
        %v3470 = vunpack.c.h.b16 %v1046
        %v3471 = vunpack.c.l.b16 %v1047
        %v3472 = vunpack.c.h.b16 %v1047
        %v3473 = vunpack.c.l.b16 %v1048
        %v3474 = vunpack.c.h.b16 %v1048
        %v3475 = vunpack.c.l.b16 %v1049
        %v3476 = vunpack.c.h.b16 %v1049
        %v3477 = vunpack.c.l.b16 %v1050
        %v3478 = vunpack.c.h.b16 %v1050
        %v3479 = vunpack.c.l.b16 %v1051
        %v3480 = vunpack.c.h.b16 %v1051
        %v3481 = vunpack.c.l.b16 %v1052
        %v3482 = vunpack.c.h.b16 %v1052
        %v3483 = vunpack.c.l.b16 %v1053
        %v3484 = vunpack.c.h.b16 %v1053
        %v3485 = vunpack.c.l.b16 %v1054
        %v3486 = vunpack.c.h.b16 %v1054
        %v3487 = vunpack.c.l.b16 %v1055
        %v3488 = vunpack.c.h.b16 %v1055
        %v3489 = vunpack.c.l.b16 %v1056
        %v3490 = vunpack.c.h.b16 %v1056
        %v3491 = vunpack.c.l.b16 %v1057
        %v3492 = vunpack.c.h.b16 %v1057
        %v3493 = vunpack.c.l.b16 %v1058
        %v3494 = vunpack.c.h.b16 %v1058
        %v3495 = vunpack.c.l.b16 %v1059
        %v3496 = vunpack.c.h.b16 %v1059
        %v3497 = vunpack.c.l.b16 %v1060
        %v3498 = vunpack.c.h.b16 %v1060
        %v3499 = vunpack.c.l.b16 %v1061
        %v3500 = vunpack.c.h.b16 %v1061
        %v3501 = vunpack.c.l.b16 %v1062
        %v3502 = vunpack.c.h.b16 %v1062
        %v3503 = vunpack.c.l.b16 %v1063
        %v3504 = vunpack.c.h.b16 %v1063
        %v3505 = vunpack.c.l.b16 %v1064
        %v3506 = vunpack.c.h.b16 %v1064
        %v3507 = vunpack.c.l.b16 %v1065
        %v3508 = vunpack.c.h.b16 %v1065
        %v3509 = vunpack.c.l.b16 %v1066
        %v3510 = vunpack.c.h.b16 %v1066
        %v3511 = vunpack.c.l.b16 %v1067
        %v3512 = vunpack.c.h.b16 %v1067
        %v3513 = vunpack.c.l.b16 %v1068
        %v3514 = vunpack.c.h.b16 %v1068
        %v3515 = vunpack.c.l.b16 %v1069
        %v3516 = vunpack.c.h.b16 %v1069
        %v3517 = vunpack.c.l.b16 %v1070
        %v3518 = vunpack.c.h.b16 %v1070
        %v3519 = vunpack.c.l.b16 %v1071
        %v3520 = vunpack.c.h.b16 %v1071
        %v3521 = vunpack.c.l.b16 %v1072
        %v3522 = vunpack.c.h.b16 %v1072
        %v3523 = vunpack.c.l.b16 %v1073
        %v3524 = vunpack.c.h.b16 %v1073
        %v3525 = vunpack.c.l.b16 %v1074
        %v3526 = vunpack.c.h.b16 %v1074
        %v3527 = vunpack.c.l.b16 %v1075
        %v3528 = vunpack.c.h.b16 %v1075
        %v3529 = vunpack.c.l.b16 %v1076
        %v3530 = vunpack.c.h.b16 %v1076
        %v3531 = vunpack.c.l.b16 %v1077
        %v3532 = vunpack.c.h.b16 %v1077
        %v3533 = vunpack.c.l.b16 %v1078
        %v3534 = vunpack.c.h.b16 %v1078
        %v3535 = vunpack.c.l.b16 %v1079
        %v3536 = vunpack.c.h.b16 %v1079
        %v3537 = vunpack.c.l.b16 %v1080
        %v3538 = vunpack.c.h.b16 %v1080
        %v3539 = vunpack.c.l.b16 %v1081
        %v3540 = vunpack.c.h.b16 %v1081
        %v3541 = vunpack.c.l.b16 %v1082
        %v3542 = vunpack.c.h.b16 %v1082
        %v3543 = vunpack.c.l.b16 %v1083
        %v3544 = vunpack.c.h.b16 %v1083
        %v3545 = vunpack.c.l.b16 %v1084
        %v3546 = vunpack.c.h.b16 %v1084
        %v3547 = vunpack.c.l.b16 %v1085
        %v3548 = vunpack.c.h.b16 %v1085
        %v3549 = vunpack.c.l.b16 %v1086
        %v3550 = vunpack.c.h.b16 %v1086
        %v3551 = vunpack.c.l.b16 %v1087
        %v3552 = vunpack.c.h.b16 %v1087
        %v3553 = vunpack.c.l.b16 %v1088
        %v3554 = vunpack.c.h.b16 %v1088
        %v3555 = vunpack.c.l.b16 %v1089
        %v3556 = vunpack.c.h.b16 %v1089
        %v3557 = vunpack.c.l.b16 %v1090
        %v3558 = vunpack.c.h.b16 %v1090
        %v3559 = vunpack.c.l.b16 %v1091
        %v3560 = vunpack.c.h.b16 %v1091
        %v3561 = vunpack.c.l.b16 %v1092
        %v3562 = vunpack.c.h.b16 %v1092
        %v3563 = vunpack.c.l.b16 %v1093
        %v3564 = vunpack.c.h.b16 %v1093
        %v3565 = vunpack.c.l.b16 %v1094
        %v3566 = vunpack.c.h.b16 %v1094
        %v3567 = vunpack.c.l.b16 %v1095
        %v3568 = vunpack.c.h.b16 %v1095
        %v3569 = vunpack.c.l.b16 %v1096
        %v3570 = vunpack.c.h.b16 %v1096
        %v3571 = vunpack.c.l.b16 %v1097
        %v3572 = vunpack.c.h.b16 %v1097
        %v3573 = vunpack.c.l.b16 %v1098
        %v3574 = vunpack.c.h.b16 %v1098
        %v3575 = vunpack.c.l.b16 %v1099
        %v3576 = vunpack.c.h.b16 %v1099
        %v3577 = vunpack.c.l.b16 %v1100
        %v3578 = vunpack.c.h.b16 %v1100
        %v3579 = vunpack.c.l.b16 %v1101
        %v3580 = vunpack.c.h.b16 %v1101
        %v3581 = vunpack.c.l.b16 %v1102
        %v3582 = vunpack.c.h.b16 %v1102
        %v3583 = vunpack.c.l.b16 %v1103
        %v3584 = vunpack.c.h.b16 %v1103
        %v3585 = vunpack.c.l.b16 %v1104
        %v3586 = vunpack.c.h.b16 %v1104
        %v3587 = vunpack.c.l.b16 %v1105
        %v3588 = vunpack.c.h.b16 %v1105
        %v3589 = vunpack.c.l.b16 %v1106
        %v3590 = vunpack.c.h.b16 %v1106
        %v3591 = vunpack.c.l.b16 %v1107
        %v3592 = vunpack.c.h.b16 %v1107
        %v3593 = vunpack.c.l.b16 %v1108
        %v3594 = vunpack.c.h.b16 %v1108
        %v3595 = vunpack.c.l.b16 %v1109
        %v3596 = vunpack.c.h.b16 %v1109
        %v3597 = vunpack.c.l.b16 %v1110
        %v3598 = vunpack.c.h.b16 %v1110
        %v3599 = vunpack.c.l.b16 %v1111
        %v3600 = vunpack.c.h.b16 %v1111
        %v3601 = vunpack.c.l.b16 %v1112
        %v3602 = vunpack.c.h.b16 %v1112
        %v3603 = vunpack.c.l.b16 %v1113
        %v3604 = vunpack.c.h.b16 %v1113
        %v3605 = vunpack.c.l.b16 %v1114
        %v3606 = vunpack.c.h.b16 %v1114
        %v3607 = vunpack.c.l.b16 %v1115
        %v3608 = vunpack.c.h.b16 %v1115
        %v3609 = vunpack.c.l.b16 %v1116
        %v3610 = vunpack.c.h.b16 %v1116
        %v3611 = vunpack.c.l.b16 %v1117
        %v3612 = vunpack.c.h.b16 %v1117
        %v3613 = vunpack.c.l.b16 %v1118
        %v3614 = vunpack.c.h.b16 %v1118
        %v3615 = vunpack.c.l.b16 %v1119
        %v3616 = vunpack.c.h.b16 %v1119
        %v3617 = vunpack.c.l.b16 %v1120
        %v3618 = vunpack.c.h.b16 %v1120
        %v3619 = vunpack.c.l.b16 %v1121
        %v3620 = vunpack.c.h.b16 %v1121
        %v3621 = vunpack.c.l.b16 %v1122
        %v3622 = vunpack.c.h.b16 %v1122
        %v3623 = vunpack.c.l.b16 %v1123
        %v3624 = vunpack.c.h.b16 %v1123
        %v3625 = vunpack.c.l.b16 %v1124
        %v3626 = vunpack.c.h.b16 %v1124
        %v3627 = vunpack.c.l.b16 %v1125
        %v3628 = vunpack.c.h.b16 %v1125
        %v3629 = vunpack.c.l.b16 %v1126
        %v3630 = vunpack.c.h.b16 %v1126
        %v3631 = vunpack.c.l.b16 %v1127
        %v3632 = vunpack.c.h.b16 %v1127
        %v3633 = vunpack.c.l.b16 %v1128
        %v3634 = vunpack.c.h.b16 %v1128
        %v3635 = vunpack.c.l.b16 %v1129
        %v3636 = vunpack.c.h.b16 %v1129
        %v3637 = vunpack.c.l.b16 %v1130
        %v3638 = vunpack.c.h.b16 %v1130
        %v3639 = vunpack.c.l.b16 %v1131
        %v3640 = vunpack.c.h.b16 %v1131
        %v3641 = vunpack.c.l.b16 %v1132
        %v3642 = vunpack.c.h.b16 %v1132
        %v3643 = vunpack.c.l.b16 %v1133
        %v3644 = vunpack.c.h.b16 %v1133
        %v3645 = vunpack.c.l.b16 %v1134
        %v3646 = vunpack.c.h.b16 %v1134
        %v3647 = vunpack.c.l.b16 %v1135
        %v3648 = vunpack.c.h.b16 %v1135
        %v3649 = vunpack.c.l.b16 %v1136
        %v3650 = vunpack.c.h.b16 %v1136
        %v3651 = vunpack.c.l.b16 %v1137
        %v3652 = vunpack.c.h.b16 %v1137
        %v3653 = vunpack.c.l.b16 %v1138
        %v3654 = vunpack.c.h.b16 %v1138
        %v3655 = vunpack.c.l.b16 %v1139
        %v3656 = vunpack.c.h.b16 %v1139
        %v3657 = vunpack.c.l.b16 %v1140
        %v3658 = vunpack.c.h.b16 %v1140
        %v3659 = vunpack.c.l.b16 %v1141
        %v3660 = vunpack.c.h.b16 %v1141
        %v3661 = vunpack.c.l.b16 %v1142
        %v3662 = vunpack.c.h.b16 %v1142
        %v3663 = vunpack.c.l.b16 %v1143
        %v3664 = vunpack.c.h.b16 %v1143
        %v3665 = vunpack.c.l.b16 %v1144
        %v3666 = vunpack.c.h.b16 %v1144
        %v3667 = vunpack.c.l.b16 %v1145
        %v3668 = vunpack.c.h.b16 %v1145
        %v3669 = vunpack.c.l.b16 %v1146
        %v3670 = vunpack.c.h.b16 %v1146
        %v3671 = vunpack.c.l.b16 %v1147
        %v3672 = vunpack.c.h.b16 %v1147
        %v3673 = vunpack.c.l.b16 %v1148
        %v3674 = vunpack.c.h.b16 %v1148
        %v3675 = vunpack.c.l.b16 %v1149
        %v3676 = vunpack.c.h.b16 %v1149
        %v3677 = vunpack.c.l.b16 %v1150
        %v3678 = vunpack.c.h.b16 %v1150
        %v3679 = vunpack.c.l.b16 %v1151
        %v3680 = vunpack.c.h.b16 %v1151
        %v3681 = vunpack.c.l.b16 %v1152
        %v3682 = vunpack.c.h.b16 %v1152
        %v3683 = vunpack.c.l.b16 %v1153
        %v3684 = vunpack.c.h.b16 %v1153
        %v3685 = vunpack.c.l.b16 %v1154
        %v3686 = vunpack.c.h.b16 %v1154
        %v3687 = vunpack.c.l.b16 %v1155
        %v3688 = vunpack.c.h.b16 %v1155
        %v3689 = vunpack.c.l.b16 %v1156
        %v3690 = vunpack.c.h.b16 %v1156
        %v3691 = vunpack.c.l.b16 %v1157
        %v3692 = vunpack.c.h.b16 %v1157
        %v3693 = vunpack.c.l.b16 %v1158
        %v3694 = vunpack.c.h.b16 %v1158
        %v3695 = vunpack.c.l.b16 %v1159
        %v3696 = vunpack.c.h.b16 %v1159
        %v3697 = vunpack.c.l.b16 %v1160
        %v3698 = vunpack.c.h.b16 %v1160
        %v3699 = vunpack.c.l.b16 %v1161
        %v3700 = vunpack.c.h.b16 %v1161
        %v3701 = vunpack.c.l.b16 %v1162
        %v3702 = vunpack.c.h.b16 %v1162
        %v3703 = vunpack.c.l.b16 %v1163
        %v3704 = vunpack.c.h.b16 %v1163
        %v3705 = vunpack.c.l.b16 %v1164
        %v3706 = vunpack.c.h.b16 %v1164
        %v3707 = vunpack.c.l.b16 %v1165
        %v3708 = vunpack.c.h.b16 %v1165
        %v3709 = vunpack.c.l.b16 %v1166
        %v3710 = vunpack.c.h.b16 %v1166
        %v3711 = vunpack.c.l.b16 %v1167
        %v3712 = vunpack.c.h.b16 %v1167
        %v3713 = vunpack.c.l.b16 %v1168
        %v3714 = vunpack.c.h.b16 %v1168
        %v3715 = vunpack.c.l.b16 %v1169
        %v3716 = vunpack.c.h.b16 %v1169
        %v3717 = vunpack.c.l.b16 %v1170
        %v3718 = vunpack.c.h.b16 %v1170
        %v3719 = vunpack.c.l.b16 %v1171
        %v3720 = vunpack.c.h.b16 %v1171
        %v3721 = vunpack.c.l.b16 %v1172
        %v3722 = vunpack.c.h.b16 %v1172
        %v3723 = vunpack.c.l.b16 %v1173
        %v3724 = vunpack.c.h.b16 %v1173
        %v3725 = vunpack.c.l.b16 %v1174
        %v3726 = vunpack.c.h.b16 %v1174
        %v3727 = vunpack.c.l.b16 %v1175
        %v3728 = vunpack.c.h.b16 %v1175
        %v3729 = vunpack.c.l.b16 %v1176
        %v3730 = vunpack.c.h.b16 %v1176
        %v3731 = vunpack.c.l.b16 %v1177
        %v3732 = vunpack.c.h.b16 %v1177
        %v3733 = vunpack.c.l.b16 %v1178
        %v3734 = vunpack.c.h.b16 %v1178
        %v3735 = vunpack.c.l.b16 %v1179
        %v3736 = vunpack.c.h.b16 %v1179
        %v3737 = vunpack.c.l.b16 %v1180
        %v3738 = vunpack.c.h.b16 %v1180
        %v3739 = vunpack.c.l.b16 %v1181
        %v3740 = vunpack.c.h.b16 %v1181
        %v3741 = vunpack.c.l.b16 %v1182
        %v3742 = vunpack.c.h.b16 %v1182
        %v3743 = vunpack.c.l.b16 %v1183
        %v3744 = vunpack.c.h.b16 %v1183
        %v3745 = vunpack.c.l.b16 %v1184
        %v3746 = vunpack.c.h.b16 %v1184
        %v3747 = vunpack.c.l.b16 %v1185
        %v3748 = vunpack.c.h.b16 %v1185
        %v3749 = vunpack.c.l.b16 %v1186
        %v3750 = vunpack.c.h.b16 %v1186
        %v3751 = vunpack.c.l.b16 %v1187
        %v3752 = vunpack.c.h.b16 %v1187
        %v3753 = vunpack.c.l.b16 %v1188
        %v3754 = vunpack.c.h.b16 %v1188
        %v3755 = vunpack.c.l.b16 %v1189
        %v3756 = vunpack.c.h.b16 %v1189
        %v3757 = vunpack.c.l.b16 %v1190
        %v3758 = vunpack.c.h.b16 %v1190
        %v3759 = vunpack.c.l.b16 %v1191
        %v3760 = vunpack.c.h.b16 %v1191
        %v3761 = vunpack.c.l.b16 %v1192
        %v3762 = vunpack.c.h.b16 %v1192
        %v3763 = vunpack.c.l.b16 %v1193
        %v3764 = vunpack.c.h.b16 %v1193
        %v3765 = vunpack.c.l.b16 %v1194
        %v3766 = vunpack.c.h.b16 %v1194
        %v3767 = vunpack.c.l.b16 %v1195
        %v3768 = vunpack.c.h.b16 %v1195
        %v3769 = vunpack.c.l.b16 %v1196
        %v3770 = vunpack.c.h.b16 %v1196
        %v3771 = vunpack.c.l.b16 %v1197
        %v3772 = vunpack.c.h.b16 %v1197
        %v3773 = vunpack.c.l.b16 %v1198
        %v3774 = vunpack.c.h.b16 %v1198
        %v3775 = vunpack.c.l.b16 %v1199
        %v3776 = vunpack.c.h.b16 %v1199
        %v3777 = vunpack.c.l.b16 %v1200
        %v3778 = vunpack.c.h.b16 %v1200
        %v3779 = vunpack.c.l.b16 %v1201
        %v3780 = vunpack.c.h.b16 %v1201
        %v3781 = vunpack.c.l.b16 %v1202
        %v3782 = vunpack.c.h.b16 %v1202
        %v3783 = vunpack.c.l.b16 %v1203
        %v3784 = vunpack.c.h.b16 %v1203
        %v3785 = vunpack.c.l.b16 %v1204
        %v3786 = vunpack.c.h.b16 %v1204
        %v3787 = vunpack.c.l.b16 %v1205
        %v3788 = vunpack.c.h.b16 %v1205
        %v3789 = vunpack.c.l.b16 %v1206
        %v3790 = vunpack.c.h.b16 %v1206
        %v3791 = vunpack.c.l.b16 %v1207
        %v3792 = vunpack.c.h.b16 %v1207
        %v3793 = vunpack.c.l.b16 %v1208
        %v3794 = vunpack.c.h.b16 %v1208
        %v3795 = vunpack.c.l.b16 %v1209
        %v3796 = vunpack.c.h.b16 %v1209
        %v3797 = vunpack.c.l.b16 %v1210
        %v3798 = vunpack.c.h.b16 %v1210
        %v3799 = vunpack.c.l.b16 %v1211
        %v3800 = vunpack.c.h.b16 %v1211
        %v3801 = vunpack.c.l.b16 %v1212
        %v3802 = vunpack.c.h.b16 %v1212
        %v3803 = vunpack.c.l.b16 %v1213
        %v3804 = vunpack.c.h.b16 %v1213
        %v3805 = vunpack.c.l.b16 %v1214
        %v3806 = vunpack.c.h.b16 %v1214
        %v3807 = vunpack.c.l.b16 %v1215
        %v3808 = vunpack.c.h.b16 %v1215
        %v3809 = vunpack.c.l.b16 %v1216
        %v3810 = vunpack.c.h.b16 %v1216
        %v3811 = vunpack.c.l.b16 %v1217
        %v3812 = vunpack.c.h.b16 %v1217
        %v3813 = vunpack.c.l.b16 %v1218
        %v3814 = vunpack.c.h.b16 %v1218
        %v3815 = vunpack.c.l.b16 %v1219
        %v3816 = vunpack.c.h.b16 %v1219
        %v3817 = vunpack.c.l.b16 %v1220
        %v3818 = vunpack.c.h.b16 %v1220
        %v3819 = vunpack.c.l.b16 %v1221
        %v3820 = vunpack.c.h.b16 %v1221
        %v3821 = vunpack.c.l.b16 %v1222
        %v3822 = vunpack.c.h.b16 %v1222
        %v3823 = vunpack.c.l.b16 %v1223
        %v3824 = vunpack.c.h.b16 %v1223
        %v3825 = vunpack.c.l.b16 %v1224
        %v3826 = vunpack.c.h.b16 %v1224
        %v3827 = vunpack.c.l.b16 %v1225
        %v3828 = vunpack.c.h.b16 %v1225
        %v3829 = vunpack.c.l.b16 %v1226
        %v3830 = vunpack.c.h.b16 %v1226
        %v3831 = vunpack.c.l.b16 %v1227
        %v3832 = vunpack.c.h.b16 %v1227
        %v3833 = vunpack.c.l.b16 %v1228
        %v3834 = vunpack.c.h.b16 %v1228
        %v3835 = vunpack.c.l.b16 %v1229
        %v3836 = vunpack.c.h.b16 %v1229
        %v3837 = vunpack.c.l.b16 %v1230
        %v3838 = vunpack.c.h.b16 %v1230
        %v3839 = vunpack.c.l.b16 %v1231
        %v3840 = vunpack.c.h.b16 %v1231
        %v3841 = vunpack.c.l.b16 %v1232
        %v3842 = vunpack.c.h.b16 %v1232
        %v3843 = vunpack.c.l.b16 %v1233
        %v3844 = vunpack.c.h.b16 %v1233
        %v3845 = vunpack.c.l.b16 %v1234
        %v3846 = vunpack.c.h.b16 %v1234
        %v3847 = vunpack.c.l.b16 %v1235
        %v3848 = vunpack.c.h.b16 %v1235
        %v3849 = vunpack.c.l.b16 %v1236
        %v3850 = vunpack.c.h.b16 %v1236
        %v3851 = vunpack.c.l.b16 %v1237
        %v3852 = vunpack.c.h.b16 %v1237
        %v3853 = vunpack.c.l.b16 %v1238
        %v3854 = vunpack.c.h.b16 %v1238
        %v3855 = vunpack.c.l.b16 %v1239
        %v3856 = vunpack.c.h.b16 %v1239
        %v3857 = vunpack.c.l.b16 %v1240
        %v3858 = vunpack.c.h.b16 %v1240
        %v3859 = vunpack.c.l.b16 %v1241
        %v3860 = vunpack.c.h.b16 %v1241
        %v3861 = vunpack.c.l.b16 %v1242
        %v3862 = vunpack.c.h.b16 %v1242
        %v3863 = vunpack.c.l.b16 %v1243
        %v3864 = vunpack.c.h.b16 %v1243
        %v3865 = vunpack.c.l.b16 %v1244
        %v3866 = vunpack.c.h.b16 %v1244
        %v3867 = vunpack.c.l.b16 %v1245
        %v3868 = vunpack.c.h.b16 %v1245
        %v3869 = vunpack.c.l.b16 %v1246
        %v3870 = vunpack.c.h.b16 %v1246
        %v3871 = vunpack.c.l.b16 %v1247
        %v3872 = vunpack.c.h.b16 %v1247
        %v3873 = vunpack.c.l.b16 %v1248
        %v3874 = vunpack.c.h.b16 %v1248
        %v3875 = vunpack.c.l.b16 %v1249
        %v3876 = vunpack.c.h.b16 %v1249
        %v3877 = vunpack.c.l.b16 %v1250
        %v3878 = vunpack.c.h.b16 %v1250
        %v3879 = vunpack.c.l.b16 %v1251
        %v3880 = vunpack.c.h.b16 %v1251
        %v3881 = vunpack.c.l.b16 %v1252
        %v3882 = vunpack.c.h.b16 %v1252
        %v3883 = vunpack.c.l.b16 %v1253
        %v3884 = vunpack.c.h.b16 %v1253
        %v3885 = vunpack.c.l.b16 %v1254
        %v3886 = vunpack.c.h.b16 %v1254
        %v3887 = vunpack.c.l.b16 %v1255
        %v3888 = vunpack.c.h.b16 %v1255
        %v3889 = vunpack.c.l.b16 %v1256
        %v3890 = vunpack.c.h.b16 %v1256
        %v3891 = vunpack.c.l.b16 %v1257
        %v3892 = vunpack.c.h.b16 %v1257
        %v3893 = vunpack.c.l.b16 %v1258
        %v3894 = vunpack.c.h.b16 %v1258
        %v3895 = vunpack.c.l.b16 %v1259
        %v3896 = vunpack.c.h.b16 %v1259
        %v3897 = vunpack.c.l.b16 %v1260
        %v3898 = vunpack.c.h.b16 %v1260
        %v3899 = vunpack.c.l.b16 %v1261
        %v3900 = vunpack.c.h.b16 %v1261
        %v3901 = vunpack.c.l.b16 %v1262
        %v3902 = vunpack.c.h.b16 %v1262
        %v3903 = vunpack.c.l.b16 %v1263
        %v3904 = vunpack.c.h.b16 %v1263
        %v3905 = vunpack.c.l.b16 %v1264
        %v3906 = vunpack.c.h.b16 %v1264
        %v3907 = vunpack.c.l.b16 %v1265
        %v3908 = vunpack.c.h.b16 %v1265
        %v3909 = vunpack.c.l.b16 %v1266
        %v3910 = vunpack.c.h.b16 %v1266
        %v3911 = vunpack.c.l.b16 %v1267
        %v3912 = vunpack.c.h.b16 %v1267
        %v3913 = vunpack.c.l.b16 %v1268
        %v3914 = vunpack.c.h.b16 %v1268
        %v3915 = vunpack.c.l.b16 %v1269
        %v3916 = vunpack.c.h.b16 %v1269
        %v3917 = vunpack.c.l.b16 %v1270
        %v3918 = vunpack.c.h.b16 %v1270
        %v3919 = vunpack.c.l.b16 %v1271
        %v3920 = vunpack.c.h.b16 %v1271
        %v3921 = vunpack.c.l.b16 %v1272
        %v3922 = vunpack.c.h.b16 %v1272
        %v3923 = vunpack.c.l.b16 %v1273
        %v3924 = vunpack.c.h.b16 %v1273
        %v3925 = vunpack.c.l.b16 %v1274
        %v3926 = vunpack.c.h.b16 %v1274
        %v3927 = vunpack.c.l.b16 %v1275
        %v3928 = vunpack.c.h.b16 %v1275
        %v3929 = vunpack.c.l.b16 %v1276
        %v3930 = vunpack.c.h.b16 %v1276
        %v3931 = vunpack.c.l.b16 %v1277
        %v3932 = vunpack.c.h.b16 %v1277
        %v3933 = vunpack.c.l.b16 %v1278
        %v3934 = vunpack.c.h.b16 %v1278
        %v3935 = vunpack.c.l.b16 %v1279
        %v3936 = vunpack.c.h.b16 %v1279
        %v3937 = vunpack.c.l.b16 %v1280
        %v3938 = vunpack.c.h.b16 %v1280
        %v3939 = vunpack.c.l.b16 %v1281
        %v3940 = vunpack.c.h.b16 %v1281
        %v3941 = vunpack.c.l.b16 %v1282
        %v3942 = vunpack.c.h.b16 %v1282
        %v3943 = vunpack.c.l.b16 %v1283
        %v3944 = vunpack.c.h.b16 %v1283
        %v3945 = vunpack.c.l.b16 %v1284
        %v3946 = vunpack.c.h.b16 %v1284
        %v3947 = vunpack.c.l.b16 %v1285
        %v3948 = vunpack.c.h.b16 %v1285
        %v3949 = vunpack.c.l.b16 %v1286
        %v3950 = vunpack.c.h.b16 %v1286
        %v3951 = vunpack.c.l.b16 %v1287
        %v3952 = vunpack.c.h.b16 %v1287
        %v3953 = vunpack.c.l.b16 %v1288
        %v3954 = vunpack.c.h.b16 %v1288
        %v3955 = vunpack.c.l.b16 %v1289
        %v3956 = vunpack.c.h.b16 %v1289
        %v3957 = vunpack.c.l.b16 %v1290
        %v3958 = vunpack.c.h.b16 %v1290
        %v3959 = vunpack.c.l.b16 %v1291
        %v3960 = vunpack.c.h.b16 %v1291
        %v3961 = vunpack.c.l.b16 %v1292
        %v3962 = vunpack.c.h.b16 %v1292
        %v3963 = vunpack.c.l.b16 %v1293
        %v3964 = vunpack.c.h.b16 %v1293
        %v3965 = vunpack.c.l.b16 %v1294
        %v3966 = vunpack.c.h.b16 %v1294
        %v3967 = vunpack.c.l.b16 %v1295
        %v3968 = vunpack.c.h.b16 %v1295
        %v3969 = vunpack.c.l.b16 %v1296
        %v3970 = vunpack.c.h.b16 %v1296
        %v3971 = vunpack.c.l.b16 %v1297
        %v3972 = vunpack.c.h.b16 %v1297
        %v3973 = vunpack.c.l.b16 %v1298
        %v3974 = vunpack.c.h.b16 %v1298
        %v3975 = vunpack.c.l.b16 %v1299
        %v3976 = vunpack.c.h.b16 %v1299
        %v3977 = vunpack.c.l.b16 %v1300
        %v3978 = vunpack.c.h.b16 %v1300
        %v3979 = vunpack.c.l.b16 %v1301
        %v3980 = vunpack.c.h.b16 %v1301
        %v3981 = vunpack.c.l.b16 %v1302
        %v3982 = vunpack.c.h.b16 %v1302
        %v3983 = vunpack.c.l.b16 %v1303
        %v3984 = vunpack.c.h.b16 %v1303
        %v3985 = vunpack.c.l.b16 %v1304
        %v3986 = vunpack.c.h.b16 %v1304
        %v3987 = vunpack.c.l.b16 %v1305
        %v3988 = vunpack.c.h.b16 %v1305
        %v3989 = vunpack.c.l.b16 %v1306
        %v3990 = vunpack.c.h.b16 %v1306
        %v3991 = vunpack.c.l.b16 %v1307
        %v3992 = vunpack.c.h.b16 %v1307
        %v3993 = vunpack.c.l.b16 %v1308
        %v3994 = vunpack.c.h.b16 %v1308
        %v3995 = vunpack.c.l.b16 %v1309
        %v3996 = vunpack.c.h.b16 %v1309
        %v3997 = vunpack.c.l.b16 %v1310
        %v3998 = vunpack.c.h.b16 %v1310
        %v3999 = vunpack.c.l.b16 %v1311
        %v4000 = vunpack.c.h.b16 %v1311
        %v4001 = vunpack.c.l.b16 %v1312
        %v4002 = vunpack.c.h.b16 %v1312
        %v4003 = vunpack.c.l.b16 %v1313
        %v4004 = vunpack.c.h.b16 %v1313
        %v4005 = vunpack.c.l.b16 %v1314
        %v4006 = vunpack.c.h.b16 %v1314
        %v4007 = vunpack.c.l.b16 %v1315
        %v4008 = vunpack.c.h.b16 %v1315
        %v4009 = vunpack.c.l.b16 %v1316
        %v4010 = vunpack.c.h.b16 %v1316
        %v4011 = vunpack.c.l.b16 %v1317
        %v4012 = vunpack.c.h.b16 %v1317
        %v4013 = vunpack.c.l.b16 %v1318
        %v4014 = vunpack.c.h.b16 %v1318
        %v4015 = vunpack.c.l.b16 %v1319
        %v4016 = vunpack.c.h.b16 %v1319
        %v4017 = vunpack.c.l.b16 %v1320
        %v4018 = vunpack.c.h.b16 %v1320
        %v4019 = vunpack.c.l.b16 %v1321
        %v4020 = vunpack.c.h.b16 %v1321
        %v4021 = vunpack.c.l.b16 %v1322
        %v4022 = vunpack.c.h.b16 %v1322
        %v4023 = vunpack.c.l.b16 %v1323
        %v4024 = vunpack.c.h.b16 %v1323
        %v4025 = vunpack.c.l.b16 %v1324
        %v4026 = vunpack.c.h.b16 %v1324
        %v4027 = vunpack.c.l.b16 %v1325
        %v4028 = vunpack.c.h.b16 %v1325
        %v4029 = vunpack.c.l.b16 %v1326
        %v4030 = vunpack.c.h.b16 %v1326
        %v4031 = vunpack.c.l.b16 %v1327
        %v4032 = vunpack.c.h.b16 %v1327
        %v4033 = vunpack.c.l.b16 %v1328
        %v4034 = vunpack.c.h.b16 %v1328
        %v4035 = vunpack.c.l.b16 %v1329
        %v4036 = vunpack.c.h.b16 %v1329
        %v4037 = vunpack.c.l.b16 %v1330
        %v4038 = vunpack.c.h.b16 %v1330
        %v4039 = vunpack.c.l.b16 %v1331
        %v4040 = vunpack.c.h.b16 %v1331
        %v4041 = vunpack.c.l.b16 %v1332
        %v4042 = vunpack.c.h.b16 %v1332
        %v4043 = vunpack.c.l.b16 %v1333
        %v4044 = vunpack.c.h.b16 %v1333
        %v4045 = vunpack.c.l.b16 %v1334
        %v4046 = vunpack.c.h.b16 %v1334
        %v4047 = vunpack.c.l.b16 %v1335
        %v4048 = vunpack.c.h.b16 %v1335
        %v4049 = vunpack.c.l.b16 %v1336
        %v4050 = vunpack.c.h.b16 %v1336
        %v4051 = vunpack.c.l.b16 %v1337
        %v4052 = vunpack.c.h.b16 %v1337
        %v4053 = vunpack.c.l.b16 %v1338
        %v4054 = vunpack.c.h.b16 %v1338
        %v4055 = vunpack.c.l.b16 %v1339
        %v4056 = vunpack.c.h.b16 %v1339
        %v4057 = vunpack.c.l.b16 %v1340
        %v4058 = vunpack.c.h.b16 %v1340
        %v4059 = vunpack.c.l.b16 %v1341
        %v4060 = vunpack.c.h.b16 %v1341
        %v4061 = vunpack.c.l.b16 %v1342
        %v4062 = vunpack.c.h.b16 %v1342
        %v4063 = vunpack.c.l.b16 %v1343
        %v4064 = vunpack.c.h.b16 %v1343
        %v4065 = vunpack.c.l.b16 %v1344
        %v4066 = vunpack.c.h.b16 %v1344
        %v4067 = vunpack.c.l.b16 %v1345
        %v4068 = vunpack.c.h.b16 %v1345
        %v4069 = vunpack.c.l.b16 %v1346
        %v4070 = vunpack.c.h.b16 %v1346
        %v4071 = vunpack.c.l.b16 %v1347
        %v4072 = vunpack.c.h.b16 %v1347
        %v4073 = vunpack.c.l.b16 %v1348
        %v4074 = vunpack.c.h.b16 %v1348
        %v4075 = vunpack.c.l.b16 %v1349
        %v4076 = vunpack.c.h.b16 %v1349
        %v4077 = vunpack.c.l.b16 %v1350
        %v4078 = vunpack.c.h.b16 %v1350
        %v4079 = vunpack.c.l.b16 %v1351
        %v4080 = vunpack.c.h.b16 %v1351
        %v4081 = vunpack.c.l.b16 %v1352
        %v4082 = vunpack.c.h.b16 %v1352
        %v4083 = vunpack.c.l.b16 %v1353
        %v4084 = vunpack.c.h.b16 %v1353
        %v4085 = vunpack.c.l.b16 %v1354
        %v4086 = vunpack.c.h.b16 %v1354
        %v4087 = vunpack.c.l.b16 %v1355
        %v4088 = vunpack.c.h.b16 %v1355
        %v4089 = vunpack.c.l.b16 %v1356
        %v4090 = vunpack.c.h.b16 %v1356
        %v4091 = vunpack.c.l.b16 %v1357
        %v4092 = vunpack.c.h.b16 %v1357
        %v4093 = vunpack.c.l.b16 %v1358
        %v4094 = vunpack.c.h.b16 %v1358
        %v4095 = vunpack.c.l.b16 %v1359
        %v4096 = vunpack.c.h.b16 %v1359
        %v4097 = vunpack.c.l.b16 %v1360
        %v4098 = vunpack.c.h.b16 %v1360
        %v4099 = vunpack.c.l.b16 %v1361
        %v4100 = vunpack.c.h.b16 %v1361
        %v4101 = vunpack.c.l.b16 %v1362
        %v4102 = vunpack.c.h.b16 %v1362
        %v4103 = vunpack.c.l.b16 %v1363
        %v4104 = vunpack.c.h.b16 %v1363
        %v4105 = vunpack.c.l.b16 %v1364
        %v4106 = vunpack.c.h.b16 %v1364
        %v4107 = vunpack.c.l.b16 %v1365
        %v4108 = vunpack.c.h.b16 %v1365
        %v4109 = vunpack.c.l.b16 %v1366
        %v4110 = vunpack.c.h.b16 %v1366
        %v4111 = vunpack.c.l.b16 %v1367
        %v4112 = vunpack.c.h.b16 %v1367
        %v4113 = vunpack.c.l.b16 %v1368
        %v4114 = vunpack.c.h.b16 %v1368
        %v4115 = vunpack.c.l.b16 %v1369
        %v4116 = vunpack.c.h.b16 %v1369
        %v4117 = vunpack.c.l.b16 %v1370
        %v4118 = vunpack.c.h.b16 %v1370
        %v4119 = vunpack.c.l.b16 %v1371
        %v4120 = vunpack.c.h.b16 %v1371
        %v4121 = vunpack.c.l.b16 %v1372
        %v4122 = vunpack.c.h.b16 %v1372
        %v4123 = vunpack.c.l.b16 %v1373
        %v4124 = vunpack.c.h.b16 %v1373
        %v4125 = vunpack.c.l.b16 %v1374
        %v4126 = vunpack.c.h.b16 %v1374
        %v4127 = vunpack.c.l.b16 %v1375
        %v4128 = vunpack.c.h.b16 %v1375
        %v4129 = vunpack.c.l.b16 %v1376
        %v4130 = vunpack.c.h.b16 %v1376
        %v4131 = vunpack.c.l.b16 %v1377
        %v4132 = vunpack.c.h.b16 %v1377
        %v4133 = vunpack.c.l.b16 %v1378
        %v4134 = vunpack.c.h.b16 %v1378
        %v4135 = vunpack.c.l.b16 %v1379
        %v4136 = vunpack.c.h.b16 %v1379
        %v4137 = vunpack.c.l.b16 %v1380
        %v4138 = vunpack.c.h.b16 %v1380
        %v4139 = vunpack.c.l.b16 %v1381
        %v4140 = vunpack.c.h.b16 %v1381
        %v4141 = vunpack.c.l.b16 %v1382
        %v4142 = vunpack.c.h.b16 %v1382
        %v4143 = vunpack.c.l.b16 %v1383
        %v4144 = vunpack.c.h.b16 %v1383
        %v4145 = vunpack.c.l.b16 %v1384
        %v4146 = vunpack.c.h.b16 %v1384
        %v4147 = vunpack.c.l.b16 %v1385
        %v4148 = vunpack.c.h.b16 %v1385
        %v4149 = vunpack.c.l.b16 %v1386
        %v4150 = vunpack.c.h.b16 %v1386
        %v4151 = vunpack.c.l.b16 %v1387
        %v4152 = vunpack.c.h.b16 %v1387
        %v4153 = vunpack.c.l.b16 %v1388
        %v4154 = vunpack.c.h.b16 %v1388
        %v4155 = vunpack.c.l.b16 %v1389
        %v4156 = vunpack.c.h.b16 %v1389
        %v4157 = vunpack.c.l.b16 %v1390
        %v4158 = vunpack.c.h.b16 %v1390
        %v4159 = vunpack.c.l.b16 %v1391
        %v4160 = vunpack.c.h.b16 %v1391
        %v4161 = vunpack.c.l.b16 %v1392
        %v4162 = vunpack.c.h.b16 %v1392
        %v4163 = vunpack.c.l.b16 %v1393
        %v4164 = vunpack.c.h.b16 %v1393
        %v4165 = vunpack.c.l.b16 %v1394
        %v4166 = vunpack.c.h.b16 %v1394
        %v4167 = vunpack.c.l.b16 %v1395
        %v4168 = vunpack.c.h.b16 %v1395
        %v4169 = vunpack.c.l.b16 %v1396
        %v4170 = vunpack.c.h.b16 %v1396
        %v4171 = vunpack.c.l.b16 %v1397
        %v4172 = vunpack.c.h.b16 %v1397
        %v4173 = vunpack.c.l.b16 %v1398
        %v4174 = vunpack.c.h.b16 %v1398
        %v4175 = vunpack.c.l.b16 %v1399
        %v4176 = vunpack.c.h.b16 %v1399
        %v4177 = vunpack.c.l.b16 %v1400
        %v4178 = vunpack.c.h.b16 %v1400
        %v4179 = vunpack.c.l.b16 %v1401
        %v4180 = vunpack.c.h.b16 %v1401
        %v4181 = vunpack.c.l.b16 %v1402
        %v4182 = vunpack.c.h.b16 %v1402
        %v4183 = vunpack.c.l.b16 %v1403
        %v4184 = vunpack.c.h.b16 %v1403
        %v4185 = vunpack.c.l.b16 %v1404
        %v4186 = vunpack.c.h.b16 %v1404
        %v4187 = vunpack.c.l.b16 %v1405
        %v4188 = vunpack.c.h.b16 %v1405
        %v4189 = vunpack.c.l.b16 %v1406
        %v4190 = vunpack.c.h.b16 %v1406
        %v4191 = vunpack.c.l.b16 %v1407
        %v4192 = vunpack.c.h.b16 %v1407
        %v4193 = vunpack.c.l.b16 %v1408
        %v4194 = vunpack.c.h.b16 %v1408
        %v4195 = vunpack.c.l.b16 %v1409
        %v4196 = vunpack.c.h.b16 %v1409
        %v4197 = vunpack.c.l.b16 %v1410
        %v4198 = vunpack.c.h.b16 %v1410
        %v4199 = vunpack.c.l.b16 %v1411
        %v4200 = vunpack.c.h.b16 %v1411
        %v4201 = vunpack.c.l.b16 %v1412
        %v4202 = vunpack.c.h.b16 %v1412
        %v4203 = vunpack.c.l.b16 %v1413
        %v4204 = vunpack.c.h.b16 %v1413
        %v4205 = vunpack.c.l.b16 %v1414
        %v4206 = vunpack.c.h.b16 %v1414
        %v4207 = vunpack.c.l.b16 %v1415
        %v4208 = vunpack.c.h.b16 %v1415
        %v4209 = vunpack.c.l.b16 %v1416
        %v4210 = vunpack.c.h.b16 %v1416
        %v4211 = vunpack.c.l.b16 %v1417
        %v4212 = vunpack.c.h.b16 %v1417
        %v4213 = vunpack.c.l.b16 %v1418
        %v4214 = vunpack.c.h.b16 %v1418
        %v4215 = vunpack.c.l.b16 %v1419
        %v4216 = vunpack.c.h.b16 %v1419
        %v4217 = vunpack.c.l.b16 %v1420
        %v4218 = vunpack.c.h.b16 %v1420
        %v4219 = vunpack.c.l.b16 %v1421
        %v4220 = vunpack.c.h.b16 %v1421
        %v4221 = vunpack.c.l.b16 %v1422
        %v4222 = vunpack.c.h.b16 %v1422
        %v4223 = vunpack.c.l.b16 %v1423
        %v4224 = vunpack.c.h.b16 %v1423
        %v4225 = vunpack.c.l.b16 %v1424
        %v4226 = vunpack.c.h.b16 %v1424
        %v4227 = vunpack.c.l.b16 %v1425
        %v4228 = vunpack.c.h.b16 %v1425
        %v4229 = vunpack.c.l.b16 %v1426
        %v4230 = vunpack.c.h.b16 %v1426
        %v4231 = vunpack.c.l.b16 %v1427
        %v4232 = vunpack.c.h.b16 %v1427
        %v4233 = vunpack.c.l.b16 %v1428
        %v4234 = vunpack.c.h.b16 %v1428
        %v4235 = vunpack.c.l.b16 %v1429
        %v4236 = vunpack.c.h.b16 %v1429
        %v4237 = vunpack.c.l.b16 %v1430
        %v4238 = vunpack.c.h.b16 %v1430
        %v4239 = vunpack.c.l.b16 %v1431
        %v4240 = vunpack.c.h.b16 %v1431
        %v4241 = vunpack.c.l.b16 %v1432
        %v4242 = vunpack.c.h.b16 %v1432
        %v4243 = vunpack.c.l.b16 %v1433
        %v4244 = vunpack.c.h.b16 %v1433
        %v4245 = vunpack.c.l.b16 %v1434
        %v4246 = vunpack.c.h.b16 %v1434
        %v4247 = vunpack.c.l.b16 %v1435
        %v4248 = vunpack.c.h.b16 %v1435
        %v4249 = vunpack.c.l.b16 %v1436
        %v4250 = vunpack.c.h.b16 %v1436
        %v4251 = vunpack.c.l.b16 %v1437
        %v4252 = vunpack.c.h.b16 %v1437
        %v4253 = vunpack.c.l.b16 %v1438
        %v4254 = vunpack.c.h.b16 %v1438
        %v4255 = vunpack.c.l.b16 %v1439
        %v4256 = vunpack.c.h.b16 %v1439
        %v4257 = vunpack.c.l.b16 %v1440
        %v4258 = vunpack.c.h.b16 %v1440
        %v4259 = vunpack.c.l.b16 %v1441
        %v4260 = vunpack.c.h.b16 %v1441
        %v4261 = vunpack.c.l.b16 %v1442
        %v4262 = vunpack.c.h.b16 %v1442
        %v4263 = vunpack.c.l.b16 %v1443
        %v4264 = vunpack.c.h.b16 %v1443
        %v4265 = vunpack.c.l.b16 %v1444
        %v4266 = vunpack.c.h.b16 %v1444
        %v4267 = vunpack.c.l.b16 %v1445
        %v4268 = vunpack.c.h.b16 %v1445
        %v4269 = vunpack.c.l.b16 %v1446
        %v4270 = vunpack.c.h.b16 %v1446
        %v4271 = vunpack.c.l.b16 %v1447
        %v4272 = vunpack.c.h.b16 %v1447
        %v4273 = vunpack.c.l.b16 %v1448
        %v4274 = vunpack.c.h.b16 %v1448
        %v4275 = vunpack.c.l.b16 %v1449
        %v4276 = vunpack.c.h.b16 %v1449
        %v4277 = vunpack.c.l.b16 %v1450
        %v4278 = vunpack.c.h.b16 %v1450
        %v4279 = vunpack.c.l.b16 %v1451
        %v4280 = vunpack.c.h.b16 %v1451
        %v4281 = vunpack.c.l.b16 %v1452
        %v4282 = vunpack.c.h.b16 %v1452
        %v4283 = vunpack.c.l.b16 %v1453
        %v4284 = vunpack.c.h.b16 %v1453
        %v4285 = vunpack.c.l.b16 %v1454
        %v4286 = vunpack.c.h.b16 %v1454
        %v4287 = vunpack.c.l.b16 %v1455
        %v4288 = vunpack.c.h.b16 %v1455
        %v4289 = vunpack.c.l.b16 %v1456
        %v4290 = vunpack.c.h.b16 %v1456
        %v4291 = vunpack.c.l.b16 %v1457
        %v4292 = vunpack.c.h.b16 %v1457
        %v4293 = vunpack.c.l.b16 %v1458
        %v4294 = vunpack.c.h.b16 %v1458
        %v4295 = vunpack.c.l.b16 %v1459
        %v4296 = vunpack.c.h.b16 %v1459
        %v4297 = vunpack.c.l.b16 %v1460
        %v4298 = vunpack.c.h.b16 %v1460
        %v4299 = vunpack.c.l.b16 %v1461
        %v4300 = vunpack.c.h.b16 %v1461
        %v4301 = vunpack.c.l.b16 %v1462
        %v4302 = vunpack.c.h.b16 %v1462
        %v4303 = vunpack.c.l.b16 %v1463
        %v4304 = vunpack.c.h.b16 %v1463
        %v4305 = vunpack.c.l.b16 %v1464
        %v4306 = vunpack.c.h.b16 %v1464
        %v4307 = vunpack.c.l.b16 %v1465
        %v4308 = vunpack.c.h.b16 %v1465
        %v4309 = vunpack.c.l.b16 %v1466
        %v4310 = vunpack.c.h.b16 %v1466
        %v4311 = vunpack.c.l.b16 %v1467
        %v4312 = vunpack.c.h.b16 %v1467
        %v4313 = vunpack.c.l.b16 %v1468
        %v4314 = vunpack.c.h.b16 %v1468
        %v4315 = vunpack.c.l.b16 %v1469
        %v4316 = vunpack.c.h.b16 %v1469
        %v4317 = vunpack.c.l.b16 %v1470
        %v4318 = vunpack.c.h.b16 %v1470
        %v4319 = vunpack.c.l.b16 %v1471
        %v4320 = vunpack.c.h.b16 %v1471
        %v4321 = vunpack.c.l.b16 %v1472
        %v4322 = vunpack.c.h.b16 %v1472
        %v4323 = vunpack.c.l.b16 %v1473
        %v4324 = vunpack.c.h.b16 %v1473
        %v4325 = vunpack.c.l.b16 %v1474
        %v4326 = vunpack.c.h.b16 %v1474
        %v4327 = vunpack.c.l.b16 %v1475
        %v4328 = vunpack.c.h.b16 %v1475
        %v4329 = vunpack.c.l.b16 %v1476
        %v4330 = vunpack.c.h.b16 %v1476
        %v4331 = vunpack.c.l.b16 %v1477
        %v4332 = vunpack.c.h.b16 %v1477
        %v4333 = vunpack.c.l.b16 %v1478
        %v4334 = vunpack.c.h.b16 %v1478
        %v4335 = vunpack.c.l.b16 %v1479
        %v4336 = vunpack.c.h.b16 %v1479
        %v4337 = vunpack.c.l.b16 %v1480
        %v4338 = vunpack.c.h.b16 %v1480
        %v4339 = vunpack.c.l.b16 %v1481
        %v4340 = vunpack.c.h.b16 %v1481
        %v4341 = vunpack.c.l.b16 %v1482
        %v4342 = vunpack.c.h.b16 %v1482
        %v4343 = vunpack.c.l.b16 %v1483
        %v4344 = vunpack.c.h.b16 %v1483
        %v4345 = vunpack.c.l.b16 %v1484
        %v4346 = vunpack.c.h.b16 %v1484
        %v4347 = vunpack.c.l.b16 %v1485
        %v4348 = vunpack.c.h.b16 %v1485
        %v4349 = vunpack.c.l.b16 %v1486
        %v4350 = vunpack.c.h.b16 %v1486
        %v4351 = vunpack.c.l.b16 %v1487
        %v4352 = vunpack.c.h.b16 %v1487
        %v4353 = vunpack.c.l.b16 %v1488
        %v4354 = vunpack.c.h.b16 %v1488
        %v4355 = vunpack.c.l.b16 %v1489
        %v4356 = vunpack.c.h.b16 %v1489
        %v4357 = vunpack.c.l.b16 %v1490
        %v4358 = vunpack.c.h.b16 %v1490
        %v4359 = vunpack.c.l.b16 %v1491
        %v4360 = vunpack.c.h.b16 %v1491
        %v4361 = vunpack.c.l.b16 %v1492
        %v4362 = vunpack.c.h.b16 %v1492
        %v4363 = vunpack.c.l.b16 %v1493
        %v4364 = vunpack.c.h.b16 %v1493
        %v4365 = vunpack.c.l.b16 %v1494
        %v4366 = vunpack.c.h.b16 %v1494
        %v4367 = vunpack.c.l.b16 %v1495
        %v4368 = vunpack.c.h.b16 %v1495
        %v4369 = vunpack.c.l.b16 %v1496
        %v4370 = vunpack.c.h.b16 %v1496
        %v4371 = vunpack.c.l.b16 %v1497
        %v4372 = vunpack.c.h.b16 %v1497
        %v4373 = vunpack.c.l.b16 %v1498
        %v4374 = vunpack.c.h.b16 %v1498
        %v4375 = vunpack.c.l.b16 %v1499
        %v4376 = vunpack.c.h.b16 %v1499
        %v4377 = vunpack.c.l.b16 %v1500
        %v4378 = vunpack.c.h.b16 %v1500
        %v4379 = vunpack.c.l.b16 %v1501
        %v4380 = vunpack.c.h.b16 %v1501
        %v4381 = vunpack.c.l.b16 %v1502
        %v4382 = vunpack.c.h.b16 %v1502
        %v4383 = vunpack.c.l.b16 %v1503
        %v4384 = vunpack.c.h.b16 %v1503
        %v4385 = vunpack.c.l.b16 %v1504
        %v4386 = vunpack.c.h.b16 %v1504
        %v4387 = vunpack.c.l.b16 %v1505
        %v4388 = vunpack.c.h.b16 %v1505
        %v4389 = vunpack.c.l.b16 %v1506
        %v4390 = vunpack.c.h.b16 %v1506
        %v4391 = vunpack.c.l.b16 %v1507
        %v4392 = vunpack.c.h.b16 %v1507
        %v4393 = vunpack.c.l.b16 %v1508
        %v4394 = vunpack.c.h.b16 %v1508
        %v4395 = vunpack.c.l.b16 %v1509
        %v4396 = vunpack.c.h.b16 %v1509
        %v4397 = vunpack.c.l.b16 %v1510
        %v4398 = vunpack.c.h.b16 %v1510
        %v4399 = vunpack.c.l.b16 %v1511
        %v4400 = vunpack.c.h.b16 %v1511
        %v4401 = vunpack.c.l.b16 %v1512
        %v4402 = vunpack.c.h.b16 %v1512
        %v4403 = vunpack.c.l.b16 %v1513
        %v4404 = vunpack.c.h.b16 %v1513
        %v4405 = vunpack.c.l.b16 %v1514
        %v4406 = vunpack.c.h.b16 %v1514
        %v4407 = vunpack.c.l.b16 %v1515
        %v4408 = vunpack.c.h.b16 %v1515
        %v4409 = vunpack.c.l.b16 %v1516
        %v4410 = vunpack.c.h.b16 %v1516
        %v4411 = vunpack.c.l.b16 %v1517
        %v4412 = vunpack.c.h.b16 %v1517
        %v4413 = vunpack.c.l.b16 %v1518
        %v4414 = vunpack.c.h.b16 %v1518
        %v4415 = vunpack.c.l.b16 %v1519
        %v4416 = vunpack.c.h.b16 %v1519
        %v4417 = vunpack.c.l.b16 %v1520
        %v4418 = vunpack.c.h.b16 %v1520
        %v4419 = vunpack.c.l.b16 %v1521
        %v4420 = vunpack.c.h.b16 %v1521
        %v4421 = vunpack.c.l.b16 %v1522
        %v4422 = vunpack.c.h.b16 %v1522
        %v4423 = vunpack.c.l.b16 %v1523
        %v4424 = vunpack.c.h.b16 %v1523
        %v4425 = vunpack.c.l.b16 %v1524
        %v4426 = vunpack.c.h.b16 %v1524
        %v4427 = vunpack.c.l.b16 %v1525
        %v4428 = vunpack.c.h.b16 %v1525
        %v4429 = vunpack.c.l.b16 %v1526
        %v4430 = vunpack.c.h.b16 %v1526
        %v4431 = vunpack.c.l.b16 %v1527
        %v4432 = vunpack.c.h.b16 %v1527
        %v4433 = vunpack.c.l.b16 %v1528
        %v4434 = vunpack.c.h.b16 %v1528
        %v4435 = vunpack.c.l.b16 %v1529
        %v4436 = vunpack.c.h.b16 %v1529
        %v4437 = vunpack.c.l.b16 %v1530
        %v4438 = vunpack.c.h.b16 %v1530
        %v4439 = vunpack.c.l.b16 %v1531
        %v4440 = vunpack.c.h.b16 %v1531
        %v4441 = vunpack.c.l.b16 %v1532
        %v4442 = vunpack.c.h.b16 %v1532
        %v4443 = vunpack.c.l.b16 %v1533
        %v4444 = vunpack.c.h.b16 %v1533
        %v4445 = vunpack.c.l.b16 %v1534
        %v4446 = vunpack.c.h.b16 %v1534
        %v4447 = vunpack.c.l.b16 %v1535
        %v4448 = vunpack.c.h.b16 %v1535
        %v4449 = vunpack.c.l.b16 %v1536
        %v4450 = vunpack.c.h.b16 %v1536
        %v4451 = vunpack.c.l.b16 %v1537
        %v4452 = vunpack.c.h.b16 %v1537
        %v4453 = vunpack.c.l.b16 %v1538
        %v4454 = vunpack.c.h.b16 %v1538
        %v4455 = vunpack.c.l.b16 %v1539
        %v4456 = vunpack.c.h.b16 %v1539
        %v4457 = vunpack.c.l.b16 %v1540
        %v4458 = vunpack.c.h.b16 %v1540
        %v4459 = vunpack.c.l.b16 %v1541
        %v4460 = vunpack.c.h.b16 %v1541
        %v4461 = vunpack.c.l.b16 %v1542
        %v4462 = vunpack.c.h.b16 %v1542
        %v4463 = vunpack.c.l.b16 %v1543
        %v4464 = vunpack.c.h.b16 %v1543
        %v4465 = vunpack.c.l.b16 %v1544
        %v4466 = vunpack.c.h.b16 %v1544
        %v4467 = vunpack.c.l.b16 %v1545
        %v4468 = vunpack.c.h.b16 %v1545
        %v4469 = vunpack.c.l.b16 %v1546
        %v4470 = vunpack.c.h.b16 %v1546
        %v4471 = vunpack.c.l.b16 %v1547
        %v4472 = vunpack.c.h.b16 %v1547
        %v4473 = vunpack.c.l.b16 %v1548
        %v4474 = vunpack.c.h.b16 %v1548
        %v4475 = vunpack.c.l.b16 %v1549
        %v4476 = vunpack.c.h.b16 %v1549
        %v4477 = vunpack.c.l.b16 %v1550
        %v4478 = vunpack.c.h.b16 %v1550
        %v4479 = vunpack.c.l.b16 %v1551
        %v4480 = vunpack.c.h.b16 %v1551
        %v4481 = vunpack.c.l.b16 %v1552
        %v4482 = vunpack.c.h.b16 %v1552
        %v4483 = vunpack.c.l.b16 %v1553
        %v4484 = vunpack.c.h.b16 %v1553
        %v4485 = vunpack.c.l.b16 %v1554
        %v4486 = vunpack.c.h.b16 %v1554
        %v4487 = vunpack.c.l.b16 %v1555
        %v4488 = vunpack.c.h.b16 %v1555
        %v4489 = vunpack.c.l.b16 %v1556
        %v4490 = vunpack.c.h.b16 %v1556
        %v4491 = vunpack.c.l.b16 %v1557
        %v4492 = vunpack.c.h.b16 %v1557
        %v4493 = vunpack.c.l.b16 %v1558
        %v4494 = vunpack.c.h.b16 %v1558
        %v4495 = vunpack.c.l.b16 %v1559
        %v4496 = vunpack.c.h.b16 %v1559
        %v4497 = vunpack.c.l.b16 %v1560
        %v4498 = vunpack.c.h.b16 %v1560
        %v4499 = vunpack.c.l.b16 %v1561
        %v4500 = vunpack.c.h.b16 %v1561
        %v4501 = vunpack.c.l.b16 %v1562
        %v4502 = vunpack.c.h.b16 %v1562
        %v4503 = vunpack.c.l.b16 %v1563
        %v4504 = vunpack.c.h.b16 %v1563
        %v4505 = vunpack.c.l.b16 %v1564
        %v4506 = vunpack.c.h.b16 %v1564
        %v4507 = vunpack.c.l.b16 %v1565
        %v4508 = vunpack.c.h.b16 %v1565
        %v4509 = vunpack.c.l.b16 %v1566
        %v4510 = vunpack.c.h.b16 %v1566
        %v4511 = vunpack.c.l.b16 %v1567
        %v4512 = vunpack.c.h.b16 %v1567
        %v4513 = vunpack.c.l.b16 %v1568
        %v4514 = vunpack.c.h.b16 %v1568
        %v4515 = vunpack.c.l.b16 %v1569
        %v4516 = vunpack.c.h.b16 %v1569
        %v4517 = vunpack.c.l.b16 %v1570
        %v4518 = vunpack.c.h.b16 %v1570
        %v4519 = vunpack.c.l.b16 %v1571
        %v4520 = vunpack.c.h.b16 %v1571
        %v4521 = vunpack.c.l.b16 %v1572
        %v4522 = vunpack.c.h.b16 %v1572
        %v4523 = vunpack.c.l.b16 %v1573
        %v4524 = vunpack.c.h.b16 %v1573
        %v4525 = vunpack.c.l.b16 %v1574
        %v4526 = vunpack.c.h.b16 %v1574
        %v4527 = vunpack.c.l.b16 %v1575
        %v4528 = vunpack.c.h.b16 %v1575
        %v4529 = vunpack.c.l.b16 %v1576
        %v4530 = vunpack.c.h.b16 %v1576
        %v4531 = vunpack.c.l.b16 %v1577
        %v4532 = vunpack.c.h.b16 %v1577
        %v4533 = vunpack.c.l.b16 %v1578
        %v4534 = vunpack.c.h.b16 %v1578
        %v4535 = vunpack.c.l.b16 %v1579
        %v4536 = vunpack.c.h.b16 %v1579
        %v4537 = vunpack.c.l.b16 %v1580
        %v4538 = vunpack.c.h.b16 %v1580
        %v4539 = vunpack.c.l.b16 %v1581
        %v4540 = vunpack.c.h.b16 %v1581
        %v4541 = vunpack.c.l.b16 %v1582
        %v4542 = vunpack.c.h.b16 %v1582
        %v4543 = vunpack.c.l.b16 %v1583
        %v4544 = vunpack.c.h.b16 %v1583
        %v4545 = vunpack.c.l.b16 %v1584
        %v4546 = vunpack.c.h.b16 %v1584
        %v4547 = vunpack.c.l.b16 %v1585
        %v4548 = vunpack.c.h.b16 %v1585
        %v4549 = vunpack.c.l.b16 %v1586
        %v4550 = vunpack.c.h.b16 %v1586
        %v4551 = vunpack.c.l.b16 %v1587
        %v4552 = vunpack.c.h.b16 %v1587
        %v4553 = vunpack.c.l.b16 %v1588
        %v4554 = vunpack.c.h.b16 %v1588
        %v4555 = vunpack.c.l.b16 %v1589
        %v4556 = vunpack.c.h.b16 %v1589
        %v4557 = vunpack.c.l.b16 %v1590
        %v4558 = vunpack.c.h.b16 %v1590
        %v4559 = vunpack.c.l.b16 %v1591
        %v4560 = vunpack.c.h.b16 %v1591
        %v4561 = vunpack.c.l.b16 %v1592
        %v4562 = vunpack.c.h.b16 %v1592
        %v4563 = vunpack.c.l.b16 %v1593
        %v4564 = vunpack.c.h.b16 %v1593
        %v4565 = vunpack.c.l.b16 %v1594
        %v4566 = vunpack.c.h.b16 %v1594
        %v4567 = vunpack.c.l.b16 %v1595
        %v4568 = vunpack.c.h.b16 %v1595
        %v4569 = vunpack.c.l.b16 %v1596
        %v4570 = vunpack.c.h.b16 %v1596
        %v4571 = vunpack.c.l.b16 %v1597
        %v4572 = vunpack.c.h.b16 %v1597
        %v4573 = vunpack.c.l.b16 %v1598
        %v4574 = vunpack.c.h.b16 %v1598
        %v4575 = vunpack.c.l.b16 %v1599
        %v4576 = vunpack.c.h.b16 %v1599
        %v4577 = vunpack.c.l.b16 %v1600
        %v4578 = vunpack.c.h.b16 %v1600
        %v4579 = vunpack.c.l.b16 %v1601
        %v4580 = vunpack.c.h.b16 %v1601
        %v4581 = vunpack.c.l.b16 %v1602
        %v4582 = vunpack.c.h.b16 %v1602
        %v4583 = vunpack.c.l.b16 %v1603
        %v4584 = vunpack.c.h.b16 %v1603
        %v4585 = vunpack.c.l.b16 %v1604
        %v4586 = vunpack.c.h.b16 %v1604
        %v4587 = vunpack.c.l.b16 %v1605
        %v4588 = vunpack.c.h.b16 %v1605
        %v4589 = vunpack.c.l.b16 %v1606
        %v4590 = vunpack.c.h.b16 %v1606
        %v4591 = vunpack.c.l.b16 %v1607
        %v4592 = vunpack.c.h.b16 %v1607
        %v4593 = vunpack.c.l.b16 %v1608
        %v4594 = vunpack.c.h.b16 %v1608
        %v4595 = vunpack.c.l.b16 %v1609
        %v4596 = vunpack.c.h.b16 %v1609
        %v4597 = vunpack.c.l.b16 %v1610
        %v4598 = vunpack.c.h.b16 %v1610
        %v4599 = vunpack.c.l.b16 %v1611
        %v4600 = vunpack.c.h.b16 %v1611
        %v4601 = vunpack.c.l.b16 %v1612
        %v4602 = vunpack.c.h.b16 %v1612
        %v4603 = vunpack.c.l.b16 %v1613
        %v4604 = vunpack.c.h.b16 %v1613
        %v4605 = vunpack.c.l.b16 %v1614
        %v4606 = vunpack.c.h.b16 %v1614
        %v4607 = vunpack.c.l.b16 %v1615
        %v4608 = vunpack.c.h.b16 %v1615
        %v4609 = vunpack.c.l.b16 %v1616
        %v4610 = vunpack.c.h.b16 %v1616
        %v4611 = vunpack.c.l.b16 %v1617
        %v4612 = vunpack.c.h.b16 %v1617
        %v4613 = vunpack.c.l.b16 %v1618
        %v4614 = vunpack.c.h.b16 %v1618
        %v4615 = vunpack.c.l.b16 %v1619
        %v4616 = vunpack.c.h.b16 %v1619
        %v4617 = vunpack.c.l.b16 %v1620
        %v4618 = vunpack.c.h.b16 %v1620
        %v4619 = vunpack.c.l.b16 %v1621
        %v4620 = vunpack.c.h.b16 %v1621
        %v4621 = vunpack.c.l.b16 %v1622
        %v4622 = vunpack.c.h.b16 %v1622
        %v4623 = vunpack.c.l.b16 %v1623
        %v4624 = vunpack.c.h.b16 %v1623
        %v4625 = vunpack.c.l.b16 %v1624
        %v4626 = vunpack.c.h.b16 %v1624
        %v4627 = vunpack.c.l.b16 %v1625
        %v4628 = vunpack.c.h.b16 %v1625
        %v4629 = vunpack.c.l.b16 %v1626
        %v4630 = vunpack.c.h.b16 %v1626
        %v4631 = vunpack.c.l.b16 %v1627
        %v4632 = vunpack.c.h.b16 %v1627
        %v4633 = vunpack.c.l.b16 %v1628
        %v4634 = vunpack.c.h.b16 %v1628
        %v4635 = vunpack.c.l.b16 %v1629
        %v4636 = vunpack.c.h.b16 %v1629
        %v4637 = vunpack.c.l.b16 %v1630
        %v4638 = vunpack.c.h.b16 %v1630
        %v4639 = vunpack.c.l.b16 %v1631
        %v4640 = vunpack.c.h.b16 %v1631
        %v4641 = vunpack.c.l.b16 %v1632
        %v4642 = vunpack.c.h.b16 %v1632
        %v4643 = vunpack.c.l.b16 %v1633
        %v4644 = vunpack.c.h.b16 %v1633
        %v4645 = vunpack.c.l.b16 %v1634
        %v4646 = vunpack.c.h.b16 %v1634
        %v4647 = vunpack.c.l.b16 %v1635
        %v4648 = vunpack.c.h.b16 %v1635
        %v4649 = vunpack.c.l.b16 %v1636
        %v4650 = vunpack.c.h.b16 %v1636
        %v4651 = vunpack.c.l.b16 %v1637
        %v4652 = vunpack.c.h.b16 %v1637
        %v4653 = vunpack.c.l.b16 %v1638
        %v4654 = vunpack.c.h.b16 %v1638
        %v4655 = vunpack.c.l.b16 %v1639
        %v4656 = vunpack.c.h.b16 %v1639
        %v4657 = vunpack.c.l.b16 %v1640
        %v4658 = vunpack.c.h.b16 %v1640
        %v4659 = vunpack.c.l.b16 %v1641
        %v4660 = vunpack.c.h.b16 %v1641
        %v4661 = vunpack.c.l.b16 %v1642
        %v4662 = vunpack.c.h.b16 %v1642
        %v4663 = vunpack.c.l.b16 %v1643
        %v4664 = vunpack.c.h.b16 %v1643
        %v4665 = vunpack.c.l.b16 %v1644
        %v4666 = vunpack.c.h.b16 %v1644
        %v4667 = vunpack.c.l.b16 %v1645
        %v4668 = vunpack.c.h.b16 %v1645
        %v4669 = vunpack.c.l.b16 %v1646
        %v4670 = vunpack.c.h.b16 %v1646
        %v4671 = vunpack.c.l.b16 %v1647
        %v4672 = vunpack.c.h.b16 %v1647
        %v4673 = vunpack.c.l.b16 %v1648
        %v4674 = vunpack.c.h.b16 %v1648
        %v4675 = vunpack.c.l.b16 %v1649
        %v4676 = vunpack.c.h.b16 %v1649
        %v4677 = vunpack.c.l.b16 %v1650
        %v4678 = vunpack.c.h.b16 %v1650
        %v4679 = vunpack.c.l.b16 %v1651
        %v4680 = vunpack.c.h.b16 %v1651
        %v4681 = vunpack.c.l.b16 %v1652
        %v4682 = vunpack.c.h.b16 %v1652
        %v4683 = vunpack.c.l.b16 %v1653
        %v4684 = vunpack.c.h.b16 %v1653
        %v4685 = vunpack.c.l.b16 %v1654
        %v4686 = vunpack.c.h.b16 %v1654
        %v4687 = vunpack.c.l.b16 %v1655
        %v4688 = vunpack.c.h.b16 %v1655
        %v4689 = vunpack.c.l.b16 %v1656
        %v4690 = vunpack.c.h.b16 %v1656
        %v4691 = vunpack.c.l.b16 %v1657
        %v4692 = vunpack.c.h.b16 %v1657
        %v4693 = vunpack.c.l.b16 %v1658
        %v4694 = vunpack.c.h.b16 %v1658
        %v4695 = vunpack.c.l.b16 %v1659
        %v4696 = vunpack.c.h.b16 %v1659
        %v4697 = vunpack.c.l.b16 %v1660
        %v4698 = vunpack.c.h.b16 %v1660
        %v4699 = vunpack.c.l.b16 %v1661
        %v4700 = vunpack.c.h.b16 %v1661
        %v4701 = vunpack.c.l.b16 %v1662
        %v4702 = vunpack.c.h.b16 %v1662
        %v4703 = vunpack.c.l.b16 %v1663
        %v4704 = vunpack.c.h.b16 %v1663
        %v4705 = vunpack.c.l.b16 %v1664
        %v4706 = vunpack.c.h.b16 %v1664
        %v4707 = vunpack.c.l.b16 %v1665
        %v4708 = vunpack.c.h.b16 %v1665
        %v4709 = vunpack.c.l.b16 %v1666
        %v4710 = vunpack.c.h.b16 %v1666
        %v4711 = vunpack.c.l.b16 %v1667
        %v4712 = vunpack.c.h.b16 %v1667
        %v4713 = vunpack.c.l.b16 %v1668
        %v4714 = vunpack.c.h.b16 %v1668
        %v4715 = vunpack.c.l.b16 %v1669
        %v4716 = vunpack.c.h.b16 %v1669
        %v4717 = vunpack.c.l.b16 %v1670
        %v4718 = vunpack.c.h.b16 %v1670
        %v4719 = vunpack.c.l.b16 %v1671
        %v4720 = vunpack.c.h.b16 %v1671
        %v4721 = vunpack.c.l.b16 %v1672
        %v4722 = vunpack.c.h.b16 %v1672
        %v4723 = vunpack.c.l.b16 %v1673
        %v4724 = vunpack.c.h.b16 %v1673
        %v4725 = vunpack.c.l.b16 %v1674
        %v4726 = vunpack.c.h.b16 %v1674
        %v4727 = vunpack.c.l.b16 %v1675
        %v4728 = vunpack.c.h.b16 %v1675
        %v4729 = vunpack.c.l.b16 %v1676
        %v4730 = vunpack.c.h.b16 %v1676
        %v4731 = vunpack.c.l.b16 %v1677
        %v4732 = vunpack.c.h.b16 %v1677
        %v4733 = vunpack.c.l.b16 %v1678
        %v4734 = vunpack.c.h.b16 %v1678
        %v4735 = vunpack.c.l.b16 %v1679
        %v4736 = vunpack.c.h.b16 %v1679
        %v4737 = vunpack.c.l.b16 %v1680
        %v4738 = vunpack.c.h.b16 %v1680
        %v4739 = vunpack.c.l.b16 %v1681
        %v4740 = vunpack.c.h.b16 %v1681
        %v4741 = vunpack.c.l.b16 %v1682
        %v4742 = vunpack.c.h.b16 %v1682
        %v4743 = vunpack.c.l.b16 %v1683
        %v4744 = vunpack.c.h.b16 %v1683
        %v4745 = vunpack.c.l.b16 %v1684
        %v4746 = vunpack.c.h.b16 %v1684
        %v4747 = vunpack.c.l.b16 %v1685
        %v4748 = vunpack.c.h.b16 %v1685
        %v4749 = vunpack.c.l.b16 %v1686
        %v4750 = vunpack.c.h.b16 %v1686
        %v4751 = vunpack.c.l.b16 %v1687
        %v4752 = vunpack.c.h.b16 %v1687
        %v4753 = vunpack.c.l.b16 %v1688
        %v4754 = vunpack.c.h.b16 %v1688
        %v4755 = vunpack.c.l.b16 %v1689
        %v4756 = vunpack.c.h.b16 %v1689
        %v4757 = vunpack.c.l.b16 %v1690
        %v4758 = vunpack.c.h.b16 %v1690
        %v4759 = vunpack.c.l.b16 %v1691
        %v4760 = vunpack.c.h.b16 %v1691
        %v4761 = vunpack.c.l.b16 %v1692
        %v4762 = vunpack.c.h.b16 %v1692
        %v4763 = vunpack.c.l.b16 %v1693
        %v4764 = vunpack.c.h.b16 %v1693
        %v4765 = vunpack.c.l.b16 %v1694
        %v4766 = vunpack.c.h.b16 %v1694
        %v4767 = vpack.c.b16 %v2723, %v2719
        %v4768 = vpack.c.b16 %v2724, %v2720
        %v4769 = vpack.c.b16 %v2725, %v2721
        %v4770 = vpack.c.b16 %v2726, %v2722
        %v4771 = vpack.c.b16 %v2731, %v2727
        %v4772 = vpack.c.b16 %v2732, %v2728
        %v4773 = vpack.c.b16 %v2733, %v2729
        %v4774 = vpack.c.b16 %v2734, %v2730
        %v4775 = vpack.c.b16 %v2739, %v2735
        %v4776 = vpack.c.b16 %v2740, %v2736
        %v4777 = vpack.c.b16 %v2741, %v2737
        %v4778 = vpack.c.b16 %v2742, %v2738
        %v4779 = vpack.c.b16 %v2747, %v2743
        %v4780 = vpack.c.b16 %v2748, %v2744
        %v4781 = vpack.c.b16 %v2749, %v2745
        %v4782 = vpack.c.b16 %v2750, %v2746
        %v4783 = vpack.c.b16 %v2755, %v2751
        %v4784 = vpack.c.b16 %v2756, %v2752
        %v4785 = vpack.c.b16 %v2757, %v2753
        %v4786 = vpack.c.b16 %v2758, %v2754
        %v4787 = vpack.c.b16 %v2763, %v2759
        %v4788 = vpack.c.b16 %v2764, %v2760
        %v4789 = vpack.c.b16 %v2765, %v2761
        %v4790 = vpack.c.b16 %v2766, %v2762
        %v4791 = vpack.c.b16 %v2771, %v2767
        %v4792 = vpack.c.b16 %v2772, %v2768
        %v4793 = vpack.c.b16 %v2773, %v2769
        %v4794 = vpack.c.b16 %v2774, %v2770
        %v4795 = vpack.c.b16 %v2779, %v2775
        %v4796 = vpack.c.b16 %v2780, %v2776
        %v4797 = vpack.c.b16 %v2781, %v2777
        %v4798 = vpack.c.b16 %v2782, %v2778
        %v4799 = vpack.c.b16 %v2787, %v2783
        %v4800 = vpack.c.b16 %v2788, %v2784
        %v4801 = vpack.c.b16 %v2789, %v2785
        %v4802 = vpack.c.b16 %v2790, %v2786
        %v4803 = vpack.c.b16 %v2795, %v2791
        %v4804 = vpack.c.b16 %v2796, %v2792
        %v4805 = vpack.c.b16 %v2797, %v2793
        %v4806 = vpack.c.b16 %v2798, %v2794
        %v4807 = vpack.c.b16 %v2803, %v2799
        %v4808 = vpack.c.b16 %v2804, %v2800
        %v4809 = vpack.c.b16 %v2805, %v2801
        %v4810 = vpack.c.b16 %v2806, %v2802
        %v4811 = vpack.c.b16 %v2811, %v2807
        %v4812 = vpack.c.b16 %v2812, %v2808
        %v4813 = vpack.c.b16 %v2813, %v2809
        %v4814 = vpack.c.b16 %v2814, %v2810
        %v4815 = vpack.c.b16 %v2819, %v2815
        %v4816 = vpack.c.b16 %v2820, %v2816
        %v4817 = vpack.c.b16 %v2821, %v2817
        %v4818 = vpack.c.b16 %v2822, %v2818
        %v4819 = vpack.c.b16 %v2827, %v2823
        %v4820 = vpack.c.b16 %v2828, %v2824
        %v4821 = vpack.c.b16 %v2829, %v2825
        %v4822 = vpack.c.b16 %v2830, %v2826
        %v4823 = vpack.c.b16 %v2835, %v2831
        %v4824 = vpack.c.b16 %v2836, %v2832
        %v4825 = vpack.c.b16 %v2837, %v2833
        %v4826 = vpack.c.b16 %v2838, %v2834
        %v4827 = vpack.c.b16 %v2843, %v2839
        %v4828 = vpack.c.b16 %v2844, %v2840
        %v4829 = vpack.c.b16 %v2845, %v2841
        %v4830 = vpack.c.b16 %v2846, %v2842
        %v4831 = vpack.c.b16 %v2851, %v2847
        %v4832 = vpack.c.b16 %v2852, %v2848
        %v4833 = vpack.c.b16 %v2853, %v2849
        %v4834 = vpack.c.b16 %v2854, %v2850
        %v4835 = vpack.c.b16 %v2859, %v2855
        %v4836 = vpack.c.b16 %v2860, %v2856
        %v4837 = vpack.c.b16 %v2861, %v2857
        %v4838 = vpack.c.b16 %v2862, %v2858
        %v4839 = vpack.c.b16 %v2867, %v2863
        %v4840 = vpack.c.b16 %v2868, %v2864
        %v4841 = vpack.c.b16 %v2869, %v2865
        %v4842 = vpack.c.b16 %v2870, %v2866
        %v4843 = vpack.c.b16 %v2875, %v2871
        %v4844 = vpack.c.b16 %v2876, %v2872
        %v4845 = vpack.c.b16 %v2877, %v2873
        %v4846 = vpack.c.b16 %v2878, %v2874
        %v4847 = vpack.c.b16 %v2883, %v2879
        %v4848 = vpack.c.b16 %v2884, %v2880
        %v4849 = vpack.c.b16 %v2885, %v2881
        %v4850 = vpack.c.b16 %v2886, %v2882
        %v4851 = vpack.c.b16 %v2891, %v2887
        %v4852 = vpack.c.b16 %v2892, %v2888
        %v4853 = vpack.c.b16 %v2893, %v2889
        %v4854 = vpack.c.b16 %v2894, %v2890
        %v4855 = vpack.c.b16 %v2899, %v2895
        %v4856 = vpack.c.b16 %v2900, %v2896
        %v4857 = vpack.c.b16 %v2901, %v2897
        %v4858 = vpack.c.b16 %v2902, %v2898
        %v4859 = vpack.c.b16 %v2907, %v2903
        %v4860 = vpack.c.b16 %v2908, %v2904
        %v4861 = vpack.c.b16 %v2909, %v2905
        %v4862 = vpack.c.b16 %v2910, %v2906
        %v4863 = vpack.c.b16 %v2915, %v2911
        %v4864 = vpack.c.b16 %v2916, %v2912
        %v4865 = vpack.c.b16 %v2917, %v2913
        %v4866 = vpack.c.b16 %v2918, %v2914
        %v4867 = vpack.c.b16 %v2923, %v2919
        %v4868 = vpack.c.b16 %v2924, %v2920
        %v4869 = vpack.c.b16 %v2925, %v2921
        %v4870 = vpack.c.b16 %v2926, %v2922
        %v4871 = vpack.c.b16 %v2931, %v2927
        %v4872 = vpack.c.b16 %v2932, %v2928
        %v4873 = vpack.c.b16 %v2933, %v2929
        %v4874 = vpack.c.b16 %v2934, %v2930
        %v4875 = vpack.c.b16 %v2939, %v2935
        %v4876 = vpack.c.b16 %v2940, %v2936
        %v4877 = vpack.c.b16 %v2941, %v2937
        %v4878 = vpack.c.b16 %v2942, %v2938
        %v4879 = vpack.c.b16 %v2947, %v2943
        %v4880 = vpack.c.b16 %v2948, %v2944
        %v4881 = vpack.c.b16 %v2949, %v2945
        %v4882 = vpack.c.b16 %v2950, %v2946
        %v4883 = vpack.c.b16 %v2955, %v2951
        %v4884 = vpack.c.b16 %v2956, %v2952
        %v4885 = vpack.c.b16 %v2957, %v2953
        %v4886 = vpack.c.b16 %v2958, %v2954
        %v4887 = vpack.c.b16 %v2963, %v2959
        %v4888 = vpack.c.b16 %v2964, %v2960
        %v4889 = vpack.c.b16 %v2965, %v2961
        %v4890 = vpack.c.b16 %v2966, %v2962
        %v4891 = vpack.c.b16 %v2971, %v2967
        %v4892 = vpack.c.b16 %v2972, %v2968
        %v4893 = vpack.c.b16 %v2973, %v2969
        %v4894 = vpack.c.b16 %v2974, %v2970
        %v4895 = vpack.c.b16 %v2979, %v2975
        %v4896 = vpack.c.b16 %v2980, %v2976
        %v4897 = vpack.c.b16 %v2981, %v2977
        %v4898 = vpack.c.b16 %v2982, %v2978
        %v4899 = vpack.c.b16 %v2987, %v2983
        %v4900 = vpack.c.b16 %v2988, %v2984
        %v4901 = vpack.c.b16 %v2989, %v2985
        %v4902 = vpack.c.b16 %v2990, %v2986
        %v4903 = vpack.c.b16 %v2995, %v2991
        %v4904 = vpack.c.b16 %v2996, %v2992
        %v4905 = vpack.c.b16 %v2997, %v2993
        %v4906 = vpack.c.b16 %v2998, %v2994
        %v4907 = vpack.c.b16 %v3003, %v2999
        %v4908 = vpack.c.b16 %v3004, %v3000
        %v4909 = vpack.c.b16 %v3005, %v3001
        %v4910 = vpack.c.b16 %v3006, %v3002
        %v4911 = vpack.c.b16 %v3011, %v3007
        %v4912 = vpack.c.b16 %v3012, %v3008
        %v4913 = vpack.c.b16 %v3013, %v3009
        %v4914 = vpack.c.b16 %v3014, %v3010
        %v4915 = vpack.c.b16 %v3019, %v3015
        %v4916 = vpack.c.b16 %v3020, %v3016
        %v4917 = vpack.c.b16 %v3021, %v3017
        %v4918 = vpack.c.b16 %v3022, %v3018
        %v4919 = vpack.c.b16 %v3027, %v3023
        %v4920 = vpack.c.b16 %v3028, %v3024
        %v4921 = vpack.c.b16 %v3029, %v3025
        %v4922 = vpack.c.b16 %v3030, %v3026
        %v4923 = vpack.c.b16 %v3035, %v3031
        %v4924 = vpack.c.b16 %v3036, %v3032
        %v4925 = vpack.c.b16 %v3037, %v3033
        %v4926 = vpack.c.b16 %v3038, %v3034
        %v4927 = vpack.c.b16 %v3043, %v3039
        %v4928 = vpack.c.b16 %v3044, %v3040
        %v4929 = vpack.c.b16 %v3045, %v3041
        %v4930 = vpack.c.b16 %v3046, %v3042
        %v4931 = vpack.c.b16 %v3051, %v3047
        %v4932 = vpack.c.b16 %v3052, %v3048
        %v4933 = vpack.c.b16 %v3053, %v3049
        %v4934 = vpack.c.b16 %v3054, %v3050
        %v4935 = vpack.c.b16 %v3059, %v3055
        %v4936 = vpack.c.b16 %v3060, %v3056
        %v4937 = vpack.c.b16 %v3061, %v3057
        %v4938 = vpack.c.b16 %v3062, %v3058
        %v4939 = vpack.c.b16 %v3067, %v3063
        %v4940 = vpack.c.b16 %v3068, %v3064
        %v4941 = vpack.c.b16 %v3069, %v3065
        %v4942 = vpack.c.b16 %v3070, %v3066
        %v4943 = vpack.c.b16 %v3075, %v3071
        %v4944 = vpack.c.b16 %v3076, %v3072
        %v4945 = vpack.c.b16 %v3077, %v3073
        %v4946 = vpack.c.b16 %v3078, %v3074
        %v4947 = vpack.c.b16 %v3083, %v3079
        %v4948 = vpack.c.b16 %v3084, %v3080
        %v4949 = vpack.c.b16 %v3085, %v3081
        %v4950 = vpack.c.b16 %v3086, %v3082
        %v4951 = vpack.c.b16 %v3091, %v3087
        %v4952 = vpack.c.b16 %v3092, %v3088
        %v4953 = vpack.c.b16 %v3093, %v3089
        %v4954 = vpack.c.b16 %v3094, %v3090
        %v4955 = vpack.c.b16 %v3099, %v3095
        %v4956 = vpack.c.b16 %v3100, %v3096
        %v4957 = vpack.c.b16 %v3101, %v3097
        %v4958 = vpack.c.b16 %v3102, %v3098
        %v4959 = vpack.c.b16 %v3107, %v3103
        %v4960 = vpack.c.b16 %v3108, %v3104
        %v4961 = vpack.c.b16 %v3109, %v3105
        %v4962 = vpack.c.b16 %v3110, %v3106
        %v4963 = vpack.c.b16 %v3115, %v3111
        %v4964 = vpack.c.b16 %v3116, %v3112
        %v4965 = vpack.c.b16 %v3117, %v3113
        %v4966 = vpack.c.b16 %v3118, %v3114
        %v4967 = vpack.c.b16 %v3123, %v3119
        %v4968 = vpack.c.b16 %v3124, %v3120
        %v4969 = vpack.c.b16 %v3125, %v3121
        %v4970 = vpack.c.b16 %v3126, %v3122
        %v4971 = vpack.c.b16 %v3131, %v3127
        %v4972 = vpack.c.b16 %v3132, %v3128
        %v4973 = vpack.c.b16 %v3133, %v3129
        %v4974 = vpack.c.b16 %v3134, %v3130
        %v4975 = vpack.c.b16 %v3139, %v3135
        %v4976 = vpack.c.b16 %v3140, %v3136
        %v4977 = vpack.c.b16 %v3141, %v3137
        %v4978 = vpack.c.b16 %v3142, %v3138
        %v4979 = vpack.c.b16 %v3147, %v3143
        %v4980 = vpack.c.b16 %v3148, %v3144
        %v4981 = vpack.c.b16 %v3149, %v3145
        %v4982 = vpack.c.b16 %v3150, %v3146
        %v4983 = vpack.c.b16 %v3155, %v3151
        %v4984 = vpack.c.b16 %v3156, %v3152
        %v4985 = vpack.c.b16 %v3157, %v3153
        %v4986 = vpack.c.b16 %v3158, %v3154
        %v4987 = vpack.c.b16 %v3163, %v3159
        %v4988 = vpack.c.b16 %v3164, %v3160
        %v4989 = vpack.c.b16 %v3165, %v3161
        %v4990 = vpack.c.b16 %v3166, %v3162
        %v4991 = vpack.c.b16 %v3171, %v3167
        %v4992 = vpack.c.b16 %v3172, %v3168
        %v4993 = vpack.c.b16 %v3173, %v3169
        %v4994 = vpack.c.b16 %v3174, %v3170
        %v4995 = vpack.c.b16 %v3179, %v3175
        %v4996 = vpack.c.b16 %v3180, %v3176
        %v4997 = vpack.c.b16 %v3181, %v3177
        %v4998 = vpack.c.b16 %v3182, %v3178
        %v4999 = vpack.c.b16 %v3187, %v3183
        %v5000 = vpack.c.b16 %v3188, %v3184
        %v5001 = vpack.c.b16 %v3189, %v3185
        %v5002 = vpack.c.b16 %v3190, %v3186
        %v5003 = vpack.c.b16 %v3195, %v3191
        %v5004 = vpack.c.b16 %v3196, %v3192
        %v5005 = vpack.c.b16 %v3197, %v3193
        %v5006 = vpack.c.b16 %v3198, %v3194
        %v5007 = vpack.c.b16 %v3203, %v3199
        %v5008 = vpack.c.b16 %v3204, %v3200
        %v5009 = vpack.c.b16 %v3205, %v3201
        %v5010 = vpack.c.b16 %v3206, %v3202
        %v5011 = vpack.c.b16 %v3211, %v3207
        %v5012 = vpack.c.b16 %v3212, %v3208
        %v5013 = vpack.c.b16 %v3213, %v3209
        %v5014 = vpack.c.b16 %v3214, %v3210
        %v5015 = vpack.c.b16 %v3219, %v3215
        %v5016 = vpack.c.b16 %v3220, %v3216
        %v5017 = vpack.c.b16 %v3221, %v3217
        %v5018 = vpack.c.b16 %v3222, %v3218
        %v5019 = vpack.c.b16 %v3227, %v3223
        %v5020 = vpack.c.b16 %v3228, %v3224
        %v5021 = vpack.c.b16 %v3229, %v3225
        %v5022 = vpack.c.b16 %v3230, %v3226
        %v5023 = vpack.c.b16 %v3235, %v3231
        %v5024 = vpack.c.b16 %v3236, %v3232
        %v5025 = vpack.c.b16 %v3237, %v3233
        %v5026 = vpack.c.b16 %v3238, %v3234
        %v5027 = vpack.c.b16 %v3243, %v3239
        %v5028 = vpack.c.b16 %v3244, %v3240
        %v5029 = vpack.c.b16 %v3245, %v3241
        %v5030 = vpack.c.b16 %v3246, %v3242
        %v5031 = vpack.c.b16 %v3251, %v3247
        %v5032 = vpack.c.b16 %v3252, %v3248
        %v5033 = vpack.c.b16 %v3253, %v3249
        %v5034 = vpack.c.b16 %v3254, %v3250
        %v5035 = vpack.c.b16 %v3259, %v3255
        %v5036 = vpack.c.b16 %v3260, %v3256
        %v5037 = vpack.c.b16 %v3261, %v3257
        %v5038 = vpack.c.b16 %v3262, %v3258
        %v5039 = vpack.c.b16 %v3267, %v3263
        %v5040 = vpack.c.b16 %v3268, %v3264
        %v5041 = vpack.c.b16 %v3269, %v3265
        %v5042 = vpack.c.b16 %v3270, %v3266
        %v5043 = vpack.c.b16 %v3275, %v3271
        %v5044 = vpack.c.b16 %v3276, %v3272
        %v5045 = vpack.c.b16 %v3277, %v3273
        %v5046 = vpack.c.b16 %v3278, %v3274
        %v5047 = vpack.c.b16 %v3283, %v3279
        %v5048 = vpack.c.b16 %v3284, %v3280
        %v5049 = vpack.c.b16 %v3285, %v3281
        %v5050 = vpack.c.b16 %v3286, %v3282
        %v5051 = vpack.c.b16 %v3291, %v3287
        %v5052 = vpack.c.b16 %v3292, %v3288
        %v5053 = vpack.c.b16 %v3293, %v3289
        %v5054 = vpack.c.b16 %v3294, %v3290
        %v5055 = vpack.c.b16 %v3299, %v3295
        %v5056 = vpack.c.b16 %v3300, %v3296
        %v5057 = vpack.c.b16 %v3301, %v3297
        %v5058 = vpack.c.b16 %v3302, %v3298
        %v5059 = vpack.c.b16 %v3307, %v3303
        %v5060 = vpack.c.b16 %v3308, %v3304
        %v5061 = vpack.c.b16 %v3309, %v3305
        %v5062 = vpack.c.b16 %v3310, %v3306
        %v5063 = vpack.c.b16 %v3315, %v3311
        %v5064 = vpack.c.b16 %v3316, %v3312
        %v5065 = vpack.c.b16 %v3317, %v3313
        %v5066 = vpack.c.b16 %v3318, %v3314
        %v5067 = vpack.c.b16 %v3323, %v3319
        %v5068 = vpack.c.b16 %v3324, %v3320
        %v5069 = vpack.c.b16 %v3325, %v3321
        %v5070 = vpack.c.b16 %v3326, %v3322
        %v5071 = vpack.c.b16 %v3331, %v3327
        %v5072 = vpack.c.b16 %v3332, %v3328
        %v5073 = vpack.c.b16 %v3333, %v3329
        %v5074 = vpack.c.b16 %v3334, %v3330
        %v5075 = vpack.c.b16 %v3339, %v3335
        %v5076 = vpack.c.b16 %v3340, %v3336
        %v5077 = vpack.c.b16 %v3341, %v3337
        %v5078 = vpack.c.b16 %v3342, %v3338
        %v5079 = vpack.c.b16 %v3347, %v3343
        %v5080 = vpack.c.b16 %v3348, %v3344
        %v5081 = vpack.c.b16 %v3349, %v3345
        %v5082 = vpack.c.b16 %v3350, %v3346
        %v5083 = vpack.c.b16 %v3355, %v3351
        %v5084 = vpack.c.b16 %v3356, %v3352
        %v5085 = vpack.c.b16 %v3357, %v3353
        %v5086 = vpack.c.b16 %v3358, %v3354
        %v5087 = vpack.c.b16 %v3363, %v3359
        %v5088 = vpack.c.b16 %v3364, %v3360
        %v5089 = vpack.c.b16 %v3365, %v3361
        %v5090 = vpack.c.b16 %v3366, %v3362
        %v5091 = vpack.c.b16 %v3371, %v3367
        %v5092 = vpack.c.b16 %v3372, %v3368
        %v5093 = vpack.c.b16 %v3373, %v3369
        %v5094 = vpack.c.b16 %v3374, %v3370
        %v5095 = vpack.c.b16 %v3379, %v3375
        %v5096 = vpack.c.b16 %v3380, %v3376
        %v5097 = vpack.c.b16 %v3381, %v3377
        %v5098 = vpack.c.b16 %v3382, %v3378
        %v5099 = vpack.c.b16 %v3387, %v3383
        %v5100 = vpack.c.b16 %v3388, %v3384
        %v5101 = vpack.c.b16 %v3389, %v3385
        %v5102 = vpack.c.b16 %v3390, %v3386
        %v5103 = vpack.c.b16 %v3395, %v3391
        %v5104 = vpack.c.b16 %v3396, %v3392
        %v5105 = vpack.c.b16 %v3397, %v3393
        %v5106 = vpack.c.b16 %v3398, %v3394
        %v5107 = vpack.c.b16 %v3403, %v3399
        %v5108 = vpack.c.b16 %v3404, %v3400
        %v5109 = vpack.c.b16 %v3405, %v3401
        %v5110 = vpack.c.b16 %v3406, %v3402
        %v5111 = vpack.c.b16 %v3411, %v3407
        %v5112 = vpack.c.b16 %v3412, %v3408
        %v5113 = vpack.c.b16 %v3413, %v3409
        %v5114 = vpack.c.b16 %v3414, %v3410
        %v5115 = vpack.c.b16 %v3419, %v3415
        %v5116 = vpack.c.b16 %v3420, %v3416
        %v5117 = vpack.c.b16 %v3421, %v3417
        %v5118 = vpack.c.b16 %v3422, %v3418
        %v5119 = vpack.c.b16 %v3427, %v3423
        %v5120 = vpack.c.b16 %v3428, %v3424
        %v5121 = vpack.c.b16 %v3429, %v3425
        %v5122 = vpack.c.b16 %v3430, %v3426
        %v5123 = vpack.c.b16 %v3435, %v3431
        %v5124 = vpack.c.b16 %v3436, %v3432
        %v5125 = vpack.c.b16 %v3437, %v3433
        %v5126 = vpack.c.b16 %v3438, %v3434
        %v5127 = vpack.c.b16 %v3443, %v3439
        %v5128 = vpack.c.b16 %v3444, %v3440
        %v5129 = vpack.c.b16 %v3445, %v3441
        %v5130 = vpack.c.b16 %v3446, %v3442
        %v5131 = vpack.c.b16 %v3451, %v3447
        %v5132 = vpack.c.b16 %v3452, %v3448
        %v5133 = vpack.c.b16 %v3453, %v3449
        %v5134 = vpack.c.b16 %v3454, %v3450
        %v5135 = vpack.c.b16 %v3459, %v3455
        %v5136 = vpack.c.b16 %v3460, %v3456
        %v5137 = vpack.c.b16 %v3461, %v3457
        %v5138 = vpack.c.b16 %v3462, %v3458
        %v5139 = vpack.c.b16 %v3467, %v3463
        %v5140 = vpack.c.b16 %v3468, %v3464
        %v5141 = vpack.c.b16 %v3469, %v3465
        %v5142 = vpack.c.b16 %v3470, %v3466
        %v5143 = vpack.c.b16 %v3475, %v3471
        %v5144 = vpack.c.b16 %v3476, %v3472
        %v5145 = vpack.c.b16 %v3477, %v3473
        %v5146 = vpack.c.b16 %v3478, %v3474
        %v5147 = vpack.c.b16 %v3483, %v3479
        %v5148 = vpack.c.b16 %v3484, %v3480
        %v5149 = vpack.c.b16 %v3485, %v3481
        %v5150 = vpack.c.b16 %v3486, %v3482
        %v5151 = vpack.c.b16 %v3491, %v3487
        %v5152 = vpack.c.b16 %v3492, %v3488
        %v5153 = vpack.c.b16 %v3493, %v3489
        %v5154 = vpack.c.b16 %v3494, %v3490
        %v5155 = vpack.c.b16 %v3499, %v3495
        %v5156 = vpack.c.b16 %v3500, %v3496
        %v5157 = vpack.c.b16 %v3501, %v3497
        %v5158 = vpack.c.b16 %v3502, %v3498
        %v5159 = vpack.c.b16 %v3507, %v3503
        %v5160 = vpack.c.b16 %v3508, %v3504
        %v5161 = vpack.c.b16 %v3509, %v3505
        %v5162 = vpack.c.b16 %v3510, %v3506
        %v5163 = vpack.c.b16 %v3515, %v3511
        %v5164 = vpack.c.b16 %v3516, %v3512
        %v5165 = vpack.c.b16 %v3517, %v3513
        %v5166 = vpack.c.b16 %v3518, %v3514
        %v5167 = vpack.c.b16 %v3523, %v3519
        %v5168 = vpack.c.b16 %v3524, %v3520
        %v5169 = vpack.c.b16 %v3525, %v3521
        %v5170 = vpack.c.b16 %v3526, %v3522
        %v5171 = vpack.c.b16 %v3531, %v3527
        %v5172 = vpack.c.b16 %v3532, %v3528
        %v5173 = vpack.c.b16 %v3533, %v3529
        %v5174 = vpack.c.b16 %v3534, %v3530
        %v5175 = vpack.c.b16 %v3539, %v3535
        %v5176 = vpack.c.b16 %v3540, %v3536
        %v5177 = vpack.c.b16 %v3541, %v3537
        %v5178 = vpack.c.b16 %v3542, %v3538
        %v5179 = vpack.c.b16 %v3547, %v3543
        %v5180 = vpack.c.b16 %v3548, %v3544
        %v5181 = vpack.c.b16 %v3549, %v3545
        %v5182 = vpack.c.b16 %v3550, %v3546
        %v5183 = vpack.c.b16 %v3555, %v3551
        %v5184 = vpack.c.b16 %v3556, %v3552
        %v5185 = vpack.c.b16 %v3557, %v3553
        %v5186 = vpack.c.b16 %v3558, %v3554
        %v5187 = vpack.c.b16 %v3563, %v3559
        %v5188 = vpack.c.b16 %v3564, %v3560
        %v5189 = vpack.c.b16 %v3565, %v3561
        %v5190 = vpack.c.b16 %v3566, %v3562
        %v5191 = vpack.c.b16 %v3571, %v3567
        %v5192 = vpack.c.b16 %v3572, %v3568
        %v5193 = vpack.c.b16 %v3573, %v3569
        %v5194 = vpack.c.b16 %v3574, %v3570
        %v5195 = vpack.c.b16 %v3579, %v3575
        %v5196 = vpack.c.b16 %v3580, %v3576
        %v5197 = vpack.c.b16 %v3581, %v3577
        %v5198 = vpack.c.b16 %v3582, %v3578
        %v5199 = vpack.c.b16 %v3587, %v3583
        %v5200 = vpack.c.b16 %v3588, %v3584
        %v5201 = vpack.c.b16 %v3589, %v3585
        %v5202 = vpack.c.b16 %v3590, %v3586
        %v5203 = vpack.c.b16 %v3595, %v3591
        %v5204 = vpack.c.b16 %v3596, %v3592
        %v5205 = vpack.c.b16 %v3597, %v3593
        %v5206 = vpack.c.b16 %v3598, %v3594
        %v5207 = vpack.c.b16 %v3603, %v3599
        %v5208 = vpack.c.b16 %v3604, %v3600
        %v5209 = vpack.c.b16 %v3605, %v3601
        %v5210 = vpack.c.b16 %v3606, %v3602
        %v5211 = vpack.c.b16 %v3611, %v3607
        %v5212 = vpack.c.b16 %v3612, %v3608
        %v5213 = vpack.c.b16 %v3613, %v3609
        %v5214 = vpack.c.b16 %v3614, %v3610
        %v5215 = vpack.c.b16 %v3619, %v3615
        %v5216 = vpack.c.b16 %v3620, %v3616
        %v5217 = vpack.c.b16 %v3621, %v3617
        %v5218 = vpack.c.b16 %v3622, %v3618
        %v5219 = vpack.c.b16 %v3627, %v3623
        %v5220 = vpack.c.b16 %v3628, %v3624
        %v5221 = vpack.c.b16 %v3629, %v3625
        %v5222 = vpack.c.b16 %v3630, %v3626
        %v5223 = vpack.c.b16 %v3635, %v3631
        %v5224 = vpack.c.b16 %v3636, %v3632
        %v5225 = vpack.c.b16 %v3637, %v3633
        %v5226 = vpack.c.b16 %v3638, %v3634
        %v5227 = vpack.c.b16 %v3643, %v3639
        %v5228 = vpack.c.b16 %v3644, %v3640
        %v5229 = vpack.c.b16 %v3645, %v3641
        %v5230 = vpack.c.b16 %v3646, %v3642
        %v5231 = vpack.c.b16 %v3651, %v3647
        %v5232 = vpack.c.b16 %v3652, %v3648
        %v5233 = vpack.c.b16 %v3653, %v3649
        %v5234 = vpack.c.b16 %v3654, %v3650
        %v5235 = vpack.c.b16 %v3659, %v3655
        %v5236 = vpack.c.b16 %v3660, %v3656
        %v5237 = vpack.c.b16 %v3661, %v3657
        %v5238 = vpack.c.b16 %v3662, %v3658
        %v5239 = vpack.c.b16 %v3667, %v3663
        %v5240 = vpack.c.b16 %v3668, %v3664
        %v5241 = vpack.c.b16 %v3669, %v3665
        %v5242 = vpack.c.b16 %v3670, %v3666
        %v5243 = vpack.c.b16 %v3675, %v3671
        %v5244 = vpack.c.b16 %v3676, %v3672
        %v5245 = vpack.c.b16 %v3677, %v3673
        %v5246 = vpack.c.b16 %v3678, %v3674
        %v5247 = vpack.c.b16 %v3683, %v3679
        %v5248 = vpack.c.b16 %v3684, %v3680
        %v5249 = vpack.c.b16 %v3685, %v3681
        %v5250 = vpack.c.b16 %v3686, %v3682
        %v5251 = vpack.c.b16 %v3691, %v3687
        %v5252 = vpack.c.b16 %v3692, %v3688
        %v5253 = vpack.c.b16 %v3693, %v3689
        %v5254 = vpack.c.b16 %v3694, %v3690
        %v5255 = vpack.c.b16 %v3699, %v3695
        %v5256 = vpack.c.b16 %v3700, %v3696
        %v5257 = vpack.c.b16 %v3701, %v3697
        %v5258 = vpack.c.b16 %v3702, %v3698
        %v5259 = vpack.c.b16 %v3707, %v3703
        %v5260 = vpack.c.b16 %v3708, %v3704
        %v5261 = vpack.c.b16 %v3709, %v3705
        %v5262 = vpack.c.b16 %v3710, %v3706
        %v5263 = vpack.c.b16 %v3715, %v3711
        %v5264 = vpack.c.b16 %v3716, %v3712
        %v5265 = vpack.c.b16 %v3717, %v3713
        %v5266 = vpack.c.b16 %v3718, %v3714
        %v5267 = vpack.c.b16 %v3723, %v3719
        %v5268 = vpack.c.b16 %v3724, %v3720
        %v5269 = vpack.c.b16 %v3725, %v3721
        %v5270 = vpack.c.b16 %v3726, %v3722
        %v5271 = vpack.c.b16 %v3731, %v3727
        %v5272 = vpack.c.b16 %v3732, %v3728
        %v5273 = vpack.c.b16 %v3733, %v3729
        %v5274 = vpack.c.b16 %v3734, %v3730
        %v5275 = vpack.c.b16 %v3739, %v3735
        %v5276 = vpack.c.b16 %v3740, %v3736
        %v5277 = vpack.c.b16 %v3741, %v3737
        %v5278 = vpack.c.b16 %v3742, %v3738
        %v5279 = vpack.c.b16 %v3747, %v3743
        %v5280 = vpack.c.b16 %v3748, %v3744
        %v5281 = vpack.c.b16 %v3749, %v3745
        %v5282 = vpack.c.b16 %v3750, %v3746
        %v5283 = vpack.c.b16 %v3755, %v3751
        %v5284 = vpack.c.b16 %v3756, %v3752
        %v5285 = vpack.c.b16 %v3757, %v3753
        %v5286 = vpack.c.b16 %v3758, %v3754
        %v5287 = vpack.c.b16 %v3763, %v3759
        %v5288 = vpack.c.b16 %v3764, %v3760
        %v5289 = vpack.c.b16 %v3765, %v3761
        %v5290 = vpack.c.b16 %v3766, %v3762
        %v5291 = vpack.c.b16 %v3771, %v3767
        %v5292 = vpack.c.b16 %v3772, %v3768
        %v5293 = vpack.c.b16 %v3773, %v3769
        %v5294 = vpack.c.b16 %v3774, %v3770
        %v5295 = vpack.c.b16 %v3779, %v3775
        %v5296 = vpack.c.b16 %v3780, %v3776
        %v5297 = vpack.c.b16 %v3781, %v3777
        %v5298 = vpack.c.b16 %v3782, %v3778
        %v5299 = vpack.c.b16 %v3787, %v3783
        %v5300 = vpack.c.b16 %v3788, %v3784
        %v5301 = vpack.c.b16 %v3789, %v3785
        %v5302 = vpack.c.b16 %v3790, %v3786
        %v5303 = vpack.c.b16 %v3795, %v3791
        %v5304 = vpack.c.b16 %v3796, %v3792
        %v5305 = vpack.c.b16 %v3797, %v3793
        %v5306 = vpack.c.b16 %v3798, %v3794
        %v5307 = vpack.c.b16 %v3803, %v3799
        %v5308 = vpack.c.b16 %v3804, %v3800
        %v5309 = vpack.c.b16 %v3805, %v3801
        %v5310 = vpack.c.b16 %v3806, %v3802
        %v5311 = vpack.c.b16 %v3811, %v3807
        %v5312 = vpack.c.b16 %v3812, %v3808
        %v5313 = vpack.c.b16 %v3813, %v3809
        %v5314 = vpack.c.b16 %v3814, %v3810
        %v5315 = vpack.c.b16 %v3819, %v3815
        %v5316 = vpack.c.b16 %v3820, %v3816
        %v5317 = vpack.c.b16 %v3821, %v3817
        %v5318 = vpack.c.b16 %v3822, %v3818
        %v5319 = vpack.c.b16 %v3827, %v3823
        %v5320 = vpack.c.b16 %v3828, %v3824
        %v5321 = vpack.c.b16 %v3829, %v3825
        %v5322 = vpack.c.b16 %v3830, %v3826
        %v5323 = vpack.c.b16 %v3835, %v3831
        %v5324 = vpack.c.b16 %v3836, %v3832
        %v5325 = vpack.c.b16 %v3837, %v3833
        %v5326 = vpack.c.b16 %v3838, %v3834
        %v5327 = vpack.c.b16 %v3843, %v3839
        %v5328 = vpack.c.b16 %v3844, %v3840
        %v5329 = vpack.c.b16 %v3845, %v3841
        %v5330 = vpack.c.b16 %v3846, %v3842
        %v5331 = vpack.c.b16 %v3851, %v3847
        %v5332 = vpack.c.b16 %v3852, %v3848
        %v5333 = vpack.c.b16 %v3853, %v3849
        %v5334 = vpack.c.b16 %v3854, %v3850
        %v5335 = vpack.c.b16 %v3859, %v3855
        %v5336 = vpack.c.b16 %v3860, %v3856
        %v5337 = vpack.c.b16 %v3861, %v3857
        %v5338 = vpack.c.b16 %v3862, %v3858
        %v5339 = vpack.c.b16 %v3867, %v3863
        %v5340 = vpack.c.b16 %v3868, %v3864
        %v5341 = vpack.c.b16 %v3869, %v3865
        %v5342 = vpack.c.b16 %v3870, %v3866
        %v5343 = vpack.c.b16 %v3875, %v3871
        %v5344 = vpack.c.b16 %v3876, %v3872
        %v5345 = vpack.c.b16 %v3877, %v3873
        %v5346 = vpack.c.b16 %v3878, %v3874
        %v5347 = vpack.c.b16 %v3883, %v3879
        %v5348 = vpack.c.b16 %v3884, %v3880
        %v5349 = vpack.c.b16 %v3885, %v3881
        %v5350 = vpack.c.b16 %v3886, %v3882
        %v5351 = vpack.c.b16 %v3891, %v3887
        %v5352 = vpack.c.b16 %v3892, %v3888
        %v5353 = vpack.c.b16 %v3893, %v3889
        %v5354 = vpack.c.b16 %v3894, %v3890
        %v5355 = vpack.c.b16 %v3899, %v3895
        %v5356 = vpack.c.b16 %v3900, %v3896
        %v5357 = vpack.c.b16 %v3901, %v3897
        %v5358 = vpack.c.b16 %v3902, %v3898
        %v5359 = vpack.c.b16 %v3907, %v3903
        %v5360 = vpack.c.b16 %v3908, %v3904
        %v5361 = vpack.c.b16 %v3909, %v3905
        %v5362 = vpack.c.b16 %v3910, %v3906
        %v5363 = vpack.c.b16 %v3915, %v3911
        %v5364 = vpack.c.b16 %v3916, %v3912
        %v5365 = vpack.c.b16 %v3917, %v3913
        %v5366 = vpack.c.b16 %v3918, %v3914
        %v5367 = vpack.c.b16 %v3923, %v3919
        %v5368 = vpack.c.b16 %v3924, %v3920
        %v5369 = vpack.c.b16 %v3925, %v3921
        %v5370 = vpack.c.b16 %v3926, %v3922
        %v5371 = vpack.c.b16 %v3931, %v3927
        %v5372 = vpack.c.b16 %v3932, %v3928
        %v5373 = vpack.c.b16 %v3933, %v3929
        %v5374 = vpack.c.b16 %v3934, %v3930
        %v5375 = vpack.c.b16 %v3939, %v3935
        %v5376 = vpack.c.b16 %v3940, %v3936
        %v5377 = vpack.c.b16 %v3941, %v3937
        %v5378 = vpack.c.b16 %v3942, %v3938
        %v5379 = vpack.c.b16 %v3947, %v3943
        %v5380 = vpack.c.b16 %v3948, %v3944
        %v5381 = vpack.c.b16 %v3949, %v3945
        %v5382 = vpack.c.b16 %v3950, %v3946
        %v5383 = vpack.c.b16 %v3955, %v3951
        %v5384 = vpack.c.b16 %v3956, %v3952
        %v5385 = vpack.c.b16 %v3957, %v3953
        %v5386 = vpack.c.b16 %v3958, %v3954
        %v5387 = vpack.c.b16 %v3963, %v3959
        %v5388 = vpack.c.b16 %v3964, %v3960
        %v5389 = vpack.c.b16 %v3965, %v3961
        %v5390 = vpack.c.b16 %v3966, %v3962
        %v5391 = vpack.c.b16 %v3971, %v3967
        %v5392 = vpack.c.b16 %v3972, %v3968
        %v5393 = vpack.c.b16 %v3973, %v3969
        %v5394 = vpack.c.b16 %v3974, %v3970
        %v5395 = vpack.c.b16 %v3979, %v3975
        %v5396 = vpack.c.b16 %v3980, %v3976
        %v5397 = vpack.c.b16 %v3981, %v3977
        %v5398 = vpack.c.b16 %v3982, %v3978
        %v5399 = vpack.c.b16 %v3987, %v3983
        %v5400 = vpack.c.b16 %v3988, %v3984
        %v5401 = vpack.c.b16 %v3989, %v3985
        %v5402 = vpack.c.b16 %v3990, %v3986
        %v5403 = vpack.c.b16 %v3995, %v3991
        %v5404 = vpack.c.b16 %v3996, %v3992
        %v5405 = vpack.c.b16 %v3997, %v3993
        %v5406 = vpack.c.b16 %v3998, %v3994
        %v5407 = vpack.c.b16 %v4003, %v3999
        %v5408 = vpack.c.b16 %v4004, %v4000
        %v5409 = vpack.c.b16 %v4005, %v4001
        %v5410 = vpack.c.b16 %v4006, %v4002
        %v5411 = vpack.c.b16 %v4011, %v4007
        %v5412 = vpack.c.b16 %v4012, %v4008
        %v5413 = vpack.c.b16 %v4013, %v4009
        %v5414 = vpack.c.b16 %v4014, %v4010
        %v5415 = vpack.c.b16 %v4019, %v4015
        %v5416 = vpack.c.b16 %v4020, %v4016
        %v5417 = vpack.c.b16 %v4021, %v4017
        %v5418 = vpack.c.b16 %v4022, %v4018
        %v5419 = vpack.c.b16 %v4027, %v4023
        %v5420 = vpack.c.b16 %v4028, %v4024
        %v5421 = vpack.c.b16 %v4029, %v4025
        %v5422 = vpack.c.b16 %v4030, %v4026
        %v5423 = vpack.c.b16 %v4035, %v4031
        %v5424 = vpack.c.b16 %v4036, %v4032
        %v5425 = vpack.c.b16 %v4037, %v4033
        %v5426 = vpack.c.b16 %v4038, %v4034
        %v5427 = vpack.c.b16 %v4043, %v4039
        %v5428 = vpack.c.b16 %v4044, %v4040
        %v5429 = vpack.c.b16 %v4045, %v4041
        %v5430 = vpack.c.b16 %v4046, %v4042
        %v5431 = vpack.c.b16 %v4051, %v4047
        %v5432 = vpack.c.b16 %v4052, %v4048
        %v5433 = vpack.c.b16 %v4053, %v4049
        %v5434 = vpack.c.b16 %v4054, %v4050
        %v5435 = vpack.c.b16 %v4059, %v4055
        %v5436 = vpack.c.b16 %v4060, %v4056
        %v5437 = vpack.c.b16 %v4061, %v4057
        %v5438 = vpack.c.b16 %v4062, %v4058
        %v5439 = vpack.c.b16 %v4067, %v4063
        %v5440 = vpack.c.b16 %v4068, %v4064
        %v5441 = vpack.c.b16 %v4069, %v4065
        %v5442 = vpack.c.b16 %v4070, %v4066
        %v5443 = vpack.c.b16 %v4075, %v4071
        %v5444 = vpack.c.b16 %v4076, %v4072
        %v5445 = vpack.c.b16 %v4077, %v4073
        %v5446 = vpack.c.b16 %v4078, %v4074
        %v5447 = vpack.c.b16 %v4083, %v4079
        %v5448 = vpack.c.b16 %v4084, %v4080
        %v5449 = vpack.c.b16 %v4085, %v4081
        %v5450 = vpack.c.b16 %v4086, %v4082
        %v5451 = vpack.c.b16 %v4091, %v4087
        %v5452 = vpack.c.b16 %v4092, %v4088
        %v5453 = vpack.c.b16 %v4093, %v4089
        %v5454 = vpack.c.b16 %v4094, %v4090
        %v5455 = vpack.c.b16 %v4099, %v4095
        %v5456 = vpack.c.b16 %v4100, %v4096
        %v5457 = vpack.c.b16 %v4101, %v4097
        %v5458 = vpack.c.b16 %v4102, %v4098
        %v5459 = vpack.c.b16 %v4107, %v4103
        %v5460 = vpack.c.b16 %v4108, %v4104
        %v5461 = vpack.c.b16 %v4109, %v4105
        %v5462 = vpack.c.b16 %v4110, %v4106
        %v5463 = vpack.c.b16 %v4115, %v4111
        %v5464 = vpack.c.b16 %v4116, %v4112
        %v5465 = vpack.c.b16 %v4117, %v4113
        %v5466 = vpack.c.b16 %v4118, %v4114
        %v5467 = vpack.c.b16 %v4123, %v4119
        %v5468 = vpack.c.b16 %v4124, %v4120
        %v5469 = vpack.c.b16 %v4125, %v4121
        %v5470 = vpack.c.b16 %v4126, %v4122
        %v5471 = vpack.c.b16 %v4131, %v4127
        %v5472 = vpack.c.b16 %v4132, %v4128
        %v5473 = vpack.c.b16 %v4133, %v4129
        %v5474 = vpack.c.b16 %v4134, %v4130
        %v5475 = vpack.c.b16 %v4139, %v4135
        %v5476 = vpack.c.b16 %v4140, %v4136
        %v5477 = vpack.c.b16 %v4141, %v4137
        %v5478 = vpack.c.b16 %v4142, %v4138
        %v5479 = vpack.c.b16 %v4147, %v4143
        %v5480 = vpack.c.b16 %v4148, %v4144
        %v5481 = vpack.c.b16 %v4149, %v4145
        %v5482 = vpack.c.b16 %v4150, %v4146
        %v5483 = vpack.c.b16 %v4155, %v4151
        %v5484 = vpack.c.b16 %v4156, %v4152
        %v5485 = vpack.c.b16 %v4157, %v4153
        %v5486 = vpack.c.b16 %v4158, %v4154
        %v5487 = vpack.c.b16 %v4163, %v4159
        %v5488 = vpack.c.b16 %v4164, %v4160
        %v5489 = vpack.c.b16 %v4165, %v4161
        %v5490 = vpack.c.b16 %v4166, %v4162
        %v5491 = vpack.c.b16 %v4171, %v4167
        %v5492 = vpack.c.b16 %v4172, %v4168
        %v5493 = vpack.c.b16 %v4173, %v4169
        %v5494 = vpack.c.b16 %v4174, %v4170
        %v5495 = vpack.c.b16 %v4179, %v4175
        %v5496 = vpack.c.b16 %v4180, %v4176
        %v5497 = vpack.c.b16 %v4181, %v4177
        %v5498 = vpack.c.b16 %v4182, %v4178
        %v5499 = vpack.c.b16 %v4187, %v4183
        %v5500 = vpack.c.b16 %v4188, %v4184
        %v5501 = vpack.c.b16 %v4189, %v4185
        %v5502 = vpack.c.b16 %v4190, %v4186
        %v5503 = vpack.c.b16 %v4195, %v4191
        %v5504 = vpack.c.b16 %v4196, %v4192
        %v5505 = vpack.c.b16 %v4197, %v4193
        %v5506 = vpack.c.b16 %v4198, %v4194
        %v5507 = vpack.c.b16 %v4203, %v4199
        %v5508 = vpack.c.b16 %v4204, %v4200
        %v5509 = vpack.c.b16 %v4205, %v4201
        %v5510 = vpack.c.b16 %v4206, %v4202
        %v5511 = vpack.c.b16 %v4211, %v4207
        %v5512 = vpack.c.b16 %v4212, %v4208
        %v5513 = vpack.c.b16 %v4213, %v4209
        %v5514 = vpack.c.b16 %v4214, %v4210
        %v5515 = vpack.c.b16 %v4219, %v4215
        %v5516 = vpack.c.b16 %v4220, %v4216
        %v5517 = vpack.c.b16 %v4221, %v4217
        %v5518 = vpack.c.b16 %v4222, %v4218
        %v5519 = vpack.c.b16 %v4227, %v4223
        %v5520 = vpack.c.b16 %v4228, %v4224
        %v5521 = vpack.c.b16 %v4229, %v4225
        %v5522 = vpack.c.b16 %v4230, %v4226
        %v5523 = vpack.c.b16 %v4235, %v4231
        %v5524 = vpack.c.b16 %v4236, %v4232
        %v5525 = vpack.c.b16 %v4237, %v4233
        %v5526 = vpack.c.b16 %v4238, %v4234
        %v5527 = vpack.c.b16 %v4243, %v4239
        %v5528 = vpack.c.b16 %v4244, %v4240
        %v5529 = vpack.c.b16 %v4245, %v4241
        %v5530 = vpack.c.b16 %v4246, %v4242
        %v5531 = vpack.c.b16 %v4251, %v4247
        %v5532 = vpack.c.b16 %v4252, %v4248
        %v5533 = vpack.c.b16 %v4253, %v4249
        %v5534 = vpack.c.b16 %v4254, %v4250
        %v5535 = vpack.c.b16 %v4259, %v4255
        %v5536 = vpack.c.b16 %v4260, %v4256
        %v5537 = vpack.c.b16 %v4261, %v4257
        %v5538 = vpack.c.b16 %v4262, %v4258
        %v5539 = vpack.c.b16 %v4267, %v4263
        %v5540 = vpack.c.b16 %v4268, %v4264
        %v5541 = vpack.c.b16 %v4269, %v4265
        %v5542 = vpack.c.b16 %v4270, %v4266
        %v5543 = vpack.c.b16 %v4275, %v4271
        %v5544 = vpack.c.b16 %v4276, %v4272
        %v5545 = vpack.c.b16 %v4277, %v4273
        %v5546 = vpack.c.b16 %v4278, %v4274
        %v5547 = vpack.c.b16 %v4283, %v4279
        %v5548 = vpack.c.b16 %v4284, %v4280
        %v5549 = vpack.c.b16 %v4285, %v4281
        %v5550 = vpack.c.b16 %v4286, %v4282
        %v5551 = vpack.c.b16 %v4291, %v4287
        %v5552 = vpack.c.b16 %v4292, %v4288
        %v5553 = vpack.c.b16 %v4293, %v4289
        %v5554 = vpack.c.b16 %v4294, %v4290
        %v5555 = vpack.c.b16 %v4299, %v4295
        %v5556 = vpack.c.b16 %v4300, %v4296
        %v5557 = vpack.c.b16 %v4301, %v4297
        %v5558 = vpack.c.b16 %v4302, %v4298
        %v5559 = vpack.c.b16 %v4307, %v4303
        %v5560 = vpack.c.b16 %v4308, %v4304
        %v5561 = vpack.c.b16 %v4309, %v4305
        %v5562 = vpack.c.b16 %v4310, %v4306
        %v5563 = vpack.c.b16 %v4315, %v4311
        %v5564 = vpack.c.b16 %v4316, %v4312
        %v5565 = vpack.c.b16 %v4317, %v4313
        %v5566 = vpack.c.b16 %v4318, %v4314
        %v5567 = vpack.c.b16 %v4323, %v4319
        %v5568 = vpack.c.b16 %v4324, %v4320
        %v5569 = vpack.c.b16 %v4325, %v4321
        %v5570 = vpack.c.b16 %v4326, %v4322
        %v5571 = vpack.c.b16 %v4331, %v4327
        %v5572 = vpack.c.b16 %v4332, %v4328
        %v5573 = vpack.c.b16 %v4333, %v4329
        %v5574 = vpack.c.b16 %v4334, %v4330
        %v5575 = vpack.c.b16 %v4339, %v4335
        %v5576 = vpack.c.b16 %v4340, %v4336
        %v5577 = vpack.c.b16 %v4341, %v4337
        %v5578 = vpack.c.b16 %v4342, %v4338
        %v5579 = vpack.c.b16 %v4347, %v4343
        %v5580 = vpack.c.b16 %v4348, %v4344
        %v5581 = vpack.c.b16 %v4349, %v4345
        %v5582 = vpack.c.b16 %v4350, %v4346
        %v5583 = vpack.c.b16 %v4355, %v4351
        %v5584 = vpack.c.b16 %v4356, %v4352
        %v5585 = vpack.c.b16 %v4357, %v4353
        %v5586 = vpack.c.b16 %v4358, %v4354
        %v5587 = vpack.c.b16 %v4363, %v4359
        %v5588 = vpack.c.b16 %v4364, %v4360
        %v5589 = vpack.c.b16 %v4365, %v4361
        %v5590 = vpack.c.b16 %v4366, %v4362
        %v5591 = vpack.c.b16 %v4371, %v4367
        %v5592 = vpack.c.b16 %v4372, %v4368
        %v5593 = vpack.c.b16 %v4373, %v4369
        %v5594 = vpack.c.b16 %v4374, %v4370
        %v5595 = vpack.c.b16 %v4379, %v4375
        %v5596 = vpack.c.b16 %v4380, %v4376
        %v5597 = vpack.c.b16 %v4381, %v4377
        %v5598 = vpack.c.b16 %v4382, %v4378
        %v5599 = vpack.c.b16 %v4387, %v4383
        %v5600 = vpack.c.b16 %v4388, %v4384
        %v5601 = vpack.c.b16 %v4389, %v4385
        %v5602 = vpack.c.b16 %v4390, %v4386
        %v5603 = vpack.c.b16 %v4395, %v4391
        %v5604 = vpack.c.b16 %v4396, %v4392
        %v5605 = vpack.c.b16 %v4397, %v4393
        %v5606 = vpack.c.b16 %v4398, %v4394
        %v5607 = vpack.c.b16 %v4403, %v4399
        %v5608 = vpack.c.b16 %v4404, %v4400
        %v5609 = vpack.c.b16 %v4405, %v4401
        %v5610 = vpack.c.b16 %v4406, %v4402
        %v5611 = vpack.c.b16 %v4411, %v4407
        %v5612 = vpack.c.b16 %v4412, %v4408
        %v5613 = vpack.c.b16 %v4413, %v4409
        %v5614 = vpack.c.b16 %v4414, %v4410
        %v5615 = vpack.c.b16 %v4419, %v4415
        %v5616 = vpack.c.b16 %v4420, %v4416
        %v5617 = vpack.c.b16 %v4421, %v4417
        %v5618 = vpack.c.b16 %v4422, %v4418
        %v5619 = vpack.c.b16 %v4427, %v4423
        %v5620 = vpack.c.b16 %v4428, %v4424
        %v5621 = vpack.c.b16 %v4429, %v4425
        %v5622 = vpack.c.b16 %v4430, %v4426
        %v5623 = vpack.c.b16 %v4435, %v4431
        %v5624 = vpack.c.b16 %v4436, %v4432
        %v5625 = vpack.c.b16 %v4437, %v4433
        %v5626 = vpack.c.b16 %v4438, %v4434
        %v5627 = vpack.c.b16 %v4443, %v4439
        %v5628 = vpack.c.b16 %v4444, %v4440
        %v5629 = vpack.c.b16 %v4445, %v4441
        %v5630 = vpack.c.b16 %v4446, %v4442
        %v5631 = vpack.c.b16 %v4451, %v4447
        %v5632 = vpack.c.b16 %v4452, %v4448
        %v5633 = vpack.c.b16 %v4453, %v4449
        %v5634 = vpack.c.b16 %v4454, %v4450
        %v5635 = vpack.c.b16 %v4459, %v4455
        %v5636 = vpack.c.b16 %v4460, %v4456
        %v5637 = vpack.c.b16 %v4461, %v4457
        %v5638 = vpack.c.b16 %v4462, %v4458
        %v5639 = vpack.c.b16 %v4467, %v4463
        %v5640 = vpack.c.b16 %v4468, %v4464
        %v5641 = vpack.c.b16 %v4469, %v4465
        %v5642 = vpack.c.b16 %v4470, %v4466
        %v5643 = vpack.c.b16 %v4475, %v4471
        %v5644 = vpack.c.b16 %v4476, %v4472
        %v5645 = vpack.c.b16 %v4477, %v4473
        %v5646 = vpack.c.b16 %v4478, %v4474
        %v5647 = vpack.c.b16 %v4483, %v4479
        %v5648 = vpack.c.b16 %v4484, %v4480
        %v5649 = vpack.c.b16 %v4485, %v4481
        %v5650 = vpack.c.b16 %v4486, %v4482
        %v5651 = vpack.c.b16 %v4491, %v4487
        %v5652 = vpack.c.b16 %v4492, %v4488
        %v5653 = vpack.c.b16 %v4493, %v4489
        %v5654 = vpack.c.b16 %v4494, %v4490
        %v5655 = vpack.c.b16 %v4499, %v4495
        %v5656 = vpack.c.b16 %v4500, %v4496
        %v5657 = vpack.c.b16 %v4501, %v4497
        %v5658 = vpack.c.b16 %v4502, %v4498
        %v5659 = vpack.c.b16 %v4507, %v4503
        %v5660 = vpack.c.b16 %v4508, %v4504
        %v5661 = vpack.c.b16 %v4509, %v4505
        %v5662 = vpack.c.b16 %v4510, %v4506
        %v5663 = vpack.c.b16 %v4515, %v4511
        %v5664 = vpack.c.b16 %v4516, %v4512
        %v5665 = vpack.c.b16 %v4517, %v4513
        %v5666 = vpack.c.b16 %v4518, %v4514
        %v5667 = vpack.c.b16 %v4523, %v4519
        %v5668 = vpack.c.b16 %v4524, %v4520
        %v5669 = vpack.c.b16 %v4525, %v4521
        %v5670 = vpack.c.b16 %v4526, %v4522
        %v5671 = vpack.c.b16 %v4531, %v4527
        %v5672 = vpack.c.b16 %v4532, %v4528
        %v5673 = vpack.c.b16 %v4533, %v4529
        %v5674 = vpack.c.b16 %v4534, %v4530
        %v5675 = vpack.c.b16 %v4539, %v4535
        %v5676 = vpack.c.b16 %v4540, %v4536
        %v5677 = vpack.c.b16 %v4541, %v4537
        %v5678 = vpack.c.b16 %v4542, %v4538
        %v5679 = vpack.c.b16 %v4547, %v4543
        %v5680 = vpack.c.b16 %v4548, %v4544
        %v5681 = vpack.c.b16 %v4549, %v4545
        %v5682 = vpack.c.b16 %v4550, %v4546
        %v5683 = vpack.c.b16 %v4555, %v4551
        %v5684 = vpack.c.b16 %v4556, %v4552
        %v5685 = vpack.c.b16 %v4557, %v4553
        %v5686 = vpack.c.b16 %v4558, %v4554
        %v5687 = vpack.c.b16 %v4563, %v4559
        %v5688 = vpack.c.b16 %v4564, %v4560
        %v5689 = vpack.c.b16 %v4565, %v4561
        %v5690 = vpack.c.b16 %v4566, %v4562
        %v5691 = vpack.c.b16 %v4571, %v4567
        %v5692 = vpack.c.b16 %v4572, %v4568
        %v5693 = vpack.c.b16 %v4573, %v4569
        %v5694 = vpack.c.b16 %v4574, %v4570
        %v5695 = vpack.c.b16 %v4579, %v4575
        %v5696 = vpack.c.b16 %v4580, %v4576
        %v5697 = vpack.c.b16 %v4581, %v4577
        %v5698 = vpack.c.b16 %v4582, %v4578
        %v5699 = vpack.c.b16 %v4587, %v4583
        %v5700 = vpack.c.b16 %v4588, %v4584
        %v5701 = vpack.c.b16 %v4589, %v4585
        %v5702 = vpack.c.b16 %v4590, %v4586
        %v5703 = vpack.c.b16 %v4595, %v4591
        %v5704 = vpack.c.b16 %v4596, %v4592
        %v5705 = vpack.c.b16 %v4597, %v4593
        %v5706 = vpack.c.b16 %v4598, %v4594
        %v5707 = vpack.c.b16 %v4603, %v4599
        %v5708 = vpack.c.b16 %v4604, %v4600
        %v5709 = vpack.c.b16 %v4605, %v4601
        %v5710 = vpack.c.b16 %v4606, %v4602
        %v5711 = vpack.c.b16 %v4611, %v4607
        %v5712 = vpack.c.b16 %v4612, %v4608
        %v5713 = vpack.c.b16 %v4613, %v4609
        %v5714 = vpack.c.b16 %v4614, %v4610
        %v5715 = vpack.c.b16 %v4619, %v4615
        %v5716 = vpack.c.b16 %v4620, %v4616
        %v5717 = vpack.c.b16 %v4621, %v4617
        %v5718 = vpack.c.b16 %v4622, %v4618
        %v5719 = vpack.c.b16 %v4627, %v4623
        %v5720 = vpack.c.b16 %v4628, %v4624
        %v5721 = vpack.c.b16 %v4629, %v4625
        %v5722 = vpack.c.b16 %v4630, %v4626
        %v5723 = vpack.c.b16 %v4635, %v4631
        %v5724 = vpack.c.b16 %v4636, %v4632
        %v5725 = vpack.c.b16 %v4637, %v4633
        %v5726 = vpack.c.b16 %v4638, %v4634
        %v5727 = vpack.c.b16 %v4643, %v4639
        %v5728 = vpack.c.b16 %v4644, %v4640
        %v5729 = vpack.c.b16 %v4645, %v4641
        %v5730 = vpack.c.b16 %v4646, %v4642
        %v5731 = vpack.c.b16 %v4651, %v4647
        %v5732 = vpack.c.b16 %v4652, %v4648
        %v5733 = vpack.c.b16 %v4653, %v4649
        %v5734 = vpack.c.b16 %v4654, %v4650
        %v5735 = vpack.c.b16 %v4659, %v4655
        %v5736 = vpack.c.b16 %v4660, %v4656
        %v5737 = vpack.c.b16 %v4661, %v4657
        %v5738 = vpack.c.b16 %v4662, %v4658
        %v5739 = vpack.c.b16 %v4667, %v4663
        %v5740 = vpack.c.b16 %v4668, %v4664
        %v5741 = vpack.c.b16 %v4669, %v4665
        %v5742 = vpack.c.b16 %v4670, %v4666
        %v5743 = vpack.c.b16 %v4675, %v4671
        %v5744 = vpack.c.b16 %v4676, %v4672
        %v5745 = vpack.c.b16 %v4677, %v4673
        %v5746 = vpack.c.b16 %v4678, %v4674
        %v5747 = vpack.c.b16 %v4683, %v4679
        %v5748 = vpack.c.b16 %v4684, %v4680
        %v5749 = vpack.c.b16 %v4685, %v4681
        %v5750 = vpack.c.b16 %v4686, %v4682
        %v5751 = vpack.c.b16 %v4691, %v4687
        %v5752 = vpack.c.b16 %v4692, %v4688
        %v5753 = vpack.c.b16 %v4693, %v4689
        %v5754 = vpack.c.b16 %v4694, %v4690
        %v5755 = vpack.c.b16 %v4699, %v4695
        %v5756 = vpack.c.b16 %v4700, %v4696
        %v5757 = vpack.c.b16 %v4701, %v4697
        %v5758 = vpack.c.b16 %v4702, %v4698
        %v5759 = vpack.c.b16 %v4707, %v4703
        %v5760 = vpack.c.b16 %v4708, %v4704
        %v5761 = vpack.c.b16 %v4709, %v4705
        %v5762 = vpack.c.b16 %v4710, %v4706
        %v5763 = vpack.c.b16 %v4715, %v4711
        %v5764 = vpack.c.b16 %v4716, %v4712
        %v5765 = vpack.c.b16 %v4717, %v4713
        %v5766 = vpack.c.b16 %v4718, %v4714
        %v5767 = vpack.c.b16 %v4723, %v4719
        %v5768 = vpack.c.b16 %v4724, %v4720
        %v5769 = vpack.c.b16 %v4725, %v4721
        %v5770 = vpack.c.b16 %v4726, %v4722
        %v5771 = vpack.c.b16 %v4731, %v4727
        %v5772 = vpack.c.b16 %v4732, %v4728
        %v5773 = vpack.c.b16 %v4733, %v4729
        %v5774 = vpack.c.b16 %v4734, %v4730
        %v5775 = vpack.c.b16 %v4739, %v4735
        %v5776 = vpack.c.b16 %v4740, %v4736
        %v5777 = vpack.c.b16 %v4741, %v4737
        %v5778 = vpack.c.b16 %v4742, %v4738
        %v5779 = vpack.c.b16 %v4747, %v4743
        %v5780 = vpack.c.b16 %v4748, %v4744
        %v5781 = vpack.c.b16 %v4749, %v4745
        %v5782 = vpack.c.b16 %v4750, %v4746
        %v5783 = vpack.c.b16 %v4755, %v4751
        %v5784 = vpack.c.b16 %v4756, %v4752
        %v5785 = vpack.c.b16 %v4757, %v4753
        %v5786 = vpack.c.b16 %v4758, %v4754
        %v5787 = vpack.c.b16 %v4763, %v4759
        %v5788 = vpack.c.b16 %v4764, %v4760
        %v5789 = vpack.c.b16 %v4765, %v4761
        %v5790 = vpack.c.b16 %v4766, %v4762
        %6815 = vmatpush.bf16.msra.mxu0 %v4795
        %6816 = vmatpush.bf16.msra.mxu0 %v4791
        %6817 = vmatpush.bf16.msra.mxu0 %v4787
        %6818 = vmatpush.bf16.msra.mxu0 %v4783
        %6819 = vmatpush.bf16.msra.mxu0 %v4779
        %6820 = vmatpush.bf16.msra.mxu0 %v4775
        %6821 = vmatpush.bf16.msra.mxu0 %v4771
        %6822 = vmatpush.bf16.msra.mxu0 %v4767
        %6823 = vmatmul.bf16.gmra.mxu0 %v639
        %v6824 = vpop.f32.mrf.mxu0
        %v6825 = vadd.f32 0.0, %v6824
        %v6826 = vpop.f32.mrf.mxu0
        %6827 = vdwg.mxu0
        %6828 = vmatpush.bf16.msra.mxu0 %v4827
        %6829 = vmatpush.bf16.msra.mxu0 %v4823
        %6830 = vmatpush.bf16.msra.mxu0 %v4819
        %6831 = vmatpush.bf16.msra.mxu0 %v4815
        %6832 = vmatpush.bf16.msra.mxu0 %v4811
        %6833 = vmatpush.bf16.msra.mxu0 %v4807
        %6834 = vmatpush.bf16.msra.mxu0 %v4803
        %6835 = vmatpush.bf16.msra.mxu0 %v4799
        %6836 = vmatmul.bf16.gmra.mxu0 %v640
        %v6837 = vpop.f32.mrf.mxu0
        %v6838 = vadd.f32 %v6825, %v6837
        %v6839 = vpop.f32.mrf.mxu0
        %6840 = vdwg.mxu0
        %6841 = vmatpush.bf16.msra.mxu0 %v4859
        %6842 = vmatpush.bf16.msra.mxu0 %v4855
        %6843 = vmatpush.bf16.msra.mxu0 %v4851
        %6844 = vmatpush.bf16.msra.mxu0 %v4847
        %6845 = vmatpush.bf16.msra.mxu0 %v4843
        %6846 = vmatpush.bf16.msra.mxu0 %v4839
        %6847 = vmatpush.bf16.msra.mxu0 %v4835
        %6848 = vmatpush.bf16.msra.mxu0 %v4831
        %6849 = vmatmul.bf16.gmra.mxu0 %v641
        %v6850 = vpop.f32.mrf.mxu0
        %v6851 = vadd.f32 %v6838, %v6850
        %v6852 = vpop.f32.mrf.mxu0
        %6853 = vdwg.mxu0
        %6854 = vmatpush.bf16.msra.mxu0 %v4891
        %6855 = vmatpush.bf16.msra.mxu0 %v4887
        %6856 = vmatpush.bf16.msra.mxu0 %v4883
        %6857 = vmatpush.bf16.msra.mxu0 %v4879
        %6858 = vmatpush.bf16.msra.mxu0 %v4875
        %6859 = vmatpush.bf16.msra.mxu0 %v4871
        %6860 = vmatpush.bf16.msra.mxu0 %v4867
        %6861 = vmatpush.bf16.msra.mxu0 %v4863
        %6862 = vmatmul.bf16.gmra.mxu0 %v642
        %v6863 = vpop.f32.mrf.mxu0
        %v6864 = vadd.f32 %v6851, %v6863
        %v6865 = vpop.f32.mrf.mxu0
        %6866 = vdwg.mxu0
        %6867 = vmatpush.bf16.msra.mxu0 %v4923
        %6868 = vmatpush.bf16.msra.mxu0 %v4919
        %6869 = vmatpush.bf16.msra.mxu0 %v4915
        %6870 = vmatpush.bf16.msra.mxu0 %v4911
        %6871 = vmatpush.bf16.msra.mxu0 %v4907
        %6872 = vmatpush.bf16.msra.mxu0 %v4903
        %6873 = vmatpush.bf16.msra.mxu0 %v4899
        %6874 = vmatpush.bf16.msra.mxu0 %v4895
        %6875 = vmatmul.bf16.gmra.mxu0 %v643
        %v6876 = vpop.f32.mrf.mxu0
        %v6877 = vadd.f32 %v6864, %v6876
        %v6878 = vpop.f32.mrf.mxu0
        %6879 = vdwg.mxu0
        %6880 = vmatpush.bf16.msra.mxu0 %v4955
        %6881 = vmatpush.bf16.msra.mxu0 %v4951
        %6882 = vmatpush.bf16.msra.mxu0 %v4947
        %6883 = vmatpush.bf16.msra.mxu0 %v4943
        %6884 = vmatpush.bf16.msra.mxu0 %v4939
        %6885 = vmatpush.bf16.msra.mxu0 %v4935
        %6886 = vmatpush.bf16.msra.mxu0 %v4931
        %6887 = vmatpush.bf16.msra.mxu0 %v4927
        %6888 = vmatmul.bf16.gmra.mxu0 %v644
        %v6889 = vpop.f32.mrf.mxu0
        %v6890 = vadd.f32 %v6877, %v6889
        %v6891 = vpop.f32.mrf.mxu0
        %6892 = vdwg.mxu0
        %6893 = vmatpush.bf16.msra.mxu0 %v4987
        %6894 = vmatpush.bf16.msra.mxu0 %v4983
        %6895 = vmatpush.bf16.msra.mxu0 %v4979
        %6896 = vmatpush.bf16.msra.mxu0 %v4975
        %6897 = vmatpush.bf16.msra.mxu0 %v4971
        %6898 = vmatpush.bf16.msra.mxu0 %v4967
        %6899 = vmatpush.bf16.msra.mxu0 %v4963
        %6900 = vmatpush.bf16.msra.mxu0 %v4959
        %6901 = vmatmul.bf16.gmra.mxu0 %v645
        %v6902 = vpop.f32.mrf.mxu0
        %v6903 = vadd.f32 %v6890, %v6902
        %v6904 = vpop.f32.mrf.mxu0
        %6905 = vdwg.mxu0
        %6906 = vmatpush.bf16.msra.mxu0 %v5019
        %6907 = vmatpush.bf16.msra.mxu0 %v5015
        %6908 = vmatpush.bf16.msra.mxu0 %v5011
        %6909 = vmatpush.bf16.msra.mxu0 %v5007
        %6910 = vmatpush.bf16.msra.mxu0 %v5003
        %6911 = vmatpush.bf16.msra.mxu0 %v4999
        %6912 = vmatpush.bf16.msra.mxu0 %v4995
        %6913 = vmatpush.bf16.msra.mxu0 %v4991
        %6914 = vmatmul.bf16.gmra.mxu0 %v646
        %v6915 = vpop.f32.mrf.mxu0
        %v6916 = vadd.f32 %v6903, %v6915
        %v6917 = vpop.f32.mrf.mxu0
        %6918 = vdwg.mxu0
        %6919 = vmatpush.bf16.msra.mxu0 %v5051
        %6920 = vmatpush.bf16.msra.mxu0 %v5047
        %6921 = vmatpush.bf16.msra.mxu0 %v5043
        %6922 = vmatpush.bf16.msra.mxu0 %v5039
        %6923 = vmatpush.bf16.msra.mxu0 %v5035
        %6924 = vmatpush.bf16.msra.mxu0 %v5031
        %6925 = vmatpush.bf16.msra.mxu0 %v5027
        %6926 = vmatpush.bf16.msra.mxu0 %v5023
        %6927 = vmatmul.bf16.gmra.mxu0 %v647
        %v6928 = vpop.f32.mrf.mxu0
        %v6929 = vadd.f32 %v6916, %v6928
        %v6930 = vpop.f32.mrf.mxu0
        %6931 = vdwg.mxu0
        %6932 = vmatpush.bf16.msra.mxu0 %v5083
        %6933 = vmatpush.bf16.msra.mxu0 %v5079
        %6934 = vmatpush.bf16.msra.mxu0 %v5075
        %6935 = vmatpush.bf16.msra.mxu0 %v5071
        %6936 = vmatpush.bf16.msra.mxu0 %v5067
        %6937 = vmatpush.bf16.msra.mxu0 %v5063
        %6938 = vmatpush.bf16.msra.mxu0 %v5059
        %6939 = vmatpush.bf16.msra.mxu0 %v5055
        %6940 = vmatmul.bf16.gmra.mxu0 %v648
        %v6941 = vpop.f32.mrf.mxu0
        %v6942 = vadd.f32 %v6929, %v6941
        %v6943 = vpop.f32.mrf.mxu0
        %6944 = vdwg.mxu0
        %6945 = vmatpush.bf16.msra.mxu0 %v5115
        %6946 = vmatpush.bf16.msra.mxu0 %v5111
        %6947 = vmatpush.bf16.msra.mxu0 %v5107
        %6948 = vmatpush.bf16.msra.mxu0 %v5103
        %6949 = vmatpush.bf16.msra.mxu0 %v5099
        %6950 = vmatpush.bf16.msra.mxu0 %v5095
        %6951 = vmatpush.bf16.msra.mxu0 %v5091
        %6952 = vmatpush.bf16.msra.mxu0 %v5087
        %6953 = vmatmul.bf16.gmra.mxu0 %v649
        %v6954 = vpop.f32.mrf.mxu0
        %v6955 = vadd.f32 %v6942, %v6954
        %v6956 = vpop.f32.mrf.mxu0
        %6957 = vdwg.mxu0
        %6958 = vmatpush.bf16.msra.mxu0 %v5147
        %6959 = vmatpush.bf16.msra.mxu0 %v5143
        %6960 = vmatpush.bf16.msra.mxu0 %v5139
        %6961 = vmatpush.bf16.msra.mxu0 %v5135
        %6962 = vmatpush.bf16.msra.mxu0 %v5131
        %6963 = vmatpush.bf16.msra.mxu0 %v5127
        %6964 = vmatpush.bf16.msra.mxu0 %v5123
        %6965 = vmatpush.bf16.msra.mxu0 %v5119
        %6966 = vmatmul.bf16.gmra.mxu0 %v650
        %v6967 = vpop.f32.mrf.mxu0
        %v6968 = vadd.f32 %v6955, %v6967
        %v6969 = vpop.f32.mrf.mxu0
        %6970 = vdwg.mxu0
        %6971 = vmatpush.bf16.msra.mxu0 %v5179
        %6972 = vmatpush.bf16.msra.mxu0 %v5175
        %6973 = vmatpush.bf16.msra.mxu0 %v5171
        %6974 = vmatpush.bf16.msra.mxu0 %v5167
        %6975 = vmatpush.bf16.msra.mxu0 %v5163
        %6976 = vmatpush.bf16.msra.mxu0 %v5159
        %6977 = vmatpush.bf16.msra.mxu0 %v5155
        %6978 = vmatpush.bf16.msra.mxu0 %v5151
        %6979 = vmatmul.bf16.gmra.mxu0 %v651
        %v6980 = vpop.f32.mrf.mxu0
        %v6981 = vadd.f32 %v6968, %v6980
        %v6982 = vpop.f32.mrf.mxu0
        %6983 = vdwg.mxu0
        %6984 = vmatpush.bf16.msra.mxu0 %v5211
        %6985 = vmatpush.bf16.msra.mxu0 %v5207
        %6986 = vmatpush.bf16.msra.mxu0 %v5203
        %6987 = vmatpush.bf16.msra.mxu0 %v5199
        %6988 = vmatpush.bf16.msra.mxu0 %v5195
        %6989 = vmatpush.bf16.msra.mxu0 %v5191
        %6990 = vmatpush.bf16.msra.mxu0 %v5187
        %6991 = vmatpush.bf16.msra.mxu0 %v5183
        %6992 = vmatmul.bf16.gmra.mxu0 %v652
        %v6993 = vpop.f32.mrf.mxu0
        %v6994 = vadd.f32 %v6981, %v6993
        %v6995 = vpop.f32.mrf.mxu0
        %6996 = vdwg.mxu0
        %6997 = vmatpush.bf16.msra.mxu0 %v5243
        %6998 = vmatpush.bf16.msra.mxu0 %v5239
        %6999 = vmatpush.bf16.msra.mxu0 %v5235
        %7000 = vmatpush.bf16.msra.mxu0 %v5231
        %7001 = vmatpush.bf16.msra.mxu0 %v5227
        %7002 = vmatpush.bf16.msra.mxu0 %v5223
        %7003 = vmatpush.bf16.msra.mxu0 %v5219
        %7004 = vmatpush.bf16.msra.mxu0 %v5215
        %7005 = vmatmul.bf16.gmra.mxu0 %v653
        %v7006 = vpop.f32.mrf.mxu0
        %v7007 = vadd.f32 %v6994, %v7006
        %v7008 = vpop.f32.mrf.mxu0
        %7009 = vdwg.mxu0
        %7010 = vmatpush.bf16.msra.mxu0 %v5275
        %7011 = vmatpush.bf16.msra.mxu0 %v5271
        %7012 = vmatpush.bf16.msra.mxu0 %v5267
        %7013 = vmatpush.bf16.msra.mxu0 %v5263
        %7014 = vmatpush.bf16.msra.mxu0 %v5259
        %7015 = vmatpush.bf16.msra.mxu0 %v5255
        %7016 = vmatpush.bf16.msra.mxu0 %v5251
        %7017 = vmatpush.bf16.msra.mxu0 %v5247
        %7018 = vmatmul.bf16.gmra.mxu0 %v654
        %v7019 = vpop.f32.mrf.mxu0
        %v7020 = vadd.f32 %v7007, %v7019
        %v7021 = vpop.f32.mrf.mxu0
        %7022 = vdwg.mxu0
        %7023 = vmatpush.bf16.msra.mxu0 %v5307
        %7024 = vmatpush.bf16.msra.mxu0 %v5303
        %7025 = vmatpush.bf16.msra.mxu0 %v5299
        %7026 = vmatpush.bf16.msra.mxu0 %v5295
        %7027 = vmatpush.bf16.msra.mxu0 %v5291
        %7028 = vmatpush.bf16.msra.mxu0 %v5287
        %7029 = vmatpush.bf16.msra.mxu0 %v5283
        %7030 = vmatpush.bf16.msra.mxu0 %v5279
        %7031 = vmatmul.bf16.gmra.mxu0 %v655
        %v7032 = vpop.f32.mrf.mxu0
        %v7033 = vadd.f32 %v7020, %v7032
        %v7034 = vpop.f32.mrf.mxu0
        %7035 = vdwg.mxu0
        %7036 = vmatpush.bf16.msra.mxu0 %v5339
        %7037 = vmatpush.bf16.msra.mxu0 %v5335
        %7038 = vmatpush.bf16.msra.mxu0 %v5331
        %7039 = vmatpush.bf16.msra.mxu0 %v5327
        %7040 = vmatpush.bf16.msra.mxu0 %v5323
        %7041 = vmatpush.bf16.msra.mxu0 %v5319
        %7042 = vmatpush.bf16.msra.mxu0 %v5315
        %7043 = vmatpush.bf16.msra.mxu0 %v5311
        %7044 = vmatmul.bf16.gmra.mxu0 %v656
        %v7045 = vpop.f32.mrf.mxu0
        %v7046 = vadd.f32 %v7033, %v7045
        %v7047 = vpop.f32.mrf.mxu0
        %7048 = vdwg.mxu0
        %7049 = vmatpush.bf16.msra.mxu0 %v5371
        %7050 = vmatpush.bf16.msra.mxu0 %v5367
        %7051 = vmatpush.bf16.msra.mxu0 %v5363
        %7052 = vmatpush.bf16.msra.mxu0 %v5359
        %7053 = vmatpush.bf16.msra.mxu0 %v5355
        %7054 = vmatpush.bf16.msra.mxu0 %v5351
        %7055 = vmatpush.bf16.msra.mxu0 %v5347
        %7056 = vmatpush.bf16.msra.mxu0 %v5343
        %7057 = vmatmul.bf16.gmra.mxu0 %v657
        %v7058 = vpop.f32.mrf.mxu0
        %v7059 = vadd.f32 %v7046, %v7058
        %v7060 = vpop.f32.mrf.mxu0
        %7061 = vdwg.mxu0
        %7062 = vmatpush.bf16.msra.mxu0 %v5403
        %7063 = vmatpush.bf16.msra.mxu0 %v5399
        %7064 = vmatpush.bf16.msra.mxu0 %v5395
        %7065 = vmatpush.bf16.msra.mxu0 %v5391
        %7066 = vmatpush.bf16.msra.mxu0 %v5387
        %7067 = vmatpush.bf16.msra.mxu0 %v5383
        %7068 = vmatpush.bf16.msra.mxu0 %v5379
        %7069 = vmatpush.bf16.msra.mxu0 %v5375
        %7070 = vmatmul.bf16.gmra.mxu0 %v658
        %v7071 = vpop.f32.mrf.mxu0
        %v7072 = vadd.f32 %v7059, %v7071
        %v7073 = vpop.f32.mrf.mxu0
        %7074 = vdwg.mxu0
        %7075 = vmatpush.bf16.msra.mxu0 %v5435
        %7076 = vmatpush.bf16.msra.mxu0 %v5431
        %7077 = vmatpush.bf16.msra.mxu0 %v5427
        %7078 = vmatpush.bf16.msra.mxu0 %v5423
        %7079 = vmatpush.bf16.msra.mxu0 %v5419
        %7080 = vmatpush.bf16.msra.mxu0 %v5415
        %7081 = vmatpush.bf16.msra.mxu0 %v5411
        %7082 = vmatpush.bf16.msra.mxu0 %v5407
        %7083 = vmatmul.bf16.gmra.mxu0 %v659
        %v7084 = vpop.f32.mrf.mxu0
        %v7085 = vadd.f32 %v7072, %v7084
        %v7086 = vpop.f32.mrf.mxu0
        %7087 = vdwg.mxu0
        %7088 = vmatpush.bf16.msra.mxu0 %v5467
        %7089 = vmatpush.bf16.msra.mxu0 %v5463
        %7090 = vmatpush.bf16.msra.mxu0 %v5459
        %7091 = vmatpush.bf16.msra.mxu0 %v5455
        %7092 = vmatpush.bf16.msra.mxu0 %v5451
        %7093 = vmatpush.bf16.msra.mxu0 %v5447
        %7094 = vmatpush.bf16.msra.mxu0 %v5443
        %7095 = vmatpush.bf16.msra.mxu0 %v5439
        %7096 = vmatmul.bf16.gmra.mxu0 %v660
        %v7097 = vpop.f32.mrf.mxu0
        %v7098 = vadd.f32 %v7085, %v7097
        %v7099 = vpop.f32.mrf.mxu0
        %7100 = vdwg.mxu0
        %7101 = vmatpush.bf16.msra.mxu0 %v5499
        %7102 = vmatpush.bf16.msra.mxu0 %v5495
        %7103 = vmatpush.bf16.msra.mxu0 %v5491
        %7104 = vmatpush.bf16.msra.mxu0 %v5487
        %7105 = vmatpush.bf16.msra.mxu0 %v5483
        %7106 = vmatpush.bf16.msra.mxu0 %v5479
        %7107 = vmatpush.bf16.msra.mxu0 %v5475
        %7108 = vmatpush.bf16.msra.mxu0 %v5471
        %7109 = vmatmul.bf16.gmra.mxu0 %v661
        %v7110 = vpop.f32.mrf.mxu0
        %v7111 = vadd.f32 %v7098, %v7110
        %v7112 = vpop.f32.mrf.mxu0
        %7113 = vdwg.mxu0
        %7114 = vmatpush.bf16.msra.mxu0 %v5531
        %7115 = vmatpush.bf16.msra.mxu0 %v5527
        %7116 = vmatpush.bf16.msra.mxu0 %v5523
        %7117 = vmatpush.bf16.msra.mxu0 %v5519
        %7118 = vmatpush.bf16.msra.mxu0 %v5515
        %7119 = vmatpush.bf16.msra.mxu0 %v5511
        %7120 = vmatpush.bf16.msra.mxu0 %v5507
        %7121 = vmatpush.bf16.msra.mxu0 %v5503
        %7122 = vmatmul.bf16.gmra.mxu0 %v662
        %v7123 = vpop.f32.mrf.mxu0
        %v7124 = vadd.f32 %v7111, %v7123
        %v7125 = vpop.f32.mrf.mxu0
        %7126 = vdwg.mxu0
        %7127 = vmatpush.bf16.msra.mxu0 %v5563
        %7128 = vmatpush.bf16.msra.mxu0 %v5559
        %7129 = vmatpush.bf16.msra.mxu0 %v5555
        %7130 = vmatpush.bf16.msra.mxu0 %v5551
        %7131 = vmatpush.bf16.msra.mxu0 %v5547
        %7132 = vmatpush.bf16.msra.mxu0 %v5543
        %7133 = vmatpush.bf16.msra.mxu0 %v5539
        %7134 = vmatpush.bf16.msra.mxu0 %v5535
        %7135 = vmatmul.bf16.gmra.mxu0 %v663
        %v7136 = vpop.f32.mrf.mxu0
        %v7137 = vadd.f32 %v7124, %v7136
        %v7138 = vpop.f32.mrf.mxu0
        %7139 = vdwg.mxu0
        %7140 = vmatpush.bf16.msra.mxu0 %v5595
        %7141 = vmatpush.bf16.msra.mxu0 %v5591
        %7142 = vmatpush.bf16.msra.mxu0 %v5587
        %7143 = vmatpush.bf16.msra.mxu0 %v5583
        %7144 = vmatpush.bf16.msra.mxu0 %v5579
        %7145 = vmatpush.bf16.msra.mxu0 %v5575
        %7146 = vmatpush.bf16.msra.mxu0 %v5571
        %7147 = vmatpush.bf16.msra.mxu0 %v5567
        %7148 = vmatmul.bf16.gmra.mxu0 %v664
        %v7149 = vpop.f32.mrf.mxu0
        %v7150 = vadd.f32 %v7137, %v7149
        %v7151 = vpop.f32.mrf.mxu0
        %7152 = vdwg.mxu0
        %7153 = vmatpush.bf16.msra.mxu0 %v5627
        %7154 = vmatpush.bf16.msra.mxu0 %v5623
        %7155 = vmatpush.bf16.msra.mxu0 %v5619
        %7156 = vmatpush.bf16.msra.mxu0 %v5615
        %7157 = vmatpush.bf16.msra.mxu0 %v5611
        %7158 = vmatpush.bf16.msra.mxu0 %v5607
        %7159 = vmatpush.bf16.msra.mxu0 %v5603
        %7160 = vmatpush.bf16.msra.mxu0 %v5599
        %7161 = vmatmul.bf16.gmra.mxu0 %v665
        %v7162 = vpop.f32.mrf.mxu0
        %v7163 = vadd.f32 %v7150, %v7162
        %v7164 = vpop.f32.mrf.mxu0
        %7165 = vdwg.mxu0
        %7166 = vmatpush.bf16.msra.mxu0 %v5659
        %7167 = vmatpush.bf16.msra.mxu0 %v5655
        %7168 = vmatpush.bf16.msra.mxu0 %v5651
        %7169 = vmatpush.bf16.msra.mxu0 %v5647
        %7170 = vmatpush.bf16.msra.mxu0 %v5643
        %7171 = vmatpush.bf16.msra.mxu0 %v5639
        %7172 = vmatpush.bf16.msra.mxu0 %v5635
        %7173 = vmatpush.bf16.msra.mxu0 %v5631
        %7174 = vmatmul.bf16.gmra.mxu0 %v666
        %v7175 = vpop.f32.mrf.mxu0
        %v7176 = vadd.f32 %v7163, %v7175
        %v7177 = vpop.f32.mrf.mxu0
        %7178 = vdwg.mxu0
        %7179 = vmatpush.bf16.msra.mxu0 %v5691
        %7180 = vmatpush.bf16.msra.mxu0 %v5687
        %7181 = vmatpush.bf16.msra.mxu0 %v5683
        %7182 = vmatpush.bf16.msra.mxu0 %v5679
        %7183 = vmatpush.bf16.msra.mxu0 %v5675
        %7184 = vmatpush.bf16.msra.mxu0 %v5671
        %7185 = vmatpush.bf16.msra.mxu0 %v5667
        %7186 = vmatpush.bf16.msra.mxu0 %v5663
        %7187 = vmatmul.bf16.gmra.mxu0 %v667
        %v7188 = vpop.f32.mrf.mxu0
        %v7189 = vadd.f32 %v7176, %v7188
        %v7190 = vpop.f32.mrf.mxu0
        %7191 = vdwg.mxu0
        %7192 = vmatpush.bf16.msra.mxu0 %v5723
        %7193 = vmatpush.bf16.msra.mxu0 %v5719
        %7194 = vmatpush.bf16.msra.mxu0 %v5715
        %7195 = vmatpush.bf16.msra.mxu0 %v5711
        %7196 = vmatpush.bf16.msra.mxu0 %v5707
        %7197 = vmatpush.bf16.msra.mxu0 %v5703
        %7198 = vmatpush.bf16.msra.mxu0 %v5699
        %7199 = vmatpush.bf16.msra.mxu0 %v5695
        %7200 = vmatmul.bf16.gmra.mxu0 %v668
        %v7201 = vpop.f32.mrf.mxu0
        %v7202 = vadd.f32 %v7189, %v7201
        %v7203 = vpop.f32.mrf.mxu0
        %7204 = vdwg.mxu0
        %7205 = vmatpush.bf16.msra.mxu0 %v5755
        %7206 = vmatpush.bf16.msra.mxu0 %v5751
        %7207 = vmatpush.bf16.msra.mxu0 %v5747
        %7208 = vmatpush.bf16.msra.mxu0 %v5743
        %7209 = vmatpush.bf16.msra.mxu0 %v5739
        %7210 = vmatpush.bf16.msra.mxu0 %v5735
        %7211 = vmatpush.bf16.msra.mxu0 %v5731
        %7212 = vmatpush.bf16.msra.mxu0 %v5727
        %7213 = vmatmul.bf16.gmra.mxu0 %v669
        %v7214 = vpop.f32.mrf.mxu0
        %v7215 = vadd.f32 %v7202, %v7214
        %v7216 = vpop.f32.mrf.mxu0
        %7217 = vdwg.mxu0
        %7218 = vmatpush.bf16.msra.mxu0 %v5787
        %7219 = vmatpush.bf16.msra.mxu0 %v5783
        %7220 = vmatpush.bf16.msra.mxu0 %v5779
        %7221 = vmatpush.bf16.msra.mxu0 %v5775
        %7222 = vmatpush.bf16.msra.mxu0 %v5771
        %7223 = vmatpush.bf16.msra.mxu0 %v5767
        %7224 = vmatpush.bf16.msra.mxu0 %v5763
        %7225 = vmatpush.bf16.msra.mxu0 %v5759
        %7226 = vmatmul.bf16.gmra.mxu0 %v670
        %v7227 = vpop.f32.mrf.mxu0
        %v7228 = vadd.f32 %v7215, %v7227
        %v7229 = vpop.f32.mrf.mxu0
        %7230 = vdwg.mxu0
        %7231 = vmatpush.bf16.msra.mxu0 %v4796
        %7232 = vmatpush.bf16.msra.mxu0 %v4792
        %7233 = vmatpush.bf16.msra.mxu0 %v4788
        %7234 = vmatpush.bf16.msra.mxu0 %v4784
        %7235 = vmatpush.bf16.msra.mxu0 %v4780
        %7236 = vmatpush.bf16.msra.mxu0 %v4776
        %7237 = vmatpush.bf16.msra.mxu0 %v4772
        %7238 = vmatpush.bf16.msra.mxu0 %v4768
        %7239 = vmatmul.bf16.gmra.mxu0 %v639
        %v7240 = vpop.f32.mrf.mxu0
        %v7241 = vadd.f32 0.0, %v7240
        %v7242 = vpop.f32.mrf.mxu0
        %7243 = vdwg.mxu0
        %7244 = vmatpush.bf16.msra.mxu0 %v4828
        %7245 = vmatpush.bf16.msra.mxu0 %v4824
        %7246 = vmatpush.bf16.msra.mxu0 %v4820
        %7247 = vmatpush.bf16.msra.mxu0 %v4816
        %7248 = vmatpush.bf16.msra.mxu0 %v4812
        %7249 = vmatpush.bf16.msra.mxu0 %v4808
        %7250 = vmatpush.bf16.msra.mxu0 %v4804
        %7251 = vmatpush.bf16.msra.mxu0 %v4800
        %7252 = vmatmul.bf16.gmra.mxu0 %v640
        %v7253 = vpop.f32.mrf.mxu0
        %v7254 = vadd.f32 %v7241, %v7253
        %v7255 = vpop.f32.mrf.mxu0
        %7256 = vdwg.mxu0
        %7257 = vmatpush.bf16.msra.mxu0 %v4860
        %7258 = vmatpush.bf16.msra.mxu0 %v4856
        %7259 = vmatpush.bf16.msra.mxu0 %v4852
        %7260 = vmatpush.bf16.msra.mxu0 %v4848
        %7261 = vmatpush.bf16.msra.mxu0 %v4844
        %7262 = vmatpush.bf16.msra.mxu0 %v4840
        %7263 = vmatpush.bf16.msra.mxu0 %v4836
        %7264 = vmatpush.bf16.msra.mxu0 %v4832
        %7265 = vmatmul.bf16.gmra.mxu0 %v641
        %v7266 = vpop.f32.mrf.mxu0
        %v7267 = vadd.f32 %v7254, %v7266
        %v7268 = vpop.f32.mrf.mxu0
        %7269 = vdwg.mxu0
        %7270 = vmatpush.bf16.msra.mxu0 %v4892
        %7271 = vmatpush.bf16.msra.mxu0 %v4888
        %7272 = vmatpush.bf16.msra.mxu0 %v4884
        %7273 = vmatpush.bf16.msra.mxu0 %v4880
        %7274 = vmatpush.bf16.msra.mxu0 %v4876
        %7275 = vmatpush.bf16.msra.mxu0 %v4872
        %7276 = vmatpush.bf16.msra.mxu0 %v4868
        %7277 = vmatpush.bf16.msra.mxu0 %v4864
        %7278 = vmatmul.bf16.gmra.mxu0 %v642
        %v7279 = vpop.f32.mrf.mxu0
        %v7280 = vadd.f32 %v7267, %v7279
        %v7281 = vpop.f32.mrf.mxu0
        %7282 = vdwg.mxu0
        %7283 = vmatpush.bf16.msra.mxu0 %v4924
        %7284 = vmatpush.bf16.msra.mxu0 %v4920
        %7285 = vmatpush.bf16.msra.mxu0 %v4916
        %7286 = vmatpush.bf16.msra.mxu0 %v4912
        %7287 = vmatpush.bf16.msra.mxu0 %v4908
        %7288 = vmatpush.bf16.msra.mxu0 %v4904
        %7289 = vmatpush.bf16.msra.mxu0 %v4900
        %7290 = vmatpush.bf16.msra.mxu0 %v4896
        %7291 = vmatmul.bf16.gmra.mxu0 %v643
        %v7292 = vpop.f32.mrf.mxu0
        %v7293 = vadd.f32 %v7280, %v7292
        %v7294 = vpop.f32.mrf.mxu0
        %7295 = vdwg.mxu0
        %7296 = vmatpush.bf16.msra.mxu0 %v4956
        %7297 = vmatpush.bf16.msra.mxu0 %v4952
        %7298 = vmatpush.bf16.msra.mxu0 %v4948
        %7299 = vmatpush.bf16.msra.mxu0 %v4944
        %7300 = vmatpush.bf16.msra.mxu0 %v4940
        %7301 = vmatpush.bf16.msra.mxu0 %v4936
        %7302 = vmatpush.bf16.msra.mxu0 %v4932
        %7303 = vmatpush.bf16.msra.mxu0 %v4928
        %7304 = vmatmul.bf16.gmra.mxu0 %v644
        %v7305 = vpop.f32.mrf.mxu0
        %v7306 = vadd.f32 %v7293, %v7305
        %v7307 = vpop.f32.mrf.mxu0
        %7308 = vdwg.mxu0
        %7309 = vmatpush.bf16.msra.mxu0 %v4988
        %7310 = vmatpush.bf16.msra.mxu0 %v4984
        %7311 = vmatpush.bf16.msra.mxu0 %v4980
        %7312 = vmatpush.bf16.msra.mxu0 %v4976
        %7313 = vmatpush.bf16.msra.mxu0 %v4972
        %7314 = vmatpush.bf16.msra.mxu0 %v4968
        %7315 = vmatpush.bf16.msra.mxu0 %v4964
        %7316 = vmatpush.bf16.msra.mxu0 %v4960
        %7317 = vmatmul.bf16.gmra.mxu0 %v645
        %v7318 = vpop.f32.mrf.mxu0
        %v7319 = vadd.f32 %v7306, %v7318
        %v7320 = vpop.f32.mrf.mxu0
        %7321 = vdwg.mxu0
        %7322 = vmatpush.bf16.msra.mxu0 %v5020
        %7323 = vmatpush.bf16.msra.mxu0 %v5016
        %7324 = vmatpush.bf16.msra.mxu0 %v5012
        %7325 = vmatpush.bf16.msra.mxu0 %v5008
        %7326 = vmatpush.bf16.msra.mxu0 %v5004
        %7327 = vmatpush.bf16.msra.mxu0 %v5000
        %7328 = vmatpush.bf16.msra.mxu0 %v4996
        %7329 = vmatpush.bf16.msra.mxu0 %v4992
        %7330 = vmatmul.bf16.gmra.mxu0 %v646
        %v7331 = vpop.f32.mrf.mxu0
        %v7332 = vadd.f32 %v7319, %v7331
        %v7333 = vpop.f32.mrf.mxu0
        %7334 = vdwg.mxu0
        %7335 = vmatpush.bf16.msra.mxu0 %v5052
        %7336 = vmatpush.bf16.msra.mxu0 %v5048
        %7337 = vmatpush.bf16.msra.mxu0 %v5044
        %7338 = vmatpush.bf16.msra.mxu0 %v5040
        %7339 = vmatpush.bf16.msra.mxu0 %v5036
        %7340 = vmatpush.bf16.msra.mxu0 %v5032
        %7341 = vmatpush.bf16.msra.mxu0 %v5028
        %7342 = vmatpush.bf16.msra.mxu0 %v5024
        %7343 = vmatmul.bf16.gmra.mxu0 %v647
        %v7344 = vpop.f32.mrf.mxu0
        %v7345 = vadd.f32 %v7332, %v7344
        %v7346 = vpop.f32.mrf.mxu0
        %7347 = vdwg.mxu0
        %7348 = vmatpush.bf16.msra.mxu0 %v5084
        %7349 = vmatpush.bf16.msra.mxu0 %v5080
        %7350 = vmatpush.bf16.msra.mxu0 %v5076
        %7351 = vmatpush.bf16.msra.mxu0 %v5072
        %7352 = vmatpush.bf16.msra.mxu0 %v5068
        %7353 = vmatpush.bf16.msra.mxu0 %v5064
        %7354 = vmatpush.bf16.msra.mxu0 %v5060
        %7355 = vmatpush.bf16.msra.mxu0 %v5056
        %7356 = vmatmul.bf16.gmra.mxu0 %v648
        %v7357 = vpop.f32.mrf.mxu0
        %v7358 = vadd.f32 %v7345, %v7357
        %v7359 = vpop.f32.mrf.mxu0
        %7360 = vdwg.mxu0
        %7361 = vmatpush.bf16.msra.mxu0 %v5116
        %7362 = vmatpush.bf16.msra.mxu0 %v5112
        %7363 = vmatpush.bf16.msra.mxu0 %v5108
        %7364 = vmatpush.bf16.msra.mxu0 %v5104
        %7365 = vmatpush.bf16.msra.mxu0 %v5100
        %7366 = vmatpush.bf16.msra.mxu0 %v5096
        %7367 = vmatpush.bf16.msra.mxu0 %v5092
        %7368 = vmatpush.bf16.msra.mxu0 %v5088
        %7369 = vmatmul.bf16.gmra.mxu0 %v649
        %v7370 = vpop.f32.mrf.mxu0
        %v7371 = vadd.f32 %v7358, %v7370
        %v7372 = vpop.f32.mrf.mxu0
        %7373 = vdwg.mxu0
        %7374 = vmatpush.bf16.msra.mxu0 %v5148
        %7375 = vmatpush.bf16.msra.mxu0 %v5144
        %7376 = vmatpush.bf16.msra.mxu0 %v5140
        %7377 = vmatpush.bf16.msra.mxu0 %v5136
        %7378 = vmatpush.bf16.msra.mxu0 %v5132
        %7379 = vmatpush.bf16.msra.mxu0 %v5128
        %7380 = vmatpush.bf16.msra.mxu0 %v5124
        %7381 = vmatpush.bf16.msra.mxu0 %v5120
        %7382 = vmatmul.bf16.gmra.mxu0 %v650
        %v7383 = vpop.f32.mrf.mxu0
        %v7384 = vadd.f32 %v7371, %v7383
        %v7385 = vpop.f32.mrf.mxu0
        %7386 = vdwg.mxu0
        %7387 = vmatpush.bf16.msra.mxu0 %v5180
        %7388 = vmatpush.bf16.msra.mxu0 %v5176
        %7389 = vmatpush.bf16.msra.mxu0 %v5172
        %7390 = vmatpush.bf16.msra.mxu0 %v5168
        %7391 = vmatpush.bf16.msra.mxu0 %v5164
        %7392 = vmatpush.bf16.msra.mxu0 %v5160
        %7393 = vmatpush.bf16.msra.mxu0 %v5156
        %7394 = vmatpush.bf16.msra.mxu0 %v5152
        %7395 = vmatmul.bf16.gmra.mxu0 %v651
        %v7396 = vpop.f32.mrf.mxu0
        %v7397 = vadd.f32 %v7384, %v7396
        %v7398 = vpop.f32.mrf.mxu0
        %7399 = vdwg.mxu0
        %7400 = vmatpush.bf16.msra.mxu0 %v5212
        %7401 = vmatpush.bf16.msra.mxu0 %v5208
        %7402 = vmatpush.bf16.msra.mxu0 %v5204
        %7403 = vmatpush.bf16.msra.mxu0 %v5200
        %7404 = vmatpush.bf16.msra.mxu0 %v5196
        %7405 = vmatpush.bf16.msra.mxu0 %v5192
        %7406 = vmatpush.bf16.msra.mxu0 %v5188
        %7407 = vmatpush.bf16.msra.mxu0 %v5184
        %7408 = vmatmul.bf16.gmra.mxu0 %v652
        %v7409 = vpop.f32.mrf.mxu0
        %v7410 = vadd.f32 %v7397, %v7409
        %v7411 = vpop.f32.mrf.mxu0
        %7412 = vdwg.mxu0
        %7413 = vmatpush.bf16.msra.mxu0 %v5244
        %7414 = vmatpush.bf16.msra.mxu0 %v5240
        %7415 = vmatpush.bf16.msra.mxu0 %v5236
        %7416 = vmatpush.bf16.msra.mxu0 %v5232
        %7417 = vmatpush.bf16.msra.mxu0 %v5228
        %7418 = vmatpush.bf16.msra.mxu0 %v5224
        %7419 = vmatpush.bf16.msra.mxu0 %v5220
        %7420 = vmatpush.bf16.msra.mxu0 %v5216
        %7421 = vmatmul.bf16.gmra.mxu0 %v653
        %v7422 = vpop.f32.mrf.mxu0
        %v7423 = vadd.f32 %v7410, %v7422
        %v7424 = vpop.f32.mrf.mxu0
        %7425 = vdwg.mxu0
        %7426 = vmatpush.bf16.msra.mxu0 %v5276
        %7427 = vmatpush.bf16.msra.mxu0 %v5272
        %7428 = vmatpush.bf16.msra.mxu0 %v5268
        %7429 = vmatpush.bf16.msra.mxu0 %v5264
        %7430 = vmatpush.bf16.msra.mxu0 %v5260
        %7431 = vmatpush.bf16.msra.mxu0 %v5256
        %7432 = vmatpush.bf16.msra.mxu0 %v5252
        %7433 = vmatpush.bf16.msra.mxu0 %v5248
        %7434 = vmatmul.bf16.gmra.mxu0 %v654
        %v7435 = vpop.f32.mrf.mxu0
        %v7436 = vadd.f32 %v7423, %v7435
        %v7437 = vpop.f32.mrf.mxu0
        %7438 = vdwg.mxu0
        %7439 = vmatpush.bf16.msra.mxu0 %v5308
        %7440 = vmatpush.bf16.msra.mxu0 %v5304
        %7441 = vmatpush.bf16.msra.mxu0 %v5300
        %7442 = vmatpush.bf16.msra.mxu0 %v5296
        %7443 = vmatpush.bf16.msra.mxu0 %v5292
        %7444 = vmatpush.bf16.msra.mxu0 %v5288
        %7445 = vmatpush.bf16.msra.mxu0 %v5284
        %7446 = vmatpush.bf16.msra.mxu0 %v5280
        %7447 = vmatmul.bf16.gmra.mxu0 %v655
        %v7448 = vpop.f32.mrf.mxu0
        %v7449 = vadd.f32 %v7436, %v7448
        %v7450 = vpop.f32.mrf.mxu0
        %7451 = vdwg.mxu0
        %7452 = vmatpush.bf16.msra.mxu0 %v5340
        %7453 = vmatpush.bf16.msra.mxu0 %v5336
        %7454 = vmatpush.bf16.msra.mxu0 %v5332
        %7455 = vmatpush.bf16.msra.mxu0 %v5328
        %7456 = vmatpush.bf16.msra.mxu0 %v5324
        %7457 = vmatpush.bf16.msra.mxu0 %v5320
        %7458 = vmatpush.bf16.msra.mxu0 %v5316
        %7459 = vmatpush.bf16.msra.mxu0 %v5312
        %7460 = vmatmul.bf16.gmra.mxu0 %v656
        %v7461 = vpop.f32.mrf.mxu0
        %v7462 = vadd.f32 %v7449, %v7461
        %v7463 = vpop.f32.mrf.mxu0
        %7464 = vdwg.mxu0
        %7465 = vmatpush.bf16.msra.mxu0 %v5372
        %7466 = vmatpush.bf16.msra.mxu0 %v5368
        %7467 = vmatpush.bf16.msra.mxu0 %v5364
        %7468 = vmatpush.bf16.msra.mxu0 %v5360
        %7469 = vmatpush.bf16.msra.mxu0 %v5356
        %7470 = vmatpush.bf16.msra.mxu0 %v5352
        %7471 = vmatpush.bf16.msra.mxu0 %v5348
        %7472 = vmatpush.bf16.msra.mxu0 %v5344
        %7473 = vmatmul.bf16.gmra.mxu0 %v657
        %v7474 = vpop.f32.mrf.mxu0
        %v7475 = vadd.f32 %v7462, %v7474
        %v7476 = vpop.f32.mrf.mxu0
        %7477 = vdwg.mxu0
        %7478 = vmatpush.bf16.msra.mxu0 %v5404
        %7479 = vmatpush.bf16.msra.mxu0 %v5400
        %7480 = vmatpush.bf16.msra.mxu0 %v5396
        %7481 = vmatpush.bf16.msra.mxu0 %v5392
        %7482 = vmatpush.bf16.msra.mxu0 %v5388
        %7483 = vmatpush.bf16.msra.mxu0 %v5384
        %7484 = vmatpush.bf16.msra.mxu0 %v5380
        %7485 = vmatpush.bf16.msra.mxu0 %v5376
        %7486 = vmatmul.bf16.gmra.mxu0 %v658
        %v7487 = vpop.f32.mrf.mxu0
        %v7488 = vadd.f32 %v7475, %v7487
        %v7489 = vpop.f32.mrf.mxu0
        %7490 = vdwg.mxu0
        %7491 = vmatpush.bf16.msra.mxu0 %v5436
        %7492 = vmatpush.bf16.msra.mxu0 %v5432
        %7493 = vmatpush.bf16.msra.mxu0 %v5428
        %7494 = vmatpush.bf16.msra.mxu0 %v5424
        %7495 = vmatpush.bf16.msra.mxu0 %v5420
        %7496 = vmatpush.bf16.msra.mxu0 %v5416
        %7497 = vmatpush.bf16.msra.mxu0 %v5412
        %7498 = vmatpush.bf16.msra.mxu0 %v5408
        %7499 = vmatmul.bf16.gmra.mxu0 %v659
        %v7500 = vpop.f32.mrf.mxu0
        %v7501 = vadd.f32 %v7488, %v7500
        %v7502 = vpop.f32.mrf.mxu0
        %7503 = vdwg.mxu0
        %7504 = vmatpush.bf16.msra.mxu0 %v5468
        %7505 = vmatpush.bf16.msra.mxu0 %v5464
        %7506 = vmatpush.bf16.msra.mxu0 %v5460
        %7507 = vmatpush.bf16.msra.mxu0 %v5456
        %7508 = vmatpush.bf16.msra.mxu0 %v5452
        %7509 = vmatpush.bf16.msra.mxu0 %v5448
        %7510 = vmatpush.bf16.msra.mxu0 %v5444
        %7511 = vmatpush.bf16.msra.mxu0 %v5440
        %7512 = vmatmul.bf16.gmra.mxu0 %v660
        %v7513 = vpop.f32.mrf.mxu0
        %v7514 = vadd.f32 %v7501, %v7513
        %v7515 = vpop.f32.mrf.mxu0
        %7516 = vdwg.mxu0
        %7517 = vmatpush.bf16.msra.mxu0 %v5500
        %7518 = vmatpush.bf16.msra.mxu0 %v5496
        %7519 = vmatpush.bf16.msra.mxu0 %v5492
        %7520 = vmatpush.bf16.msra.mxu0 %v5488
        %7521 = vmatpush.bf16.msra.mxu0 %v5484
        %7522 = vmatpush.bf16.msra.mxu0 %v5480
        %7523 = vmatpush.bf16.msra.mxu0 %v5476
        %7524 = vmatpush.bf16.msra.mxu0 %v5472
        %7525 = vmatmul.bf16.gmra.mxu0 %v661
        %v7526 = vpop.f32.mrf.mxu0
        %v7527 = vadd.f32 %v7514, %v7526
        %v7528 = vpop.f32.mrf.mxu0
        %7529 = vdwg.mxu0
        %7530 = vmatpush.bf16.msra.mxu0 %v5532
        %7531 = vmatpush.bf16.msra.mxu0 %v5528
        %7532 = vmatpush.bf16.msra.mxu0 %v5524
        %7533 = vmatpush.bf16.msra.mxu0 %v5520
        %7534 = vmatpush.bf16.msra.mxu0 %v5516
        %7535 = vmatpush.bf16.msra.mxu0 %v5512
        %7536 = vmatpush.bf16.msra.mxu0 %v5508
        %7537 = vmatpush.bf16.msra.mxu0 %v5504
        %7538 = vmatmul.bf16.gmra.mxu0 %v662
        %v7539 = vpop.f32.mrf.mxu0
        %v7540 = vadd.f32 %v7527, %v7539
        %v7541 = vpop.f32.mrf.mxu0
        %7542 = vdwg.mxu0
        %7543 = vmatpush.bf16.msra.mxu0 %v5564
        %7544 = vmatpush.bf16.msra.mxu0 %v5560
        %7545 = vmatpush.bf16.msra.mxu0 %v5556
        %7546 = vmatpush.bf16.msra.mxu0 %v5552
        %7547 = vmatpush.bf16.msra.mxu0 %v5548
        %7548 = vmatpush.bf16.msra.mxu0 %v5544
        %7549 = vmatpush.bf16.msra.mxu0 %v5540
        %7550 = vmatpush.bf16.msra.mxu0 %v5536
        %7551 = vmatmul.bf16.gmra.mxu0 %v663
        %v7552 = vpop.f32.mrf.mxu0
        %v7553 = vadd.f32 %v7540, %v7552
        %v7554 = vpop.f32.mrf.mxu0
        %7555 = vdwg.mxu0
        %7556 = vmatpush.bf16.msra.mxu0 %v5596
        %7557 = vmatpush.bf16.msra.mxu0 %v5592
        %7558 = vmatpush.bf16.msra.mxu0 %v5588
        %7559 = vmatpush.bf16.msra.mxu0 %v5584
        %7560 = vmatpush.bf16.msra.mxu0 %v5580
        %7561 = vmatpush.bf16.msra.mxu0 %v5576
        %7562 = vmatpush.bf16.msra.mxu0 %v5572
        %7563 = vmatpush.bf16.msra.mxu0 %v5568
        %7564 = vmatmul.bf16.gmra.mxu0 %v664
        %v7565 = vpop.f32.mrf.mxu0
        %v7566 = vadd.f32 %v7553, %v7565
        %v7567 = vpop.f32.mrf.mxu0
        %7568 = vdwg.mxu0
        %7569 = vmatpush.bf16.msra.mxu0 %v5628
        %7570 = vmatpush.bf16.msra.mxu0 %v5624
        %7571 = vmatpush.bf16.msra.mxu0 %v5620
        %7572 = vmatpush.bf16.msra.mxu0 %v5616
        %7573 = vmatpush.bf16.msra.mxu0 %v5612
        %7574 = vmatpush.bf16.msra.mxu0 %v5608
        %7575 = vmatpush.bf16.msra.mxu0 %v5604
        %7576 = vmatpush.bf16.msra.mxu0 %v5600
        %7577 = vmatmul.bf16.gmra.mxu0 %v665
        %v7578 = vpop.f32.mrf.mxu0
        %v7579 = vadd.f32 %v7566, %v7578
        %v7580 = vpop.f32.mrf.mxu0
        %7581 = vdwg.mxu0
        %7582 = vmatpush.bf16.msra.mxu0 %v5660
        %7583 = vmatpush.bf16.msra.mxu0 %v5656
        %7584 = vmatpush.bf16.msra.mxu0 %v5652
        %7585 = vmatpush.bf16.msra.mxu0 %v5648
        %7586 = vmatpush.bf16.msra.mxu0 %v5644
        %7587 = vmatpush.bf16.msra.mxu0 %v5640
        %7588 = vmatpush.bf16.msra.mxu0 %v5636
        %7589 = vmatpush.bf16.msra.mxu0 %v5632
        %7590 = vmatmul.bf16.gmra.mxu0 %v666
        %v7591 = vpop.f32.mrf.mxu0
        %v7592 = vadd.f32 %v7579, %v7591
        %v7593 = vpop.f32.mrf.mxu0
        %7594 = vdwg.mxu0
        %7595 = vmatpush.bf16.msra.mxu0 %v5692
        %7596 = vmatpush.bf16.msra.mxu0 %v5688
        %7597 = vmatpush.bf16.msra.mxu0 %v5684
        %7598 = vmatpush.bf16.msra.mxu0 %v5680
        %7599 = vmatpush.bf16.msra.mxu0 %v5676
        %7600 = vmatpush.bf16.msra.mxu0 %v5672
        %7601 = vmatpush.bf16.msra.mxu0 %v5668
        %7602 = vmatpush.bf16.msra.mxu0 %v5664
        %7603 = vmatmul.bf16.gmra.mxu0 %v667
        %v7604 = vpop.f32.mrf.mxu0
        %v7605 = vadd.f32 %v7592, %v7604
        %v7606 = vpop.f32.mrf.mxu0
        %7607 = vdwg.mxu0
        %7608 = vmatpush.bf16.msra.mxu0 %v5724
        %7609 = vmatpush.bf16.msra.mxu0 %v5720
        %7610 = vmatpush.bf16.msra.mxu0 %v5716
        %7611 = vmatpush.bf16.msra.mxu0 %v5712
        %7612 = vmatpush.bf16.msra.mxu0 %v5708
        %7613 = vmatpush.bf16.msra.mxu0 %v5704
        %7614 = vmatpush.bf16.msra.mxu0 %v5700
        %7615 = vmatpush.bf16.msra.mxu0 %v5696
        %7616 = vmatmul.bf16.gmra.mxu0 %v668
        %v7617 = vpop.f32.mrf.mxu0
        %v7618 = vadd.f32 %v7605, %v7617
        %v7619 = vpop.f32.mrf.mxu0
        %7620 = vdwg.mxu0
        %7621 = vmatpush.bf16.msra.mxu0 %v5756
        %7622 = vmatpush.bf16.msra.mxu0 %v5752
        %7623 = vmatpush.bf16.msra.mxu0 %v5748
        %7624 = vmatpush.bf16.msra.mxu0 %v5744
        %7625 = vmatpush.bf16.msra.mxu0 %v5740
        %7626 = vmatpush.bf16.msra.mxu0 %v5736
        %7627 = vmatpush.bf16.msra.mxu0 %v5732
        %7628 = vmatpush.bf16.msra.mxu0 %v5728
        %7629 = vmatmul.bf16.gmra.mxu0 %v669
        %v7630 = vpop.f32.mrf.mxu0
        %v7631 = vadd.f32 %v7618, %v7630
        %v7632 = vpop.f32.mrf.mxu0
        %7633 = vdwg.mxu0
        %7634 = vmatpush.bf16.msra.mxu0 %v5788
        %7635 = vmatpush.bf16.msra.mxu0 %v5784
        %7636 = vmatpush.bf16.msra.mxu0 %v5780
        %7637 = vmatpush.bf16.msra.mxu0 %v5776
        %7638 = vmatpush.bf16.msra.mxu0 %v5772
        %7639 = vmatpush.bf16.msra.mxu0 %v5768
        %7640 = vmatpush.bf16.msra.mxu0 %v5764
        %7641 = vmatpush.bf16.msra.mxu0 %v5760
        %7642 = vmatmul.bf16.gmra.mxu0 %v670
        %v7643 = vpop.f32.mrf.mxu0
        %v7644 = vadd.f32 %v7631, %v7643
        %v7645 = vpop.f32.mrf.mxu0
        %7646 = vdwg.mxu0
        %7647 = vmatpush.bf16.msra.mxu0 %v4797
        %7648 = vmatpush.bf16.msra.mxu0 %v4793
        %7649 = vmatpush.bf16.msra.mxu0 %v4789
        %7650 = vmatpush.bf16.msra.mxu0 %v4785
        %7651 = vmatpush.bf16.msra.mxu0 %v4781
        %7652 = vmatpush.bf16.msra.mxu0 %v4777
        %7653 = vmatpush.bf16.msra.mxu0 %v4773
        %7654 = vmatpush.bf16.msra.mxu0 %v4769
        %7655 = vmatmul.bf16.gmra.mxu0 %v639
        %v7656 = vpop.f32.mrf.mxu0
        %v7657 = vadd.f32 0.0, %v7656
        %v7658 = vpop.f32.mrf.mxu0
        %7659 = vdwg.mxu0
        %7660 = vmatpush.bf16.msra.mxu0 %v4829
        %7661 = vmatpush.bf16.msra.mxu0 %v4825
        %7662 = vmatpush.bf16.msra.mxu0 %v4821
        %7663 = vmatpush.bf16.msra.mxu0 %v4817
        %7664 = vmatpush.bf16.msra.mxu0 %v4813
        %7665 = vmatpush.bf16.msra.mxu0 %v4809
        %7666 = vmatpush.bf16.msra.mxu0 %v4805
        %7667 = vmatpush.bf16.msra.mxu0 %v4801
        %7668 = vmatmul.bf16.gmra.mxu0 %v640
        %v7669 = vpop.f32.mrf.mxu0
        %v7670 = vadd.f32 %v7657, %v7669
        %v7671 = vpop.f32.mrf.mxu0
        %7672 = vdwg.mxu0
        %7673 = vmatpush.bf16.msra.mxu0 %v4861
        %7674 = vmatpush.bf16.msra.mxu0 %v4857
        %7675 = vmatpush.bf16.msra.mxu0 %v4853
        %7676 = vmatpush.bf16.msra.mxu0 %v4849
        %7677 = vmatpush.bf16.msra.mxu0 %v4845
        %7678 = vmatpush.bf16.msra.mxu0 %v4841
        %7679 = vmatpush.bf16.msra.mxu0 %v4837
        %7680 = vmatpush.bf16.msra.mxu0 %v4833
        %7681 = vmatmul.bf16.gmra.mxu0 %v641
        %v7682 = vpop.f32.mrf.mxu0
        %v7683 = vadd.f32 %v7670, %v7682
        %v7684 = vpop.f32.mrf.mxu0
        %7685 = vdwg.mxu0
        %7686 = vmatpush.bf16.msra.mxu0 %v4893
        %7687 = vmatpush.bf16.msra.mxu0 %v4889
        %7688 = vmatpush.bf16.msra.mxu0 %v4885
        %7689 = vmatpush.bf16.msra.mxu0 %v4881
        %7690 = vmatpush.bf16.msra.mxu0 %v4877
        %7691 = vmatpush.bf16.msra.mxu0 %v4873
        %7692 = vmatpush.bf16.msra.mxu0 %v4869
        %7693 = vmatpush.bf16.msra.mxu0 %v4865
        %7694 = vmatmul.bf16.gmra.mxu0 %v642
        %v7695 = vpop.f32.mrf.mxu0
        %v7696 = vadd.f32 %v7683, %v7695
        %v7697 = vpop.f32.mrf.mxu0
        %7698 = vdwg.mxu0
        %7699 = vmatpush.bf16.msra.mxu0 %v4925
        %7700 = vmatpush.bf16.msra.mxu0 %v4921
        %7701 = vmatpush.bf16.msra.mxu0 %v4917
        %7702 = vmatpush.bf16.msra.mxu0 %v4913
        %7703 = vmatpush.bf16.msra.mxu0 %v4909
        %7704 = vmatpush.bf16.msra.mxu0 %v4905
        %7705 = vmatpush.bf16.msra.mxu0 %v4901
        %7706 = vmatpush.bf16.msra.mxu0 %v4897
        %7707 = vmatmul.bf16.gmra.mxu0 %v643
        %v7708 = vpop.f32.mrf.mxu0
        %v7709 = vadd.f32 %v7696, %v7708
        %v7710 = vpop.f32.mrf.mxu0
        %7711 = vdwg.mxu0
        %7712 = vmatpush.bf16.msra.mxu0 %v4957
        %7713 = vmatpush.bf16.msra.mxu0 %v4953
        %7714 = vmatpush.bf16.msra.mxu0 %v4949
        %7715 = vmatpush.bf16.msra.mxu0 %v4945
        %7716 = vmatpush.bf16.msra.mxu0 %v4941
        %7717 = vmatpush.bf16.msra.mxu0 %v4937
        %7718 = vmatpush.bf16.msra.mxu0 %v4933
        %7719 = vmatpush.bf16.msra.mxu0 %v4929
        %7720 = vmatmul.bf16.gmra.mxu0 %v644
        %v7721 = vpop.f32.mrf.mxu0
        %v7722 = vadd.f32 %v7709, %v7721
        %v7723 = vpop.f32.mrf.mxu0
        %7724 = vdwg.mxu0
        %7725 = vmatpush.bf16.msra.mxu0 %v4989
        %7726 = vmatpush.bf16.msra.mxu0 %v4985
        %7727 = vmatpush.bf16.msra.mxu0 %v4981
        %7728 = vmatpush.bf16.msra.mxu0 %v4977
        %7729 = vmatpush.bf16.msra.mxu0 %v4973
        %7730 = vmatpush.bf16.msra.mxu0 %v4969
        %7731 = vmatpush.bf16.msra.mxu0 %v4965
        %7732 = vmatpush.bf16.msra.mxu0 %v4961
        %7733 = vmatmul.bf16.gmra.mxu0 %v645
        %v7734 = vpop.f32.mrf.mxu0
        %v7735 = vadd.f32 %v7722, %v7734
        %v7736 = vpop.f32.mrf.mxu0
        %7737 = vdwg.mxu0
        %7738 = vmatpush.bf16.msra.mxu0 %v5021
        %7739 = vmatpush.bf16.msra.mxu0 %v5017
        %7740 = vmatpush.bf16.msra.mxu0 %v5013
        %7741 = vmatpush.bf16.msra.mxu0 %v5009
        %7742 = vmatpush.bf16.msra.mxu0 %v5005
        %7743 = vmatpush.bf16.msra.mxu0 %v5001
        %7744 = vmatpush.bf16.msra.mxu0 %v4997
        %7745 = vmatpush.bf16.msra.mxu0 %v4993
        %7746 = vmatmul.bf16.gmra.mxu0 %v646
        %v7747 = vpop.f32.mrf.mxu0
        %v7748 = vadd.f32 %v7735, %v7747
        %v7749 = vpop.f32.mrf.mxu0
        %7750 = vdwg.mxu0
        %7751 = vmatpush.bf16.msra.mxu0 %v5053
        %7752 = vmatpush.bf16.msra.mxu0 %v5049
        %7753 = vmatpush.bf16.msra.mxu0 %v5045
        %7754 = vmatpush.bf16.msra.mxu0 %v5041
        %7755 = vmatpush.bf16.msra.mxu0 %v5037
        %7756 = vmatpush.bf16.msra.mxu0 %v5033
        %7757 = vmatpush.bf16.msra.mxu0 %v5029
        %7758 = vmatpush.bf16.msra.mxu0 %v5025
        %7759 = vmatmul.bf16.gmra.mxu0 %v647
        %v7760 = vpop.f32.mrf.mxu0
        %v7761 = vadd.f32 %v7748, %v7760
        %v7762 = vpop.f32.mrf.mxu0
        %7763 = vdwg.mxu0
        %7764 = vmatpush.bf16.msra.mxu0 %v5085
        %7765 = vmatpush.bf16.msra.mxu0 %v5081
        %7766 = vmatpush.bf16.msra.mxu0 %v5077
        %7767 = vmatpush.bf16.msra.mxu0 %v5073
        %7768 = vmatpush.bf16.msra.mxu0 %v5069
        %7769 = vmatpush.bf16.msra.mxu0 %v5065
        %7770 = vmatpush.bf16.msra.mxu0 %v5061
        %7771 = vmatpush.bf16.msra.mxu0 %v5057
        %7772 = vmatmul.bf16.gmra.mxu0 %v648
        %v7773 = vpop.f32.mrf.mxu0
        %v7774 = vadd.f32 %v7761, %v7773
        %v7775 = vpop.f32.mrf.mxu0
        %7776 = vdwg.mxu0
        %7777 = vmatpush.bf16.msra.mxu0 %v5117
        %7778 = vmatpush.bf16.msra.mxu0 %v5113
        %7779 = vmatpush.bf16.msra.mxu0 %v5109
        %7780 = vmatpush.bf16.msra.mxu0 %v5105
        %7781 = vmatpush.bf16.msra.mxu0 %v5101
        %7782 = vmatpush.bf16.msra.mxu0 %v5097
        %7783 = vmatpush.bf16.msra.mxu0 %v5093
        %7784 = vmatpush.bf16.msra.mxu0 %v5089
        %7785 = vmatmul.bf16.gmra.mxu0 %v649
        %v7786 = vpop.f32.mrf.mxu0
        %v7787 = vadd.f32 %v7774, %v7786
        %v7788 = vpop.f32.mrf.mxu0
        %7789 = vdwg.mxu0
        %7790 = vmatpush.bf16.msra.mxu0 %v5149
        %7791 = vmatpush.bf16.msra.mxu0 %v5145
        %7792 = vmatpush.bf16.msra.mxu0 %v5141
        %7793 = vmatpush.bf16.msra.mxu0 %v5137
        %7794 = vmatpush.bf16.msra.mxu0 %v5133
        %7795 = vmatpush.bf16.msra.mxu0 %v5129
        %7796 = vmatpush.bf16.msra.mxu0 %v5125
        %7797 = vmatpush.bf16.msra.mxu0 %v5121
        %7798 = vmatmul.bf16.gmra.mxu0 %v650
        %v7799 = vpop.f32.mrf.mxu0
        %v7800 = vadd.f32 %v7787, %v7799
        %v7801 = vpop.f32.mrf.mxu0
        %7802 = vdwg.mxu0
        %7803 = vmatpush.bf16.msra.mxu0 %v5181
        %7804 = vmatpush.bf16.msra.mxu0 %v5177
        %7805 = vmatpush.bf16.msra.mxu0 %v5173
        %7806 = vmatpush.bf16.msra.mxu0 %v5169
        %7807 = vmatpush.bf16.msra.mxu0 %v5165
        %7808 = vmatpush.bf16.msra.mxu0 %v5161
        %7809 = vmatpush.bf16.msra.mxu0 %v5157
        %7810 = vmatpush.bf16.msra.mxu0 %v5153
        %7811 = vmatmul.bf16.gmra.mxu0 %v651
        %v7812 = vpop.f32.mrf.mxu0
        %v7813 = vadd.f32 %v7800, %v7812
        %v7814 = vpop.f32.mrf.mxu0
        %7815 = vdwg.mxu0
        %7816 = vmatpush.bf16.msra.mxu0 %v5213
        %7817 = vmatpush.bf16.msra.mxu0 %v5209
        %7818 = vmatpush.bf16.msra.mxu0 %v5205
        %7819 = vmatpush.bf16.msra.mxu0 %v5201
        %7820 = vmatpush.bf16.msra.mxu0 %v5197
        %7821 = vmatpush.bf16.msra.mxu0 %v5193
        %7822 = vmatpush.bf16.msra.mxu0 %v5189
        %7823 = vmatpush.bf16.msra.mxu0 %v5185
        %7824 = vmatmul.bf16.gmra.mxu0 %v652
        %v7825 = vpop.f32.mrf.mxu0
        %v7826 = vadd.f32 %v7813, %v7825
        %v7827 = vpop.f32.mrf.mxu0
        %7828 = vdwg.mxu0
        %7829 = vmatpush.bf16.msra.mxu0 %v5245
        %7830 = vmatpush.bf16.msra.mxu0 %v5241
        %7831 = vmatpush.bf16.msra.mxu0 %v5237
        %7832 = vmatpush.bf16.msra.mxu0 %v5233
        %7833 = vmatpush.bf16.msra.mxu0 %v5229
        %7834 = vmatpush.bf16.msra.mxu0 %v5225
        %7835 = vmatpush.bf16.msra.mxu0 %v5221
        %7836 = vmatpush.bf16.msra.mxu0 %v5217
        %7837 = vmatmul.bf16.gmra.mxu0 %v653
        %v7838 = vpop.f32.mrf.mxu0
        %v7839 = vadd.f32 %v7826, %v7838
        %v7840 = vpop.f32.mrf.mxu0
        %7841 = vdwg.mxu0
        %7842 = vmatpush.bf16.msra.mxu0 %v5277
        %7843 = vmatpush.bf16.msra.mxu0 %v5273
        %7844 = vmatpush.bf16.msra.mxu0 %v5269
        %7845 = vmatpush.bf16.msra.mxu0 %v5265
        %7846 = vmatpush.bf16.msra.mxu0 %v5261
        %7847 = vmatpush.bf16.msra.mxu0 %v5257
        %7848 = vmatpush.bf16.msra.mxu0 %v5253
        %7849 = vmatpush.bf16.msra.mxu0 %v5249
        %7850 = vmatmul.bf16.gmra.mxu0 %v654
        %v7851 = vpop.f32.mrf.mxu0
        %v7852 = vadd.f32 %v7839, %v7851
        %v7853 = vpop.f32.mrf.mxu0
        %7854 = vdwg.mxu0
        %7855 = vmatpush.bf16.msra.mxu0 %v5309
        %7856 = vmatpush.bf16.msra.mxu0 %v5305
        %7857 = vmatpush.bf16.msra.mxu0 %v5301
        %7858 = vmatpush.bf16.msra.mxu0 %v5297
        %7859 = vmatpush.bf16.msra.mxu0 %v5293
        %7860 = vmatpush.bf16.msra.mxu0 %v5289
        %7861 = vmatpush.bf16.msra.mxu0 %v5285
        %7862 = vmatpush.bf16.msra.mxu0 %v5281
        %7863 = vmatmul.bf16.gmra.mxu0 %v655
        %v7864 = vpop.f32.mrf.mxu0
        %v7865 = vadd.f32 %v7852, %v7864
        %v7866 = vpop.f32.mrf.mxu0
        %7867 = vdwg.mxu0
        %7868 = vmatpush.bf16.msra.mxu0 %v5341
        %7869 = vmatpush.bf16.msra.mxu0 %v5337
        %7870 = vmatpush.bf16.msra.mxu0 %v5333
        %7871 = vmatpush.bf16.msra.mxu0 %v5329
        %7872 = vmatpush.bf16.msra.mxu0 %v5325
        %7873 = vmatpush.bf16.msra.mxu0 %v5321
        %7874 = vmatpush.bf16.msra.mxu0 %v5317
        %7875 = vmatpush.bf16.msra.mxu0 %v5313
        %7876 = vmatmul.bf16.gmra.mxu0 %v656
        %v7877 = vpop.f32.mrf.mxu0
        %v7878 = vadd.f32 %v7865, %v7877
        %v7879 = vpop.f32.mrf.mxu0
        %7880 = vdwg.mxu0
        %7881 = vmatpush.bf16.msra.mxu0 %v5373
        %7882 = vmatpush.bf16.msra.mxu0 %v5369
        %7883 = vmatpush.bf16.msra.mxu0 %v5365
        %7884 = vmatpush.bf16.msra.mxu0 %v5361
        %7885 = vmatpush.bf16.msra.mxu0 %v5357
        %7886 = vmatpush.bf16.msra.mxu0 %v5353
        %7887 = vmatpush.bf16.msra.mxu0 %v5349
        %7888 = vmatpush.bf16.msra.mxu0 %v5345
        %7889 = vmatmul.bf16.gmra.mxu0 %v657
        %v7890 = vpop.f32.mrf.mxu0
        %v7891 = vadd.f32 %v7878, %v7890
        %v7892 = vpop.f32.mrf.mxu0
        %7893 = vdwg.mxu0
        %7894 = vmatpush.bf16.msra.mxu0 %v5405
        %7895 = vmatpush.bf16.msra.mxu0 %v5401
        %7896 = vmatpush.bf16.msra.mxu0 %v5397
        %7897 = vmatpush.bf16.msra.mxu0 %v5393
        %7898 = vmatpush.bf16.msra.mxu0 %v5389
        %7899 = vmatpush.bf16.msra.mxu0 %v5385
        %7900 = vmatpush.bf16.msra.mxu0 %v5381
        %7901 = vmatpush.bf16.msra.mxu0 %v5377
        %7902 = vmatmul.bf16.gmra.mxu0 %v658
        %v7903 = vpop.f32.mrf.mxu0
        %v7904 = vadd.f32 %v7891, %v7903
        %v7905 = vpop.f32.mrf.mxu0
        %7906 = vdwg.mxu0
        %7907 = vmatpush.bf16.msra.mxu0 %v5437
        %7908 = vmatpush.bf16.msra.mxu0 %v5433
        %7909 = vmatpush.bf16.msra.mxu0 %v5429
        %7910 = vmatpush.bf16.msra.mxu0 %v5425
        %7911 = vmatpush.bf16.msra.mxu0 %v5421
        %7912 = vmatpush.bf16.msra.mxu0 %v5417
        %7913 = vmatpush.bf16.msra.mxu0 %v5413
        %7914 = vmatpush.bf16.msra.mxu0 %v5409
        %7915 = vmatmul.bf16.gmra.mxu0 %v659
        %v7916 = vpop.f32.mrf.mxu0
        %v7917 = vadd.f32 %v7904, %v7916
        %v7918 = vpop.f32.mrf.mxu0
        %7919 = vdwg.mxu0
        %7920 = vmatpush.bf16.msra.mxu0 %v5469
        %7921 = vmatpush.bf16.msra.mxu0 %v5465
        %7922 = vmatpush.bf16.msra.mxu0 %v5461
        %7923 = vmatpush.bf16.msra.mxu0 %v5457
        %7924 = vmatpush.bf16.msra.mxu0 %v5453
        %7925 = vmatpush.bf16.msra.mxu0 %v5449
        %7926 = vmatpush.bf16.msra.mxu0 %v5445
        %7927 = vmatpush.bf16.msra.mxu0 %v5441
        %7928 = vmatmul.bf16.gmra.mxu0 %v660
        %v7929 = vpop.f32.mrf.mxu0
        %v7930 = vadd.f32 %v7917, %v7929
        %v7931 = vpop.f32.mrf.mxu0
        %7932 = vdwg.mxu0
        %7933 = vmatpush.bf16.msra.mxu0 %v5501
        %7934 = vmatpush.bf16.msra.mxu0 %v5497
        %7935 = vmatpush.bf16.msra.mxu0 %v5493
        %7936 = vmatpush.bf16.msra.mxu0 %v5489
        %7937 = vmatpush.bf16.msra.mxu0 %v5485
        %7938 = vmatpush.bf16.msra.mxu0 %v5481
        %7939 = vmatpush.bf16.msra.mxu0 %v5477
        %7940 = vmatpush.bf16.msra.mxu0 %v5473
        %7941 = vmatmul.bf16.gmra.mxu0 %v661
        %v7942 = vpop.f32.mrf.mxu0
        %v7943 = vadd.f32 %v7930, %v7942
        %v7944 = vpop.f32.mrf.mxu0
        %7945 = vdwg.mxu0
        %7946 = vmatpush.bf16.msra.mxu0 %v5533
        %7947 = vmatpush.bf16.msra.mxu0 %v5529
        %7948 = vmatpush.bf16.msra.mxu0 %v5525
        %7949 = vmatpush.bf16.msra.mxu0 %v5521
        %7950 = vmatpush.bf16.msra.mxu0 %v5517
        %7951 = vmatpush.bf16.msra.mxu0 %v5513
        %7952 = vmatpush.bf16.msra.mxu0 %v5509
        %7953 = vmatpush.bf16.msra.mxu0 %v5505
        %7954 = vmatmul.bf16.gmra.mxu0 %v662
        %v7955 = vpop.f32.mrf.mxu0
        %v7956 = vadd.f32 %v7943, %v7955
        %v7957 = vpop.f32.mrf.mxu0
        %7958 = vdwg.mxu0
        %7959 = vmatpush.bf16.msra.mxu0 %v5565
        %7960 = vmatpush.bf16.msra.mxu0 %v5561
        %7961 = vmatpush.bf16.msra.mxu0 %v5557
        %7962 = vmatpush.bf16.msra.mxu0 %v5553
        %7963 = vmatpush.bf16.msra.mxu0 %v5549
        %7964 = vmatpush.bf16.msra.mxu0 %v5545
        %7965 = vmatpush.bf16.msra.mxu0 %v5541
        %7966 = vmatpush.bf16.msra.mxu0 %v5537
        %7967 = vmatmul.bf16.gmra.mxu0 %v663
        %v7968 = vpop.f32.mrf.mxu0
        %v7969 = vadd.f32 %v7956, %v7968
        %v7970 = vpop.f32.mrf.mxu0
        %7971 = vdwg.mxu0
        %7972 = vmatpush.bf16.msra.mxu0 %v5597
        %7973 = vmatpush.bf16.msra.mxu0 %v5593
        %7974 = vmatpush.bf16.msra.mxu0 %v5589
        %7975 = vmatpush.bf16.msra.mxu0 %v5585
        %7976 = vmatpush.bf16.msra.mxu0 %v5581
        %7977 = vmatpush.bf16.msra.mxu0 %v5577
        %7978 = vmatpush.bf16.msra.mxu0 %v5573
        %7979 = vmatpush.bf16.msra.mxu0 %v5569
        %7980 = vmatmul.bf16.gmra.mxu0 %v664
        %v7981 = vpop.f32.mrf.mxu0
        %v7982 = vadd.f32 %v7969, %v7981
        %v7983 = vpop.f32.mrf.mxu0
        %7984 = vdwg.mxu0
        %7985 = vmatpush.bf16.msra.mxu0 %v5629
        %7986 = vmatpush.bf16.msra.mxu0 %v5625
        %7987 = vmatpush.bf16.msra.mxu0 %v5621
        %7988 = vmatpush.bf16.msra.mxu0 %v5617
        %7989 = vmatpush.bf16.msra.mxu0 %v5613
        %7990 = vmatpush.bf16.msra.mxu0 %v5609
        %7991 = vmatpush.bf16.msra.mxu0 %v5605
        %7992 = vmatpush.bf16.msra.mxu0 %v5601
        %7993 = vmatmul.bf16.gmra.mxu0 %v665
        %v7994 = vpop.f32.mrf.mxu0
        %v7995 = vadd.f32 %v7982, %v7994
        %v7996 = vpop.f32.mrf.mxu0
        %7997 = vdwg.mxu0
        %7998 = vmatpush.bf16.msra.mxu0 %v5661
        %7999 = vmatpush.bf16.msra.mxu0 %v5657
        %8000 = vmatpush.bf16.msra.mxu0 %v5653
        %8001 = vmatpush.bf16.msra.mxu0 %v5649
        %8002 = vmatpush.bf16.msra.mxu0 %v5645
        %8003 = vmatpush.bf16.msra.mxu0 %v5641
        %8004 = vmatpush.bf16.msra.mxu0 %v5637
        %8005 = vmatpush.bf16.msra.mxu0 %v5633
        %8006 = vmatmul.bf16.gmra.mxu0 %v666
        %v8007 = vpop.f32.mrf.mxu0
        %v8008 = vadd.f32 %v7995, %v8007
        %v8009 = vpop.f32.mrf.mxu0
        %8010 = vdwg.mxu0
        %8011 = vmatpush.bf16.msra.mxu0 %v5693
        %8012 = vmatpush.bf16.msra.mxu0 %v5689
        %8013 = vmatpush.bf16.msra.mxu0 %v5685
        %8014 = vmatpush.bf16.msra.mxu0 %v5681
        %8015 = vmatpush.bf16.msra.mxu0 %v5677
        %8016 = vmatpush.bf16.msra.mxu0 %v5673
        %8017 = vmatpush.bf16.msra.mxu0 %v5669
        %8018 = vmatpush.bf16.msra.mxu0 %v5665
        %8019 = vmatmul.bf16.gmra.mxu0 %v667
        %v8020 = vpop.f32.mrf.mxu0
        %v8021 = vadd.f32 %v8008, %v8020
        %v8022 = vpop.f32.mrf.mxu0
        %8023 = vdwg.mxu0
        %8024 = vmatpush.bf16.msra.mxu0 %v5725
        %8025 = vmatpush.bf16.msra.mxu0 %v5721
        %8026 = vmatpush.bf16.msra.mxu0 %v5717
        %8027 = vmatpush.bf16.msra.mxu0 %v5713
        %8028 = vmatpush.bf16.msra.mxu0 %v5709
        %8029 = vmatpush.bf16.msra.mxu0 %v5705
        %8030 = vmatpush.bf16.msra.mxu0 %v5701
        %8031 = vmatpush.bf16.msra.mxu0 %v5697
        %8032 = vmatmul.bf16.gmra.mxu0 %v668
        %v8033 = vpop.f32.mrf.mxu0
        %v8034 = vadd.f32 %v8021, %v8033
        %v8035 = vpop.f32.mrf.mxu0
        %8036 = vdwg.mxu0
        %8037 = vmatpush.bf16.msra.mxu0 %v5757
        %8038 = vmatpush.bf16.msra.mxu0 %v5753
        %8039 = vmatpush.bf16.msra.mxu0 %v5749
        %8040 = vmatpush.bf16.msra.mxu0 %v5745
        %8041 = vmatpush.bf16.msra.mxu0 %v5741
        %8042 = vmatpush.bf16.msra.mxu0 %v5737
        %8043 = vmatpush.bf16.msra.mxu0 %v5733
        %8044 = vmatpush.bf16.msra.mxu0 %v5729
        %8045 = vmatmul.bf16.gmra.mxu0 %v669
        %v8046 = vpop.f32.mrf.mxu0
        %v8047 = vadd.f32 %v8034, %v8046
        %v8048 = vpop.f32.mrf.mxu0
        %8049 = vdwg.mxu0
        %8050 = vmatpush.bf16.msra.mxu0 %v5789
        %8051 = vmatpush.bf16.msra.mxu0 %v5785
        %8052 = vmatpush.bf16.msra.mxu0 %v5781
        %8053 = vmatpush.bf16.msra.mxu0 %v5777
        %8054 = vmatpush.bf16.msra.mxu0 %v5773
        %8055 = vmatpush.bf16.msra.mxu0 %v5769
        %8056 = vmatpush.bf16.msra.mxu0 %v5765
        %8057 = vmatpush.bf16.msra.mxu0 %v5761
        %8058 = vmatmul.bf16.gmra.mxu0 %v670
        %v8059 = vpop.f32.mrf.mxu0
        %v8060 = vadd.f32 %v8047, %v8059
        %v8061 = vpop.f32.mrf.mxu0
        %8062 = vdwg.mxu0
        %8063 = vmatpush.bf16.msra.mxu0 %v4798
        %8064 = vmatpush.bf16.msra.mxu0 %v4794
        %8065 = vmatpush.bf16.msra.mxu0 %v4790
        %8066 = vmatpush.bf16.msra.mxu0 %v4786
        %8067 = vmatpush.bf16.msra.mxu0 %v4782
        %8068 = vmatpush.bf16.msra.mxu0 %v4778
        %8069 = vmatpush.bf16.msra.mxu0 %v4774
        %8070 = vmatpush.bf16.msra.mxu0 %v4770
        %8071 = vmatmul.bf16.gmra.mxu0 %v639
        %v8072 = vpop.f32.mrf.mxu0
        %v8073 = vadd.f32 0.0, %v8072
        %v8074 = vpop.f32.mrf.mxu0
        %8075 = vdwg.mxu0
        %8076 = vmatpush.bf16.msra.mxu0 %v4830
        %8077 = vmatpush.bf16.msra.mxu0 %v4826
        %8078 = vmatpush.bf16.msra.mxu0 %v4822
        %8079 = vmatpush.bf16.msra.mxu0 %v4818
        %8080 = vmatpush.bf16.msra.mxu0 %v4814
        %8081 = vmatpush.bf16.msra.mxu0 %v4810
        %8082 = vmatpush.bf16.msra.mxu0 %v4806
        %8083 = vmatpush.bf16.msra.mxu0 %v4802
        %8084 = vmatmul.bf16.gmra.mxu0 %v640
        %v8085 = vpop.f32.mrf.mxu0
        %v8086 = vadd.f32 %v8073, %v8085
        %v8087 = vpop.f32.mrf.mxu0
        %8088 = vdwg.mxu0
        %8089 = vmatpush.bf16.msra.mxu0 %v4862
        %8090 = vmatpush.bf16.msra.mxu0 %v4858
        %8091 = vmatpush.bf16.msra.mxu0 %v4854
        %8092 = vmatpush.bf16.msra.mxu0 %v4850
        %8093 = vmatpush.bf16.msra.mxu0 %v4846
        %8094 = vmatpush.bf16.msra.mxu0 %v4842
        %8095 = vmatpush.bf16.msra.mxu0 %v4838
        %8096 = vmatpush.bf16.msra.mxu0 %v4834
        %8097 = vmatmul.bf16.gmra.mxu0 %v641
        %v8098 = vpop.f32.mrf.mxu0
        %v8099 = vadd.f32 %v8086, %v8098
        %v8100 = vpop.f32.mrf.mxu0
        %8101 = vdwg.mxu0
        %8102 = vmatpush.bf16.msra.mxu0 %v4894
        %8103 = vmatpush.bf16.msra.mxu0 %v4890
        %8104 = vmatpush.bf16.msra.mxu0 %v4886
        %8105 = vmatpush.bf16.msra.mxu0 %v4882
        %8106 = vmatpush.bf16.msra.mxu0 %v4878
        %8107 = vmatpush.bf16.msra.mxu0 %v4874
        %8108 = vmatpush.bf16.msra.mxu0 %v4870
        %8109 = vmatpush.bf16.msra.mxu0 %v4866
        %8110 = vmatmul.bf16.gmra.mxu0 %v642
        %v8111 = vpop.f32.mrf.mxu0
        %v8112 = vadd.f32 %v8099, %v8111
        %v8113 = vpop.f32.mrf.mxu0
        %8114 = vdwg.mxu0
        %8115 = vmatpush.bf16.msra.mxu0 %v4926
        %8116 = vmatpush.bf16.msra.mxu0 %v4922
        %8117 = vmatpush.bf16.msra.mxu0 %v4918
        %8118 = vmatpush.bf16.msra.mxu0 %v4914
        %8119 = vmatpush.bf16.msra.mxu0 %v4910
        %8120 = vmatpush.bf16.msra.mxu0 %v4906
        %8121 = vmatpush.bf16.msra.mxu0 %v4902
        %8122 = vmatpush.bf16.msra.mxu0 %v4898
        %8123 = vmatmul.bf16.gmra.mxu0 %v643
        %v8124 = vpop.f32.mrf.mxu0
        %v8125 = vadd.f32 %v8112, %v8124
        %v8126 = vpop.f32.mrf.mxu0
        %8127 = vdwg.mxu0
        %8128 = vmatpush.bf16.msra.mxu0 %v4958
        %8129 = vmatpush.bf16.msra.mxu0 %v4954
        %8130 = vmatpush.bf16.msra.mxu0 %v4950
        %8131 = vmatpush.bf16.msra.mxu0 %v4946
        %8132 = vmatpush.bf16.msra.mxu0 %v4942
        %8133 = vmatpush.bf16.msra.mxu0 %v4938
        %8134 = vmatpush.bf16.msra.mxu0 %v4934
        %8135 = vmatpush.bf16.msra.mxu0 %v4930
        %8136 = vmatmul.bf16.gmra.mxu0 %v644
        %v8137 = vpop.f32.mrf.mxu0
        %v8138 = vadd.f32 %v8125, %v8137
        %v8139 = vpop.f32.mrf.mxu0
        %8140 = vdwg.mxu0
        %8141 = vmatpush.bf16.msra.mxu0 %v4990
        %8142 = vmatpush.bf16.msra.mxu0 %v4986
        %8143 = vmatpush.bf16.msra.mxu0 %v4982
        %8144 = vmatpush.bf16.msra.mxu0 %v4978
        %8145 = vmatpush.bf16.msra.mxu0 %v4974
        %8146 = vmatpush.bf16.msra.mxu0 %v4970
        %8147 = vmatpush.bf16.msra.mxu0 %v4966
        %8148 = vmatpush.bf16.msra.mxu0 %v4962
        %8149 = vmatmul.bf16.gmra.mxu0 %v645
        %v8150 = vpop.f32.mrf.mxu0
        %v8151 = vadd.f32 %v8138, %v8150
        %v8152 = vpop.f32.mrf.mxu0
        %8153 = vdwg.mxu0
        %8154 = vmatpush.bf16.msra.mxu0 %v5022
        %8155 = vmatpush.bf16.msra.mxu0 %v5018
        %8156 = vmatpush.bf16.msra.mxu0 %v5014
        %8157 = vmatpush.bf16.msra.mxu0 %v5010
        %8158 = vmatpush.bf16.msra.mxu0 %v5006
        %8159 = vmatpush.bf16.msra.mxu0 %v5002
        %8160 = vmatpush.bf16.msra.mxu0 %v4998
        %8161 = vmatpush.bf16.msra.mxu0 %v4994
        %8162 = vmatmul.bf16.gmra.mxu0 %v646
        %v8163 = vpop.f32.mrf.mxu0
        %v8164 = vadd.f32 %v8151, %v8163
        %v8165 = vpop.f32.mrf.mxu0
        %8166 = vdwg.mxu0
        %8167 = vmatpush.bf16.msra.mxu0 %v5054
        %8168 = vmatpush.bf16.msra.mxu0 %v5050
        %8169 = vmatpush.bf16.msra.mxu0 %v5046
        %8170 = vmatpush.bf16.msra.mxu0 %v5042
        %8171 = vmatpush.bf16.msra.mxu0 %v5038
        %8172 = vmatpush.bf16.msra.mxu0 %v5034
        %8173 = vmatpush.bf16.msra.mxu0 %v5030
        %8174 = vmatpush.bf16.msra.mxu0 %v5026
        %8175 = vmatmul.bf16.gmra.mxu0 %v647
        %v8176 = vpop.f32.mrf.mxu0
        %v8177 = vadd.f32 %v8164, %v8176
        %v8178 = vpop.f32.mrf.mxu0
        %8179 = vdwg.mxu0
        %8180 = vmatpush.bf16.msra.mxu0 %v5086
        %8181 = vmatpush.bf16.msra.mxu0 %v5082
        %8182 = vmatpush.bf16.msra.mxu0 %v5078
        %8183 = vmatpush.bf16.msra.mxu0 %v5074
        %8184 = vmatpush.bf16.msra.mxu0 %v5070
        %8185 = vmatpush.bf16.msra.mxu0 %v5066
        %8186 = vmatpush.bf16.msra.mxu0 %v5062
        %8187 = vmatpush.bf16.msra.mxu0 %v5058
        %8188 = vmatmul.bf16.gmra.mxu0 %v648
        %v8189 = vpop.f32.mrf.mxu0
        %v8190 = vadd.f32 %v8177, %v8189
        %v8191 = vpop.f32.mrf.mxu0
        %8192 = vdwg.mxu0
        %8193 = vmatpush.bf16.msra.mxu0 %v5118
        %8194 = vmatpush.bf16.msra.mxu0 %v5114
        %8195 = vmatpush.bf16.msra.mxu0 %v5110
        %8196 = vmatpush.bf16.msra.mxu0 %v5106
        %8197 = vmatpush.bf16.msra.mxu0 %v5102
        %8198 = vmatpush.bf16.msra.mxu0 %v5098
        %8199 = vmatpush.bf16.msra.mxu0 %v5094
        %8200 = vmatpush.bf16.msra.mxu0 %v5090
        %8201 = vmatmul.bf16.gmra.mxu0 %v649
        %v8202 = vpop.f32.mrf.mxu0
        %v8203 = vadd.f32 %v8190, %v8202
        %v8204 = vpop.f32.mrf.mxu0
        %8205 = vdwg.mxu0
        %8206 = vmatpush.bf16.msra.mxu0 %v5150
        %8207 = vmatpush.bf16.msra.mxu0 %v5146
        %8208 = vmatpush.bf16.msra.mxu0 %v5142
        %8209 = vmatpush.bf16.msra.mxu0 %v5138
        %8210 = vmatpush.bf16.msra.mxu0 %v5134
        %8211 = vmatpush.bf16.msra.mxu0 %v5130
        %8212 = vmatpush.bf16.msra.mxu0 %v5126
        %8213 = vmatpush.bf16.msra.mxu0 %v5122
        %8214 = vmatmul.bf16.gmra.mxu0 %v650
        %v8215 = vpop.f32.mrf.mxu0
        %v8216 = vadd.f32 %v8203, %v8215
        %v8217 = vpop.f32.mrf.mxu0
        %8218 = vdwg.mxu0
        %8219 = vmatpush.bf16.msra.mxu0 %v5182
        %8220 = vmatpush.bf16.msra.mxu0 %v5178
        %8221 = vmatpush.bf16.msra.mxu0 %v5174
        %8222 = vmatpush.bf16.msra.mxu0 %v5170
        %8223 = vmatpush.bf16.msra.mxu0 %v5166
        %8224 = vmatpush.bf16.msra.mxu0 %v5162
        %8225 = vmatpush.bf16.msra.mxu0 %v5158
        %8226 = vmatpush.bf16.msra.mxu0 %v5154
        %8227 = vmatmul.bf16.gmra.mxu0 %v651
        %v8228 = vpop.f32.mrf.mxu0
        %v8229 = vadd.f32 %v8216, %v8228
        %v8230 = vpop.f32.mrf.mxu0
        %8231 = vdwg.mxu0
        %8232 = vmatpush.bf16.msra.mxu0 %v5214
        %8233 = vmatpush.bf16.msra.mxu0 %v5210
        %8234 = vmatpush.bf16.msra.mxu0 %v5206
        %8235 = vmatpush.bf16.msra.mxu0 %v5202
        %8236 = vmatpush.bf16.msra.mxu0 %v5198
        %8237 = vmatpush.bf16.msra.mxu0 %v5194
        %8238 = vmatpush.bf16.msra.mxu0 %v5190
        %8239 = vmatpush.bf16.msra.mxu0 %v5186
        %8240 = vmatmul.bf16.gmra.mxu0 %v652
        %v8241 = vpop.f32.mrf.mxu0
        %v8242 = vadd.f32 %v8229, %v8241
        %v8243 = vpop.f32.mrf.mxu0
        %8244 = vdwg.mxu0
        %8245 = vmatpush.bf16.msra.mxu0 %v5246
        %8246 = vmatpush.bf16.msra.mxu0 %v5242
        %8247 = vmatpush.bf16.msra.mxu0 %v5238
        %8248 = vmatpush.bf16.msra.mxu0 %v5234
        %8249 = vmatpush.bf16.msra.mxu0 %v5230
        %8250 = vmatpush.bf16.msra.mxu0 %v5226
        %8251 = vmatpush.bf16.msra.mxu0 %v5222
        %8252 = vmatpush.bf16.msra.mxu0 %v5218
        %8253 = vmatmul.bf16.gmra.mxu0 %v653
        %v8254 = vpop.f32.mrf.mxu0
        %v8255 = vadd.f32 %v8242, %v8254
        %v8256 = vpop.f32.mrf.mxu0
        %8257 = vdwg.mxu0
        %8258 = vmatpush.bf16.msra.mxu0 %v5278
        %8259 = vmatpush.bf16.msra.mxu0 %v5274
        %8260 = vmatpush.bf16.msra.mxu0 %v5270
        %8261 = vmatpush.bf16.msra.mxu0 %v5266
        %8262 = vmatpush.bf16.msra.mxu0 %v5262
        %8263 = vmatpush.bf16.msra.mxu0 %v5258
        %8264 = vmatpush.bf16.msra.mxu0 %v5254
        %8265 = vmatpush.bf16.msra.mxu0 %v5250
        %8266 = vmatmul.bf16.gmra.mxu0 %v654
        %v8267 = vpop.f32.mrf.mxu0
        %v8268 = vadd.f32 %v8255, %v8267
        %v8269 = vpop.f32.mrf.mxu0
        %8270 = vdwg.mxu0
        %8271 = vmatpush.bf16.msra.mxu0 %v5310
        %8272 = vmatpush.bf16.msra.mxu0 %v5306
        %8273 = vmatpush.bf16.msra.mxu0 %v5302
        %8274 = vmatpush.bf16.msra.mxu0 %v5298
        %8275 = vmatpush.bf16.msra.mxu0 %v5294
        %8276 = vmatpush.bf16.msra.mxu0 %v5290
        %8277 = vmatpush.bf16.msra.mxu0 %v5286
        %8278 = vmatpush.bf16.msra.mxu0 %v5282
        %8279 = vmatmul.bf16.gmra.mxu0 %v655
        %v8280 = vpop.f32.mrf.mxu0
        %v8281 = vadd.f32 %v8268, %v8280
        %v8282 = vpop.f32.mrf.mxu0
        %8283 = vdwg.mxu0
        %8284 = vmatpush.bf16.msra.mxu0 %v5342
        %8285 = vmatpush.bf16.msra.mxu0 %v5338
        %8286 = vmatpush.bf16.msra.mxu0 %v5334
        %8287 = vmatpush.bf16.msra.mxu0 %v5330
        %8288 = vmatpush.bf16.msra.mxu0 %v5326
        %8289 = vmatpush.bf16.msra.mxu0 %v5322
        %8290 = vmatpush.bf16.msra.mxu0 %v5318
        %8291 = vmatpush.bf16.msra.mxu0 %v5314
        %8292 = vmatmul.bf16.gmra.mxu0 %v656
        %v8293 = vpop.f32.mrf.mxu0
        %v8294 = vadd.f32 %v8281, %v8293
        %v8295 = vpop.f32.mrf.mxu0
        %8296 = vdwg.mxu0
        %8297 = vmatpush.bf16.msra.mxu0 %v5374
        %8298 = vmatpush.bf16.msra.mxu0 %v5370
        %8299 = vmatpush.bf16.msra.mxu0 %v5366
        %8300 = vmatpush.bf16.msra.mxu0 %v5362
        %8301 = vmatpush.bf16.msra.mxu0 %v5358
        %8302 = vmatpush.bf16.msra.mxu0 %v5354
        %8303 = vmatpush.bf16.msra.mxu0 %v5350
        %8304 = vmatpush.bf16.msra.mxu0 %v5346
        %8305 = vmatmul.bf16.gmra.mxu0 %v657
        %v8306 = vpop.f32.mrf.mxu0
        %v8307 = vadd.f32 %v8294, %v8306
        %v8308 = vpop.f32.mrf.mxu0
        %8309 = vdwg.mxu0
        %8310 = vmatpush.bf16.msra.mxu0 %v5406
        %8311 = vmatpush.bf16.msra.mxu0 %v5402
        %8312 = vmatpush.bf16.msra.mxu0 %v5398
        %8313 = vmatpush.bf16.msra.mxu0 %v5394
        %8314 = vmatpush.bf16.msra.mxu0 %v5390
        %8315 = vmatpush.bf16.msra.mxu0 %v5386
        %8316 = vmatpush.bf16.msra.mxu0 %v5382
        %8317 = vmatpush.bf16.msra.mxu0 %v5378
        %8318 = vmatmul.bf16.gmra.mxu0 %v658
        %v8319 = vpop.f32.mrf.mxu0
        %v8320 = vadd.f32 %v8307, %v8319
        %v8321 = vpop.f32.mrf.mxu0
        %8322 = vdwg.mxu0
        %8323 = vmatpush.bf16.msra.mxu0 %v5438
        %8324 = vmatpush.bf16.msra.mxu0 %v5434
        %8325 = vmatpush.bf16.msra.mxu0 %v5430
        %8326 = vmatpush.bf16.msra.mxu0 %v5426
        %8327 = vmatpush.bf16.msra.mxu0 %v5422
        %8328 = vmatpush.bf16.msra.mxu0 %v5418
        %8329 = vmatpush.bf16.msra.mxu0 %v5414
        %8330 = vmatpush.bf16.msra.mxu0 %v5410
        %8331 = vmatmul.bf16.gmra.mxu0 %v659
        %v8332 = vpop.f32.mrf.mxu0
        %v8333 = vadd.f32 %v8320, %v8332
        %v8334 = vpop.f32.mrf.mxu0
        %8335 = vdwg.mxu0
        %8336 = vmatpush.bf16.msra.mxu0 %v5470
        %8337 = vmatpush.bf16.msra.mxu0 %v5466
        %8338 = vmatpush.bf16.msra.mxu0 %v5462
        %8339 = vmatpush.bf16.msra.mxu0 %v5458
        %8340 = vmatpush.bf16.msra.mxu0 %v5454
        %8341 = vmatpush.bf16.msra.mxu0 %v5450
        %8342 = vmatpush.bf16.msra.mxu0 %v5446
        %8343 = vmatpush.bf16.msra.mxu0 %v5442
        %8344 = vmatmul.bf16.gmra.mxu0 %v660
        %v8345 = vpop.f32.mrf.mxu0
        %v8346 = vadd.f32 %v8333, %v8345
        %v8347 = vpop.f32.mrf.mxu0
        %8348 = vdwg.mxu0
        %8349 = vmatpush.bf16.msra.mxu0 %v5502
        %8350 = vmatpush.bf16.msra.mxu0 %v5498
        %8351 = vmatpush.bf16.msra.mxu0 %v5494
        %8352 = vmatpush.bf16.msra.mxu0 %v5490
        %8353 = vmatpush.bf16.msra.mxu0 %v5486
        %8354 = vmatpush.bf16.msra.mxu0 %v5482
        %8355 = vmatpush.bf16.msra.mxu0 %v5478
        %8356 = vmatpush.bf16.msra.mxu0 %v5474
        %8357 = vmatmul.bf16.gmra.mxu0 %v661
        %v8358 = vpop.f32.mrf.mxu0
        %v8359 = vadd.f32 %v8346, %v8358
        %v8360 = vpop.f32.mrf.mxu0
        %8361 = vdwg.mxu0
        %8362 = vmatpush.bf16.msra.mxu0 %v5534
        %8363 = vmatpush.bf16.msra.mxu0 %v5530
        %8364 = vmatpush.bf16.msra.mxu0 %v5526
        %8365 = vmatpush.bf16.msra.mxu0 %v5522
        %8366 = vmatpush.bf16.msra.mxu0 %v5518
        %8367 = vmatpush.bf16.msra.mxu0 %v5514
        %8368 = vmatpush.bf16.msra.mxu0 %v5510
        %8369 = vmatpush.bf16.msra.mxu0 %v5506
        %8370 = vmatmul.bf16.gmra.mxu0 %v662
        %v8371 = vpop.f32.mrf.mxu0
        %v8372 = vadd.f32 %v8359, %v8371
        %v8373 = vpop.f32.mrf.mxu0
        %8374 = vdwg.mxu0
        %8375 = vmatpush.bf16.msra.mxu0 %v5566
        %8376 = vmatpush.bf16.msra.mxu0 %v5562
        %8377 = vmatpush.bf16.msra.mxu0 %v5558
        %8378 = vmatpush.bf16.msra.mxu0 %v5554
        %8379 = vmatpush.bf16.msra.mxu0 %v5550
        %8380 = vmatpush.bf16.msra.mxu0 %v5546
        %8381 = vmatpush.bf16.msra.mxu0 %v5542
        %8382 = vmatpush.bf16.msra.mxu0 %v5538
        %8383 = vmatmul.bf16.gmra.mxu0 %v663
        %v8384 = vpop.f32.mrf.mxu0
        %v8385 = vadd.f32 %v8372, %v8384
        %v8386 = vpop.f32.mrf.mxu0
        %8387 = vdwg.mxu0
        %8388 = vmatpush.bf16.msra.mxu0 %v5598
        %8389 = vmatpush.bf16.msra.mxu0 %v5594
        %8390 = vmatpush.bf16.msra.mxu0 %v5590
        %8391 = vmatpush.bf16.msra.mxu0 %v5586
        %8392 = vmatpush.bf16.msra.mxu0 %v5582
        %8393 = vmatpush.bf16.msra.mxu0 %v5578
        %8394 = vmatpush.bf16.msra.mxu0 %v5574
        %8395 = vmatpush.bf16.msra.mxu0 %v5570
        %8396 = vmatmul.bf16.gmra.mxu0 %v664
        %v8397 = vpop.f32.mrf.mxu0
        %v8398 = vadd.f32 %v8385, %v8397
        %v8399 = vpop.f32.mrf.mxu0
        %8400 = vdwg.mxu0
        %8401 = vmatpush.bf16.msra.mxu0 %v5630
        %8402 = vmatpush.bf16.msra.mxu0 %v5626
        %8403 = vmatpush.bf16.msra.mxu0 %v5622
        %8404 = vmatpush.bf16.msra.mxu0 %v5618
        %8405 = vmatpush.bf16.msra.mxu0 %v5614
        %8406 = vmatpush.bf16.msra.mxu0 %v5610
        %8407 = vmatpush.bf16.msra.mxu0 %v5606
        %8408 = vmatpush.bf16.msra.mxu0 %v5602
        %8409 = vmatmul.bf16.gmra.mxu0 %v665
        %v8410 = vpop.f32.mrf.mxu0
        %v8411 = vadd.f32 %v8398, %v8410
        %v8412 = vpop.f32.mrf.mxu0
        %8413 = vdwg.mxu0
        %8414 = vmatpush.bf16.msra.mxu0 %v5662
        %8415 = vmatpush.bf16.msra.mxu0 %v5658
        %8416 = vmatpush.bf16.msra.mxu0 %v5654
        %8417 = vmatpush.bf16.msra.mxu0 %v5650
        %8418 = vmatpush.bf16.msra.mxu0 %v5646
        %8419 = vmatpush.bf16.msra.mxu0 %v5642
        %8420 = vmatpush.bf16.msra.mxu0 %v5638
        %8421 = vmatpush.bf16.msra.mxu0 %v5634
        %8422 = vmatmul.bf16.gmra.mxu0 %v666
        %v8423 = vpop.f32.mrf.mxu0
        %v8424 = vadd.f32 %v8411, %v8423
        %v8425 = vpop.f32.mrf.mxu0
        %8426 = vdwg.mxu0
        %8427 = vmatpush.bf16.msra.mxu0 %v5694
        %8428 = vmatpush.bf16.msra.mxu0 %v5690
        %8429 = vmatpush.bf16.msra.mxu0 %v5686
        %8430 = vmatpush.bf16.msra.mxu0 %v5682
        %8431 = vmatpush.bf16.msra.mxu0 %v5678
        %8432 = vmatpush.bf16.msra.mxu0 %v5674
        %8433 = vmatpush.bf16.msra.mxu0 %v5670
        %8434 = vmatpush.bf16.msra.mxu0 %v5666
        %8435 = vmatmul.bf16.gmra.mxu0 %v667
        %v8436 = vpop.f32.mrf.mxu0
        %v8437 = vadd.f32 %v8424, %v8436
        %v8438 = vpop.f32.mrf.mxu0
        %8439 = vdwg.mxu0
        %8440 = vmatpush.bf16.msra.mxu0 %v5726
        %8441 = vmatpush.bf16.msra.mxu0 %v5722
        %8442 = vmatpush.bf16.msra.mxu0 %v5718
        %8443 = vmatpush.bf16.msra.mxu0 %v5714
        %8444 = vmatpush.bf16.msra.mxu0 %v5710
        %8445 = vmatpush.bf16.msra.mxu0 %v5706
        %8446 = vmatpush.bf16.msra.mxu0 %v5702
        %8447 = vmatpush.bf16.msra.mxu0 %v5698
        %8448 = vmatmul.bf16.gmra.mxu0 %v668
        %v8449 = vpop.f32.mrf.mxu0
        %v8450 = vadd.f32 %v8437, %v8449
        %v8451 = vpop.f32.mrf.mxu0
        %8452 = vdwg.mxu0
        %8453 = vmatpush.bf16.msra.mxu0 %v5758
        %8454 = vmatpush.bf16.msra.mxu0 %v5754
        %8455 = vmatpush.bf16.msra.mxu0 %v5750
        %8456 = vmatpush.bf16.msra.mxu0 %v5746
        %8457 = vmatpush.bf16.msra.mxu0 %v5742
        %8458 = vmatpush.bf16.msra.mxu0 %v5738
        %8459 = vmatpush.bf16.msra.mxu0 %v5734
        %8460 = vmatpush.bf16.msra.mxu0 %v5730
        %8461 = vmatmul.bf16.gmra.mxu0 %v669
        %v8462 = vpop.f32.mrf.mxu0
        %v8463 = vadd.f32 %v8450, %v8462
        %v8464 = vpop.f32.mrf.mxu0
        %8465 = vdwg.mxu0
        %8466 = vmatpush.bf16.msra.mxu0 %v5790
        %8467 = vmatpush.bf16.msra.mxu0 %v5786
        %8468 = vmatpush.bf16.msra.mxu0 %v5782
        %8469 = vmatpush.bf16.msra.mxu0 %v5778
        %8470 = vmatpush.bf16.msra.mxu0 %v5774
        %8471 = vmatpush.bf16.msra.mxu0 %v5770
        %8472 = vmatpush.bf16.msra.mxu0 %v5766
        %8473 = vmatpush.bf16.msra.mxu0 %v5762
        %8474 = vmatmul.bf16.gmra.mxu0 %v670
        %v8475 = vpop.f32.mrf.mxu0
        %v8476 = vadd.f32 %v8463, %v8475
        %v8477 = vpop.f32.mrf.mxu0
        %8478 = vdwg.mxu0
        %v8483 = vrot.slane %v7644, 6
        %v8484 = vrot.slane %v8060, 4
        %v8485 = vrot.slane %v8476, 2
        %vm8486 = vcmask 1041408
        %v8487 = vsel %vm8486, %v7228, %v8483
        %vm8488 = vcmask 1045508
        %v8489 = vsel %vm8488, %v8484, %v8485
        %vm8490 = vcmask 1043456
        %v8491 = vsel %vm8490, %v8487, %v8489
        %v8493 = vadd.f32 %v549, %v8491
        %8494 = vst [vmem:[#allocation14] sm:$0xff] %v8493
        %p8495 = scmp.eq.s32.totalorder %s33, 1
        // Predicated region
        $region85: #{ir50_head.1} parent=51 // pred_check
          %p8496 = pneg %p8495
        $region86: #{ir50_head.1} parent=51 // pred_check_branch
          %8498 = sbr.rel (%p8496) target = $region88
        $region87: #{ir50_head.1} parent=51 // pred_region
          %v8499 = vld [vmem:[#allocation14] sm:$0xff]
          %v8500 = vld [vmem:[#allocation7] sm:$0xff]
          %v8501 = vld [vmem:[#allocation7 + $0x8] sm:$0xff]
          %v8502 = vld [vmem:[#allocation7 + $0x10] sm:$0xff]
          %v8503 = vld [vmem:[#allocation7 + $0x18] sm:$0xff]
          %v8504 = vld [vmem:[#allocation7 + $0x20] sm:$0xff]
          %v8505 = vld [vmem:[#allocation7 + $0x28] sm:$0xff]
          %v8506 = vld [vmem:[#allocation7 + $0x30] sm:$0xff]
          %v8507 = vld [vmem:[#allocation7 + $0x38] sm:$0xff]
          %v8508 = vld [vmem:[#allocation7 + $0x40] sm:$0xff]
          %v8509 = vld [vmem:[#allocation7 + $0x48] sm:$0xff]
          %v8510 = vld [vmem:[#allocation7 + $0x50] sm:$0xff]
          %v8511 = vld [vmem:[#allocation7 + $0x58] sm:$0xff]
          %v8512 = vld [vmem:[#allocation7 + $0x60] sm:$0xff]
          %v8513 = vld [vmem:[#allocation7 + $0x68] sm:$0xff]
          %v8514 = vld [vmem:[#allocation7 + $0x70] sm:$0xff]
          %v8515 = vld [vmem:[#allocation7 + $0x78] sm:$0xff]
          %v8516 = vld [vmem:[#allocation7 + $0x80] sm:$0xff]
          %v8517 = vld [vmem:[#allocation7 + $0x88] sm:$0xff]
          %v8518 = vld [vmem:[#allocation7 + $0x90] sm:$0xff]
          %v8519 = vld [vmem:[#allocation7 + $0x98] sm:$0xff]
          %v8520 = vld [vmem:[#allocation7 + $0xa0] sm:$0xff]
          %v8521 = vld [vmem:[#allocation7 + $0xa8] sm:$0xff]
          %v8522 = vld [vmem:[#allocation7 + $0xb0] sm:$0xff]
          %v8523 = vld [vmem:[#allocation7 + $0xb8] sm:$0xff]
          %v8524 = vld [vmem:[#allocation7 + $0xc0] sm:$0xff]
          %v8525 = vld [vmem:[#allocation7 + $0xc8] sm:$0xff]
          %v8526 = vld [vmem:[#allocation7 + $0xd0] sm:$0xff]
          %v8527 = vld [vmem:[#allocation7 + $0xd8] sm:$0xff]
          %v8528 = vld [vmem:[#allocation7 + $0xe0] sm:$0xff]
          %v8529 = vld [vmem:[#allocation7 + $0xe8] sm:$0xff]
          %v8530 = vld [vmem:[#allocation7 + $0xf0] sm:$0xff]
          %v8531 = vld [vmem:[#allocation7 + $0xf8] sm:$0xff]
          %v8532 = vld [vmem:[#allocation7 + $0x100] sm:$0xff]
          %v8533 = vld [vmem:[#allocation7 + $0x108] sm:$0xff]
          %v8534 = vld [vmem:[#allocation7 + $0x110] sm:$0xff]
          %v8535 = vld [vmem:[#allocation7 + $0x118] sm:$0xff]
          %v8536 = vld [vmem:[#allocation7 + $0x120] sm:$0xff]
          %v8537 = vld [vmem:[#allocation7 + $0x128] sm:$0xff]
          %v8538 = vld [vmem:[#allocation7 + $0x130] sm:$0xff]
          %v8539 = vld [vmem:[#allocation7 + $0x138] sm:$0xff]
          %v8540 = vld [vmem:[#allocation7 + $0x140] sm:$0xff]
          %v8541 = vld [vmem:[#allocation7 + $0x148] sm:$0xff]
          %v8542 = vld [vmem:[#allocation7 + $0x150] sm:$0xff]
          %v8543 = vld [vmem:[#allocation7 + $0x158] sm:$0xff]
          %v8544 = vld [vmem:[#allocation7 + $0x160] sm:$0xff]
          %v8545 = vld [vmem:[#allocation7 + $0x168] sm:$0xff]
          %v8546 = vld [vmem:[#allocation7 + $0x170] sm:$0xff]
          %v8547 = vld [vmem:[#allocation7 + $0x178] sm:$0xff]
          %v8548 = vld [vmem:[#allocation7 + $0x180] sm:$0xff]
          %v8549 = vld [vmem:[#allocation7 + $0x188] sm:$0xff]
          %v8550 = vld [vmem:[#allocation7 + $0x190] sm:$0xff]
          %v8551 = vld [vmem:[#allocation7 + $0x198] sm:$0xff]
          %v8552 = vld [vmem:[#allocation7 + $0x1a0] sm:$0xff]
          %v8553 = vld [vmem:[#allocation7 + $0x1a8] sm:$0xff]
          %v8554 = vld [vmem:[#allocation7 + $0x1b0] sm:$0xff]
          %v8555 = vld [vmem:[#allocation7 + $0x1b8] sm:$0xff]
          %v8556 = vld [vmem:[#allocation7 + $0x1c0] sm:$0xff]
          %v8557 = vld [vmem:[#allocation7 + $0x1c8] sm:$0xff]
          %v8558 = vld [vmem:[#allocation7 + $0x1d0] sm:$0xff]
          %v8559 = vld [vmem:[#allocation7 + $0x1d8] sm:$0xff]
          %v8560 = vld [vmem:[#allocation7 + $0x1e0] sm:$0xff]
          %v8561 = vld [vmem:[#allocation7 + $0x1e8] sm:$0xff]
          %v8562 = vld [vmem:[#allocation7 + $0x1f0] sm:$0xff]
          %v8563 = vld [vmem:[#allocation7 + $0x1f8] sm:$0xff]
          %v8564 = vld [vmem:[#allocation7 + $0x200] sm:$0xff]
          %v8565 = vld [vmem:[#allocation7 + $0x208] sm:$0xff]
          %v8566 = vld [vmem:[#allocation7 + $0x210] sm:$0xff]
          %v8567 = vld [vmem:[#allocation7 + $0x218] sm:$0xff]
          %v8568 = vld [vmem:[#allocation7 + $0x220] sm:$0xff]
          %v8569 = vld [vmem:[#allocation7 + $0x228] sm:$0xff]
          %v8570 = vld [vmem:[#allocation7 + $0x230] sm:$0xff]
          %v8571 = vld [vmem:[#allocation7 + $0x238] sm:$0xff]
          %v8572 = vld [vmem:[#allocation7 + $0x240] sm:$0xff]
          %v8573 = vld [vmem:[#allocation7 + $0x248] sm:$0xff]
          %v8574 = vld [vmem:[#allocation7 + $0x250] sm:$0xff]
          %v8575 = vld [vmem:[#allocation7 + $0x258] sm:$0xff]
          %v8576 = vld [vmem:[#allocation7 + $0x260] sm:$0xff]
          %v8577 = vld [vmem:[#allocation7 + $0x268] sm:$0xff]
          %v8578 = vld [vmem:[#allocation7 + $0x270] sm:$0xff]
          %v8579 = vld [vmem:[#allocation7 + $0x278] sm:$0xff]
          %v8580 = vld [vmem:[#allocation7 + $0x280] sm:$0xff]
          %v8581 = vld [vmem:[#allocation7 + $0x288] sm:$0xff]
          %v8582 = vld [vmem:[#allocation7 + $0x290] sm:$0xff]
          %v8583 = vld [vmem:[#allocation7 + $0x298] sm:$0xff]
          %v8584 = vld [vmem:[#allocation7 + $0x2a0] sm:$0xff]
          %v8585 = vld [vmem:[#allocation7 + $0x2a8] sm:$0xff]
          %v8586 = vld [vmem:[#allocation7 + $0x2b0] sm:$0xff]
          %v8587 = vld [vmem:[#allocation7 + $0x2b8] sm:$0xff]
          %v8588 = vld [vmem:[#allocation7 + $0x2c0] sm:$0xff]
          %v8589 = vld [vmem:[#allocation7 + $0x2c8] sm:$0xff]
          %v8590 = vld [vmem:[#allocation7 + $0x2d0] sm:$0xff]
          %v8591 = vld [vmem:[#allocation7 + $0x2d8] sm:$0xff]
          %v8592 = vld [vmem:[#allocation7 + $0x2e0] sm:$0xff]
          %v8593 = vld [vmem:[#allocation7 + $0x2e8] sm:$0xff]
          %v8594 = vld [vmem:[#allocation7 + $0x2f0] sm:$0xff]
          %v8595 = vld [vmem:[#allocation7 + $0x2f8] sm:$0xff]
          %v8596 = vld [vmem:[#allocation7 + $0x300] sm:$0xff]
          %v8597 = vld [vmem:[#allocation7 + $0x308] sm:$0xff]
          %v8598 = vld [vmem:[#allocation7 + $0x310] sm:$0xff]
          %v8599 = vld [vmem:[#allocation7 + $0x318] sm:$0xff]
          %v8600 = vld [vmem:[#allocation7 + $0x320] sm:$0xff]
          %v8601 = vld [vmem:[#allocation7 + $0x328] sm:$0xff]
          %v8602 = vld [vmem:[#allocation7 + $0x330] sm:$0xff]
          %v8603 = vld [vmem:[#allocation7 + $0x338] sm:$0xff]
          %v8604 = vld [vmem:[#allocation7 + $0x340] sm:$0xff]
          %v8605 = vld [vmem:[#allocation7 + $0x348] sm:$0xff]
          %v8606 = vld [vmem:[#allocation7 + $0x350] sm:$0xff]
          %v8607 = vld [vmem:[#allocation7 + $0x358] sm:$0xff]
          %v8608 = vld [vmem:[#allocation7 + $0x360] sm:$0xff]
          %v8609 = vld [vmem:[#allocation7 + $0x368] sm:$0xff]
          %v8610 = vld [vmem:[#allocation7 + $0x370] sm:$0xff]
          %v8611 = vld [vmem:[#allocation7 + $0x378] sm:$0xff]
          %v8612 = vld [vmem:[#allocation7 + $0x380] sm:$0xff]
          %v8613 = vld [vmem:[#allocation7 + $0x388] sm:$0xff]
          %v8614 = vld [vmem:[#allocation7 + $0x390] sm:$0xff]
          %v8615 = vld [vmem:[#allocation7 + $0x398] sm:$0xff]
          %v8616 = vld [vmem:[#allocation7 + $0x3a0] sm:$0xff]
          %v8617 = vld [vmem:[#allocation7 + $0x3a8] sm:$0xff]
          %v8618 = vld [vmem:[#allocation7 + $0x3b0] sm:$0xff]
          %v8619 = vld [vmem:[#allocation7 + $0x3b8] sm:$0xff]
          %v8620 = vld [vmem:[#allocation7 + $0x3c0] sm:$0xff]
          %v8621 = vld [vmem:[#allocation7 + $0x3c8] sm:$0xff]
          %v8622 = vld [vmem:[#allocation7 + $0x3d0] sm:$0xff]
          %v8623 = vld [vmem:[#allocation7 + $0x3d8] sm:$0xff]
          %v8624 = vld [vmem:[#allocation7 + $0x3e0] sm:$0xff]
          %v8625 = vld [vmem:[#allocation7 + $0x3e8] sm:$0xff]
          %v8626 = vld [vmem:[#allocation7 + $0x3f0] sm:$0xff]
          %v8627 = vld [vmem:[#allocation7 + $0x3f8] sm:$0xff]
          %v8628 = vld [vmem:[#allocation7 + $0x400] sm:$0xff]
          %v8629 = vld [vmem:[#allocation7 + $0x408] sm:$0xff]
          %v8630 = vld [vmem:[#allocation7 + $0x410] sm:$0xff]
          %v8631 = vld [vmem:[#allocation7 + $0x418] sm:$0xff]
          %v8632 = vld [vmem:[#allocation7 + $0x420] sm:$0xff]
          %v8633 = vld [vmem:[#allocation7 + $0x428] sm:$0xff]
          %v8634 = vld [vmem:[#allocation7 + $0x430] sm:$0xff]
          %v8635 = vld [vmem:[#allocation7 + $0x438] sm:$0xff]
          %v8636 = vld [vmem:[#allocation7 + $0x440] sm:$0xff]
          %v8637 = vld [vmem:[#allocation7 + $0x448] sm:$0xff]
          %v8638 = vld [vmem:[#allocation7 + $0x450] sm:$0xff]
          %v8639 = vld [vmem:[#allocation7 + $0x458] sm:$0xff]
          %v8640 = vld [vmem:[#allocation7 + $0x460] sm:$0xff]
          %v8641 = vld [vmem:[#allocation7 + $0x468] sm:$0xff]
          %v8642 = vld [vmem:[#allocation7 + $0x470] sm:$0xff]
          %v8643 = vld [vmem:[#allocation7 + $0x478] sm:$0xff]
          %v8644 = vld [vmem:[#allocation7 + $0x480] sm:$0xff]
          %v8645 = vld [vmem:[#allocation7 + $0x488] sm:$0xff]
          %v8646 = vld [vmem:[#allocation7 + $0x490] sm:$0xff]
          %v8647 = vld [vmem:[#allocation7 + $0x498] sm:$0xff]
          %v8648 = vld [vmem:[#allocation7 + $0x4a0] sm:$0xff]
          %v8649 = vld [vmem:[#allocation7 + $0x4a8] sm:$0xff]
          %v8650 = vld [vmem:[#allocation7 + $0x4b0] sm:$0xff]
          %v8651 = vld [vmem:[#allocation7 + $0x4b8] sm:$0xff]
          %v8652 = vld [vmem:[#allocation7 + $0x4c0] sm:$0xff]
          %v8653 = vld [vmem:[#allocation7 + $0x4c8] sm:$0xff]
          %v8654 = vld [vmem:[#allocation7 + $0x4d0] sm:$0xff]
          %v8655 = vld [vmem:[#allocation7 + $0x4d8] sm:$0xff]
          %v8656 = vld [vmem:[#allocation7 + $0x4e0] sm:$0xff]
          %v8657 = vld [vmem:[#allocation7 + $0x4e8] sm:$0xff]
          %v8658 = vld [vmem:[#allocation7 + $0x4f0] sm:$0xff]
          %v8659 = vld [vmem:[#allocation7 + $0x4f8] sm:$0xff]
          %v8660 = vld [vmem:[#allocation7 + $0x500] sm:$0xff]
          %v8661 = vld [vmem:[#allocation7 + $0x508] sm:$0xff]
          %v8662 = vld [vmem:[#allocation7 + $0x510] sm:$0xff]
          %v8663 = vld [vmem:[#allocation7 + $0x518] sm:$0xff]
          %v8664 = vld [vmem:[#allocation7 + $0x520] sm:$0xff]
          %v8665 = vld [vmem:[#allocation7 + $0x528] sm:$0xff]
          %v8666 = vld [vmem:[#allocation7 + $0x530] sm:$0xff]
          %v8667 = vld [vmem:[#allocation7 + $0x538] sm:$0xff]
          %v8668 = vld [vmem:[#allocation7 + $0x540] sm:$0xff]
          %v8669 = vld [vmem:[#allocation7 + $0x548] sm:$0xff]
          %v8670 = vld [vmem:[#allocation7 + $0x550] sm:$0xff]
          %v8671 = vld [vmem:[#allocation7 + $0x558] sm:$0xff]
          %v8672 = vld [vmem:[#allocation7 + $0x560] sm:$0xff]
          %v8673 = vld [vmem:[#allocation7 + $0x568] sm:$0xff]
          %v8674 = vld [vmem:[#allocation7 + $0x570] sm:$0xff]
          %v8675 = vld [vmem:[#allocation7 + $0x578] sm:$0xff]
          %v8676 = vld [vmem:[#allocation7 + $0x580] sm:$0xff]
          %v8677 = vld [vmem:[#allocation7 + $0x588] sm:$0xff]
          %v8678 = vld [vmem:[#allocation7 + $0x590] sm:$0xff]
          %v8679 = vld [vmem:[#allocation7 + $0x598] sm:$0xff]
          %v8680 = vld [vmem:[#allocation7 + $0x5a0] sm:$0xff]
          %v8681 = vld [vmem:[#allocation7 + $0x5a8] sm:$0xff]
          %v8682 = vld [vmem:[#allocation7 + $0x5b0] sm:$0xff]
          %v8683 = vld [vmem:[#allocation7 + $0x5b8] sm:$0xff]
          %v8684 = vld [vmem:[#allocation7 + $0x5c0] sm:$0xff]
          %v8685 = vld [vmem:[#allocation7 + $0x5c8] sm:$0xff]
          %v8686 = vld [vmem:[#allocation7 + $0x5d0] sm:$0xff]
          %v8687 = vld [vmem:[#allocation7 + $0x5d8] sm:$0xff]
          %v8688 = vld [vmem:[#allocation7 + $0x5e0] sm:$0xff]
          %v8689 = vld [vmem:[#allocation7 + $0x5e8] sm:$0xff]
          %v8690 = vld [vmem:[#allocation7 + $0x5f0] sm:$0xff]
          %v8691 = vld [vmem:[#allocation7 + $0x5f8] sm:$0xff]
          %v8692 = vld [vmem:[#allocation7 + $0x600] sm:$0xff]
          %v8693 = vld [vmem:[#allocation7 + $0x608] sm:$0xff]
          %v8694 = vld [vmem:[#allocation7 + $0x610] sm:$0xff]
          %v8695 = vld [vmem:[#allocation7 + $0x618] sm:$0xff]
          %v8696 = vld [vmem:[#allocation7 + $0x620] sm:$0xff]
          %v8697 = vld [vmem:[#allocation7 + $0x628] sm:$0xff]
          %v8698 = vld [vmem:[#allocation7 + $0x630] sm:$0xff]
          %v8699 = vld [vmem:[#allocation7 + $0x638] sm:$0xff]
          %v8700 = vld [vmem:[#allocation7 + $0x640] sm:$0xff]
          %v8701 = vld [vmem:[#allocation7 + $0x648] sm:$0xff]
          %v8702 = vld [vmem:[#allocation7 + $0x650] sm:$0xff]
          %v8703 = vld [vmem:[#allocation7 + $0x658] sm:$0xff]
          %v8704 = vld [vmem:[#allocation7 + $0x660] sm:$0xff]
          %v8705 = vld [vmem:[#allocation7 + $0x668] sm:$0xff]
          %v8706 = vld [vmem:[#allocation7 + $0x670] sm:$0xff]
          %v8707 = vld [vmem:[#allocation7 + $0x678] sm:$0xff]
          %v8708 = vld [vmem:[#allocation7 + $0x680] sm:$0xff]
          %v8709 = vld [vmem:[#allocation7 + $0x688] sm:$0xff]
          %v8710 = vld [vmem:[#allocation7 + $0x690] sm:$0xff]
          %v8711 = vld [vmem:[#allocation7 + $0x698] sm:$0xff]
          %v8712 = vld [vmem:[#allocation7 + $0x6a0] sm:$0xff]
          %v8713 = vld [vmem:[#allocation7 + $0x6a8] sm:$0xff]
          %v8714 = vld [vmem:[#allocation7 + $0x6b0] sm:$0xff]
          %v8715 = vld [vmem:[#allocation7 + $0x6b8] sm:$0xff]
          %v8716 = vld [vmem:[#allocation7 + $0x6c0] sm:$0xff]
          %v8717 = vld [vmem:[#allocation7 + $0x6c8] sm:$0xff]
          %v8718 = vld [vmem:[#allocation7 + $0x6d0] sm:$0xff]
          %v8719 = vld [vmem:[#allocation7 + $0x6d8] sm:$0xff]
          %v8720 = vld [vmem:[#allocation7 + $0x6e0] sm:$0xff]
          %v8721 = vld [vmem:[#allocation7 + $0x6e8] sm:$0xff]
          %v8722 = vld [vmem:[#allocation7 + $0x6f0] sm:$0xff]
          %v8723 = vld [vmem:[#allocation7 + $0x6f8] sm:$0xff]
          %v8724 = vld [vmem:[#allocation7 + $0x700] sm:$0xff]
          %v8725 = vld [vmem:[#allocation7 + $0x708] sm:$0xff]
          %v8726 = vld [vmem:[#allocation7 + $0x710] sm:$0xff]
          %v8727 = vld [vmem:[#allocation7 + $0x718] sm:$0xff]
          %v8728 = vld [vmem:[#allocation7 + $0x720] sm:$0xff]
          %v8729 = vld [vmem:[#allocation7 + $0x728] sm:$0xff]
          %v8730 = vld [vmem:[#allocation7 + $0x730] sm:$0xff]
          %v8731 = vld [vmem:[#allocation7 + $0x738] sm:$0xff]
          %v8732 = vld [vmem:[#allocation7 + $0x740] sm:$0xff]
          %v8733 = vld [vmem:[#allocation7 + $0x748] sm:$0xff]
          %v8734 = vld [vmem:[#allocation7 + $0x750] sm:$0xff]
          %v8735 = vld [vmem:[#allocation7 + $0x758] sm:$0xff]
          %v8736 = vld [vmem:[#allocation7 + $0x760] sm:$0xff]
          %v8737 = vld [vmem:[#allocation7 + $0x768] sm:$0xff]
          %v8738 = vld [vmem:[#allocation7 + $0x770] sm:$0xff]
          %v8739 = vld [vmem:[#allocation7 + $0x778] sm:$0xff]
          %v8740 = vld [vmem:[#allocation7 + $0x780] sm:$0xff]
          %v8741 = vld [vmem:[#allocation7 + $0x788] sm:$0xff]
          %v8742 = vld [vmem:[#allocation7 + $0x790] sm:$0xff]
          %v8743 = vld [vmem:[#allocation7 + $0x798] sm:$0xff]
          %v8744 = vld [vmem:[#allocation7 + $0x7a0] sm:$0xff]
          %v8745 = vld [vmem:[#allocation7 + $0x7a8] sm:$0xff]
          %v8746 = vld [vmem:[#allocation7 + $0x7b0] sm:$0xff]
          %v8747 = vld [vmem:[#allocation7 + $0x7b8] sm:$0xff]
          %v8748 = vld [vmem:[#allocation7 + $0x7c0] sm:$0xff]
          %v8749 = vld [vmem:[#allocation7 + $0x7c8] sm:$0xff]
          %v8750 = vld [vmem:[#allocation7 + $0x7d0] sm:$0xff]
          %v8751 = vld [vmem:[#allocation7 + $0x7d8] sm:$0xff]
          %v8752 = vld [vmem:[#allocation7 + $0x7e0] sm:$0xff]
          %v8753 = vld [vmem:[#allocation7 + $0x7e8] sm:$0xff]
          %v8754 = vld [vmem:[#allocation7 + $0x7f0] sm:$0xff]
          %v8755 = vld [vmem:[#allocation7 + $0x7f8] sm:$0xff]
          %v8756 = vld [vmem:[#allocation8] sm:$0xf]
          %v8758 = vperm.slane %v8756, 0
          %v8759 = vperm.slane %v8756, 1
          %v8760 = vperm.slane %v8756, 2
          %v8761 = vperm.slane %v8756, 3
          %8767 = vst [vmem:[#allocation1] ss:$4 sm:$0xff] %v8499
          %v8768 = vld.sshfl [vmem:[#allocation1] sm:$0xff pattern:$0x73625140]
          %v8769 = vld.sshfl [vmem:[#allocation1 + $0x8] sm:$0xff pattern:$0x73625140]
          %v8770 = vld.sshfl [vmem:[#allocation1 + $0x10] sm:$0xff pattern:$0x73625140]
          %v8771 = vld.sshfl [vmem:[#allocation1 + $0x18] sm:$0xff pattern:$0x73625140]
          %8776 = vmatpush.msra.mxu0 %v8560
          %8777 = vmatpush.msra.mxu0 %v8556
          %8778 = vmatpush.msra.mxu0 %v8552
          %8779 = vmatpush.msra.mxu0 %v8548
          %8780 = vmatpush.msra.mxu0 %v8544
          %8781 = vmatpush.msra.mxu0 %v8540
          %8782 = vmatpush.msra.mxu0 %v8536
          %8783 = vmatpush.msra.mxu0 %v8532
          %8784 = vmatpush.msra.mxu0 %v8528
          %8785 = vmatpush.msra.mxu0 %v8524
          %8786 = vmatpush.msra.mxu0 %v8520
          %8787 = vmatpush.msra.mxu0 %v8516
          %8788 = vmatpush.msra.mxu0 %v8512
          %8789 = vmatpush.msra.mxu0 %v8508
          %8790 = vmatpush.msra.mxu0 %v8504
          %8791 = vmatpush.msra.mxu0 %v8500
          %8792 = vmatmul.f32.gmra.mxu0 %v8768
          %v8793 = vpop.f32.mrf.mxu0
          %v8794 = vadd.f32 %v8758, %v8793
          %8795 = vdwg.mxu0
          %8796 = vmatpush.msra.mxu0 %v8624
          %8797 = vmatpush.msra.mxu0 %v8620
          %8798 = vmatpush.msra.mxu0 %v8616
          %8799 = vmatpush.msra.mxu0 %v8612
          %8800 = vmatpush.msra.mxu0 %v8608
          %8801 = vmatpush.msra.mxu0 %v8604
          %8802 = vmatpush.msra.mxu0 %v8600
          %8803 = vmatpush.msra.mxu0 %v8596
          %8804 = vmatpush.msra.mxu0 %v8592
          %8805 = vmatpush.msra.mxu0 %v8588
          %8806 = vmatpush.msra.mxu0 %v8584
          %8807 = vmatpush.msra.mxu0 %v8580
          %8808 = vmatpush.msra.mxu0 %v8576
          %8809 = vmatpush.msra.mxu0 %v8572
          %8810 = vmatpush.msra.mxu0 %v8568
          %8811 = vmatpush.msra.mxu0 %v8564
          %8812 = vmatmul.f32.gmra.mxu0 %v8769
          %v8813 = vpop.f32.mrf.mxu0
          %v8814 = vadd.f32 %v8794, %v8813
          %8815 = vdwg.mxu0
          %8816 = vmatpush.msra.mxu0 %v8688
          %8817 = vmatpush.msra.mxu0 %v8684
          %8818 = vmatpush.msra.mxu0 %v8680
          %8819 = vmatpush.msra.mxu0 %v8676
          %8820 = vmatpush.msra.mxu0 %v8672
          %8821 = vmatpush.msra.mxu0 %v8668
          %8822 = vmatpush.msra.mxu0 %v8664
          %8823 = vmatpush.msra.mxu0 %v8660
          %8824 = vmatpush.msra.mxu0 %v8656
          %8825 = vmatpush.msra.mxu0 %v8652
          %8826 = vmatpush.msra.mxu0 %v8648
          %8827 = vmatpush.msra.mxu0 %v8644
          %8828 = vmatpush.msra.mxu0 %v8640
          %8829 = vmatpush.msra.mxu0 %v8636
          %8830 = vmatpush.msra.mxu0 %v8632
          %8831 = vmatpush.msra.mxu0 %v8628
          %8832 = vmatmul.f32.gmra.mxu0 %v8770
          %v8833 = vpop.f32.mrf.mxu0
          %v8834 = vadd.f32 %v8814, %v8833
          %8835 = vdwg.mxu0
          %8836 = vmatpush.msra.mxu0 %v8752
          %8837 = vmatpush.msra.mxu0 %v8748
          %8838 = vmatpush.msra.mxu0 %v8744
          %8839 = vmatpush.msra.mxu0 %v8740
          %8840 = vmatpush.msra.mxu0 %v8736
          %8841 = vmatpush.msra.mxu0 %v8732
          %8842 = vmatpush.msra.mxu0 %v8728
          %8843 = vmatpush.msra.mxu0 %v8724
          %8844 = vmatpush.msra.mxu0 %v8720
          %8845 = vmatpush.msra.mxu0 %v8716
          %8846 = vmatpush.msra.mxu0 %v8712
          %8847 = vmatpush.msra.mxu0 %v8708
          %8848 = vmatpush.msra.mxu0 %v8704
          %8849 = vmatpush.msra.mxu0 %v8700
          %8850 = vmatpush.msra.mxu0 %v8696
          %8851 = vmatpush.msra.mxu0 %v8692
          %8852 = vmatmul.f32.gmra.mxu0 %v8771
          %v8853 = vpop.f32.mrf.mxu0
          %v8854 = vadd.f32 %v8834, %v8853
          %8855 = vdwg.mxu0
          %8856 = vmatpush.msra.mxu0 %v8561
          %8857 = vmatpush.msra.mxu0 %v8557
          %8858 = vmatpush.msra.mxu0 %v8553
          %8859 = vmatpush.msra.mxu0 %v8549
          %8860 = vmatpush.msra.mxu0 %v8545
          %8861 = vmatpush.msra.mxu0 %v8541
          %8862 = vmatpush.msra.mxu0 %v8537
          %8863 = vmatpush.msra.mxu0 %v8533
          %8864 = vmatpush.msra.mxu0 %v8529
          %8865 = vmatpush.msra.mxu0 %v8525
          %8866 = vmatpush.msra.mxu0 %v8521
          %8867 = vmatpush.msra.mxu0 %v8517
          %8868 = vmatpush.msra.mxu0 %v8513
          %8869 = vmatpush.msra.mxu0 %v8509
          %8870 = vmatpush.msra.mxu0 %v8505
          %8871 = vmatpush.msra.mxu0 %v8501
          %8872 = vmatmul.f32.gmra.mxu0 %v8768
          %v8873 = vpop.f32.mrf.mxu0
          %v8874 = vadd.f32 %v8759, %v8873
          %8875 = vdwg.mxu0
          %8876 = vmatpush.msra.mxu0 %v8625
          %8877 = vmatpush.msra.mxu0 %v8621
          %8878 = vmatpush.msra.mxu0 %v8617
          %8879 = vmatpush.msra.mxu0 %v8613
          %8880 = vmatpush.msra.mxu0 %v8609
          %8881 = vmatpush.msra.mxu0 %v8605
          %8882 = vmatpush.msra.mxu0 %v8601
          %8883 = vmatpush.msra.mxu0 %v8597
          %8884 = vmatpush.msra.mxu0 %v8593
          %8885 = vmatpush.msra.mxu0 %v8589
          %8886 = vmatpush.msra.mxu0 %v8585
          %8887 = vmatpush.msra.mxu0 %v8581
          %8888 = vmatpush.msra.mxu0 %v8577
          %8889 = vmatpush.msra.mxu0 %v8573
          %8890 = vmatpush.msra.mxu0 %v8569
          %8891 = vmatpush.msra.mxu0 %v8565
          %8892 = vmatmul.f32.gmra.mxu0 %v8769
          %v8893 = vpop.f32.mrf.mxu0
          %v8894 = vadd.f32 %v8874, %v8893
          %8895 = vdwg.mxu0
          %8896 = vmatpush.msra.mxu0 %v8689
          %8897 = vmatpush.msra.mxu0 %v8685
          %8898 = vmatpush.msra.mxu0 %v8681
          %8899 = vmatpush.msra.mxu0 %v8677
          %8900 = vmatpush.msra.mxu0 %v8673
          %8901 = vmatpush.msra.mxu0 %v8669
          %8902 = vmatpush.msra.mxu0 %v8665
          %8903 = vmatpush.msra.mxu0 %v8661
          %8904 = vmatpush.msra.mxu0 %v8657
          %8905 = vmatpush.msra.mxu0 %v8653
          %8906 = vmatpush.msra.mxu0 %v8649
          %8907 = vmatpush.msra.mxu0 %v8645
          %8908 = vmatpush.msra.mxu0 %v8641
          %8909 = vmatpush.msra.mxu0 %v8637
          %8910 = vmatpush.msra.mxu0 %v8633
          %8911 = vmatpush.msra.mxu0 %v8629
          %8912 = vmatmul.f32.gmra.mxu0 %v8770
          %v8913 = vpop.f32.mrf.mxu0
          %v8914 = vadd.f32 %v8894, %v8913
          %8915 = vdwg.mxu0
          %8916 = vmatpush.msra.mxu0 %v8753
          %8917 = vmatpush.msra.mxu0 %v8749
          %8918 = vmatpush.msra.mxu0 %v8745
          %8919 = vmatpush.msra.mxu0 %v8741
          %8920 = vmatpush.msra.mxu0 %v8737
          %8921 = vmatpush.msra.mxu0 %v8733
          %8922 = vmatpush.msra.mxu0 %v8729
          %8923 = vmatpush.msra.mxu0 %v8725
          %8924 = vmatpush.msra.mxu0 %v8721
          %8925 = vmatpush.msra.mxu0 %v8717
          %8926 = vmatpush.msra.mxu0 %v8713
          %8927 = vmatpush.msra.mxu0 %v8709
          %8928 = vmatpush.msra.mxu0 %v8705
          %8929 = vmatpush.msra.mxu0 %v8701
          %8930 = vmatpush.msra.mxu0 %v8697
          %8931 = vmatpush.msra.mxu0 %v8693
          %8932 = vmatmul.f32.gmra.mxu0 %v8771
          %v8933 = vpop.f32.mrf.mxu0
          %v8934 = vadd.f32 %v8914, %v8933
          %8935 = vdwg.mxu0
          %8936 = vmatpush.msra.mxu0 %v8562
          %8937 = vmatpush.msra.mxu0 %v8558
          %8938 = vmatpush.msra.mxu0 %v8554
          %8939 = vmatpush.msra.mxu0 %v8550
          %8940 = vmatpush.msra.mxu0 %v8546
          %8941 = vmatpush.msra.mxu0 %v8542
          %8942 = vmatpush.msra.mxu0 %v8538
          %8943 = vmatpush.msra.mxu0 %v8534
          %8944 = vmatpush.msra.mxu0 %v8530
          %8945 = vmatpush.msra.mxu0 %v8526
          %8946 = vmatpush.msra.mxu0 %v8522
          %8947 = vmatpush.msra.mxu0 %v8518
          %8948 = vmatpush.msra.mxu0 %v8514
          %8949 = vmatpush.msra.mxu0 %v8510
          %8950 = vmatpush.msra.mxu0 %v8506
          %8951 = vmatpush.msra.mxu0 %v8502
          %8952 = vmatmul.f32.gmra.mxu0 %v8768
          %v8953 = vpop.f32.mrf.mxu0
          %v8954 = vadd.f32 %v8760, %v8953
          %8955 = vdwg.mxu0
          %8956 = vmatpush.msra.mxu0 %v8626
          %8957 = vmatpush.msra.mxu0 %v8622
          %8958 = vmatpush.msra.mxu0 %v8618
          %8959 = vmatpush.msra.mxu0 %v8614
          %8960 = vmatpush.msra.mxu0 %v8610
          %8961 = vmatpush.msra.mxu0 %v8606
          %8962 = vmatpush.msra.mxu0 %v8602
          %8963 = vmatpush.msra.mxu0 %v8598
          %8964 = vmatpush.msra.mxu0 %v8594
          %8965 = vmatpush.msra.mxu0 %v8590
          %8966 = vmatpush.msra.mxu0 %v8586
          %8967 = vmatpush.msra.mxu0 %v8582
          %8968 = vmatpush.msra.mxu0 %v8578
          %8969 = vmatpush.msra.mxu0 %v8574
          %8970 = vmatpush.msra.mxu0 %v8570
          %8971 = vmatpush.msra.mxu0 %v8566
          %8972 = vmatmul.f32.gmra.mxu0 %v8769
          %v8973 = vpop.f32.mrf.mxu0
          %v8974 = vadd.f32 %v8954, %v8973
          %8975 = vdwg.mxu0
          %8976 = vmatpush.msra.mxu0 %v8690
          %8977 = vmatpush.msra.mxu0 %v8686
          %8978 = vmatpush.msra.mxu0 %v8682
          %8979 = vmatpush.msra.mxu0 %v8678
          %8980 = vmatpush.msra.mxu0 %v8674
          %8981 = vmatpush.msra.mxu0 %v8670
          %8982 = vmatpush.msra.mxu0 %v8666
          %8983 = vmatpush.msra.mxu0 %v8662
          %8984 = vmatpush.msra.mxu0 %v8658
          %8985 = vmatpush.msra.mxu0 %v8654
          %8986 = vmatpush.msra.mxu0 %v8650
          %8987 = vmatpush.msra.mxu0 %v8646
          %8988 = vmatpush.msra.mxu0 %v8642
          %8989 = vmatpush.msra.mxu0 %v8638
          %8990 = vmatpush.msra.mxu0 %v8634
          %8991 = vmatpush.msra.mxu0 %v8630
          %8992 = vmatmul.f32.gmra.mxu0 %v8770
          %v8993 = vpop.f32.mrf.mxu0
          %v8994 = vadd.f32 %v8974, %v8993
          %8995 = vdwg.mxu0
          %8996 = vmatpush.msra.mxu0 %v8754
          %8997 = vmatpush.msra.mxu0 %v8750
          %8998 = vmatpush.msra.mxu0 %v8746
          %8999 = vmatpush.msra.mxu0 %v8742
          %9000 = vmatpush.msra.mxu0 %v8738
          %9001 = vmatpush.msra.mxu0 %v8734
          %9002 = vmatpush.msra.mxu0 %v8730
          %9003 = vmatpush.msra.mxu0 %v8726
          %9004 = vmatpush.msra.mxu0 %v8722
          %9005 = vmatpush.msra.mxu0 %v8718
          %9006 = vmatpush.msra.mxu0 %v8714
          %9007 = vmatpush.msra.mxu0 %v8710
          %9008 = vmatpush.msra.mxu0 %v8706
          %9009 = vmatpush.msra.mxu0 %v8702
          %9010 = vmatpush.msra.mxu0 %v8698
          %9011 = vmatpush.msra.mxu0 %v8694
          %9012 = vmatmul.f32.gmra.mxu0 %v8771
          %v9013 = vpop.f32.mrf.mxu0
          %v9014 = vadd.f32 %v8994, %v9013
          %9015 = vdwg.mxu0
          %9016 = vmatpush.msra.mxu0 %v8563
          %9017 = vmatpush.msra.mxu0 %v8559
          %9018 = vmatpush.msra.mxu0 %v8555
          %9019 = vmatpush.msra.mxu0 %v8551
          %9020 = vmatpush.msra.mxu0 %v8547
          %9021 = vmatpush.msra.mxu0 %v8543
          %9022 = vmatpush.msra.mxu0 %v8539
          %9023 = vmatpush.msra.mxu0 %v8535
          %9024 = vmatpush.msra.mxu0 %v8531
          %9025 = vmatpush.msra.mxu0 %v8527
          %9026 = vmatpush.msra.mxu0 %v8523
          %9027 = vmatpush.msra.mxu0 %v8519
          %9028 = vmatpush.msra.mxu0 %v8515
          %9029 = vmatpush.msra.mxu0 %v8511
          %9030 = vmatpush.msra.mxu0 %v8507
          %9031 = vmatpush.msra.mxu0 %v8503
          %9032 = vmatmul.f32.gmra.mxu0 %v8768
          %v9033 = vpop.f32.mrf.mxu0
          %v9034 = vadd.f32 %v8761, %v9033
          %9035 = vdwg.mxu0
          %9036 = vmatpush.msra.mxu0 %v8627
          %9037 = vmatpush.msra.mxu0 %v8623
          %9038 = vmatpush.msra.mxu0 %v8619
          %9039 = vmatpush.msra.mxu0 %v8615
          %9040 = vmatpush.msra.mxu0 %v8611
          %9041 = vmatpush.msra.mxu0 %v8607
          %9042 = vmatpush.msra.mxu0 %v8603
          %9043 = vmatpush.msra.mxu0 %v8599
          %9044 = vmatpush.msra.mxu0 %v8595
          %9045 = vmatpush.msra.mxu0 %v8591
          %9046 = vmatpush.msra.mxu0 %v8587
          %9047 = vmatpush.msra.mxu0 %v8583
          %9048 = vmatpush.msra.mxu0 %v8579
          %9049 = vmatpush.msra.mxu0 %v8575
          %9050 = vmatpush.msra.mxu0 %v8571
          %9051 = vmatpush.msra.mxu0 %v8567
          %9052 = vmatmul.f32.gmra.mxu0 %v8769
          %v9053 = vpop.f32.mrf.mxu0
          %v9054 = vadd.f32 %v9034, %v9053
          %9055 = vdwg.mxu0
          %9056 = vmatpush.msra.mxu0 %v8691
          %9057 = vmatpush.msra.mxu0 %v8687
          %9058 = vmatpush.msra.mxu0 %v8683
          %9059 = vmatpush.msra.mxu0 %v8679
          %9060 = vmatpush.msra.mxu0 %v8675
          %9061 = vmatpush.msra.mxu0 %v8671
          %9062 = vmatpush.msra.mxu0 %v8667
          %9063 = vmatpush.msra.mxu0 %v8663
          %9064 = vmatpush.msra.mxu0 %v8659
          %9065 = vmatpush.msra.mxu0 %v8655
          %9066 = vmatpush.msra.mxu0 %v8651
          %9067 = vmatpush.msra.mxu0 %v8647
          %9068 = vmatpush.msra.mxu0 %v8643
          %9069 = vmatpush.msra.mxu0 %v8639
          %9070 = vmatpush.msra.mxu0 %v8635
          %9071 = vmatpush.msra.mxu0 %v8631
          %9072 = vmatmul.f32.gmra.mxu0 %v8770
          %v9073 = vpop.f32.mrf.mxu0
          %v9074 = vadd.f32 %v9054, %v9073
          %9075 = vdwg.mxu0
          %9076 = vmatpush.msra.mxu0 %v8755
          %9077 = vmatpush.msra.mxu0 %v8751
          %9078 = vmatpush.msra.mxu0 %v8747
          %9079 = vmatpush.msra.mxu0 %v8743
          %9080 = vmatpush.msra.mxu0 %v8739
          %9081 = vmatpush.msra.mxu0 %v8735
          %9082 = vmatpush.msra.mxu0 %v8731
          %9083 = vmatpush.msra.mxu0 %v8727
          %9084 = vmatpush.msra.mxu0 %v8723
          %9085 = vmatpush.msra.mxu0 %v8719
          %9086 = vmatpush.msra.mxu0 %v8715
          %9087 = vmatpush.msra.mxu0 %v8711
          %9088 = vmatpush.msra.mxu0 %v8707
          %9089 = vmatpush.msra.mxu0 %v8703
          %9090 = vmatpush.msra.mxu0 %v8699
          %9091 = vmatpush.msra.mxu0 %v8695
          %9092 = vmatmul.f32.gmra.mxu0 %v8771
          %v9093 = vpop.f32.mrf.mxu0
          %v9094 = vadd.f32 %v9074, %v9093
          %9095 = vdwg.mxu0
          %v9096 = vsub.f32 %v9014, 5.0
          %v9097 = vsub.f32 %v9094, 5.0
          %vm9098 = vcmp.gt.f32.partialorder %v9096, 20.0
          %vm9099 = vcmp.gt.f32.partialorder %v9097, 20.0
          %v9100 = vmin.f32 %v9096, 20.0
          %v9101 = vmin.f32 %v9097, 20.0
          %v9102 = vmul.f32 %v9100, 1.442695
          %v9103 = vpow.pop %v9102
          %v9104 = vmul.f32 %v9101, 1.442695
          %v9105 = vpow.pop %v9104
          %v9106 = vadd.f32 %v9103, 1.0
          %v9107 = vadd.f32 %v9105, 1.0
          %v9108 = vlog2.pop %v9106
          %v9109 = vmul.f32 %v9108, 0.6931472
          %v9110 = vlog2.pop %v9107
          %v9111 = vmul.f32 %v9110, 0.6931472
          %v9112 = vsel %vm9098, %v9096, %v9109
          %v9113 = vsel %vm9099, %v9097, %v9111
          %v9116 = vrot.slane %v8934, 6
          %v9117 = vsel %vm8486, %v8854, %v9116
          %9119 = vst [vmem:[#allocation17] sm:$0xf] %v9117
          %v9122 = vrot.slane %v9113, 6
          %v9123 = vsel %vm8486, %v9112, %v9122
          %9125 = vst [vmem:[#allocation18] sm:$0xf] %v9123
          %v9126 = vld [vmem:[#allocation10] sm:$0xf]
          %9128 = vst [vmem:[#allocation1] ss:$4 sm:$0xff] %v9126
          %v9129 = vld.sshfl [vmem:[#allocation1] sm:$0xff pattern:$0x73625140]
          %v9130 = vld.sshfl [vmem:[#allocation1 + $0x8] sm:$0xff pattern:$0x73625140]
          %v9133 = vmul.f32 %v9112, %v9129
          %v9134 = vmul.f32 %v9113, %v9130
          %v9135 = vadd.f32 %v8854, %v9133
          %v9136 = vadd.f32 %v8934, %v9134
          %v9137 = vld [vmem:[#allocation11] sm:$0xff]
          %v9138 = vld [vmem:[#allocation11 + $0x8] sm:$0xff]
          %v9139 = vld [vmem:[#allocation11 + $0x10] sm:$0xff]
          %v9140 = vld [vmem:[#allocation11 + $0x18] sm:$0xff]
          %v9141 = vld [vmem:[#allocation11 + $0x20] sm:$0xff]
          %v9142 = vld [vmem:[#allocation11 + $0x28] sm:$0xff]
          %v9143 = vld [vmem:[#allocation11 + $0x30] sm:$0xff]
          %v9144 = vld [vmem:[#allocation11 + $0x38] sm:$0xff]
          %v9145 = vld [vmem:[#allocation11 + $0x40] sm:$0xff]
          %v9146 = vld [vmem:[#allocation11 + $0x48] sm:$0xff]
          %v9147 = vld [vmem:[#allocation11 + $0x50] sm:$0xff]
          %v9148 = vld [vmem:[#allocation11 + $0x58] sm:$0xff]
          %v9149 = vld [vmem:[#allocation11 + $0x60] sm:$0xff]
          %v9150 = vld [vmem:[#allocation11 + $0x68] sm:$0xff]
          %v9151 = vld [vmem:[#allocation11 + $0x70] sm:$0xff]
          %v9152 = vld [vmem:[#allocation11 + $0x78] sm:$0xff]
          %v9153 = vld [vmem:[#allocation11 + $0x80] sm:$0xff]
          %v9154 = vld [vmem:[#allocation11 + $0x88] sm:$0xff]
          %v9155 = vld [vmem:[#allocation11 + $0x90] sm:$0xff]
          %v9156 = vld [vmem:[#allocation11 + $0x98] sm:$0xff]
          %v9157 = vld [vmem:[#allocation11 + $0xa0] sm:$0xff]
          %v9158 = vld [vmem:[#allocation11 + $0xa8] sm:$0xff]
          %v9159 = vld [vmem:[#allocation11 + $0xb0] sm:$0xff]
          %v9160 = vld [vmem:[#allocation11 + $0xb8] sm:$0xff]
          %v9161 = vld [vmem:[#allocation11 + $0xc0] sm:$0xff]
          %v9162 = vld [vmem:[#allocation11 + $0xc8] sm:$0xff]
          %v9163 = vld [vmem:[#allocation11 + $0xd0] sm:$0xff]
          %v9164 = vld [vmem:[#allocation11 + $0xd8] sm:$0xff]
          %v9165 = vld [vmem:[#allocation11 + $0xe0] sm:$0xff]
          %v9166 = vld [vmem:[#allocation11 + $0xe8] sm:$0xff]
          %v9167 = vld [vmem:[#allocation11 + $0xf0] sm:$0xff]
          %v9168 = vld [vmem:[#allocation11 + $0xf8] sm:$0xff]
          %v9169 = vld [vmem:[#allocation11 + $0x100] sm:$0xff]
          %v9170 = vld [vmem:[#allocation11 + $0x108] sm:$0xff]
          %v9171 = vld [vmem:[#allocation11 + $0x110] sm:$0xff]
          %v9172 = vld [vmem:[#allocation11 + $0x118] sm:$0xff]
          %v9173 = vld [vmem:[#allocation11 + $0x120] sm:$0xff]
          %v9174 = vld [vmem:[#allocation11 + $0x128] sm:$0xff]
          %v9175 = vld [vmem:[#allocation11 + $0x130] sm:$0xff]
          %v9176 = vld [vmem:[#allocation11 + $0x138] sm:$0xff]
          %v9177 = vld [vmem:[#allocation11 + $0x140] sm:$0xff]
          %v9178 = vld [vmem:[#allocation11 + $0x148] sm:$0xff]
          %v9179 = vld [vmem:[#allocation11 + $0x150] sm:$0xff]
          %v9180 = vld [vmem:[#allocation11 + $0x158] sm:$0xff]
          %v9181 = vld [vmem:[#allocation11 + $0x160] sm:$0xff]
          %v9182 = vld [vmem:[#allocation11 + $0x168] sm:$0xff]
          %v9183 = vld [vmem:[#allocation11 + $0x170] sm:$0xff]
          %v9184 = vld [vmem:[#allocation11 + $0x178] sm:$0xff]
          %v9185 = vld [vmem:[#allocation11 + $0x180] sm:$0xff]
          %v9186 = vld [vmem:[#allocation11 + $0x188] sm:$0xff]
          %v9187 = vld [vmem:[#allocation11 + $0x190] sm:$0xff]
          %v9188 = vld [vmem:[#allocation11 + $0x198] sm:$0xff]
          %v9189 = vld [vmem:[#allocation11 + $0x1a0] sm:$0xff]
          %v9190 = vld [vmem:[#allocation11 + $0x1a8] sm:$0xff]
          %v9191 = vld [vmem:[#allocation11 + $0x1b0] sm:$0xff]
          %v9192 = vld [vmem:[#allocation11 + $0x1b8] sm:$0xff]
          %v9193 = vld [vmem:[#allocation11 + $0x1c0] sm:$0xff]
          %v9194 = vld [vmem:[#allocation11 + $0x1c8] sm:$0xff]
          %v9195 = vld [vmem:[#allocation11 + $0x1d0] sm:$0xff]
          %v9196 = vld [vmem:[#allocation11 + $0x1d8] sm:$0xff]
          %v9197 = vld [vmem:[#allocation11 + $0x1e0] sm:$0xff]
          %v9198 = vld [vmem:[#allocation11 + $0x1e8] sm:$0xff]
          %v9199 = vld [vmem:[#allocation11 + $0x1f0] sm:$0xff]
          %v9200 = vld [vmem:[#allocation11 + $0x1f8] sm:$0xff]
          %v9201 = vld [vmem:[#allocation11 + $0x200] sm:$0xff]
          %v9202 = vld [vmem:[#allocation11 + $0x208] sm:$0xff]
          %v9203 = vld [vmem:[#allocation11 + $0x210] sm:$0xff]
          %v9204 = vld [vmem:[#allocation11 + $0x218] sm:$0xff]
          %v9205 = vld [vmem:[#allocation11 + $0x220] sm:$0xff]
          %v9206 = vld [vmem:[#allocation11 + $0x228] sm:$0xff]
          %v9207 = vld [vmem:[#allocation11 + $0x230] sm:$0xff]
          %v9208 = vld [vmem:[#allocation11 + $0x238] sm:$0xff]
          %v9209 = vld [vmem:[#allocation11 + $0x240] sm:$0xff]
          %v9210 = vld [vmem:[#allocation11 + $0x248] sm:$0xff]
          %v9211 = vld [vmem:[#allocation11 + $0x250] sm:$0xff]
          %v9212 = vld [vmem:[#allocation11 + $0x258] sm:$0xff]
          %v9213 = vld [vmem:[#allocation11 + $0x260] sm:$0xff]
          %v9214 = vld [vmem:[#allocation11 + $0x268] sm:$0xff]
          %v9215 = vld [vmem:[#allocation11 + $0x270] sm:$0xff]
          %v9216 = vld [vmem:[#allocation11 + $0x278] sm:$0xff]
          %v9217 = vld [vmem:[#allocation11 + $0x280] sm:$0xff]
          %v9218 = vld [vmem:[#allocation11 + $0x288] sm:$0xff]
          %v9219 = vld [vmem:[#allocation11 + $0x290] sm:$0xff]
          %v9220 = vld [vmem:[#allocation11 + $0x298] sm:$0xff]
          %v9221 = vld [vmem:[#allocation11 + $0x2a0] sm:$0xff]
          %v9222 = vld [vmem:[#allocation11 + $0x2a8] sm:$0xff]
          %v9223 = vld [vmem:[#allocation11 + $0x2b0] sm:$0xff]
          %v9224 = vld [vmem:[#allocation11 + $0x2b8] sm:$0xff]
          %v9225 = vld [vmem:[#allocation11 + $0x2c0] sm:$0xff]
          %v9226 = vld [vmem:[#allocation11 + $0x2c8] sm:$0xff]
          %v9227 = vld [vmem:[#allocation11 + $0x2d0] sm:$0xff]
          %v9228 = vld [vmem:[#allocation11 + $0x2d8] sm:$0xff]
          %v9229 = vld [vmem:[#allocation11 + $0x2e0] sm:$0xff]
          %v9230 = vld [vmem:[#allocation11 + $0x2e8] sm:$0xff]
          %v9231 = vld [vmem:[#allocation11 + $0x2f0] sm:$0xff]
          %v9232 = vld [vmem:[#allocation11 + $0x2f8] sm:$0xff]
          %v9233 = vld [vmem:[#allocation11 + $0x300] sm:$0xff]
          %v9234 = vld [vmem:[#allocation11 + $0x308] sm:$0xff]
          %v9235 = vld [vmem:[#allocation11 + $0x310] sm:$0xff]
          %v9236 = vld [vmem:[#allocation11 + $0x318] sm:$0xff]
          %v9237 = vld [vmem:[#allocation11 + $0x320] sm:$0xff]
          %v9238 = vld [vmem:[#allocation11 + $0x328] sm:$0xff]
          %v9239 = vld [vmem:[#allocation11 + $0x330] sm:$0xff]
          %v9240 = vld [vmem:[#allocation11 + $0x338] sm:$0xff]
          %v9241 = vld [vmem:[#allocation11 + $0x340] sm:$0xff]
          %v9242 = vld [vmem:[#allocation11 + $0x348] sm:$0xff]
          %v9243 = vld [vmem:[#allocation11 + $0x350] sm:$0xff]
          %v9244 = vld [vmem:[#allocation11 + $0x358] sm:$0xff]
          %v9245 = vld [vmem:[#allocation11 + $0x360] sm:$0xff]
          %v9246 = vld [vmem:[#allocation11 + $0x368] sm:$0xff]
          %v9247 = vld [vmem:[#allocation11 + $0x370] sm:$0xff]
          %v9248 = vld [vmem:[#allocation11 + $0x378] sm:$0xff]
          %v9249 = vld [vmem:[#allocation11 + $0x380] sm:$0xff]
          %v9250 = vld [vmem:[#allocation11 + $0x388] sm:$0xff]
          %v9251 = vld [vmem:[#allocation11 + $0x390] sm:$0xff]
          %v9252 = vld [vmem:[#allocation11 + $0x398] sm:$0xff]
          %v9253 = vld [vmem:[#allocation11 + $0x3a0] sm:$0xff]
          %v9254 = vld [vmem:[#allocation11 + $0x3a8] sm:$0xff]
          %v9255 = vld [vmem:[#allocation11 + $0x3b0] sm:$0xff]
          %v9256 = vld [vmem:[#allocation11 + $0x3b8] sm:$0xff]
          %v9257 = vld [vmem:[#allocation11 + $0x3c0] sm:$0xff]
          %v9258 = vld [vmem:[#allocation11 + $0x3c8] sm:$0xff]
          %v9259 = vld [vmem:[#allocation11 + $0x3d0] sm:$0xff]
          %v9260 = vld [vmem:[#allocation11 + $0x3d8] sm:$0xff]
          %v9261 = vld [vmem:[#allocation11 + $0x3e0] sm:$0xff]
          %v9262 = vld [vmem:[#allocation11 + $0x3e8] sm:$0xff]
          %v9263 = vld [vmem:[#allocation11 + $0x3f0] sm:$0xff]
          %v9264 = vld [vmem:[#allocation11 + $0x3f8] sm:$0xff]
          %v9265 = vld [vmem:[#allocation11 + $0x400] sm:$0xff]
          %v9266 = vld [vmem:[#allocation11 + $0x408] sm:$0xff]
          %v9267 = vld [vmem:[#allocation11 + $0x410] sm:$0xff]
          %v9268 = vld [vmem:[#allocation11 + $0x418] sm:$0xff]
          %v9269 = vld [vmem:[#allocation11 + $0x420] sm:$0xff]
          %v9270 = vld [vmem:[#allocation11 + $0x428] sm:$0xff]
          %v9271 = vld [vmem:[#allocation11 + $0x430] sm:$0xff]
          %v9272 = vld [vmem:[#allocation11 + $0x438] sm:$0xff]
          %v9273 = vld [vmem:[#allocation11 + $0x440] sm:$0xff]
          %v9274 = vld [vmem:[#allocation11 + $0x448] sm:$0xff]
          %v9275 = vld [vmem:[#allocation11 + $0x450] sm:$0xff]
          %v9276 = vld [vmem:[#allocation11 + $0x458] sm:$0xff]
          %v9277 = vld [vmem:[#allocation11 + $0x460] sm:$0xff]
          %v9278 = vld [vmem:[#allocation11 + $0x468] sm:$0xff]
          %v9279 = vld [vmem:[#allocation11 + $0x470] sm:$0xff]
          %v9280 = vld [vmem:[#allocation11 + $0x478] sm:$0xff]
          %v9281 = vld [vmem:[#allocation11 + $0x480] sm:$0xff]
          %v9282 = vld [vmem:[#allocation11 + $0x488] sm:$0xff]
          %v9283 = vld [vmem:[#allocation11 + $0x490] sm:$0xff]
          %v9284 = vld [vmem:[#allocation11 + $0x498] sm:$0xff]
          %v9285 = vld [vmem:[#allocation11 + $0x4a0] sm:$0xff]
          %v9286 = vld [vmem:[#allocation11 + $0x4a8] sm:$0xff]
          %v9287 = vld [vmem:[#allocation11 + $0x4b0] sm:$0xff]
          %v9288 = vld [vmem:[#allocation11 + $0x4b8] sm:$0xff]
          %v9289 = vld [vmem:[#allocation11 + $0x4c0] sm:$0xff]
          %v9290 = vld [vmem:[#allocation11 + $0x4c8] sm:$0xff]
          %v9291 = vld [vmem:[#allocation11 + $0x4d0] sm:$0xff]
          %v9292 = vld [vmem:[#allocation11 + $0x4d8] sm:$0xff]
          %v9293 = vld [vmem:[#allocation11 + $0x4e0] sm:$0xff]
          %v9294 = vld [vmem:[#allocation11 + $0x4e8] sm:$0xff]
          %v9295 = vld [vmem:[#allocation11 + $0x4f0] sm:$0xff]
          %v9296 = vld [vmem:[#allocation11 + $0x4f8] sm:$0xff]
          %v9297 = vld [vmem:[#allocation11 + $0x500] sm:$0xff]
          %v9298 = vld [vmem:[#allocation11 + $0x508] sm:$0xff]
          %v9299 = vld [vmem:[#allocation11 + $0x510] sm:$0xff]
          %v9300 = vld [vmem:[#allocation11 + $0x518] sm:$0xff]
          %v9301 = vld [vmem:[#allocation11 + $0x520] sm:$0xff]
          %v9302 = vld [vmem:[#allocation11 + $0x528] sm:$0xff]
          %v9303 = vld [vmem:[#allocation11 + $0x530] sm:$0xff]
          %v9304 = vld [vmem:[#allocation11 + $0x538] sm:$0xff]
          %v9305 = vld [vmem:[#allocation11 + $0x540] sm:$0xff]
          %v9306 = vld [vmem:[#allocation11 + $0x548] sm:$0xff]
          %v9307 = vld [vmem:[#allocation11 + $0x550] sm:$0xff]
          %v9308 = vld [vmem:[#allocation11 + $0x558] sm:$0xff]
          %v9309 = vld [vmem:[#allocation11 + $0x560] sm:$0xff]
          %v9310 = vld [vmem:[#allocation11 + $0x568] sm:$0xff]
          %v9311 = vld [vmem:[#allocation11 + $0x570] sm:$0xff]
          %v9312 = vld [vmem:[#allocation11 + $0x578] sm:$0xff]
          %v9313 = vld [vmem:[#allocation11 + $0x580] sm:$0xff]
          %v9314 = vld [vmem:[#allocation11 + $0x588] sm:$0xff]
          %v9315 = vld [vmem:[#allocation11 + $0x590] sm:$0xff]
          %v9316 = vld [vmem:[#allocation11 + $0x598] sm:$0xff]
          %v9317 = vld [vmem:[#allocation11 + $0x5a0] sm:$0xff]
          %v9318 = vld [vmem:[#allocation11 + $0x5a8] sm:$0xff]
          %v9319 = vld [vmem:[#allocation11 + $0x5b0] sm:$0xff]
          %v9320 = vld [vmem:[#allocation11 + $0x5b8] sm:$0xff]
          %v9321 = vld [vmem:[#allocation11 + $0x5c0] sm:$0xff]
          %v9322 = vld [vmem:[#allocation11 + $0x5c8] sm:$0xff]
          %v9323 = vld [vmem:[#allocation11 + $0x5d0] sm:$0xff]
          %v9324 = vld [vmem:[#allocation11 + $0x5d8] sm:$0xff]
          %v9325 = vld [vmem:[#allocation11 + $0x5e0] sm:$0xff]
          %v9326 = vld [vmem:[#allocation11 + $0x5e8] sm:$0xff]
          %v9327 = vld [vmem:[#allocation11 + $0x5f0] sm:$0xff]
          %v9328 = vld [vmem:[#allocation11 + $0x5f8] sm:$0xff]
          %v9329 = vld [vmem:[#allocation11 + $0x600] sm:$0xff]
          %v9330 = vld [vmem:[#allocation11 + $0x608] sm:$0xff]
          %v9331 = vld [vmem:[#allocation11 + $0x610] sm:$0xff]
          %v9332 = vld [vmem:[#allocation11 + $0x618] sm:$0xff]
          %v9333 = vld [vmem:[#allocation11 + $0x620] sm:$0xff]
          %v9334 = vld [vmem:[#allocation11 + $0x628] sm:$0xff]
          %v9335 = vld [vmem:[#allocation11 + $0x630] sm:$0xff]
          %v9336 = vld [vmem:[#allocation11 + $0x638] sm:$0xff]
          %v9337 = vld [vmem:[#allocation11 + $0x640] sm:$0xff]
          %v9338 = vld [vmem:[#allocation11 + $0x648] sm:$0xff]
          %v9339 = vld [vmem:[#allocation11 + $0x650] sm:$0xff]
          %v9340 = vld [vmem:[#allocation11 + $0x658] sm:$0xff]
          %v9341 = vld [vmem:[#allocation11 + $0x660] sm:$0xff]
          %v9342 = vld [vmem:[#allocation11 + $0x668] sm:$0xff]
          %v9343 = vld [vmem:[#allocation11 + $0x670] sm:$0xff]
          %v9344 = vld [vmem:[#allocation11 + $0x678] sm:$0xff]
          %v9345 = vld [vmem:[#allocation11 + $0x680] sm:$0xff]
          %v9346 = vld [vmem:[#allocation11 + $0x688] sm:$0xff]
          %v9347 = vld [vmem:[#allocation11 + $0x690] sm:$0xff]
          %v9348 = vld [vmem:[#allocation11 + $0x698] sm:$0xff]
          %v9349 = vld [vmem:[#allocation11 + $0x6a0] sm:$0xff]
          %v9350 = vld [vmem:[#allocation11 + $0x6a8] sm:$0xff]
          %v9351 = vld [vmem:[#allocation11 + $0x6b0] sm:$0xff]
          %v9352 = vld [vmem:[#allocation11 + $0x6b8] sm:$0xff]
          %v9353 = vld [vmem:[#allocation11 + $0x6c0] sm:$0xff]
          %v9354 = vld [vmem:[#allocation11 + $0x6c8] sm:$0xff]
          %v9355 = vld [vmem:[#allocation11 + $0x6d0] sm:$0xff]
          %v9356 = vld [vmem:[#allocation11 + $0x6d8] sm:$0xff]
          %v9357 = vld [vmem:[#allocation11 + $0x6e0] sm:$0xff]
          %v9358 = vld [vmem:[#allocation11 + $0x6e8] sm:$0xff]
          %v9359 = vld [vmem:[#allocation11 + $0x6f0] sm:$0xff]
          %v9360 = vld [vmem:[#allocation11 + $0x6f8] sm:$0xff]
          %v9361 = vld [vmem:[#allocation11 + $0x700] sm:$0xff]
          %v9362 = vld [vmem:[#allocation11 + $0x708] sm:$0xff]
          %v9363 = vld [vmem:[#allocation11 + $0x710] sm:$0xff]
          %v9364 = vld [vmem:[#allocation11 + $0x718] sm:$0xff]
          %v9365 = vld [vmem:[#allocation11 + $0x720] sm:$0xff]
          %v9366 = vld [vmem:[#allocation11 + $0x728] sm:$0xff]
          %v9367 = vld [vmem:[#allocation11 + $0x730] sm:$0xff]
          %v9368 = vld [vmem:[#allocation11 + $0x738] sm:$0xff]
          %v9369 = vld [vmem:[#allocation11 + $0x740] sm:$0xff]
          %v9370 = vld [vmem:[#allocation11 + $0x748] sm:$0xff]
          %v9371 = vld [vmem:[#allocation11 + $0x750] sm:$0xff]
          %v9372 = vld [vmem:[#allocation11 + $0x758] sm:$0xff]
          %v9373 = vld [vmem:[#allocation11 + $0x760] sm:$0xff]
          %v9374 = vld [vmem:[#allocation11 + $0x768] sm:$0xff]
          %v9375 = vld [vmem:[#allocation11 + $0x770] sm:$0xff]
          %v9376 = vld [vmem:[#allocation11 + $0x778] sm:$0xff]
          %v9377 = vld [vmem:[#allocation11 + $0x780] sm:$0xff]
          %v9378 = vld [vmem:[#allocation11 + $0x788] sm:$0xff]
          %v9379 = vld [vmem:[#allocation11 + $0x790] sm:$0xff]
          %v9380 = vld [vmem:[#allocation11 + $0x798] sm:$0xff]
          %v9381 = vld [vmem:[#allocation11 + $0x7a0] sm:$0xff]
          %v9382 = vld [vmem:[#allocation11 + $0x7a8] sm:$0xff]
          %v9383 = vld [vmem:[#allocation11 + $0x7b0] sm:$0xff]
          %v9384 = vld [vmem:[#allocation11 + $0x7b8] sm:$0xff]
          %v9385 = vld [vmem:[#allocation11 + $0x7c0] sm:$0xff]
          %v9386 = vld [vmem:[#allocation11 + $0x7c8] sm:$0xff]
          %v9387 = vld [vmem:[#allocation11 + $0x7d0] sm:$0xff]
          %v9388 = vld [vmem:[#allocation11 + $0x7d8] sm:$0xff]
          %v9389 = vld [vmem:[#allocation11 + $0x7e0] sm:$0xff]
          %v9390 = vld [vmem:[#allocation11 + $0x7e8] sm:$0xff]
          %v9391 = vld [vmem:[#allocation11 + $0x7f0] sm:$0xff]
          %v9392 = vld [vmem:[#allocation11 + $0x7f8] sm:$0xff]
          %v9393 = vld [vmem:[#allocation13] sm:$0xff]
          %v9395 = vperm.slane %v9393, 0
          %v9396 = vperm.slane %v9393, 1
          %v9397 = vperm.slane %v9393, 2
          %v9398 = vperm.slane %v9393, 3
          %v9399 = vperm.slane %v9393, 4
          %v9400 = vperm.slane %v9393, 5
          %v9401 = vperm.slane %v9393, 6
          %v9402 = vperm.slane %v9393, 7
          %9411 = vmatpush.msra.mxu0 %v9257
          %9412 = vmatpush.msra.mxu0 %v9249
          %9413 = vmatpush.msra.mxu0 %v9241
          %9414 = vmatpush.msra.mxu0 %v9233
          %9415 = vmatpush.msra.mxu0 %v9225
          %9416 = vmatpush.msra.mxu0 %v9217
          %9417 = vmatpush.msra.mxu0 %v9209
          %9418 = vmatpush.msra.mxu0 %v9201
          %9419 = vmatpush.msra.mxu0 %v9193
          %9420 = vmatpush.msra.mxu0 %v9185
          %9421 = vmatpush.msra.mxu0 %v9177
          %9422 = vmatpush.msra.mxu0 %v9169
          %9423 = vmatpush.msra.mxu0 %v9161
          %9424 = vmatpush.msra.mxu0 %v9153
          %9425 = vmatpush.msra.mxu0 %v9145
          %9426 = vmatpush.msra.mxu0 %v9137
          %9427 = vmatmul.f32.gmra.mxu0 %v9135
          %v9428 = vpop.f32.mrf.mxu0
          %v9429 = vadd.f32 %v9395, %v9428
          %9430 = vdwg.mxu0
          %9431 = vmatpush.msra.mxu0 %v9385
          %9432 = vmatpush.msra.mxu0 %v9377
          %9433 = vmatpush.msra.mxu0 %v9369
          %9434 = vmatpush.msra.mxu0 %v9361
          %9435 = vmatpush.msra.mxu0 %v9353
          %9436 = vmatpush.msra.mxu0 %v9345
          %9437 = vmatpush.msra.mxu0 %v9337
          %9438 = vmatpush.msra.mxu0 %v9329
          %9439 = vmatpush.msra.mxu0 %v9321
          %9440 = vmatpush.msra.mxu0 %v9313
          %9441 = vmatpush.msra.mxu0 %v9305
          %9442 = vmatpush.msra.mxu0 %v9297
          %9443 = vmatpush.msra.mxu0 %v9289
          %9444 = vmatpush.msra.mxu0 %v9281
          %9445 = vmatpush.msra.mxu0 %v9273
          %9446 = vmatpush.msra.mxu0 %v9265
          %9447 = vmatmul.f32.gmra.mxu0 %v9136
          %v9448 = vpop.f32.mrf.mxu0
          %v9449 = vadd.f32 %v9429, %v9448
          %9450 = vdwg.mxu0
          %9451 = vmatpush.msra.mxu0 %v9258
          %9452 = vmatpush.msra.mxu0 %v9250
          %9453 = vmatpush.msra.mxu0 %v9242
          %9454 = vmatpush.msra.mxu0 %v9234
          %9455 = vmatpush.msra.mxu0 %v9226
          %9456 = vmatpush.msra.mxu0 %v9218
          %9457 = vmatpush.msra.mxu0 %v9210
          %9458 = vmatpush.msra.mxu0 %v9202
          %9459 = vmatpush.msra.mxu0 %v9194
          %9460 = vmatpush.msra.mxu0 %v9186
          %9461 = vmatpush.msra.mxu0 %v9178
          %9462 = vmatpush.msra.mxu0 %v9170
          %9463 = vmatpush.msra.mxu0 %v9162
          %9464 = vmatpush.msra.mxu0 %v9154
          %9465 = vmatpush.msra.mxu0 %v9146
          %9466 = vmatpush.msra.mxu0 %v9138
          %9467 = vmatmul.f32.gmra.mxu0 %v9135
          %v9468 = vpop.f32.mrf.mxu0
          %v9469 = vadd.f32 %v9396, %v9468
          %9470 = vdwg.mxu0
          %9471 = vmatpush.msra.mxu0 %v9386
          %9472 = vmatpush.msra.mxu0 %v9378
          %9473 = vmatpush.msra.mxu0 %v9370
          %9474 = vmatpush.msra.mxu0 %v9362
          %9475 = vmatpush.msra.mxu0 %v9354
          %9476 = vmatpush.msra.mxu0 %v9346
          %9477 = vmatpush.msra.mxu0 %v9338
          %9478 = vmatpush.msra.mxu0 %v9330
          %9479 = vmatpush.msra.mxu0 %v9322
          %9480 = vmatpush.msra.mxu0 %v9314
          %9481 = vmatpush.msra.mxu0 %v9306
          %9482 = vmatpush.msra.mxu0 %v9298
          %9483 = vmatpush.msra.mxu0 %v9290
          %9484 = vmatpush.msra.mxu0 %v9282
          %9485 = vmatpush.msra.mxu0 %v9274
          %9486 = vmatpush.msra.mxu0 %v9266
          %9487 = vmatmul.f32.gmra.mxu0 %v9136
          %v9488 = vpop.f32.mrf.mxu0
          %v9489 = vadd.f32 %v9469, %v9488
          %9490 = vdwg.mxu0
          %9491 = vmatpush.msra.mxu0 %v9259
          %9492 = vmatpush.msra.mxu0 %v9251
          %9493 = vmatpush.msra.mxu0 %v9243
          %9494 = vmatpush.msra.mxu0 %v9235
          %9495 = vmatpush.msra.mxu0 %v9227
          %9496 = vmatpush.msra.mxu0 %v9219
          %9497 = vmatpush.msra.mxu0 %v9211
          %9498 = vmatpush.msra.mxu0 %v9203
          %9499 = vmatpush.msra.mxu0 %v9195
          %9500 = vmatpush.msra.mxu0 %v9187
          %9501 = vmatpush.msra.mxu0 %v9179
          %9502 = vmatpush.msra.mxu0 %v9171
          %9503 = vmatpush.msra.mxu0 %v9163
          %9504 = vmatpush.msra.mxu0 %v9155
          %9505 = vmatpush.msra.mxu0 %v9147
          %9506 = vmatpush.msra.mxu0 %v9139
          %9507 = vmatmul.f32.gmra.mxu0 %v9135
          %v9508 = vpop.f32.mrf.mxu0
          %v9509 = vadd.f32 %v9397, %v9508
          %9510 = vdwg.mxu0
          %9511 = vmatpush.msra.mxu0 %v9387
          %9512 = vmatpush.msra.mxu0 %v9379
          %9513 = vmatpush.msra.mxu0 %v9371
          %9514 = vmatpush.msra.mxu0 %v9363
          %9515 = vmatpush.msra.mxu0 %v9355
          %9516 = vmatpush.msra.mxu0 %v9347
          %9517 = vmatpush.msra.mxu0 %v9339
          %9518 = vmatpush.msra.mxu0 %v9331
          %9519 = vmatpush.msra.mxu0 %v9323
          %9520 = vmatpush.msra.mxu0 %v9315
          %9521 = vmatpush.msra.mxu0 %v9307
          %9522 = vmatpush.msra.mxu0 %v9299
          %9523 = vmatpush.msra.mxu0 %v9291
          %9524 = vmatpush.msra.mxu0 %v9283
          %9525 = vmatpush.msra.mxu0 %v9275
          %9526 = vmatpush.msra.mxu0 %v9267
          %9527 = vmatmul.f32.gmra.mxu0 %v9136
          %v9528 = vpop.f32.mrf.mxu0
          %v9529 = vadd.f32 %v9509, %v9528
          %9530 = vdwg.mxu0
          %9531 = vmatpush.msra.mxu0 %v9260
          %9532 = vmatpush.msra.mxu0 %v9252
          %9533 = vmatpush.msra.mxu0 %v9244
          %9534 = vmatpush.msra.mxu0 %v9236
          %9535 = vmatpush.msra.mxu0 %v9228
          %9536 = vmatpush.msra.mxu0 %v9220
          %9537 = vmatpush.msra.mxu0 %v9212
          %9538 = vmatpush.msra.mxu0 %v9204
          %9539 = vmatpush.msra.mxu0 %v9196
          %9540 = vmatpush.msra.mxu0 %v9188
          %9541 = vmatpush.msra.mxu0 %v9180
          %9542 = vmatpush.msra.mxu0 %v9172
          %9543 = vmatpush.msra.mxu0 %v9164
          %9544 = vmatpush.msra.mxu0 %v9156
          %9545 = vmatpush.msra.mxu0 %v9148
          %9546 = vmatpush.msra.mxu0 %v9140
          %9547 = vmatmul.f32.gmra.mxu0 %v9135
          %v9548 = vpop.f32.mrf.mxu0
          %v9549 = vadd.f32 %v9398, %v9548
          %9550 = vdwg.mxu0
          %9551 = vmatpush.msra.mxu0 %v9388
          %9552 = vmatpush.msra.mxu0 %v9380
          %9553 = vmatpush.msra.mxu0 %v9372
          %9554 = vmatpush.msra.mxu0 %v9364
          %9555 = vmatpush.msra.mxu0 %v9356
          %9556 = vmatpush.msra.mxu0 %v9348
          %9557 = vmatpush.msra.mxu0 %v9340
          %9558 = vmatpush.msra.mxu0 %v9332
          %9559 = vmatpush.msra.mxu0 %v9324
          %9560 = vmatpush.msra.mxu0 %v9316
          %9561 = vmatpush.msra.mxu0 %v9308
          %9562 = vmatpush.msra.mxu0 %v9300
          %9563 = vmatpush.msra.mxu0 %v9292
          %9564 = vmatpush.msra.mxu0 %v9284
          %9565 = vmatpush.msra.mxu0 %v9276
          %9566 = vmatpush.msra.mxu0 %v9268
          %9567 = vmatmul.f32.gmra.mxu0 %v9136
          %v9568 = vpop.f32.mrf.mxu0
          %v9569 = vadd.f32 %v9549, %v9568
          %9570 = vdwg.mxu0
          %9571 = vmatpush.msra.mxu0 %v9261
          %9572 = vmatpush.msra.mxu0 %v9253
          %9573 = vmatpush.msra.mxu0 %v9245
          %9574 = vmatpush.msra.mxu0 %v9237
          %9575 = vmatpush.msra.mxu0 %v9229
          %9576 = vmatpush.msra.mxu0 %v9221
          %9577 = vmatpush.msra.mxu0 %v9213
          %9578 = vmatpush.msra.mxu0 %v9205
          %9579 = vmatpush.msra.mxu0 %v9197
          %9580 = vmatpush.msra.mxu0 %v9189
          %9581 = vmatpush.msra.mxu0 %v9181
          %9582 = vmatpush.msra.mxu0 %v9173
          %9583 = vmatpush.msra.mxu0 %v9165
          %9584 = vmatpush.msra.mxu0 %v9157
          %9585 = vmatpush.msra.mxu0 %v9149
          %9586 = vmatpush.msra.mxu0 %v9141
          %9587 = vmatmul.f32.gmra.mxu0 %v9135
          %v9588 = vpop.f32.mrf.mxu0
          %v9589 = vadd.f32 %v9399, %v9588
          %9590 = vdwg.mxu0
          %9591 = vmatpush.msra.mxu0 %v9389
          %9592 = vmatpush.msra.mxu0 %v9381
          %9593 = vmatpush.msra.mxu0 %v9373
          %9594 = vmatpush.msra.mxu0 %v9365
          %9595 = vmatpush.msra.mxu0 %v9357
          %9596 = vmatpush.msra.mxu0 %v9349
          %9597 = vmatpush.msra.mxu0 %v9341
          %9598 = vmatpush.msra.mxu0 %v9333
          %9599 = vmatpush.msra.mxu0 %v9325
          %9600 = vmatpush.msra.mxu0 %v9317
          %9601 = vmatpush.msra.mxu0 %v9309
          %9602 = vmatpush.msra.mxu0 %v9301
          %9603 = vmatpush.msra.mxu0 %v9293
          %9604 = vmatpush.msra.mxu0 %v9285
          %9605 = vmatpush.msra.mxu0 %v9277
          %9606 = vmatpush.msra.mxu0 %v9269
          %9607 = vmatmul.f32.gmra.mxu0 %v9136
          %v9608 = vpop.f32.mrf.mxu0
          %v9609 = vadd.f32 %v9589, %v9608
          %9610 = vdwg.mxu0
          %9611 = vmatpush.msra.mxu0 %v9262
          %9612 = vmatpush.msra.mxu0 %v9254
          %9613 = vmatpush.msra.mxu0 %v9246
          %9614 = vmatpush.msra.mxu0 %v9238
          %9615 = vmatpush.msra.mxu0 %v9230
          %9616 = vmatpush.msra.mxu0 %v9222
          %9617 = vmatpush.msra.mxu0 %v9214
          %9618 = vmatpush.msra.mxu0 %v9206
          %9619 = vmatpush.msra.mxu0 %v9198
          %9620 = vmatpush.msra.mxu0 %v9190
          %9621 = vmatpush.msra.mxu0 %v9182
          %9622 = vmatpush.msra.mxu0 %v9174
          %9623 = vmatpush.msra.mxu0 %v9166
          %9624 = vmatpush.msra.mxu0 %v9158
          %9625 = vmatpush.msra.mxu0 %v9150
          %9626 = vmatpush.msra.mxu0 %v9142
          %9627 = vmatmul.f32.gmra.mxu0 %v9135
          %v9628 = vpop.f32.mrf.mxu0
          %v9629 = vadd.f32 %v9400, %v9628
          %9630 = vdwg.mxu0
          %9631 = vmatpush.msra.mxu0 %v9390
          %9632 = vmatpush.msra.mxu0 %v9382
          %9633 = vmatpush.msra.mxu0 %v9374
          %9634 = vmatpush.msra.mxu0 %v9366
          %9635 = vmatpush.msra.mxu0 %v9358
          %9636 = vmatpush.msra.mxu0 %v9350
          %9637 = vmatpush.msra.mxu0 %v9342
          %9638 = vmatpush.msra.mxu0 %v9334
          %9639 = vmatpush.msra.mxu0 %v9326
          %9640 = vmatpush.msra.mxu0 %v9318
          %9641 = vmatpush.msra.mxu0 %v9310
          %9642 = vmatpush.msra.mxu0 %v9302
          %9643 = vmatpush.msra.mxu0 %v9294
          %9644 = vmatpush.msra.mxu0 %v9286
          %9645 = vmatpush.msra.mxu0 %v9278
          %9646 = vmatpush.msra.mxu0 %v9270
          %9647 = vmatmul.f32.gmra.mxu0 %v9136
          %v9648 = vpop.f32.mrf.mxu0
          %v9649 = vadd.f32 %v9629, %v9648
          %9650 = vdwg.mxu0
          %9651 = vmatpush.msra.mxu0 %v9263
          %9652 = vmatpush.msra.mxu0 %v9255
          %9653 = vmatpush.msra.mxu0 %v9247
          %9654 = vmatpush.msra.mxu0 %v9239
          %9655 = vmatpush.msra.mxu0 %v9231
          %9656 = vmatpush.msra.mxu0 %v9223
          %9657 = vmatpush.msra.mxu0 %v9215
          %9658 = vmatpush.msra.mxu0 %v9207
          %9659 = vmatpush.msra.mxu0 %v9199
          %9660 = vmatpush.msra.mxu0 %v9191
          %9661 = vmatpush.msra.mxu0 %v9183
          %9662 = vmatpush.msra.mxu0 %v9175
          %9663 = vmatpush.msra.mxu0 %v9167
          %9664 = vmatpush.msra.mxu0 %v9159
          %9665 = vmatpush.msra.mxu0 %v9151
          %9666 = vmatpush.msra.mxu0 %v9143
          %9667 = vmatmul.f32.gmra.mxu0 %v9135
          %v9668 = vpop.f32.mrf.mxu0
          %v9669 = vadd.f32 %v9401, %v9668
          %9670 = vdwg.mxu0
          %9671 = vmatpush.msra.mxu0 %v9391
          %9672 = vmatpush.msra.mxu0 %v9383
          %9673 = vmatpush.msra.mxu0 %v9375
          %9674 = vmatpush.msra.mxu0 %v9367
          %9675 = vmatpush.msra.mxu0 %v9359
          %9676 = vmatpush.msra.mxu0 %v9351
          %9677 = vmatpush.msra.mxu0 %v9343
          %9678 = vmatpush.msra.mxu0 %v9335
          %9679 = vmatpush.msra.mxu0 %v9327
          %9680 = vmatpush.msra.mxu0 %v9319
          %9681 = vmatpush.msra.mxu0 %v9311
          %9682 = vmatpush.msra.mxu0 %v9303
          %9683 = vmatpush.msra.mxu0 %v9295
          %9684 = vmatpush.msra.mxu0 %v9287
          %9685 = vmatpush.msra.mxu0 %v9279
          %9686 = vmatpush.msra.mxu0 %v9271
          %9687 = vmatmul.f32.gmra.mxu0 %v9136
          %v9688 = vpop.f32.mrf.mxu0
          %v9689 = vadd.f32 %v9669, %v9688
          %9690 = vdwg.mxu0
          %9691 = vmatpush.msra.mxu0 %v9264
          %9692 = vmatpush.msra.mxu0 %v9256
          %9693 = vmatpush.msra.mxu0 %v9248
          %9694 = vmatpush.msra.mxu0 %v9240
          %9695 = vmatpush.msra.mxu0 %v9232
          %9696 = vmatpush.msra.mxu0 %v9224
          %9697 = vmatpush.msra.mxu0 %v9216
          %9698 = vmatpush.msra.mxu0 %v9208
          %9699 = vmatpush.msra.mxu0 %v9200
          %9700 = vmatpush.msra.mxu0 %v9192
          %9701 = vmatpush.msra.mxu0 %v9184
          %9702 = vmatpush.msra.mxu0 %v9176
          %9703 = vmatpush.msra.mxu0 %v9168
          %9704 = vmatpush.msra.mxu0 %v9160
          %9705 = vmatpush.msra.mxu0 %v9152
          %9706 = vmatpush.msra.mxu0 %v9144
          %9707 = vmatmul.f32.gmra.mxu0 %v9135
          %v9708 = vpop.f32.mrf.mxu0
          %v9709 = vadd.f32 %v9402, %v9708
          %9710 = vdwg.mxu0
          %9711 = vmatpush.msra.mxu0 %v9392
          %9712 = vmatpush.msra.mxu0 %v9384
          %9713 = vmatpush.msra.mxu0 %v9376
          %9714 = vmatpush.msra.mxu0 %v9368
          %9715 = vmatpush.msra.mxu0 %v9360
          %9716 = vmatpush.msra.mxu0 %v9352
          %9717 = vmatpush.msra.mxu0 %v9344
          %9718 = vmatpush.msra.mxu0 %v9336
          %9719 = vmatpush.msra.mxu0 %v9328
          %9720 = vmatpush.msra.mxu0 %v9320
          %9721 = vmatpush.msra.mxu0 %v9312
          %9722 = vmatpush.msra.mxu0 %v9304
          %9723 = vmatpush.msra.mxu0 %v9296
          %9724 = vmatpush.msra.mxu0 %v9288
          %9725 = vmatpush.msra.mxu0 %v9280
          %9726 = vmatpush.msra.mxu0 %v9272
          %9727 = vmatmul.f32.gmra.mxu0 %v9136
          %v9728 = vpop.f32.mrf.mxu0
          %v9729 = vadd.f32 %v9709, %v9728
          %9730 = vdwg.mxu0
          %v9731 = vsel %vm8486, %v9449, -inf
          %v9732 = vsel %vm8486, %v9489, -inf
          %v9733 = vsel %vm8486, %v9529, -inf
          %v9734 = vsel %vm8486, %v9569, -inf
          %v9735 = vsel %vm8486, %v9609, -inf
          %v9736 = vmax.f32 %v9731, %v9735
          %v9737 = vsel %vm8486, %v9649, -inf
          %v9738 = vmax.f32 %v9732, %v9737
          %v9739 = vsel %vm8486, %v9689, -inf
          %v9740 = vmax.f32 %v9733, %v9739
          %v9741 = vsel %vm8486, %v9729, -inf
          %v9742 = vmax.f32 %v9734, %v9741
          %v9743 = vmax.f32 %v9736, %v9738
          %v9744 = vmax.f32 %v9740, %v9742
          %v9745 = vmax.f32 %v9743, %v9744
          %9746 = vmax.xlane.f32.xlu0 %v9745
          %v9747 = vpop.xlane.xlu0 %9746
          %v9748 = vsub.f32 %v9449, %v9747
          %v9749 = vsub.f32 %v9489, %v9747
          %v9750 = vsub.f32 %v9529, %v9747
          %v9751 = vsub.f32 %v9569, %v9747
          %v9752 = vsub.f32 %v9609, %v9747
          %v9753 = vsub.f32 %v9649, %v9747
          %v9754 = vsub.f32 %v9689, %v9747
          %v9755 = vsub.f32 %v9729, %v9747
          %v9756 = vmul.f32 %v9748, 1.442695
          %v9757 = vpow.pop %v9756
          %v9758 = vmul.f32 %v9749, 1.442695
          %v9759 = vpow.pop %v9758
          %v9760 = vmul.f32 %v9750, 1.442695
          %v9761 = vpow.pop %v9760
          %v9762 = vmul.f32 %v9751, 1.442695
          %v9763 = vpow.pop %v9762
          %v9764 = vmul.f32 %v9752, 1.442695
          %v9765 = vpow.pop %v9764
          %v9766 = vmul.f32 %v9753, 1.442695
          %v9767 = vpow.pop %v9766
          %v9768 = vmul.f32 %v9754, 1.442695
          %v9769 = vpow.pop %v9768
          %v9770 = vmul.f32 %v9755, 1.442695
          %v9771 = vpow.pop %v9770
          %v9772 = vsel %vm8486, %v9757, 0.0
          %v9773 = vsel %vm8486, %v9759, 0.0
          %v9774 = vadd.f32 %v9772, %v9773
          %v9775 = vsel %vm8486, %v9761, 0.0
          %v9776 = vadd.f32 %v9774, %v9775
          %v9777 = vsel %vm8486, %v9763, 0.0
          %v9778 = vadd.f32 %v9776, %v9777
          %v9779 = vsel %vm8486, %v9765, 0.0
          %v9780 = vadd.f32 %v9778, %v9779
          %v9781 = vsel %vm8486, %v9767, 0.0
          %v9782 = vadd.f32 %v9780, %v9781
          %v9783 = vsel %vm8486, %v9769, 0.0
          %v9784 = vadd.f32 %v9782, %v9783
          %v9785 = vsel %vm8486, %v9771, 0.0
          %v9786 = vadd.f32 %v9784, %v9785
          %9787 = vadd.xlane.f32.xlu0 %v9786
          %v9788 = vpop.xlane.xlu0 %9787
          %v9789 = vrcp.pop %v9788
          %v9790 = vmul.f32 %v9757, %v9789
          %v9791 = vmul.f32 %v9759, %v9789
          %v9792 = vmul.f32 %v9761, %v9789
          %v9793 = vmul.f32 %v9763, %v9789
          %v9794 = vmul.f32 %v9765, %v9789
          %v9795 = vmul.f32 %v9767, %v9789
          %v9796 = vmul.f32 %v9769, %v9789
          %v9797 = vmul.f32 %v9771, %v9789
          %v9806 = vrot.slane %v9791, 6
          %v9807 = vrot.slane %v9792, 4
          %v9808 = vrot.slane %v9793, 2
          %v9809 = vrot.slane %v9795, 6
          %v9810 = vrot.slane %v9796, 4
          %v9811 = vrot.slane %v9797, 2
          %v9812 = vsel %vm8486, %v9790, %v9806
          %v9813 = vsel %vm8488, %v9807, %v9808
          %v9814 = vsel %vm8490, %v9812, %v9813
          %v9815 = vsel %vm8486, %v9794, %v9809
          %v9816 = vsel %vm8488, %v9810, %v9811
          %v9817 = vsel %vm8490, %v9815, %v9816
          %9820 = vst [vmem:[#allocation15] sm:$0xff] %v9814
          %9821 = vst [vmem:[#allocation15 + $0x8] sm:$0xff] %v9817
          %v9822 = vlaneseq
          %v9823 = vand.u32 %v9822, 127
          %v9824 = vadd.s32 %v9823, 128
          %v9825 = vadd.s32 %v9823, 256
          %v9826 = vadd.s32 %v9823, 384
          %v9827 = vadd.s32 %v9823, 512
          %v9828 = vadd.s32 %v9823, 640
          %v9829 = vadd.s32 %v9823, 768
          %v9830 = vadd.s32 %v9823, 896
          %vm9831 = vcmp.eq.f32.partialorder %v9449, %v9747
          %vm9832 = vcmp.eq.f32.partialorder %v9489, %v9747
          %vm9833 = vcmp.eq.f32.partialorder %v9529, %v9747
          %vm9834 = vcmp.eq.f32.partialorder %v9569, %v9747
          %vm9835 = vcmp.eq.f32.partialorder %v9609, %v9747
          %vm9836 = vcmp.eq.f32.partialorder %v9649, %v9747
          %vm9837 = vcmp.eq.f32.partialorder %v9689, %v9747
          %vm9838 = vcmp.eq.f32.partialorder %v9729, %v9747
          %v9839 = vsel %vm9831, %v9823, 1024
          %v9840 = vsel %vm9832, %v9824, 1024
          %v9841 = vsel %vm9833, %v9825, 1024
          %v9842 = vsel %vm9834, %v9826, 1024
          %v9843 = vsel %vm9835, %v9827, 1024
          %v9844 = vsel %vm9836, %v9828, 1024
          %v9845 = vsel %vm9837, %v9829, 1024
          %v9846 = vsel %vm9838, %v9830, 1024
          %v9847 = vsel %vm8486, %v9839, 2147483647
          %v9848 = vsel %vm8486, %v9840, 2147483647
          %v9849 = vsel %vm8486, %v9841, 2147483647
          %v9850 = vsel %vm8486, %v9842, 2147483647
          %v9851 = vsel %vm8486, %v9843, 2147483647
          %vm9852 = vcmp.lt.s32.totalorder %v9847, %v9851
          %v9853 = vsel %vm9852, %v9847, %v9851
          %v9854 = vsel %vm8486, %v9844, 2147483647
          %vm9855 = vcmp.lt.s32.totalorder %v9848, %v9854
          %v9856 = vsel %vm9855, %v9848, %v9854
          %v9857 = vsel %vm8486, %v9845, 2147483647
          %vm9858 = vcmp.lt.s32.totalorder %v9849, %v9857
          %v9859 = vsel %vm9858, %v9849, %v9857
          %v9860 = vsel %vm8486, %v9846, 2147483647
          %vm9861 = vcmp.lt.s32.totalorder %v9850, %v9860
          %v9862 = vsel %vm9861, %v9850, %v9860
          %vm9863 = vcmp.lt.s32.totalorder %v9853, %v9856
          %v9864 = vsel %vm9863, %v9853, %v9856
          %vm9865 = vcmp.lt.s32.totalorder %v9859, %v9862
          %v9866 = vsel %vm9865, %v9859, %v9862
          %vm9867 = vcmp.lt.s32.totalorder %v9864, %v9866
          %v9868 = vsel %vm9867, %v9864, %v9866
          %v9869 = vand.u32 %v9868, 65535
          %v9870 = vshra.s32 %v9868, 16
          %v9871 = vcvt.s32.f32 %v9869
          %v9872 = vcvt.s32.f32 %v9870
          %9873 = vmin.xlane.f32.xlu0 %v9872
          %v9874 = vpop.xlane.xlu0 %9873
          %vm9875 = vcmp.eq.f32.partialorder %v9872, %v9874
          %v9876 = vsel %vm9875, %v9871, inf
          %9877 = vmin.xlane.f32.xlu0 %v9876
          %v9878 = vpop.xlane.xlu0 %9877
          %v9879 = vcvt.f32.s32 %v9878
          %v9880 = vcvt.f32.s32 %v9874
          %v9881 = vshll.u32 %v9880, 16
          %v9882 = vadd.s32 %v9881, %v9879
          %vm9883 = vcmask 1024
          %9884 = vst.msk [vmem:[%s12] sm:$0x3] %vm9883, %v9882
        $region88: #{ir50_head.1} parent=51 // pred_fallthru
          _
        // Predicated region
        $region89: #{ir50_head.1} parent=51 // pred_check
          %p9885 = pneg %p224
        $region90: #{ir50_head.1} parent=51 // pred_check_branch
          %9887 = sbr.rel (%p9885) target = $region92
        $region91: #{ir50_head.1} parent=51 // pred_region
          %9889 = vsyncadd [#allocation4], 0
          %s9891 = sshll.u32 [#allocation14], 4
          %s9892 = int_to_ptr.vmem [resolvable:$true] %s9891
          %s9893 = sshll.u32 %s8, 4
          %s9894 = int_to_ptr.hbm [resolvable:$true] %s9893
          %9896 = dma.vmem_to_hbm [thread:$0]  %s9892, 128, %s9894, [#allocation4]
        $region92: #{ir50_head.1} parent=51 // pred_fallthru
          _
        // Predicated region
        $region93: #{ir50_head.1} parent=51 // pred_check
          %p9897 = pneg %p245
        $region94: #{ir50_head.1} parent=51 // pred_check_branch
          %9899 = sbr.rel (%p9897) target = $region96
        $region95: #{ir50_head.1} parent=51 // pred_region
          %9901 = vsyncadd [#allocation16], 0
          %s9903 = sshll.u32 [#allocation15], 4
          %s9904 = int_to_ptr.vmem [resolvable:$true] %s9903
          %s9905 = sshll.u32 %s9, 4
          %s9906 = int_to_ptr.hbm [resolvable:$true] %s9905
          %9908 = dma.vmem_to_hbm [thread:$0]  %s9904, 256, %s9906, [#allocation16]
        $region96: #{ir50_head.1} parent=51 // pred_fallthru
          _
        // Predicated region
        $region97: #{ir50_head.1} parent=51 // pred_check
          %p9909 = pneg %p266
        $region98: #{ir50_head.1} parent=51 // pred_check_branch
          %9911 = sbr.rel (%p9909) target = $region100
        $region99: #{ir50_head.1} parent=51 // pred_region
          %9913 = vsyncadd [#allocation16], 0
          %s9915 = sshll.u32 [#allocation17], 4
          %s9916 = int_to_ptr.vmem [resolvable:$true] %s9915
          %s9917 = sshll.u32 %s10, 4
          %s9918 = int_to_ptr.hbm [resolvable:$true] %s9917
          %9920 = dma.vmem_to_hbm [thread:$0]  %s9916, 64, %s9918, [#allocation16]
        $region100: #{ir50_head.1} parent=51 // pred_fallthru
          _
        // Predicated region
        $region101: #{ir50_head.1} parent=51 // pred_check
          %p9921 = pneg %p287
        $region102: #{ir50_head.1} parent=51 // pred_check_branch
          %9923 = sbr.rel (%p9921) target = $region104
        $region103: #{ir50_head.1} parent=51 // pred_region
          %9925 = vsyncadd [#allocation19], 0
          %s9927 = sshll.u32 [#allocation18], 4
          %s9928 = int_to_ptr.vmem [resolvable:$true] %s9927
          %s9929 = sshll.u32 %s11, 4
          %s9930 = int_to_ptr.hbm [resolvable:$true] %s9929
          %9932 = dma.vmem_to_hbm [thread:$0]  %s9928, 64, %s9930, [#allocation19]
        $region104: #{ir50_head.1} parent=51 // pred_fallthru
          _
        // Predicated region
        $region105: #{ir50_head.1} parent=51 // pred_check
          %p9933 = pneg %p308
        $region106: #{ir50_head.1} parent=51 // pred_check_branch
          %9935 = sbr.rel (%p9933) target = $region108
        $region107: #{ir50_head.1} parent=51 // pred_region
          _
        $region108: #{ir50_head.1} parent=51 // pred_fallthru
          _
        // Predicated region
        $region109: #{ir50_head.1} parent=51 // pred_check
          %p9936 = pneg %p224
        $region110: #{ir50_head.1} parent=51 // pred_check_branch
          %9938 = sbr.rel (%p9936) target = $region112
        $region111: #{ir50_head.1} parent=51 // pred_region
          %9940 = dma.done [#allocation4], 128
        $region112: #{ir50_head.1} parent=51 // pred_fallthru
          _
        // Predicated region
        $region113: #{ir50_head.1} parent=51 // pred_check
          %p9941 = pneg %p245
        $region114: #{ir50_head.1} parent=51 // pred_check_branch
          %9943 = sbr.rel (%p9941) target = $region116
        $region115: #{ir50_head.1} parent=51 // pred_region
          %9945 = dma.done [#allocation16], 256
        $region116: #{ir50_head.1} parent=51 // pred_fallthru
          _
        // Predicated region
        $region117: #{ir50_head.1} parent=51 // pred_check
          %p9946 = pneg %p266
        $region118: #{ir50_head.1} parent=51 // pred_check_branch
          %9948 = sbr.rel (%p9946) target = $region120
        $region119: #{ir50_head.1} parent=51 // pred_region
          %9950 = dma.done [#allocation16], 64
        $region120: #{ir50_head.1} parent=51 // pred_fallthru
          _
        // Predicated region
        $region121: #{ir50_head.1} parent=51 // pred_check
          %p9951 = pneg %p287
        $region122: #{ir50_head.1} parent=51 // pred_check_branch
          %9953 = sbr.rel (%p9951) target = $region124
        $region123: #{ir50_head.1} parent=51 // pred_region
          %9955 = dma.done [#allocation19], 64
        $region124: #{ir50_head.1} parent=51 // pred_fallthru
          _
        // Predicated region
        $region125: #{ir50_head.1} parent=51 // pred_check
          %p9956 = pneg %p308
        $region126: #{ir50_head.1} parent=51 // pred_check_branch
          %9958 = sbr.rel (%p9956) target = $region128
        $region127: #{ir50_head.1} parent=51 // pred_region
          _
        $region128: #{ir50_head.1} parent=51 // pred_fallthru
          _
      $region52: #{ir50_head.1} parent=5 // pred_fallthru
        _
      %p9959 = scmp.le.s32.totalorder 2, %s28
      // Predicated region
      $region129: #{ir50_head.1} parent=5 // pred_check
        %p9960 = pneg %p9959
      $region130: #{ir50_head.1} parent=5 // pred_check_branch
        %9962 = sbr.rel (%p9960) target = $region132
      $region131: #{ir50_head.1} parent=5 // pred_region
        %s9963 = ssub.s32 %s28, 2
      $region132: #{ir50_head.1} parent=5 // pred_fallthru
        _
    $region6: #{ir50_head.1} parent=1 // loop_footer
      %s32 = sadd.s32 1, %s28
    $region7: #{ir50_head.1} parent=1 // loop_footer_branch
      %27 = sbr.rel target = $region3
    $region8: #{ir50_head.1} parent=1 // loop_exit
      _
    %9964 = vsyncpa [#allocation3], 1
    %s9965 = scalar_lea.sflag [#allocation3], 1
    %9966 = vsyncpa %s9965, 1
    %9967 = vsyncpa [#allocation6], 1
    %9968 = vsyncpa [#allocation9], 1
    %9969 = vsyncpa [#allocation12], 1
    %9970 = vsyncpa [#allocation4], 1
    %s9971 = scalar_lea.sflag [#allocation4], 1
    %9972 = vsyncpa %s9971, 1
    %9973 = vsyncpa [#allocation16], 1
    %9974 = vsyncpa [#allocation19], 1

</llo_original>
